<compile_context>
chip_gen: v6e
topology: v6e:2x2x1
jax: 0.10.0
libtpu: 0.0.40
codegen_flags: <defaults>
</compile_context>

<pallas_src>
import functools

import jax
import jax.numpy as jnp
from jax import lax
from jax.experimental import pallas as pl
from jax.experimental.pallas import tpu as pltpu

# ----------------- model hyper-parameters (small but consistent) -----------------
BATCH = 2
SEQ = 16            # T
HIDDEN = 32         # hidden_size (even, for the bidirectional GRU)
PROJ = 32           # projection_size
K = 8               # conv-bank size
NUM_HW_LAYERS = 4
NUM_GRU_LAYERS = 2
GRU_H = HIDDEN // 2
BN_EPS = 1e-5

PAD_L = K // 2              # universal left pad of the conv-bank scratch slab
PAD_R = K - 1 - PAD_L       # universal right pad

# GRU layer stacking (layer-0 input = PROJ, layer-1 input = 2*GRU_H) requires:
assert PROJ == HIDDEN == 2 * GRU_H


def _sigmoid(x):
    # 1 / (1 + e^-x); divide goes to the EUP via the approx reciprocal.
    return pl.reciprocal(1.0 + jnp.exp(-x), approx=True)


def _const_index_map(ndim):
    def imap(b):
        return (0,) * ndim
    return imap


# ============================ fully fused CBHG kernel ============================
def _cbhg_kernel(x_ref,          # (T, PROJ)
                 bank1_w_ref,    # (PROJ, HID)               conv k=1 (BN scale folded)
                 bank_w_ref,     # (K-1, K*HID, HID)         convs k=2..K, universal 8-tap frame
                 bank_b_ref,     # (K, 1, HID)               BN shift (conv bias folded)
                 p1_w_ref,       # (3*K*HID, HID)            BN scale folded
                 p1_b_ref,       # (1, HID)
                 p2_w_ref,       # (3*HID, PROJ)             BN scale folded
                 p2_b_ref,       # (1, PROJ)
                 hw_w_ref,       # (L_hw, PROJ, 2*PROJ)      [Wl | Wg]
                 hw_b_ref,       # (L_hw, 1, 2*PROJ)
                 gru_wih_ref,    # (L_gru, PROJ, 6*GH)       [fwd r|z|n , bwd r|z|n]
                 gru_bih_ref,    # (L_gru, 1, 6*GH)
                 gru_whh_ref,    # (L_gru, 2*GH, 3*GH)       rows: [Whh_fwd ; Whh_bwd]
                 gru_bhh_ref,    # (L_gru, 2, 3*GH)          rows: [bhh_fwd ; bhh_bwd]
                 o_ref,          # (T, HIDDEN)
                 pad_bank,       # scratch (T+K-1, HID)
                 pad_p1,         # scratch (T+2, K*HID)
                 pad_p2,         # scratch (T+2, HID)
                 fwd_buf,        # scratch (T, GH)
                 bwd_buf,        # scratch (T, GH)
                 *, T, n_hw, n_gru):
    f32 = jnp.float32
    GH = GRU_H

    x = x_ref[...].astype(f32)                              # (T, PROJ)

    # zero the padded conv slabs (margins stay zero; interiors are overwritten)
    pad_bank[...] = jnp.zeros_like(pad_bank)
    pad_p1[...] = jnp.zeros_like(pad_p1)
    pad_p2[...] = jnp.zeros_like(pad_p2)

    # ---------------- conv bank (chained) + BN + ReLU ----------------
    # conv k=1: pointwise matmul (BN scale pre-folded into the weight)
    y = jnp.maximum(jnp.dot(x, bank1_w_ref[...], preferred_element_type=f32)
                    + bank_b_ref[0], 0.0)
    bank_outs = [y]
    cur = y
    # convs k=2..K: one im2col matmul each (contraction depth K*HID = 256)
    for k in range(2, K + 1):
        pad_bank[PAD_L:PAD_L + T, :] = cur
        cols = jnp.concatenate([pad_bank[j:j + T, :] for j in range(K)], axis=-1)
        y = jnp.maximum(jnp.dot(cols, bank_w_ref[k - 2], preferred_element_type=f32)
                        + bank_b_ref[k - 1], 0.0)
        bank_outs.append(y)
        cur = y
    cat = jnp.concatenate(bank_outs, axis=-1)               # (T, K*HID)

    # ---------------- MaxPool1d(2, stride=1, pad=1)[:, :, :-1] ----------------
    # -inf left pad => pooled[0] = cat[0]; pooled[t] = max(cat[t-1], cat[t]).
    # Write the pooled result straight into the zero-padded proj-1 slab.
    pad_p1[1:2, :] = cat[0:1, :]
    pad_p1[2:T + 1, :] = jnp.maximum(cat[1:, :], cat[:-1, :])

    # ---------------- conv projection 1 (k=3) + BN + ReLU ----------------
    cols1 = jnp.concatenate(
        [pad_p1[0:T, :], pad_p1[1:T + 1, :], pad_p1[2:T + 2, :]], axis=-1)
    y1 = jnp.maximum(jnp.dot(cols1, p1_w_ref[...], preferred_element_type=f32)
                     + p1_b_ref[...], 0.0)                               # (T, HID)

    # ---------------- conv projection 2 (k=3) + BN + residual ----------------
    pad_p2[1:T + 1, :] = y1
    cols2 = jnp.concatenate(
        [pad_p2[0:T, :], pad_p2[1:T + 1, :], pad_p2[2:T + 2, :]], axis=-1)
    y2 = (jnp.dot(cols2, p2_w_ref[...], preferred_element_type=f32)
          + p2_b_ref[...] + x)                                           # (T, PROJ)

    # ---------------- highway (fused Wl|Wg per layer) ----------------
    out = y2
    for i in range(n_hw):
        z = jnp.dot(out, hw_w_ref[i], preferred_element_type=f32) + hw_b_ref[i]
        hlin = jnp.maximum(z[:, :PROJ], 0.0)
        tgate = _sigmoid(z[:, PROJ:])
        out = hlin * tgate + out * (1.0 - tgate)

    # ---------------- 2-layer bidirectional GRU ----------------
    # hidden state is (2, GH): row 0 = forward, row 1 = backward direction.
    # The recurrent matmul uses a block-diagonal (2, 2*GH) layout so one
    # (2,2GH)@(2GH,3GH) dot serves both directions.  Gate order (r, z, n).
    row_i = lax.broadcasted_iota(jnp.int32, (2, 2 * GH), 0)
    col_i = lax.broadcasted_iota(jnp.int32, (2, 2 * GH), 1)
    blk_mask = ((col_i >= GH) == (row_i == 1)).astype(f32)               # (2, 2*GH)

    seq = out                                                            # (T, PROJ)
    for layer in range(n_gru):
        # input projections for all timesteps: ONE matmul covers both directions
        xp = (jnp.dot(seq, gru_wih_ref[layer], preferred_element_type=f32)
              + gru_bih_ref[layer])                                      # (T, 6*GH)
        whh = gru_whh_ref[layer]                                         # (2*GH, 3*GH)
        bhh = gru_bhh_ref[layer]                                         # (2, 3*GH)

        h = jnp.zeros((2, GH), f32)
        for s in range(T):                                               # fully unrolled
            gi = jnp.concatenate(
                [xp[s:s + 1, :3 * GH],                                   # fwd gates @ t=s
                 xp[T - 1 - s:T - s, 3 * GH:]], axis=0)                  # bwd gates @ t=T-1-s
            h2 = jnp.concatenate([h, h], axis=-1) * blk_mask             # (2, 2*GH)
            hh = jnp.dot(h2, whh, preferred_element_type=f32) + bhh      # (2, 3*GH)
            r = _sigmoid(gi[:, :GH] + hh[:, :GH])
            zg = _sigmoid(gi[:, GH:2 * GH] + hh[:, GH:2 * GH])
            n = jnp.tanh(gi[:, 2 * GH:] + r * hh[:, 2 * GH:])
            h = (1.0 - zg) * n + zg * h
            fwd_buf[s:s + 1, :] = h[0:1, :]
            bwd_buf[T - 1 - s:T - s, :] = h[1:2, :]
        seq = jnp.concatenate([fwd_buf[...], bwd_buf[...]], axis=-1)     # (T, 2*GH)

    o_ref[...] = seq.astype(o_ref.dtype)


# ============================ parameters ============================
def init_params(key):
    keys = jax.random.split(key, 64)
    ki = iter(keys)

    def nrm(shape, s=0.1):
        return s * jax.random.normal(next(ki), shape, dtype=jnp.float32)

    bank = []
    cin = PROJ
    for k in range(1, K + 1):
        bank.append(dict(
            w=nrm((k, cin, HIDDEN)),            # torch Conv1d weight (Cout,Cin,k), transposed
            b=nrm((HIDDEN,)),
            gamma=1.0 + nrm((HIDDEN,)),
            beta=nrm((HIDDEN,)),
        ))
        cin = HIDDEN
    proj1 = dict(w=nrm((3, HIDDEN * K, HIDDEN)), b=nrm((HIDDEN,)),
                 gamma=1.0 + nrm((HIDDEN,)), beta=nrm((HIDDEN,)))
    proj2 = dict(w=nrm((3, HIDDEN, PROJ)), b=nrm((PROJ,)),
                 gamma=1.0 + nrm((PROJ,)), beta=nrm((PROJ,)))
    hw_wl = nrm((NUM_HW_LAYERS, PROJ, PROJ))    # torch Linear weight (out,in), transposed
    hw_bl = nrm((NUM_HW_LAYERS, 1, PROJ))
    hw_wg = nrm((NUM_HW_LAYERS, PROJ, PROJ))
    hw_bg = nrm((NUM_HW_LAYERS, 1, PROJ))
    gru = []
    din = PROJ
    for _layer in range(NUM_GRU_LAYERS):
        layer_p = {}
        for d in ("fwd", "bwd"):
            layer_p[d] = dict(
                wih=nrm((3, din, GRU_H)),       # (r,z,n) stacked; torch (3H,Din) transposed
                whh=nrm((3, GRU_H, GRU_H)),
                bih=nrm((3, 1, GRU_H)),
                bhh=nrm((3, 1, GRU_H)),
            )
        gru.append(layer_p)
        din = 2 * GRU_H
    return dict(bank=bank, proj1=proj1, proj2=proj2,
                hw_wl=hw_wl, hw_bl=hw_bl, hw_wg=hw_wg, hw_bg=hw_bg, gru=gru)


def _bn_fold(p):
    # eval-mode BN with fresh running stats (mean=0, var=1), conv bias folded in.
    scale = p["gamma"] / jnp.sqrt(1.0 + BN_EPS)
    shift = p["beta"] + scale * p["b"]
    return scale, shift


def pack_params(p):
    """Pre-stack weights into the MXU-friendly layouts the fused kernel expects.

    BN per-channel scales are folded into the conv weights; only shifts remain.
    """
    f32 = jnp.float32
    # --- conv bank ---
    s1, b1 = _bn_fold(p["bank"][0])
    bank1_w = p["bank"][0]["w"][0] * s1[None, :]         # (PROJ, HID), k=1
    uni = []
    shifts = [b1]
    for k in range(2, K + 1):
        w = p["bank"][k - 1]["w"]                        # (k, HID, HID)
        sk, bk = _bn_fold(p["bank"][k - 1])
        off = PAD_L - k // 2                             # tap offset in the 8-tap frame
        full = jnp.zeros((K, HIDDEN, HIDDEN), f32).at[off:off + k].set(w)
        uni.append((full * sk[None, None, :]).reshape(K * HIDDEN, HIDDEN))
        shifts.append(bk)
    bank_w = jnp.stack(uni, axis=0)                      # (K-1, K*HID, HID)
    bank_b = jnp.stack(shifts)[:, None, :]               # (K, 1, HID)
    # --- projection convs (k=3) ---
    p1_s, p1_b = _bn_fold(p["proj1"])
    p2_s, p2_b = _bn_fold(p["proj2"])
    p1_w = (p["proj1"]["w"] * p1_s[None, None, :]).reshape(3 * K * HIDDEN, HIDDEN)
    p2_w = (p["proj2"]["w"] * p2_s[None, None, :]).reshape(3 * HIDDEN, PROJ)
    # --- highway: fuse linear + gate weights ---
    hw_w = jnp.concatenate([p["hw_wl"], p["hw_wg"]], axis=-1)   # (L, PROJ, 2*PROJ)
    hw_b = jnp.concatenate([p["hw_bl"], p["hw_bg"]], axis=-1)   # (L, 1, 2*PROJ)
    # --- GRU: fused (r|z|n) gates; fwd/bwd input projections fused per layer ---
    wih, bih, whh, bhh = [], [], [], []
    for layer in range(NUM_GRU_LAYERS):
        gf, gb = p["gru"][layer]["fwd"], p["gru"][layer]["bwd"]
        wih_f = jnp.concatenate([gf["wih"][0], gf["wih"][1], gf["wih"][2]], axis=-1)
        wih_b = jnp.concatenate([gb["wih"][0], gb["wih"][1], gb["wih"][2]], axis=-1)
        wih.append(jnp.concatenate([wih_f, wih_b], axis=-1))                # (Din, 6*GH)
        bih_f = jnp.concatenate([gf["bih"][0], gf["bih"][1], gf["bih"][2]], axis=-1)
        bih_b = jnp.concatenate([gb["bih"][0], gb["bih"][1], gb["bih"][2]], axis=-1)
        bih.append(jnp.concatenate([bih_f, bih_b], axis=-1))                # (1, 6*GH)
        whh.append(jnp.concatenate(
            [jnp.concatenate([gf["whh"][0], gf["whh"][1], gf["whh"][2]], axis=-1),
             jnp.concatenate([gb["whh"][0], gb["whh"][1], gb["whh"][2]], axis=-1)], axis=0))
        bhh.append(jnp.concatenate(
            [jnp.concatenate([gf["bhh"][0], gf["bhh"][1], gf["bhh"][2]], axis=-1),
             jnp.concatenate([gb["bhh"][0], gb["bhh"][1], gb["bhh"][2]], axis=-1)], axis=0))
    gru_wih = jnp.stack(wih, axis=0)      # (L, Din, 6*GH)   (Din == PROJ == 2*GH)
    gru_bih = jnp.stack(bih, axis=0)      # (L, 1, 6*GH)
    gru_whh = jnp.stack(whh, axis=0)      # (L, 2*GH, 3*GH)
    gru_bhh = jnp.stack(bhh, axis=0)      # (L, 2, 3*GH)
    return (bank1_w, bank_w, bank_b,
            p1_w, p1_b[None, :], p2_w, p2_b[None, :],
            hw_w, hw_b, gru_wih, gru_bih, gru_whh, gru_bhh)


# ============================ full CBHG forward ============================
def cbhg_forward(x_bct, p):
    """x_bct: (B, PROJ, T) -- PyTorch NCW layout. Returns (B, T, HIDDEN)."""
    B, _, T = x_bct.shape
    x = jnp.transpose(x_bct, (0, 2, 1))                  # (B, T, PROJ) channel-last
    packed = pack_params(p)

    weight_specs = [pl.BlockSpec(w.shape, _const_index_map(w.ndim)) for w in packed]

    kernel = functools.partial(_cbhg_kernel, T=T, n_hw=NUM_HW_LAYERS,
                               n_gru=NUM_GRU_LAYERS)
    return pl.pallas_call(
        kernel,
        grid=(B,),
        in_specs=[pl.BlockSpec((None, T, PROJ), lambda b: (b, 0, 0))] + weight_specs,
        out_specs=pl.BlockSpec((None, T, HIDDEN), lambda b: (b, 0, 0)),
        out_shape=jax.ShapeDtypeStruct((B, T, HIDDEN), x.dtype),
        scratch_shapes=[
            pltpu.VMEM((T + K - 1, HIDDEN), jnp.float32),      # padded bank-conv slab
            pltpu.VMEM((T + 2, K * HIDDEN), jnp.float32),      # padded pooled slab (proj 1)
            pltpu.VMEM((T + 2, HIDDEN), jnp.float32),          # padded slab (proj 2)
            pltpu.VMEM((T, GRU_H), jnp.float32),               # GRU forward outputs
            pltpu.VMEM((T, GRU_H), jnp.float32),               # GRU backward outputs
        ],
        compiler_params=pltpu.CompilerParams(
            dimension_semantics=("parallel",)),   # batch shards across TCs on v7x
    )(x, *packed)


if __name__ == "__main__":
    root = jax.random.PRNGKey(0)
    pkey, xkey = jax.random.split(root)
    params = init_params(pkey)
    x = jax.random.normal(xkey, (BATCH, PROJ, SEQ), dtype=jnp.float32)   # torch NCW input

    out = jax.block_until_ready(cbhg_forward(x, params))

    assert out.shape == (BATCH, SEQ, HIDDEN), out.shape
    assert bool(jnp.all(jnp.isfinite(out)))
    print("KERNEL_OK")
</pallas_src>

<mosaic_0001>
module attributes {stable_mosaic.version = 11 : i64} {
  func.func @_cbhg_kernel(%arg0: i32, %arg1: memref<1x16x32xf32, #tpu.memory_space<vmem>>, %arg2: memref<32x32xf32, #tpu.memory_space<vmem>>, %arg3: memref<7x256x32xf32, #tpu.memory_space<vmem>>, %arg4: memref<8x1x32xf32, #tpu.memory_space<vmem>>, %arg5: memref<768x32xf32, #tpu.memory_space<vmem>>, %arg6: memref<1x32xf32, #tpu.memory_space<vmem>>, %arg7: memref<96x32xf32, #tpu.memory_space<vmem>>, %arg8: memref<1x32xf32, #tpu.memory_space<vmem>>, %arg9: memref<4x32x64xf32, #tpu.memory_space<vmem>>, %arg10: memref<4x1x64xf32, #tpu.memory_space<vmem>>, %arg11: memref<2x32x96xf32, #tpu.memory_space<vmem>>, %arg12: memref<2x1x96xf32, #tpu.memory_space<vmem>>, %arg13: memref<2x32x48xf32, #tpu.memory_space<vmem>>, %arg14: memref<2x2x48xf32, #tpu.memory_space<vmem>>, %arg15: memref<1x16x32xf32, #tpu.memory_space<vmem>>, %arg16: memref<23x32xf32, #tpu.memory_space<vmem>>, %arg17: memref<18x256xf32, #tpu.memory_space<vmem>>, %arg18: memref<18x32xf32, #tpu.memory_space<vmem>>, %arg19: memref<16x16xf32, #tpu.memory_space<vmem>>, %arg20: memref<16x16xf32, #tpu.memory_space<vmem>>) attributes {dimension_semantics = [#tpu.dimension_semantics<parallel>], iteration_bounds = array<i64: 2>, scalar_prefetch = 0 : i64, scratch_operands = 5 : i64, tpu.core_type = #tpu.core_type<tc>, window_params = [{transform_indices = @transform_0, window_bounds = array<i64: 1, 16, 32>}, {pipeline_mode = #tpu.pipeline_mode<synchronous>, transform_indices = @transform_1, window_bounds = array<i64: 32, 32>}, {pipeline_mode = #tpu.pipeline_mode<synchronous>, transform_indices = @transform_2, window_bounds = array<i64: 7, 256, 32>}, {pipeline_mode = #tpu.pipeline_mode<synchronous>, transform_indices = @transform_3, window_bounds = array<i64: 8, 1, 32>}, {pipeline_mode = #tpu.pipeline_mode<synchronous>, transform_indices = @transform_4, window_bounds = array<i64: 768, 32>}, {pipeline_mode = #tpu.pipeline_mode<synchronous>, transform_indices = @transform_5, window_bounds = array<i64: 1, 32>}, {pipeline_mode = #tpu.pipeline_mode<synchronous>, transform_indices = @transform_6, window_bounds = array<i64: 96, 32>}, {pipeline_mode = #tpu.pipeline_mode<synchronous>, transform_indices = @transform_7, window_bounds = array<i64: 1, 32>}, {pipeline_mode = #tpu.pipeline_mode<synchronous>, transform_indices = @transform_8, window_bounds = array<i64: 4, 32, 64>}, {pipeline_mode = #tpu.pipeline_mode<synchronous>, transform_indices = @transform_9, window_bounds = array<i64: 4, 1, 64>}, {pipeline_mode = #tpu.pipeline_mode<synchronous>, transform_indices = @transform_10, window_bounds = array<i64: 2, 32, 96>}, {pipeline_mode = #tpu.pipeline_mode<synchronous>, transform_indices = @transform_11, window_bounds = array<i64: 2, 1, 96>}, {pipeline_mode = #tpu.pipeline_mode<synchronous>, transform_indices = @transform_12, window_bounds = array<i64: 2, 32, 48>}, {pipeline_mode = #tpu.pipeline_mode<synchronous>, transform_indices = @transform_13, window_bounds = array<i64: 2, 2, 48>}, {transform_indices = @transform_14, window_bounds = array<i64: 1, 16, 32>}]} {
    %c0 = arith.constant 0 : index
    %c0_0 = arith.constant 0 : index
    %c0_1 = arith.constant 0 : index
    %0 = vector.load %arg1[%c0, %c0_0, %c0_1] : memref<1x16x32xf32, #tpu.memory_space<vmem>>, vector<1x16x32xf32>
    %1 = vector.shape_cast %0 : vector<1x16x32xf32> to vector<16x32xf32>
    %cst = arith.constant 0.000000e+00 : f32
    %2 = vector.broadcast %cst : f32 to vector<23x32xf32>
    %c0_2 = arith.constant 0 : index
    %c0_3 = arith.constant 0 : index
    %3 = vector.load %arg16[%c0_2, %c0_3] : memref<23x32xf32, #tpu.memory_space<vmem>>, vector<23x32xf32>
    tpu.vector_store %arg16[%c0_2, %c0_3], %2 {strides = array<i32>} : memref<23x32xf32, #tpu.memory_space<vmem>>, vector<23x32xf32>,
    %cst_4 = arith.constant 0.000000e+00 : f32
    %4 = vector.broadcast %cst_4 : f32 to vector<18x256xf32>
    %c0_5 = arith.constant 0 : index
    %c0_6 = arith.constant 0 : index
    %5 = vector.load %arg17[%c0_5, %c0_6] : memref<18x256xf32, #tpu.memory_space<vmem>>, vector<18x256xf32>
    tpu.vector_store %arg17[%c0_5, %c0_6], %4 {strides = array<i32>} : memref<18x256xf32, #tpu.memory_space<vmem>>, vector<18x256xf32>,
    %cst_7 = arith.constant 0.000000e+00 : f32
    %6 = vector.broadcast %cst_7 : f32 to vector<18x32xf32>
    %c0_8 = arith.constant 0 : index
    %c0_9 = arith.constant 0 : index
    %7 = vector.load %arg18[%c0_8, %c0_9] : memref<18x32xf32, #tpu.memory_space<vmem>>, vector<18x32xf32>
    tpu.vector_store %arg18[%c0_8, %c0_9], %6 {strides = array<i32>} : memref<18x32xf32, #tpu.memory_space<vmem>>, vector<18x32xf32>,
    %c0_10 = arith.constant 0 : index
    %c0_11 = arith.constant 0 : index
    %8 = vector.load %arg2[%c0_10, %c0_11] : memref<32x32xf32, #tpu.memory_space<vmem>>, vector<32x32xf32>
    %cst_12 = arith.constant dense<0.000000e+00> : vector<16x32xf32>
    %9 = tpu.matmul %1, %8, %cst_12 {dimension_numbers = #tpu.dot_dimension_numbers<[1], [0], [0], [1], [0, 0, 1, 1], [], []>} : vector<16x32xf32>, vector<32x32xf32>, vector<16x32xf32> -> vector<16x32xf32>
    %c0_13 = arith.constant 0 : index
    %c0_14 = arith.constant 0 : index
    %c0_15 = arith.constant 0 : index
    %10 = vector.load %arg4[%c0_13, %c0_14, %c0_15] : memref<8x1x32xf32, #tpu.memory_space<vmem>>, vector<1x1x32xf32>
    %11 = vector.shape_cast %10 : vector<1x1x32xf32> to vector<1x32xf32>
    %12 = vector.broadcast %11 : vector<1x32xf32> to vector<16x32xf32>
    %13 = arith.addf %9, %12 : vector<16x32xf32>
    %cst_16 = arith.constant 0.000000e+00 : f32
    %14 = vector.broadcast %cst_16 : f32 to vector<16x32xf32>
    %15 = arith.maximumf %13, %14 : vector<16x32xf32>
    %c4 = arith.constant 4 : index
    %c0_17 = arith.constant 0 : index
    %16 = vector.load %arg16[%c4, %c0_17] : memref<23x32xf32, #tpu.memory_space<vmem>>, vector<16x32xf32>
    tpu.vector_store %arg16[%c4, %c0_17], %15 {strides = array<i32>} : memref<23x32xf32, #tpu.memory_space<vmem>>, vector<16x32xf32>,
    %c0_18 = arith.constant 0 : index
    %c0_19 = arith.constant 0 : index
    %17 = vector.load %arg16[%c0_18, %c0_19] : memref<23x32xf32, #tpu.memory_space<vmem>>, vector<16x32xf32>
    %c1 = arith.constant 1 : index
    %c0_20 = arith.constant 0 : index
    %18 = vector.load %arg16[%c1, %c0_20] : memref<23x32xf32, #tpu.memory_space<vmem>>, vector<16x32xf32>
    %c2 = arith.constant 2 : index
    %c0_21 = arith.constant 0 : index
    %19 = vector.load %arg16[%c2, %c0_21] : memref<23x32xf32, #tpu.memory_space<vmem>>, vector<16x32xf32>
    %c3 = arith.constant 3 : index
    %c0_22 = arith.constant 0 : index
    %20 = vector.load %arg16[%c3, %c0_22] : memref<23x32xf32, #tpu.memory_space<vmem>>, vector<16x32xf32>
    %c4_23 = arith.constant 4 : index
    %c0_24 = arith.constant 0 : index
    %21 = vector.load %arg16[%c4_23, %c0_24] : memref<23x32xf32, #tpu.memory_space<vmem>>, vector<16x32xf32>
    %c5 = arith.constant 5 : index
    %c0_25 = arith.constant 0 : index
    %22 = vector.load %arg16[%c5, %c0_25] : memref<23x32xf32, #tpu.memory_space<vmem>>, vector<16x32xf32>
    %c6 = arith.constant 6 : index
    %c0_26 = arith.constant 0 : index
    %23 = vector.load %arg16[%c6, %c0_26] : memref<23x32xf32, #tpu.memory_space<vmem>>, vector<16x32xf32>
    %c7 = arith.constant 7 : index
    %c0_27 = arith.constant 0 : index
    %24 = vector.load %arg16[%c7, %c0_27] : memref<23x32xf32, #tpu.memory_space<vmem>>, vector<16x32xf32>
    %25 = tpu.concatenate %17, %18, %19, %20, %21, %22, %23, %24 in 1 : vector<16x32xf32>, vector<16x32xf32>, vector<16x32xf32>, vector<16x32xf32>, vector<16x32xf32>, vector<16x32xf32>, vector<16x32xf32>, vector<16x32xf32> -> vector<16x256xf32>
    %c0_28 = arith.constant 0 : index
    %c0_29 = arith.constant 0 : index
    %c0_30 = arith.constant 0 : index
    %26 = vector.load %arg3[%c0_28, %c0_29, %c0_30] : memref<7x256x32xf32, #tpu.memory_space<vmem>>, vector<1x256x32xf32>
    %27 = vector.shape_cast %26 : vector<1x256x32xf32> to vector<256x32xf32>
    %cst_31 = arith.constant dense<0.000000e+00> : vector<16x32xf32>
    %28 = tpu.matmul %25, %27, %cst_31 {dimension_numbers = #tpu.dot_dimension_numbers<[1], [0], [0], [1], [0, 0, 1, 1], [], []>} : vector<16x256xf32>, vector<256x32xf32>, vector<16x32xf32> -> vector<16x32xf32>
    %c1_32 = arith.constant 1 : index
    %c0_33 = arith.constant 0 : index
    %c0_34 = arith.constant 0 : index
    %29 = vector.load %arg4[%c1_32, %c0_33, %c0_34] : memref<8x1x32xf32, #tpu.memory_space<vmem>>, vector<1x1x32xf32>
    %30 = vector.shape_cast %29 : vector<1x1x32xf32> to vector<1x32xf32>
    %31 = vector.broadcast %30 : vector<1x32xf32> to vector<16x32xf32>
    %32 = arith.addf %28, %31 : vector<16x32xf32>
    %cst_35 = arith.constant 0.000000e+00 : f32
    %33 = vector.broadcast %cst_35 : f32 to vector<16x32xf32>
    %34 = arith.maximumf %32, %33 : vector<16x32xf32>
    %c4_36 = arith.constant 4 : index
    %c0_37 = arith.constant 0 : index
    %35 = vector.load %arg16[%c4_36, %c0_37] : memref<23x32xf32, #tpu.memory_space<vmem>>, vector<16x32xf32>
    tpu.vector_store %arg16[%c4_36, %c0_37], %34 {strides = array<i32>} : memref<23x32xf32, #tpu.memory_space<vmem>>, vector<16x32xf32>,
    %c0_38 = arith.constant 0 : index
    %c0_39 = arith.constant 0 : index
    %36 = vector.load %arg16[%c0_38, %c0_39] : memref<23x32xf32, #tpu.memory_space<vmem>>, vector<16x32xf32>
    %c1_40 = arith.constant 1 : index
    %c0_41 = arith.constant 0 : index
    %37 = vector.load %arg16[%c1_40, %c0_41] : memref<23x32xf32, #tpu.memory_space<vmem>>, vector<16x32xf32>
    %c2_42 = arith.constant 2 : index
    %c0_43 = arith.constant 0 : index
    %38 = vector.load %arg16[%c2_42, %c0_43] : memref<23x32xf32, #tpu.memory_space<vmem>>, vector<16x32xf32>
    %c3_44 = arith.constant 3 : index
    %c0_45 = arith.constant 0 : index
    %39 = vector.load %arg16[%c3_44, %c0_45] : memref<23x32xf32, #tpu.memory_space<vmem>>, vector<16x32xf32>
    %c4_46 = arith.constant 4 : index
    %c0_47 = arith.constant 0 : index
    %40 = vector.load %arg16[%c4_46, %c0_47] : memref<23x32xf32, #tpu.memory_space<vmem>>, vector<16x32xf32>
    %c5_48 = arith.constant 5 : index
    %c0_49 = arith.constant 0 : index
    %41 = vector.load %arg16[%c5_48, %c0_49] : memref<23x32xf32, #tpu.memory_space<vmem>>, vector<16x32xf32>
    %c6_50 = arith.constant 6 : index
    %c0_51 = arith.constant 0 : index
    %42 = vector.load %arg16[%c6_50, %c0_51] : memref<23x32xf32, #tpu.memory_space<vmem>>, vector<16x32xf32>
    %c7_52 = arith.constant 7 : index
    %c0_53 = arith.constant 0 : index
    %43 = vector.load %arg16[%c7_52, %c0_53] : memref<23x32xf32, #tpu.memory_space<vmem>>, vector<16x32xf32>
    %44 = tpu.concatenate %36, %37, %38, %39, %40, %41, %42, %43 in 1 : vector<16x32xf32>, vector<16x32xf32>, vector<16x32xf32>, vector<16x32xf32>, vector<16x32xf32>, vector<16x32xf32>, vector<16x32xf32>, vector<16x32xf32> -> vector<16x256xf32>
    %c1_54 = arith.constant 1 : index
    %c0_55 = arith.constant 0 : index
    %c0_56 = arith.constant 0 : index
    %45 = vector.load %arg3[%c1_54, %c0_55, %c0_56] : memref<7x256x32xf32, #tpu.memory_space<vmem>>, vector<1x256x32xf32>
    %46 = vector.shape_cast %45 : vector<1x256x32xf32> to vector<256x32xf32>
    %cst_57 = arith.constant dense<0.000000e+00> : vector<16x32xf32>
    %47 = tpu.matmul %44, %46, %cst_57 {dimension_numbers = #tpu.dot_dimension_numbers<[1], [0], [0], [1], [0, 0, 1, 1], [], []>} : vector<16x256xf32>, vector<256x32xf32>, vector<16x32xf32> -> vector<16x32xf32>
    %c2_58 = arith.constant 2 : index
    %c0_59 = arith.constant 0 : index
    %c0_60 = arith.constant 0 : index
    %48 = vector.load %arg4[%c2_58, %c0_59, %c0_60] : memref<8x1x32xf32, #tpu.memory_space<vmem>>, vector<1x1x32xf32>
    %49 = vector.shape_cast %48 : vector<1x1x32xf32> to vector<1x32xf32>
    %50 = vector.broadcast %49 : vector<1x32xf32> to vector<16x32xf32>
    %51 = arith.addf %47, %50 : vector<16x32xf32>
    %cst_61 = arith.constant 0.000000e+00 : f32
    %52 = vector.broadcast %cst_61 : f32 to vector<16x32xf32>
    %53 = arith.maximumf %51, %52 : vector<16x32xf32>
    %c4_62 = arith.constant 4 : index
    %c0_63 = arith.constant 0 : index
    %54 = vector.load %arg16[%c4_62, %c0_63] : memref<23x32xf32, #tpu.memory_space<vmem>>, vector<16x32xf32>
    tpu.vector_store %arg16[%c4_62, %c0_63], %53 {strides = array<i32>} : memref<23x32xf32, #tpu.memory_space<vmem>>, vector<16x32xf32>,
    %c0_64 = arith.constant 0 : index
    %c0_65 = arith.constant 0 : index
    %55 = vector.load %arg16[%c0_64, %c0_65] : memref<23x32xf32, #tpu.memory_space<vmem>>, vector<16x32xf32>
    %c1_66 = arith.constant 1 : index
    %c0_67 = arith.constant 0 : index
    %56 = vector.load %arg16[%c1_66, %c0_67] : memref<23x32xf32, #tpu.memory_space<vmem>>, vector<16x32xf32>
    %c2_68 = arith.constant 2 : index
    %c0_69 = arith.constant 0 : index
    %57 = vector.load %arg16[%c2_68, %c0_69] : memref<23x32xf32, #tpu.memory_space<vmem>>, vector<16x32xf32>
    %c3_70 = arith.constant 3 : index
    %c0_71 = arith.constant 0 : index
    %58 = vector.load %arg16[%c3_70, %c0_71] : memref<23x32xf32, #tpu.memory_space<vmem>>, vector<16x32xf32>
    %c4_72 = arith.constant 4 : index
    %c0_73 = arith.constant 0 : index
    %59 = vector.load %arg16[%c4_72, %c0_73] : memref<23x32xf32, #tpu.memory_space<vmem>>, vector<16x32xf32>
    %c5_74 = arith.constant 5 : index
    %c0_75 = arith.constant 0 : index
    %60 = vector.load %arg16[%c5_74, %c0_75] : memref<23x32xf32, #tpu.memory_space<vmem>>, vector<16x32xf32>
    %c6_76 = arith.constant 6 : index
    %c0_77 = arith.constant 0 : index
    %61 = vector.load %arg16[%c6_76, %c0_77] : memref<23x32xf32, #tpu.memory_space<vmem>>, vector<16x32xf32>
    %c7_78 = arith.constant 7 : index
    %c0_79 = arith.constant 0 : index
    %62 = vector.load %arg16[%c7_78, %c0_79] : memref<23x32xf32, #tpu.memory_space<vmem>>, vector<16x32xf32>
    %63 = tpu.concatenate %55, %56, %57, %58, %59, %60, %61, %62 in 1 : vector<16x32xf32>, vector<16x32xf32>, vector<16x32xf32>, vector<16x32xf32>, vector<16x32xf32>, vector<16x32xf32>, vector<16x32xf32>, vector<16x32xf32> -> vector<16x256xf32>
    %c2_80 = arith.constant 2 : index
    %c0_81 = arith.constant 0 : index
    %c0_82 = arith.constant 0 : index
    %64 = vector.load %arg3[%c2_80, %c0_81, %c0_82] : memref<7x256x32xf32, #tpu.memory_space<vmem>>, vector<1x256x32xf32>
    %65 = vector.shape_cast %64 : vector<1x256x32xf32> to vector<256x32xf32>
    %cst_83 = arith.constant dense<0.000000e+00> : vector<16x32xf32>
    %66 = tpu.matmul %63, %65, %cst_83 {dimension_numbers = #tpu.dot_dimension_numbers<[1], [0], [0], [1], [0, 0, 1, 1], [], []>} : vector<16x256xf32>, vector<256x32xf32>, vector<16x32xf32> -> vector<16x32xf32>
    %c3_84 = arith.constant 3 : index
    %c0_85 = arith.constant 0 : index
    %c0_86 = arith.constant 0 : index
    %67 = vector.load %arg4[%c3_84, %c0_85, %c0_86] : memref<8x1x32xf32, #tpu.memory_space<vmem>>, vector<1x1x32xf32>
    %68 = vector.shape_cast %67 : vector<1x1x32xf32> to vector<1x32xf32>
    %69 = vector.broadcast %68 : vector<1x32xf32> to vector<16x32xf32>
    %70 = arith.addf %66, %69 : vector<16x32xf32>
    %cst_87 = arith.constant 0.000000e+00 : f32
    %71 = vector.broadcast %cst_87 : f32 to vector<16x32xf32>
    %72 = arith.maximumf %70, %71 : vector<16x32xf32>
    %c4_88 = arith.constant 4 : index
    %c0_89 = arith.constant 0 : index
    %73 = vector.load %arg16[%c4_88, %c0_89] : memref<23x32xf32, #tpu.memory_space<vmem>>, vector<16x32xf32>
    tpu.vector_store %arg16[%c4_88, %c0_89], %72 {strides = array<i32>} : memref<23x32xf32, #tpu.memory_space<vmem>>, vector<16x32xf32>,
    %c0_90 = arith.constant 0 : index
    %c0_91 = arith.constant 0 : index
    %74 = vector.load %arg16[%c0_90, %c0_91] : memref<23x32xf32, #tpu.memory_space<vmem>>, vector<16x32xf32>
    %c1_92 = arith.constant 1 : index
    %c0_93 = arith.constant 0 : index
    %75 = vector.load %arg16[%c1_92, %c0_93] : memref<23x32xf32, #tpu.memory_space<vmem>>, vector<16x32xf32>
    %c2_94 = arith.constant 2 : index
    %c0_95 = arith.constant 0 : index
    %76 = vector.load %arg16[%c2_94, %c0_95] : memref<23x32xf32, #tpu.memory_space<vmem>>, vector<16x32xf32>
    %c3_96 = arith.constant 3 : index
    %c0_97 = arith.constant 0 : index
    %77 = vector.load %arg16[%c3_96, %c0_97] : memref<23x32xf32, #tpu.memory_space<vmem>>, vector<16x32xf32>
    %c4_98 = arith.constant 4 : index
    %c0_99 = arith.constant 0 : index
    %78 = vector.load %arg16[%c4_98, %c0_99] : memref<23x32xf32, #tpu.memory_space<vmem>>, vector<16x32xf32>
    %c5_100 = arith.constant 5 : index
    %c0_101 = arith.constant 0 : index
    %79 = vector.load %arg16[%c5_100, %c0_101] : memref<23x32xf32, #tpu.memory_space<vmem>>, vector<16x32xf32>
    %c6_102 = arith.constant 6 : index
    %c0_103 = arith.constant 0 : index
    %80 = vector.load %arg16[%c6_102, %c0_103] : memref<23x32xf32, #tpu.memory_space<vmem>>, vector<16x32xf32>
    %c7_104 = arith.constant 7 : index
    %c0_105 = arith.constant 0 : index
    %81 = vector.load %arg16[%c7_104, %c0_105] : memref<23x32xf32, #tpu.memory_space<vmem>>, vector<16x32xf32>
    %82 = tpu.concatenate %74, %75, %76, %77, %78, %79, %80, %81 in 1 : vector<16x32xf32>, vector<16x32xf32>, vector<16x32xf32>, vector<16x32xf32>, vector<16x32xf32>, vector<16x32xf32>, vector<16x32xf32>, vector<16x32xf32> -> vector<16x256xf32>
    %c3_106 = arith.constant 3 : index
    %c0_107 = arith.constant 0 : index
    %c0_108 = arith.constant 0 : index
    %83 = vector.load %arg3[%c3_106, %c0_107, %c0_108] : memref<7x256x32xf32, #tpu.memory_space<vmem>>, vector<1x256x32xf32>
    %84 = vector.shape_cast %83 : vector<1x256x32xf32> to vector<256x32xf32>
    %cst_109 = arith.constant dense<0.000000e+00> : vector<16x32xf32>
    %85 = tpu.matmul %82, %84, %cst_109 {dimension_numbers = #tpu.dot_dimension_numbers<[1], [0], [0], [1], [0, 0, 1, 1], [], []>} : vector<16x256xf32>, vector<256x32xf32>, vector<16x32xf32> -> vector<16x32xf32>
    %c4_110 = arith.constant 4 : index
    %c0_111 = arith.constant 0 : index
    %c0_112 = arith.constant 0 : index
    %86 = vector.load %arg4[%c4_110, %c0_111, %c0_112] : memref<8x1x32xf32, #tpu.memory_space<vmem>>, vector<1x1x32xf32>
    %87 = vector.shape_cast %86 : vector<1x1x32xf32> to vector<1x32xf32>
    %88 = vector.broadcast %87 : vector<1x32xf32> to vector<16x32xf32>
    %89 = arith.addf %85, %88 : vector<16x32xf32>
    %cst_113 = arith.constant 0.000000e+00 : f32
    %90 = vector.broadcast %cst_113 : f32 to vector<16x32xf32>
    %91 = arith.maximumf %89, %90 : vector<16x32xf32>
    %c4_114 = arith.constant 4 : index
    %c0_115 = arith.constant 0 : index
    %92 = vector.load %arg16[%c4_114, %c0_115] : memref<23x32xf32, #tpu.memory_space<vmem>>, vector<16x32xf32>
    tpu.vector_store %arg16[%c4_114, %c0_115], %91 {strides = array<i32>} : memref<23x32xf32, #tpu.memory_space<vmem>>, vector<16x32xf32>,
    %c0_116 = arith.constant 0 : index
    %c0_117 = arith.constant 0 : index
    %93 = vector.load %arg16[%c0_116, %c0_117] : memref<23x32xf32, #tpu.memory_space<vmem>>, vector<16x32xf32>
    %c1_118 = arith.constant 1 : index
    %c0_119 = arith.constant 0 : index
    %94 = vector.load %arg16[%c1_118, %c0_119] : memref<23x32xf32, #tpu.memory_space<vmem>>, vector<16x32xf32>
    %c2_120 = arith.constant 2 : index
    %c0_121 = arith.constant 0 : index
    %95 = vector.load %arg16[%c2_120, %c0_121] : memref<23x32xf32, #tpu.memory_space<vmem>>, vector<16x32xf32>
    %c3_122 = arith.constant 3 : index
    %c0_123 = arith.constant 0 : index
    %96 = vector.load %arg16[%c3_122, %c0_123] : memref<23x32xf32, #tpu.memory_space<vmem>>, vector<16x32xf32>
    %c4_124 = arith.constant 4 : index
    %c0_125 = arith.constant 0 : index
    %97 = vector.load %arg16[%c4_124, %c0_125] : memref<23x32xf32, #tpu.memory_space<vmem>>, vector<16x32xf32>
    %c5_126 = arith.constant 5 : index
    %c0_127 = arith.constant 0 : index
    %98 = vector.load %arg16[%c5_126, %c0_127] : memref<23x32xf32, #tpu.memory_space<vmem>>, vector<16x32xf32>
    %c6_128 = arith.constant 6 : index
    %c0_129 = arith.constant 0 : index
    %99 = vector.load %arg16[%c6_128, %c0_129] : memref<23x32xf32, #tpu.memory_space<vmem>>, vector<16x32xf32>
    %c7_130 = arith.constant 7 : index
    %c0_131 = arith.constant 0 : index
    %100 = vector.load %arg16[%c7_130, %c0_131] : memref<23x32xf32, #tpu.memory_space<vmem>>, vector<16x32xf32>
    %101 = tpu.concatenate %93, %94, %95, %96, %97, %98, %99, %100 in 1 : vector<16x32xf32>, vector<16x32xf32>, vector<16x32xf32>, vector<16x32xf32>, vector<16x32xf32>, vector<16x32xf32>, vector<16x32xf32>, vector<16x32xf32> -> vector<16x256xf32>
    %c4_132 = arith.constant 4 : index
    %c0_133 = arith.constant 0 : index
    %c0_134 = arith.constant 0 : index
    %102 = vector.load %arg3[%c4_132, %c0_133, %c0_134] : memref<7x256x32xf32, #tpu.memory_space<vmem>>, vector<1x256x32xf32>
    %103 = vector.shape_cast %102 : vector<1x256x32xf32> to vector<256x32xf32>
    %cst_135 = arith.constant dense<0.000000e+00> : vector<16x32xf32>
    %104 = tpu.matmul %101, %103, %cst_135 {dimension_numbers = #tpu.dot_dimension_numbers<[1], [0], [0], [1], [0, 0, 1, 1], [], []>} : vector<16x256xf32>, vector<256x32xf32>, vector<16x32xf32> -> vector<16x32xf32>
    %c5_136 = arith.constant 5 : index
    %c0_137 = arith.constant 0 : index
    %c0_138 = arith.constant 0 : index
    %105 = vector.load %arg4[%c5_136, %c0_137, %c0_138] : memref<8x1x32xf32, #tpu.memory_space<vmem>>, vector<1x1x32xf32>
    %106 = vector.shape_cast %105 : vector<1x1x32xf32> to vector<1x32xf32>
    %107 = vector.broadcast %106 : vector<1x32xf32> to vector<16x32xf32>
    %108 = arith.addf %104, %107 : vector<16x32xf32>
    %cst_139 = arith.constant 0.000000e+00 : f32
    %109 = vector.broadcast %cst_139 : f32 to vector<16x32xf32>
    %110 = arith.maximumf %108, %109 : vector<16x32xf32>
    %c4_140 = arith.constant 4 : index
    %c0_141 = arith.constant 0 : index
    %111 = vector.load %arg16[%c4_140, %c0_141] : memref<23x32xf32, #tpu.memory_space<vmem>>, vector<16x32xf32>
    tpu.vector_store %arg16[%c4_140, %c0_141], %110 {strides = array<i32>} : memref<23x32xf32, #tpu.memory_space<vmem>>, vector<16x32xf32>,
    %c0_142 = arith.constant 0 : index
    %c0_143 = arith.constant 0 : index
    %112 = vector.load %arg16[%c0_142, %c0_143] : memref<23x32xf32, #tpu.memory_space<vmem>>, vector<16x32xf32>
    %c1_144 = arith.constant 1 : index
    %c0_145 = arith.constant 0 : index
    %113 = vector.load %arg16[%c1_144, %c0_145] : memref<23x32xf32, #tpu.memory_space<vmem>>, vector<16x32xf32>
    %c2_146 = arith.constant 2 : index
    %c0_147 = arith.constant 0 : index
    %114 = vector.load %arg16[%c2_146, %c0_147] : memref<23x32xf32, #tpu.memory_space<vmem>>, vector<16x32xf32>
    %c3_148 = arith.constant 3 : index
    %c0_149 = arith.constant 0 : index
    %115 = vector.load %arg16[%c3_148, %c0_149] : memref<23x32xf32, #tpu.memory_space<vmem>>, vector<16x32xf32>
    %c4_150 = arith.constant 4 : index
    %c0_151 = arith.constant 0 : index
    %116 = vector.load %arg16[%c4_150, %c0_151] : memref<23x32xf32, #tpu.memory_space<vmem>>, vector<16x32xf32>
    %c5_152 = arith.constant 5 : index
    %c0_153 = arith.constant 0 : index
    %117 = vector.load %arg16[%c5_152, %c0_153] : memref<23x32xf32, #tpu.memory_space<vmem>>, vector<16x32xf32>
    %c6_154 = arith.constant 6 : index
    %c0_155 = arith.constant 0 : index
    %118 = vector.load %arg16[%c6_154, %c0_155] : memref<23x32xf32, #tpu.memory_space<vmem>>, vector<16x32xf32>
    %c7_156 = arith.constant 7 : index
    %c0_157 = arith.constant 0 : index
    %119 = vector.load %arg16[%c7_156, %c0_157] : memref<23x32xf32, #tpu.memory_space<vmem>>, vector<16x32xf32>
    %120 = tpu.concatenate %112, %113, %114, %115, %116, %117, %118, %119 in 1 : vector<16x32xf32>, vector<16x32xf32>, vector<16x32xf32>, vector<16x32xf32>, vector<16x32xf32>, vector<16x32xf32>, vector<16x32xf32>, vector<16x32xf32> -> vector<16x256xf32>
    %c5_158 = arith.constant 5 : index
    %c0_159 = arith.constant 0 : index
    %c0_160 = arith.constant 0 : index
    %121 = vector.load %arg3[%c5_158, %c0_159, %c0_160] : memref<7x256x32xf32, #tpu.memory_space<vmem>>, vector<1x256x32xf32>
    %122 = vector.shape_cast %121 : vector<1x256x32xf32> to vector<256x32xf32>
    %cst_161 = arith.constant dense<0.000000e+00> : vector<16x32xf32>
    %123 = tpu.matmul %120, %122, %cst_161 {dimension_numbers = #tpu.dot_dimension_numbers<[1], [0], [0], [1], [0, 0, 1, 1], [], []>} : vector<16x256xf32>, vector<256x32xf32>, vector<16x32xf32> -> vector<16x32xf32>
    %c6_162 = arith.constant 6 : index
    %c0_163 = arith.constant 0 : index
    %c0_164 = arith.constant 0 : index
    %124 = vector.load %arg4[%c6_162, %c0_163, %c0_164] : memref<8x1x32xf32, #tpu.memory_space<vmem>>, vector<1x1x32xf32>
    %125 = vector.shape_cast %124 : vector<1x1x32xf32> to vector<1x32xf32>
    %126 = vector.broadcast %125 : vector<1x32xf32> to vector<16x32xf32>
    %127 = arith.addf %123, %126 : vector<16x32xf32>
    %cst_165 = arith.constant 0.000000e+00 : f32
    %128 = vector.broadcast %cst_165 : f32 to vector<16x32xf32>
    %129 = arith.maximumf %127, %128 : vector<16x32xf32>
    %c4_166 = arith.constant 4 : index
    %c0_167 = arith.constant 0 : index
    %130 = vector.load %arg16[%c4_166, %c0_167] : memref<23x32xf32, #tpu.memory_space<vmem>>, vector<16x32xf32>
    tpu.vector_store %arg16[%c4_166, %c0_167], %129 {strides = array<i32>} : memref<23x32xf32, #tpu.memory_space<vmem>>, vector<16x32xf32>,
    %c0_168 = arith.constant 0 : index
    %c0_169 = arith.constant 0 : index
    %131 = vector.load %arg16[%c0_168, %c0_169] : memref<23x32xf32, #tpu.memory_space<vmem>>, vector<16x32xf32>
    %c1_170 = arith.constant 1 : index
    %c0_171 = arith.constant 0 : index
    %132 = vector.load %arg16[%c1_170, %c0_171] : memref<23x32xf32, #tpu.memory_space<vmem>>, vector<16x32xf32>
    %c2_172 = arith.constant 2 : index
    %c0_173 = arith.constant 0 : index
    %133 = vector.load %arg16[%c2_172, %c0_173] : memref<23x32xf32, #tpu.memory_space<vmem>>, vector<16x32xf32>
    %c3_174 = arith.constant 3 : index
    %c0_175 = arith.constant 0 : index
    %134 = vector.load %arg16[%c3_174, %c0_175] : memref<23x32xf32, #tpu.memory_space<vmem>>, vector<16x32xf32>
    %c4_176 = arith.constant 4 : index
    %c0_177 = arith.constant 0 : index
    %135 = vector.load %arg16[%c4_176, %c0_177] : memref<23x32xf32, #tpu.memory_space<vmem>>, vector<16x32xf32>
    %c5_178 = arith.constant 5 : index
    %c0_179 = arith.constant 0 : index
    %136 = vector.load %arg16[%c5_178, %c0_179] : memref<23x32xf32, #tpu.memory_space<vmem>>, vector<16x32xf32>
    %c6_180 = arith.constant 6 : index
    %c0_181 = arith.constant 0 : index
    %137 = vector.load %arg16[%c6_180, %c0_181] : memref<23x32xf32, #tpu.memory_space<vmem>>, vector<16x32xf32>
    %c7_182 = arith.constant 7 : index
    %c0_183 = arith.constant 0 : index
    %138 = vector.load %arg16[%c7_182, %c0_183] : memref<23x32xf32, #tpu.memory_space<vmem>>, vector<16x32xf32>
    %139 = tpu.concatenate %131, %132, %133, %134, %135, %136, %137, %138 in 1 : vector<16x32xf32>, vector<16x32xf32>, vector<16x32xf32>, vector<16x32xf32>, vector<16x32xf32>, vector<16x32xf32>, vector<16x32xf32>, vector<16x32xf32> -> vector<16x256xf32>
    %c6_184 = arith.constant 6 : index
    %c0_185 = arith.constant 0 : index
    %c0_186 = arith.constant 0 : index
    %140 = vector.load %arg3[%c6_184, %c0_185, %c0_186] : memref<7x256x32xf32, #tpu.memory_space<vmem>>, vector<1x256x32xf32>
    %141 = vector.shape_cast %140 : vector<1x256x32xf32> to vector<256x32xf32>
    %cst_187 = arith.constant dense<0.000000e+00> : vector<16x32xf32>
    %142 = tpu.matmul %139, %141, %cst_187 {dimension_numbers = #tpu.dot_dimension_numbers<[1], [0], [0], [1], [0, 0, 1, 1], [], []>} : vector<16x256xf32>, vector<256x32xf32>, vector<16x32xf32> -> vector<16x32xf32>
    %c7_188 = arith.constant 7 : index
    %c0_189 = arith.constant 0 : index
    %c0_190 = arith.constant 0 : index
    %143 = vector.load %arg4[%c7_188, %c0_189, %c0_190] : memref<8x1x32xf32, #tpu.memory_space<vmem>>, vector<1x1x32xf32>
    %144 = vector.shape_cast %143 : vector<1x1x32xf32> to vector<1x32xf32>
    %145 = vector.broadcast %144 : vector<1x32xf32> to vector<16x32xf32>
    %146 = arith.addf %142, %145 : vector<16x32xf32>
    %cst_191 = arith.constant 0.000000e+00 : f32
    %147 = vector.broadcast %cst_191 : f32 to vector<16x32xf32>
    %148 = arith.maximumf %146, %147 : vector<16x32xf32>
    %149 = tpu.concatenate %15, %34, %53, %72, %91, %110, %129, %148 in 1 : vector<16x32xf32>, vector<16x32xf32>, vector<16x32xf32>, vector<16x32xf32>, vector<16x32xf32>, vector<16x32xf32>, vector<16x32xf32>, vector<16x32xf32> -> vector<16x256xf32>
    %150 = vector.extract_strided_slice %149 {offsets = [0, 0], sizes = [1, 256], strides = [1, 1]} : vector<16x256xf32> to vector<1x256xf32>
    %c1_192 = arith.constant 1 : index
    %c0_193 = arith.constant 0 : index
    %151 = vector.load %arg17[%c1_192, %c0_193] : memref<18x256xf32, #tpu.memory_space<vmem>>, vector<1x256xf32>
    tpu.vector_store %arg17[%c1_192, %c0_193], %150 {strides = array<i32>} : memref<18x256xf32, #tpu.memory_space<vmem>>, vector<1x256xf32>,
    %152 = vector.extract_strided_slice %149 {offsets = [1, 0], sizes = [15, 256], strides = [1, 1]} : vector<16x256xf32> to vector<15x256xf32>
    %153 = vector.extract_strided_slice %149 {offsets = [0, 0], sizes = [15, 256], strides = [1, 1]} : vector<16x256xf32> to vector<15x256xf32>
    %154 = arith.maximumf %152, %153 : vector<15x256xf32>
    %c2_194 = arith.constant 2 : index
    %c0_195 = arith.constant 0 : index
    %155 = vector.load %arg17[%c2_194, %c0_195] : memref<18x256xf32, #tpu.memory_space<vmem>>, vector<15x256xf32>
    tpu.vector_store %arg17[%c2_194, %c0_195], %154 {strides = array<i32>} : memref<18x256xf32, #tpu.memory_space<vmem>>, vector<15x256xf32>,
    %c0_196 = arith.constant 0 : index
    %c0_197 = arith.constant 0 : index
    %156 = vector.load %arg17[%c0_196, %c0_197] : memref<18x256xf32, #tpu.memory_space<vmem>>, vector<16x256xf32>
    %c1_198 = arith.constant 1 : index
    %c0_199 = arith.constant 0 : index
    %157 = vector.load %arg17[%c1_198, %c0_199] : memref<18x256xf32, #tpu.memory_space<vmem>>, vector<16x256xf32>
    %c2_200 = arith.constant 2 : index
    %c0_201 = arith.constant 0 : index
    %158 = vector.load %arg17[%c2_200, %c0_201] : memref<18x256xf32, #tpu.memory_space<vmem>>, vector<16x256xf32>
    %159 = tpu.concatenate %156, %157, %158 in 1 : vector<16x256xf32>, vector<16x256xf32>, vector<16x256xf32> -> vector<16x768xf32>
    %c0_202 = arith.constant 0 : index
    %c0_203 = arith.constant 0 : index
    %160 = vector.load %arg5[%c0_202, %c0_203] : memref<768x32xf32, #tpu.memory_space<vmem>>, vector<768x32xf32>
    %cst_204 = arith.constant dense<0.000000e+00> : vector<16x32xf32>
    %161 = tpu.matmul %159, %160, %cst_204 {dimension_numbers = #tpu.dot_dimension_numbers<[1], [0], [0], [1], [0, 0, 1, 1], [], []>} : vector<16x768xf32>, vector<768x32xf32>, vector<16x32xf32> -> vector<16x32xf32>
    %c0_205 = arith.constant 0 : index
    %c0_206 = arith.constant 0 : index
    %162 = vector.load %arg6[%c0_205, %c0_206] : memref<1x32xf32, #tpu.memory_space<vmem>>, vector<1x32xf32>
    %163 = vector.broadcast %162 : vector<1x32xf32> to vector<16x32xf32>
    %164 = arith.addf %161, %163 : vector<16x32xf32>
    %cst_207 = arith.constant 0.000000e+00 : f32
    %165 = vector.broadcast %cst_207 : f32 to vector<16x32xf32>
    %166 = arith.maximumf %164, %165 : vector<16x32xf32>
    %c1_208 = arith.constant 1 : index
    %c0_209 = arith.constant 0 : index
    %167 = vector.load %arg18[%c1_208, %c0_209] : memref<18x32xf32, #tpu.memory_space<vmem>>, vector<16x32xf32>
    tpu.vector_store %arg18[%c1_208, %c0_209], %166 {strides = array<i32>} : memref<18x32xf32, #tpu.memory_space<vmem>>, vector<16x32xf32>,
    %c0_210 = arith.constant 0 : index
    %c0_211 = arith.constant 0 : index
    %168 = vector.load %arg18[%c0_210, %c0_211] : memref<18x32xf32, #tpu.memory_space<vmem>>, vector<16x32xf32>
    %c1_212 = arith.constant 1 : index
    %c0_213 = arith.constant 0 : index
    %169 = vector.load %arg18[%c1_212, %c0_213] : memref<18x32xf32, #tpu.memory_space<vmem>>, vector<16x32xf32>
    %c2_214 = arith.constant 2 : index
    %c0_215 = arith.constant 0 : index
    %170 = vector.load %arg18[%c2_214, %c0_215] : memref<18x32xf32, #tpu.memory_space<vmem>>, vector<16x32xf32>
    %171 = tpu.concatenate %168, %169, %170 in 1 : vector<16x32xf32>, vector<16x32xf32>, vector<16x32xf32> -> vector<16x96xf32>
    %c0_216 = arith.constant 0 : index
    %c0_217 = arith.constant 0 : index
    %172 = vector.load %arg7[%c0_216, %c0_217] : memref<96x32xf32, #tpu.memory_space<vmem>>, vector<96x32xf32>
    %cst_218 = arith.constant dense<0.000000e+00> : vector<16x32xf32>
    %173 = tpu.matmul %171, %172, %cst_218 {dimension_numbers = #tpu.dot_dimension_numbers<[1], [0], [0], [1], [0, 0, 1, 1], [], []>} : vector<16x96xf32>, vector<96x32xf32>, vector<16x32xf32> -> vector<16x32xf32>
    %c0_219 = arith.constant 0 : index
    %c0_220 = arith.constant 0 : index
    %174 = vector.load %arg8[%c0_219, %c0_220] : memref<1x32xf32, #tpu.memory_space<vmem>>, vector<1x32xf32>
    %175 = vector.broadcast %174 : vector<1x32xf32> to vector<16x32xf32>
    %176 = arith.addf %173, %175 : vector<16x32xf32>
    %177 = arith.addf %176, %1 : vector<16x32xf32>
    %c0_221 = arith.constant 0 : index
    %c0_222 = arith.constant 0 : index
    %c0_223 = arith.constant 0 : index
    %178 = vector.load %arg9[%c0_221, %c0_222, %c0_223] : memref<4x32x64xf32, #tpu.memory_space<vmem>>, vector<1x32x64xf32>
    %179 = vector.shape_cast %178 : vector<1x32x64xf32> to vector<32x64xf32>
    %cst_224 = arith.constant dense<0.000000e+00> : vector<16x64xf32>
    %180 = tpu.matmul %177, %179, %cst_224 {dimension_numbers = #tpu.dot_dimension_numbers<[1], [0], [0], [1], [0, 0, 1, 1], [], []>} : vector<16x32xf32>, vector<32x64xf32>, vector<16x64xf32> -> vector<16x64xf32>
    %c0_225 = arith.constant 0 : index
    %c0_226 = arith.constant 0 : index
    %c0_227 = arith.constant 0 : index
    %181 = vector.load %arg10[%c0_225, %c0_226, %c0_227] : memref<4x1x64xf32, #tpu.memory_space<vmem>>, vector<1x1x64xf32>
    %182 = vector.shape_cast %181 : vector<1x1x64xf32> to vector<1x64xf32>
    %183 = vector.broadcast %182 : vector<1x64xf32> to vector<16x64xf32>
    %184 = arith.addf %180, %183 : vector<16x64xf32>
    %185 = vector.extract_strided_slice %184 {offsets = [0, 0], sizes = [16, 32], strides = [1, 1]} : vector<16x64xf32> to vector<16x32xf32>
    %cst_228 = arith.constant 0.000000e+00 : f32
    %186 = vector.broadcast %cst_228 : f32 to vector<16x32xf32>
    %187 = arith.maximumf %185, %186 : vector<16x32xf32>
    %188 = vector.extract_strided_slice %184 {offsets = [0, 32], sizes = [16, 32], strides = [1, 1]} : vector<16x64xf32> to vector<16x32xf32>
    %cst_229 = arith.constant 0.000000e+00 : f32
    %189 = vector.broadcast %cst_229 : f32 to vector<16x32xf32>
    %190 = arith.subf %189, %188 : vector<16x32xf32>
    %191 = math.exp %190 : vector<16x32xf32>
    %cst_230 = arith.constant 1.000000e+00 : f32
    %192 = vector.broadcast %cst_230 : f32 to vector<16x32xf32>
    %193 = arith.addf %192, %191 : vector<16x32xf32>
    %194 = tpu.reciprocal %193 {approx = true} : vector<16x32xf32> -> vector<16x32xf32>
    %195 = arith.mulf %187, %194 : vector<16x32xf32>
    %cst_231 = arith.constant 1.000000e+00 : f32
    %196 = vector.broadcast %cst_231 : f32 to vector<16x32xf32>
    %197 = arith.subf %196, %194 : vector<16x32xf32>
    %198 = arith.mulf %177, %197 : vector<16x32xf32>
    %199 = arith.addf %195, %198 : vector<16x32xf32>
    %c1_232 = arith.constant 1 : index
    %c0_233 = arith.constant 0 : index
    %c0_234 = arith.constant 0 : index
    %200 = vector.load %arg9[%c1_232, %c0_233, %c0_234] : memref<4x32x64xf32, #tpu.memory_space<vmem>>, vector<1x32x64xf32>
    %201 = vector.shape_cast %200 : vector<1x32x64xf32> to vector<32x64xf32>
    %cst_235 = arith.constant dense<0.000000e+00> : vector<16x64xf32>
    %202 = tpu.matmul %199, %201, %cst_235 {dimension_numbers = #tpu.dot_dimension_numbers<[1], [0], [0], [1], [0, 0, 1, 1], [], []>} : vector<16x32xf32>, vector<32x64xf32>, vector<16x64xf32> -> vector<16x64xf32>
    %c1_236 = arith.constant 1 : index
    %c0_237 = arith.constant 0 : index
    %c0_238 = arith.constant 0 : index
    %203 = vector.load %arg10[%c1_236, %c0_237, %c0_238] : memref<4x1x64xf32, #tpu.memory_space<vmem>>, vector<1x1x64xf32>
    %204 = vector.shape_cast %203 : vector<1x1x64xf32> to vector<1x64xf32>
    %205 = vector.broadcast %204 : vector<1x64xf32> to vector<16x64xf32>
    %206 = arith.addf %202, %205 : vector<16x64xf32>
    %207 = vector.extract_strided_slice %206 {offsets = [0, 0], sizes = [16, 32], strides = [1, 1]} : vector<16x64xf32> to vector<16x32xf32>
    %cst_239 = arith.constant 0.000000e+00 : f32
    %208 = vector.broadcast %cst_239 : f32 to vector<16x32xf32>
    %209 = arith.maximumf %207, %208 : vector<16x32xf32>
    %210 = vector.extract_strided_slice %206 {offsets = [0, 32], sizes = [16, 32], strides = [1, 1]} : vector<16x64xf32> to vector<16x32xf32>
    %cst_240 = arith.constant 0.000000e+00 : f32
    %211 = vector.broadcast %cst_240 : f32 to vector<16x32xf32>
    %212 = arith.subf %211, %210 : vector<16x32xf32>
    %213 = math.exp %212 : vector<16x32xf32>
    %cst_241 = arith.constant 1.000000e+00 : f32
    %214 = vector.broadcast %cst_241 : f32 to vector<16x32xf32>
    %215 = arith.addf %214, %213 : vector<16x32xf32>
    %216 = tpu.reciprocal %215 {approx = true} : vector<16x32xf32> -> vector<16x32xf32>
    %217 = arith.mulf %209, %216 : vector<16x32xf32>
    %cst_242 = arith.constant 1.000000e+00 : f32
    %218 = vector.broadcast %cst_242 : f32 to vector<16x32xf32>
    %219 = arith.subf %218, %216 : vector<16x32xf32>
    %220 = arith.mulf %199, %219 : vector<16x32xf32>
    %221 = arith.addf %217, %220 : vector<16x32xf32>
    %c2_243 = arith.constant 2 : index
    %c0_244 = arith.constant 0 : index
    %c0_245 = arith.constant 0 : index
    %222 = vector.load %arg9[%c2_243, %c0_244, %c0_245] : memref<4x32x64xf32, #tpu.memory_space<vmem>>, vector<1x32x64xf32>
    %223 = vector.shape_cast %222 : vector<1x32x64xf32> to vector<32x64xf32>
    %cst_246 = arith.constant dense<0.000000e+00> : vector<16x64xf32>
    %224 = tpu.matmul %221, %223, %cst_246 {dimension_numbers = #tpu.dot_dimension_numbers<[1], [0], [0], [1], [0, 0, 1, 1], [], []>} : vector<16x32xf32>, vector<32x64xf32>, vector<16x64xf32> -> vector<16x64xf32>
    %c2_247 = arith.constant 2 : index
    %c0_248 = arith.constant 0 : index
    %c0_249 = arith.constant 0 : index
    %225 = vector.load %arg10[%c2_247, %c0_248, %c0_249] : memref<4x1x64xf32, #tpu.memory_space<vmem>>, vector<1x1x64xf32>
    %226 = vector.shape_cast %225 : vector<1x1x64xf32> to vector<1x64xf32>
    %227 = vector.broadcast %226 : vector<1x64xf32> to vector<16x64xf32>
    %228 = arith.addf %224, %227 : vector<16x64xf32>
    %229 = vector.extract_strided_slice %228 {offsets = [0, 0], sizes = [16, 32], strides = [1, 1]} : vector<16x64xf32> to vector<16x32xf32>
    %cst_250 = arith.constant 0.000000e+00 : f32
    %230 = vector.broadcast %cst_250 : f32 to vector<16x32xf32>
    %231 = arith.maximumf %229, %230 : vector<16x32xf32>
    %232 = vector.extract_strided_slice %228 {offsets = [0, 32], sizes = [16, 32], strides = [1, 1]} : vector<16x64xf32> to vector<16x32xf32>
    %cst_251 = arith.constant 0.000000e+00 : f32
    %233 = vector.broadcast %cst_251 : f32 to vector<16x32xf32>
    %234 = arith.subf %233, %232 : vector<16x32xf32>
    %235 = math.exp %234 : vector<16x32xf32>
    %cst_252 = arith.constant 1.000000e+00 : f32
    %236 = vector.broadcast %cst_252 : f32 to vector<16x32xf32>
    %237 = arith.addf %236, %235 : vector<16x32xf32>
    %238 = tpu.reciprocal %237 {approx = true} : vector<16x32xf32> -> vector<16x32xf32>
    %239 = arith.mulf %231, %238 : vector<16x32xf32>
    %cst_253 = arith.constant 1.000000e+00 : f32
    %240 = vector.broadcast %cst_253 : f32 to vector<16x32xf32>
    %241 = arith.subf %240, %238 : vector<16x32xf32>
    %242 = arith.mulf %221, %241 : vector<16x32xf32>
    %243 = arith.addf %239, %242 : vector<16x32xf32>
    %c3_254 = arith.constant 3 : index
    %c0_255 = arith.constant 0 : index
    %c0_256 = arith.constant 0 : index
    %244 = vector.load %arg9[%c3_254, %c0_255, %c0_256] : memref<4x32x64xf32, #tpu.memory_space<vmem>>, vector<1x32x64xf32>
    %245 = vector.shape_cast %244 : vector<1x32x64xf32> to vector<32x64xf32>
    %cst_257 = arith.constant dense<0.000000e+00> : vector<16x64xf32>
    %246 = tpu.matmul %243, %245, %cst_257 {dimension_numbers = #tpu.dot_dimension_numbers<[1], [0], [0], [1], [0, 0, 1, 1], [], []>} : vector<16x32xf32>, vector<32x64xf32>, vector<16x64xf32> -> vector<16x64xf32>
    %c3_258 = arith.constant 3 : index
    %c0_259 = arith.constant 0 : index
    %c0_260 = arith.constant 0 : index
    %247 = vector.load %arg10[%c3_258, %c0_259, %c0_260] : memref<4x1x64xf32, #tpu.memory_space<vmem>>, vector<1x1x64xf32>
    %248 = vector.shape_cast %247 : vector<1x1x64xf32> to vector<1x64xf32>
    %249 = vector.broadcast %248 : vector<1x64xf32> to vector<16x64xf32>
    %250 = arith.addf %246, %249 : vector<16x64xf32>
    %251 = vector.extract_strided_slice %250 {offsets = [0, 0], sizes = [16, 32], strides = [1, 1]} : vector<16x64xf32> to vector<16x32xf32>
    %cst_261 = arith.constant 0.000000e+00 : f32
    %252 = vector.broadcast %cst_261 : f32 to vector<16x32xf32>
    %253 = arith.maximumf %251, %252 : vector<16x32xf32>
    %254 = vector.extract_strided_slice %250 {offsets = [0, 32], sizes = [16, 32], strides = [1, 1]} : vector<16x64xf32> to vector<16x32xf32>
    %cst_262 = arith.constant 0.000000e+00 : f32
    %255 = vector.broadcast %cst_262 : f32 to vector<16x32xf32>
    %256 = arith.subf %255, %254 : vector<16x32xf32>
    %257 = math.exp %256 : vector<16x32xf32>
    %cst_263 = arith.constant 1.000000e+00 : f32
    %258 = vector.broadcast %cst_263 : f32 to vector<16x32xf32>
    %259 = arith.addf %258, %257 : vector<16x32xf32>
    %260 = tpu.reciprocal %259 {approx = true} : vector<16x32xf32> -> vector<16x32xf32>
    %261 = arith.mulf %253, %260 : vector<16x32xf32>
    %cst_264 = arith.constant 1.000000e+00 : f32
    %262 = vector.broadcast %cst_264 : f32 to vector<16x32xf32>
    %263 = arith.subf %262, %260 : vector<16x32xf32>
    %264 = arith.mulf %243, %263 : vector<16x32xf32>
    %265 = arith.addf %261, %264 : vector<16x32xf32>
    %266 = tpu.iota {dimensions = array<i32: 0>} : vector<2x32xi32>
    %267 = tpu.iota {dimensions = array<i32: 1>} : vector<2x32xi32>
    %c16_i32 = arith.constant 16 : i32
    %268 = vector.broadcast %c16_i32 : i32 to vector<2x32xi32>
    %269 = arith.cmpi sge, %267, %268 : vector<2x32xi32>
    %c1_i32 = arith.constant 1 : i32
    %270 = vector.broadcast %c1_i32 : i32 to vector<2x32xi32>
    %271 = arith.cmpi eq, %266, %270 : vector<2x32xi32>
    %272 = arith.xori %269, %271 : vector<2x32xi1>
    %cst_265 = arith.constant dense<true> : vector<2x32xi1>
    %273 = arith.xori %272, %cst_265 : vector<2x32xi1>
    %274 = arith.extui %273 : vector<2x32xi1> to vector<2x32xi32>
    %275 = arith.sitofp %274 : vector<2x32xi32> to vector<2x32xf32>
    %c0_266 = arith.constant 0 : index
    %c0_267 = arith.constant 0 : index
    %c0_268 = arith.constant 0 : index
    %276 = vector.load %arg11[%c0_266, %c0_267, %c0_268] : memref<2x32x96xf32, #tpu.memory_space<vmem>>, vector<1x32x96xf32>
    %277 = vector.shape_cast %276 : vector<1x32x96xf32> to vector<32x96xf32>
    %cst_269 = arith.constant dense<0.000000e+00> : vector<16x96xf32>
    %278 = tpu.matmul %265, %277, %cst_269 {dimension_numbers = #tpu.dot_dimension_numbers<[1], [0], [0], [1], [0, 0, 1, 1], [], []>} : vector<16x32xf32>, vector<32x96xf32>, vector<16x96xf32> -> vector<16x96xf32>
    %c0_270 = arith.constant 0 : index
    %c0_271 = arith.constant 0 : index
    %c0_272 = arith.constant 0 : index
    %279 = vector.load %arg12[%c0_270, %c0_271, %c0_272] : memref<2x1x96xf32, #tpu.memory_space<vmem>>, vector<1x1x96xf32>
    %280 = vector.shape_cast %279 : vector<1x1x96xf32> to vector<1x96xf32>
    %281 = vector.broadcast %280 : vector<1x96xf32> to vector<16x96xf32>
    %282 = arith.addf %278, %281 : vector<16x96xf32>
    %c0_273 = arith.constant 0 : index
    %c0_274 = arith.constant 0 : index
    %c0_275 = arith.constant 0 : index
    %283 = vector.load %arg13[%c0_273, %c0_274, %c0_275] : memref<2x32x48xf32, #tpu.memory_space<vmem>>, vector<1x32x48xf32>
    %284 = vector.shape_cast %283 : vector<1x32x48xf32> to vector<32x48xf32>
    %c0_276 = arith.constant 0 : index
    %c0_277 = arith.constant 0 : index
    %c0_278 = arith.constant 0 : index
    %285 = vector.load %arg14[%c0_276, %c0_277, %c0_278] : memref<2x2x48xf32, #tpu.memory_space<vmem>>, vector<1x2x48xf32>
    %286 = vector.shape_cast %285 : vector<1x2x48xf32> to vector<2x48xf32>
    %cst_279 = arith.constant 0.000000e+00 : f32
    %287 = vector.broadcast %cst_279 : f32 to vector<2x16xf32>
    %288 = vector.extract_strided_slice %282 {offsets = [0, 0], sizes = [1, 48], strides = [1, 1]} : vector<16x96xf32> to vector<1x48xf32>
    %289 = vector.extract_strided_slice %282 {offsets = [15, 48], sizes = [1, 48], strides = [1, 1]} : vector<16x96xf32> to vector<1x48xf32>
    %290 = tpu.concatenate %288, %289 in 0 : vector<1x48xf32>, vector<1x48xf32> -> vector<2x48xf32>
    %291 = tpu.concatenate %287, %287 in 1 : vector<2x16xf32>, vector<2x16xf32> -> vector<2x32xf32>
    %292 = arith.mulf %291, %275 : vector<2x32xf32>
    %cst_280 = arith.constant dense<0.000000e+00> : vector<2x48xf32>
    %293 = tpu.matmul %292, %284, %cst_280 {dimension_numbers = #tpu.dot_dimension_numbers<[1], [0], [0], [1], [0, 0, 1, 1], [], []>} : vector<2x32xf32>, vector<32x48xf32>, vector<2x48xf32> -> vector<2x48xf32>
    %294 = arith.addf %293, %286 : vector<2x48xf32>
    %295 = vector.extract_strided_slice %290 {offsets = [0, 0], sizes = [2, 16], strides = [1, 1]} : vector<2x48xf32> to vector<2x16xf32>
    %296 = vector.extract_strided_slice %294 {offsets = [0, 0], sizes = [2, 16], strides = [1, 1]} : vector<2x48xf32> to vector<2x16xf32>
    %297 = arith.addf %295, %296 : vector<2x16xf32>
    %cst_281 = arith.constant 0.000000e+00 : f32
    %298 = vector.broadcast %cst_281 : f32 to vector<2x16xf32>
    %299 = arith.subf %298, %297 : vector<2x16xf32>
    %300 = math.exp %299 : vector<2x16xf32>
    %cst_282 = arith.constant 1.000000e+00 : f32
    %301 = vector.broadcast %cst_282 : f32 to vector<2x16xf32>
    %302 = arith.addf %301, %300 : vector<2x16xf32>
    %303 = tpu.reciprocal %302 {approx = true} : vector<2x16xf32> -> vector<2x16xf32>
    %304 = vector.extract_strided_slice %290 {offsets = [0, 16], sizes = [2, 16], strides = [1, 1]} : vector<2x48xf32> to vector<2x16xf32>
    %305 = vector.extract_strided_slice %294 {offsets = [0, 16], sizes = [2, 16], strides = [1, 1]} : vector<2x48xf32> to vector<2x16xf32>
    %306 = arith.addf %304, %305 : vector<2x16xf32>
    %cst_283 = arith.constant 0.000000e+00 : f32
    %307 = vector.broadcast %cst_283 : f32 to vector<2x16xf32>
    %308 = arith.subf %307, %306 : vector<2x16xf32>
    %309 = math.exp %308 : vector<2x16xf32>
    %cst_284 = arith.constant 1.000000e+00 : f32
    %310 = vector.broadcast %cst_284 : f32 to vector<2x16xf32>
    %311 = arith.addf %310, %309 : vector<2x16xf32>
    %312 = tpu.reciprocal %311 {approx = true} : vector<2x16xf32> -> vector<2x16xf32>
    %313 = vector.extract_strided_slice %290 {offsets = [0, 32], sizes = [2, 16], strides = [1, 1]} : vector<2x48xf32> to vector<2x16xf32>
    %314 = vector.extract_strided_slice %294 {offsets = [0, 32], sizes = [2, 16], strides = [1, 1]} : vector<2x48xf32> to vector<2x16xf32>
    %315 = arith.mulf %303, %314 : vector<2x16xf32>
    %316 = arith.addf %313, %315 : vector<2x16xf32>
    %317 = math.tanh %316 : vector<2x16xf32>
    %cst_285 = arith.constant 1.000000e+00 : f32
    %318 = vector.broadcast %cst_285 : f32 to vector<2x16xf32>
    %319 = arith.subf %318, %312 : vector<2x16xf32>
    %320 = arith.mulf %319, %317 : vector<2x16xf32>
    %321 = arith.mulf %312, %287 : vector<2x16xf32>
    %322 = arith.addf %320, %321 : vector<2x16xf32>
    %323 = vector.extract_strided_slice %322 {offsets = [0, 0], sizes = [1, 16], strides = [1, 1]} : vector<2x16xf32> to vector<1x16xf32>
    %c0_286 = arith.constant 0 : index
    %c0_287 = arith.constant 0 : index
    %324 = vector.load %arg19[%c0_286, %c0_287] : memref<16x16xf32, #tpu.memory_space<vmem>>, vector<1x16xf32>
    tpu.vector_store %arg19[%c0_286, %c0_287], %323 {strides = array<i32>} : memref<16x16xf32, #tpu.memory_space<vmem>>, vector<1x16xf32>,
    %325 = vector.extract_strided_slice %322 {offsets = [1, 0], sizes = [1, 16], strides = [1, 1]} : vector<2x16xf32> to vector<1x16xf32>
    %c15 = arith.constant 15 : index
    %c0_288 = arith.constant 0 : index
    %326 = vector.load %arg20[%c15, %c0_288] : memref<16x16xf32, #tpu.memory_space<vmem>>, vector<1x16xf32>
    tpu.vector_store %arg20[%c15, %c0_288], %325 {strides = array<i32>} : memref<16x16xf32, #tpu.memory_space<vmem>>, vector<1x16xf32>,
    %327 = vector.extract_strided_slice %282 {offsets = [1, 0], sizes = [1, 48], strides = [1, 1]} : vector<16x96xf32> to vector<1x48xf32>
    %328 = vector.extract_strided_slice %282 {offsets = [14, 48], sizes = [1, 48], strides = [1, 1]} : vector<16x96xf32> to vector<1x48xf32>
    %329 = tpu.concatenate %327, %328 in 0 : vector<1x48xf32>, vector<1x48xf32> -> vector<2x48xf32>
    %330 = tpu.concatenate %322, %322 in 1 : vector<2x16xf32>, vector<2x16xf32> -> vector<2x32xf32>
    %331 = arith.mulf %330, %275 : vector<2x32xf32>
    %cst_289 = arith.constant dense<0.000000e+00> : vector<2x48xf32>
    %332 = tpu.matmul %331, %284, %cst_289 {dimension_numbers = #tpu.dot_dimension_numbers<[1], [0], [0], [1], [0, 0, 1, 1], [], []>} : vector<2x32xf32>, vector<32x48xf32>, vector<2x48xf32> -> vector<2x48xf32>
    %333 = arith.addf %332, %286 : vector<2x48xf32>
    %334 = vector.extract_strided_slice %329 {offsets = [0, 0], sizes = [2, 16], strides = [1, 1]} : vector<2x48xf32> to vector<2x16xf32>
    %335 = vector.extract_strided_slice %333 {offsets = [0, 0], sizes = [2, 16], strides = [1, 1]} : vector<2x48xf32> to vector<2x16xf32>
    %336 = arith.addf %334, %335 : vector<2x16xf32>
    %cst_290 = arith.constant 0.000000e+00 : f32
    %337 = vector.broadcast %cst_290 : f32 to vector<2x16xf32>
    %338 = arith.subf %337, %336 : vector<2x16xf32>
    %339 = math.exp %338 : vector<2x16xf32>
    %cst_291 = arith.constant 1.000000e+00 : f32
    %340 = vector.broadcast %cst_291 : f32 to vector<2x16xf32>
    %341 = arith.addf %340, %339 : vector<2x16xf32>
    %342 = tpu.reciprocal %341 {approx = true} : vector<2x16xf32> -> vector<2x16xf32>
    %343 = vector.extract_strided_slice %329 {offsets = [0, 16], sizes = [2, 16], strides = [1, 1]} : vector<2x48xf32> to vector<2x16xf32>
    %344 = vector.extract_strided_slice %333 {offsets = [0, 16], sizes = [2, 16], strides = [1, 1]} : vector<2x48xf32> to vector<2x16xf32>
    %345 = arith.addf %343, %344 : vector<2x16xf32>
    %cst_292 = arith.constant 0.000000e+00 : f32
    %346 = vector.broadcast %cst_292 : f32 to vector<2x16xf32>
    %347 = arith.subf %346, %345 : vector<2x16xf32>
    %348 = math.exp %347 : vector<2x16xf32>
    %cst_293 = arith.constant 1.000000e+00 : f32
    %349 = vector.broadcast %cst_293 : f32 to vector<2x16xf32>
    %350 = arith.addf %349, %348 : vector<2x16xf32>
    %351 = tpu.reciprocal %350 {approx = true} : vector<2x16xf32> -> vector<2x16xf32>
    %352 = vector.extract_strided_slice %329 {offsets = [0, 32], sizes = [2, 16], strides = [1, 1]} : vector<2x48xf32> to vector<2x16xf32>
    %353 = vector.extract_strided_slice %333 {offsets = [0, 32], sizes = [2, 16], strides = [1, 1]} : vector<2x48xf32> to vector<2x16xf32>
    %354 = arith.mulf %342, %353 : vector<2x16xf32>
    %355 = arith.addf %352, %354 : vector<2x16xf32>
    %356 = math.tanh %355 : vector<2x16xf32>
    %cst_294 = arith.constant 1.000000e+00 : f32
    %357 = vector.broadcast %cst_294 : f32 to vector<2x16xf32>
    %358 = arith.subf %357, %351 : vector<2x16xf32>
    %359 = arith.mulf %358, %356 : vector<2x16xf32>
    %360 = arith.mulf %351, %322 : vector<2x16xf32>
    %361 = arith.addf %359, %360 : vector<2x16xf32>
    %362 = vector.extract_strided_slice %361 {offsets = [0, 0], sizes = [1, 16], strides = [1, 1]} : vector<2x16xf32> to vector<1x16xf32>
    %c1_295 = arith.constant 1 : index
    %c0_296 = arith.constant 0 : index
    %363 = vector.load %arg19[%c1_295, %c0_296] : memref<16x16xf32, #tpu.memory_space<vmem>>, vector<1x16xf32>
    tpu.vector_store %arg19[%c1_295, %c0_296], %362 {strides = array<i32>} : memref<16x16xf32, #tpu.memory_space<vmem>>, vector<1x16xf32>,
    %364 = vector.extract_strided_slice %361 {offsets = [1, 0], sizes = [1, 16], strides = [1, 1]} : vector<2x16xf32> to vector<1x16xf32>
    %c14 = arith.constant 14 : index
    %c0_297 = arith.constant 0 : index
    %365 = vector.load %arg20[%c14, %c0_297] : memref<16x16xf32, #tpu.memory_space<vmem>>, vector<1x16xf32>
    tpu.vector_store %arg20[%c14, %c0_297], %364 {strides = array<i32>} : memref<16x16xf32, #tpu.memory_space<vmem>>, vector<1x16xf32>,
    %366 = vector.extract_strided_slice %282 {offsets = [2, 0], sizes = [1, 48], strides = [1, 1]} : vector<16x96xf32> to vector<1x48xf32>
    %367 = vector.extract_strided_slice %282 {offsets = [13, 48], sizes = [1, 48], strides = [1, 1]} : vector<16x96xf32> to vector<1x48xf32>
    %368 = tpu.concatenate %366, %367 in 0 : vector<1x48xf32>, vector<1x48xf32> -> vector<2x48xf32>
    %369 = tpu.concatenate %361, %361 in 1 : vector<2x16xf32>, vector<2x16xf32> -> vector<2x32xf32>
    %370 = arith.mulf %369, %275 : vector<2x32xf32>
    %cst_298 = arith.constant dense<0.000000e+00> : vector<2x48xf32>
    %371 = tpu.matmul %370, %284, %cst_298 {dimension_numbers = #tpu.dot_dimension_numbers<[1], [0], [0], [1], [0, 0, 1, 1], [], []>} : vector<2x32xf32>, vector<32x48xf32>, vector<2x48xf32> -> vector<2x48xf32>
    %372 = arith.addf %371, %286 : vector<2x48xf32>
    %373 = vector.extract_strided_slice %368 {offsets = [0, 0], sizes = [2, 16], strides = [1, 1]} : vector<2x48xf32> to vector<2x16xf32>
    %374 = vector.extract_strided_slice %372 {offsets = [0, 0], sizes = [2, 16], strides = [1, 1]} : vector<2x48xf32> to vector<2x16xf32>
    %375 = arith.addf %373, %374 : vector<2x16xf32>
    %cst_299 = arith.constant 0.000000e+00 : f32
    %376 = vector.broadcast %cst_299 : f32 to vector<2x16xf32>
    %377 = arith.subf %376, %375 : vector<2x16xf32>
    %378 = math.exp %377 : vector<2x16xf32>
    %cst_300 = arith.constant 1.000000e+00 : f32
    %379 = vector.broadcast %cst_300 : f32 to vector<2x16xf32>
    %380 = arith.addf %379, %378 : vector<2x16xf32>
    %381 = tpu.reciprocal %380 {approx = true} : vector<2x16xf32> -> vector<2x16xf32>
    %382 = vector.extract_strided_slice %368 {offsets = [0, 16], sizes = [2, 16], strides = [1, 1]} : vector<2x48xf32> to vector<2x16xf32>
    %383 = vector.extract_strided_slice %372 {offsets = [0, 16], sizes = [2, 16], strides = [1, 1]} : vector<2x48xf32> to vector<2x16xf32>
    %384 = arith.addf %382, %383 : vector<2x16xf32>
    %cst_301 = arith.constant 0.000000e+00 : f32
    %385 = vector.broadcast %cst_301 : f32 to vector<2x16xf32>
    %386 = arith.subf %385, %384 : vector<2x16xf32>
    %387 = math.exp %386 : vector<2x16xf32>
    %cst_302 = arith.constant 1.000000e+00 : f32
    %388 = vector.broadcast %cst_302 : f32 to vector<2x16xf32>
    %389 = arith.addf %388, %387 : vector<2x16xf32>
    %390 = tpu.reciprocal %389 {approx = true} : vector<2x16xf32> -> vector<2x16xf32>
    %391 = vector.extract_strided_slice %368 {offsets = [0, 32], sizes = [2, 16], strides = [1, 1]} : vector<2x48xf32> to vector<2x16xf32>
    %392 = vector.extract_strided_slice %372 {offsets = [0, 32], sizes = [2, 16], strides = [1, 1]} : vector<2x48xf32> to vector<2x16xf32>
    %393 = arith.mulf %381, %392 : vector<2x16xf32>
    %394 = arith.addf %391, %393 : vector<2x16xf32>
    %395 = math.tanh %394 : vector<2x16xf32>
    %cst_303 = arith.constant 1.000000e+00 : f32
    %396 = vector.broadcast %cst_303 : f32 to vector<2x16xf32>
    %397 = arith.subf %396, %390 : vector<2x16xf32>
    %398 = arith.mulf %397, %395 : vector<2x16xf32>
    %399 = arith.mulf %390, %361 : vector<2x16xf32>
    %400 = arith.addf %398, %399 : vector<2x16xf32>
    %401 = vector.extract_strided_slice %400 {offsets = [0, 0], sizes = [1, 16], strides = [1, 1]} : vector<2x16xf32> to vector<1x16xf32>
    %c2_304 = arith.constant 2 : index
    %c0_305 = arith.constant 0 : index
    %402 = vector.load %arg19[%c2_304, %c0_305] : memref<16x16xf32, #tpu.memory_space<vmem>>, vector<1x16xf32>
    tpu.vector_store %arg19[%c2_304, %c0_305], %401 {strides = array<i32>} : memref<16x16xf32, #tpu.memory_space<vmem>>, vector<1x16xf32>,
    %403 = vector.extract_strided_slice %400 {offsets = [1, 0], sizes = [1, 16], strides = [1, 1]} : vector<2x16xf32> to vector<1x16xf32>
    %c13 = arith.constant 13 : index
    %c0_306 = arith.constant 0 : index
    %404 = vector.load %arg20[%c13, %c0_306] : memref<16x16xf32, #tpu.memory_space<vmem>>, vector<1x16xf32>
    tpu.vector_store %arg20[%c13, %c0_306], %403 {strides = array<i32>} : memref<16x16xf32, #tpu.memory_space<vmem>>, vector<1x16xf32>,
    %405 = vector.extract_strided_slice %282 {offsets = [3, 0], sizes = [1, 48], strides = [1, 1]} : vector<16x96xf32> to vector<1x48xf32>
    %406 = vector.extract_strided_slice %282 {offsets = [12, 48], sizes = [1, 48], strides = [1, 1]} : vector<16x96xf32> to vector<1x48xf32>
    %407 = tpu.concatenate %405, %406 in 0 : vector<1x48xf32>, vector<1x48xf32> -> vector<2x48xf32>
    %408 = tpu.concatenate %400, %400 in 1 : vector<2x16xf32>, vector<2x16xf32> -> vector<2x32xf32>
    %409 = arith.mulf %408, %275 : vector<2x32xf32>
    %cst_307 = arith.constant dense<0.000000e+00> : vector<2x48xf32>
    %410 = tpu.matmul %409, %284, %cst_307 {dimension_numbers = #tpu.dot_dimension_numbers<[1], [0], [0], [1], [0, 0, 1, 1], [], []>} : vector<2x32xf32>, vector<32x48xf32>, vector<2x48xf32> -> vector<2x48xf32>
    %411 = arith.addf %410, %286 : vector<2x48xf32>
    %412 = vector.extract_strided_slice %407 {offsets = [0, 0], sizes = [2, 16], strides = [1, 1]} : vector<2x48xf32> to vector<2x16xf32>
    %413 = vector.extract_strided_slice %411 {offsets = [0, 0], sizes = [2, 16], strides = [1, 1]} : vector<2x48xf32> to vector<2x16xf32>
    %414 = arith.addf %412, %413 : vector<2x16xf32>
    %cst_308 = arith.constant 0.000000e+00 : f32
    %415 = vector.broadcast %cst_308 : f32 to vector<2x16xf32>
    %416 = arith.subf %415, %414 : vector<2x16xf32>
    %417 = math.exp %416 : vector<2x16xf32>
    %cst_309 = arith.constant 1.000000e+00 : f32
    %418 = vector.broadcast %cst_309 : f32 to vector<2x16xf32>
    %419 = arith.addf %418, %417 : vector<2x16xf32>
    %420 = tpu.reciprocal %419 {approx = true} : vector<2x16xf32> -> vector<2x16xf32>
    %421 = vector.extract_strided_slice %407 {offsets = [0, 16], sizes = [2, 16], strides = [1, 1]} : vector<2x48xf32> to vector<2x16xf32>
    %422 = vector.extract_strided_slice %411 {offsets = [0, 16], sizes = [2, 16], strides = [1, 1]} : vector<2x48xf32> to vector<2x16xf32>
    %423 = arith.addf %421, %422 : vector<2x16xf32>
    %cst_310 = arith.constant 0.000000e+00 : f32
    %424 = vector.broadcast %cst_310 : f32 to vector<2x16xf32>
    %425 = arith.subf %424, %423 : vector<2x16xf32>
    %426 = math.exp %425 : vector<2x16xf32>
    %cst_311 = arith.constant 1.000000e+00 : f32
    %427 = vector.broadcast %cst_311 : f32 to vector<2x16xf32>
    %428 = arith.addf %427, %426 : vector<2x16xf32>
    %429 = tpu.reciprocal %428 {approx = true} : vector<2x16xf32> -> vector<2x16xf32>
    %430 = vector.extract_strided_slice %407 {offsets = [0, 32], sizes = [2, 16], strides = [1, 1]} : vector<2x48xf32> to vector<2x16xf32>
    %431 = vector.extract_strided_slice %411 {offsets = [0, 32], sizes = [2, 16], strides = [1, 1]} : vector<2x48xf32> to vector<2x16xf32>
    %432 = arith.mulf %420, %431 : vector<2x16xf32>
    %433 = arith.addf %430, %432 : vector<2x16xf32>
    %434 = math.tanh %433 : vector<2x16xf32>
    %cst_312 = arith.constant 1.000000e+00 : f32
    %435 = vector.broadcast %cst_312 : f32 to vector<2x16xf32>
    %436 = arith.subf %435, %429 : vector<2x16xf32>
    %437 = arith.mulf %436, %434 : vector<2x16xf32>
    %438 = arith.mulf %429, %400 : vector<2x16xf32>
    %439 = arith.addf %437, %438 : vector<2x16xf32>
    %440 = vector.extract_strided_slice %439 {offsets = [0, 0], sizes = [1, 16], strides = [1, 1]} : vector<2x16xf32> to vector<1x16xf32>
    %c3_313 = arith.constant 3 : index
    %c0_314 = arith.constant 0 : index
    %441 = vector.load %arg19[%c3_313, %c0_314] : memref<16x16xf32, #tpu.memory_space<vmem>>, vector<1x16xf32>
    tpu.vector_store %arg19[%c3_313, %c0_314], %440 {strides = array<i32>} : memref<16x16xf32, #tpu.memory_space<vmem>>, vector<1x16xf32>,
    %442 = vector.extract_strided_slice %439 {offsets = [1, 0], sizes = [1, 16], strides = [1, 1]} : vector<2x16xf32> to vector<1x16xf32>
    %c12 = arith.constant 12 : index
    %c0_315 = arith.constant 0 : index
    %443 = vector.load %arg20[%c12, %c0_315] : memref<16x16xf32, #tpu.memory_space<vmem>>, vector<1x16xf32>
    tpu.vector_store %arg20[%c12, %c0_315], %442 {strides = array<i32>} : memref<16x16xf32, #tpu.memory_space<vmem>>, vector<1x16xf32>,
    %444 = vector.extract_strided_slice %282 {offsets = [4, 0], sizes = [1, 48], strides = [1, 1]} : vector<16x96xf32> to vector<1x48xf32>
    %445 = vector.extract_strided_slice %282 {offsets = [11, 48], sizes = [1, 48], strides = [1, 1]} : vector<16x96xf32> to vector<1x48xf32>
    %446 = tpu.concatenate %444, %445 in 0 : vector<1x48xf32>, vector<1x48xf32> -> vector<2x48xf32>
    %447 = tpu.concatenate %439, %439 in 1 : vector<2x16xf32>, vector<2x16xf32> -> vector<2x32xf32>
    %448 = arith.mulf %447, %275 : vector<2x32xf32>
    %cst_316 = arith.constant dense<0.000000e+00> : vector<2x48xf32>
    %449 = tpu.matmul %448, %284, %cst_316 {dimension_numbers = #tpu.dot_dimension_numbers<[1], [0], [0], [1], [0, 0, 1, 1], [], []>} : vector<2x32xf32>, vector<32x48xf32>, vector<2x48xf32> -> vector<2x48xf32>
    %450 = arith.addf %449, %286 : vector<2x48xf32>
    %451 = vector.extract_strided_slice %446 {offsets = [0, 0], sizes = [2, 16], strides = [1, 1]} : vector<2x48xf32> to vector<2x16xf32>
    %452 = vector.extract_strided_slice %450 {offsets = [0, 0], sizes = [2, 16], strides = [1, 1]} : vector<2x48xf32> to vector<2x16xf32>
    %453 = arith.addf %451, %452 : vector<2x16xf32>
    %cst_317 = arith.constant 0.000000e+00 : f32
    %454 = vector.broadcast %cst_317 : f32 to vector<2x16xf32>
    %455 = arith.subf %454, %453 : vector<2x16xf32>
    %456 = math.exp %455 : vector<2x16xf32>
    %cst_318 = arith.constant 1.000000e+00 : f32
    %457 = vector.broadcast %cst_318 : f32 to vector<2x16xf32>
    %458 = arith.addf %457, %456 : vector<2x16xf32>
    %459 = tpu.reciprocal %458 {approx = true} : vector<2x16xf32> -> vector<2x16xf32>
    %460 = vector.extract_strided_slice %446 {offsets = [0, 16], sizes = [2, 16], strides = [1, 1]} : vector<2x48xf32> to vector<2x16xf32>
    %461 = vector.extract_strided_slice %450 {offsets = [0, 16], sizes = [2, 16], strides = [1, 1]} : vector<2x48xf32> to vector<2x16xf32>
    %462 = arith.addf %460, %461 : vector<2x16xf32>
    %cst_319 = arith.constant 0.000000e+00 : f32
    %463 = vector.broadcast %cst_319 : f32 to vector<2x16xf32>
    %464 = arith.subf %463, %462 : vector<2x16xf32>
    %465 = math.exp %464 : vector<2x16xf32>
    %cst_320 = arith.constant 1.000000e+00 : f32
    %466 = vector.broadcast %cst_320 : f32 to vector<2x16xf32>
    %467 = arith.addf %466, %465 : vector<2x16xf32>
    %468 = tpu.reciprocal %467 {approx = true} : vector<2x16xf32> -> vector<2x16xf32>
    %469 = vector.extract_strided_slice %446 {offsets = [0, 32], sizes = [2, 16], strides = [1, 1]} : vector<2x48xf32> to vector<2x16xf32>
    %470 = vector.extract_strided_slice %450 {offsets = [0, 32], sizes = [2, 16], strides = [1, 1]} : vector<2x48xf32> to vector<2x16xf32>
    %471 = arith.mulf %459, %470 : vector<2x16xf32>
    %472 = arith.addf %469, %471 : vector<2x16xf32>
    %473 = math.tanh %472 : vector<2x16xf32>
    %cst_321 = arith.constant 1.000000e+00 : f32
    %474 = vector.broadcast %cst_321 : f32 to vector<2x16xf32>
    %475 = arith.subf %474, %468 : vector<2x16xf32>
    %476 = arith.mulf %475, %473 : vector<2x16xf32>
    %477 = arith.mulf %468, %439 : vector<2x16xf32>
    %478 = arith.addf %476, %477 : vector<2x16xf32>
    %479 = vector.extract_strided_slice %478 {offsets = [0, 0], sizes = [1, 16], strides = [1, 1]} : vector<2x16xf32> to vector<1x16xf32>
    %c4_322 = arith.constant 4 : index
    %c0_323 = arith.constant 0 : index
    %480 = vector.load %arg19[%c4_322, %c0_323] : memref<16x16xf32, #tpu.memory_space<vmem>>, vector<1x16xf32>
    tpu.vector_store %arg19[%c4_322, %c0_323], %479 {strides = array<i32>} : memref<16x16xf32, #tpu.memory_space<vmem>>, vector<1x16xf32>,
    %481 = vector.extract_strided_slice %478 {offsets = [1, 0], sizes = [1, 16], strides = [1, 1]} : vector<2x16xf32> to vector<1x16xf32>
    %c11 = arith.constant 11 : index
    %c0_324 = arith.constant 0 : index
    %482 = vector.load %arg20[%c11, %c0_324] : memref<16x16xf32, #tpu.memory_space<vmem>>, vector<1x16xf32>
    tpu.vector_store %arg20[%c11, %c0_324], %481 {strides = array<i32>} : memref<16x16xf32, #tpu.memory_space<vmem>>, vector<1x16xf32>,
    %483 = vector.extract_strided_slice %282 {offsets = [5, 0], sizes = [1, 48], strides = [1, 1]} : vector<16x96xf32> to vector<1x48xf32>
    %484 = vector.extract_strided_slice %282 {offsets = [10, 48], sizes = [1, 48], strides = [1, 1]} : vector<16x96xf32> to vector<1x48xf32>
    %485 = tpu.concatenate %483, %484 in 0 : vector<1x48xf32>, vector<1x48xf32> -> vector<2x48xf32>
    %486 = tpu.concatenate %478, %478 in 1 : vector<2x16xf32>, vector<2x16xf32> -> vector<2x32xf32>
    %487 = arith.mulf %486, %275 : vector<2x32xf32>
    %cst_325 = arith.constant dense<0.000000e+00> : vector<2x48xf32>
    %488 = tpu.matmul %487, %284, %cst_325 {dimension_numbers = #tpu.dot_dimension_numbers<[1], [0], [0], [1], [0, 0, 1, 1], [], []>} : vector<2x32xf32>, vector<32x48xf32>, vector<2x48xf32> -> vector<2x48xf32>
    %489 = arith.addf %488, %286 : vector<2x48xf32>
    %490 = vector.extract_strided_slice %485 {offsets = [0, 0], sizes = [2, 16], strides = [1, 1]} : vector<2x48xf32> to vector<2x16xf32>
    %491 = vector.extract_strided_slice %489 {offsets = [0, 0], sizes = [2, 16], strides = [1, 1]} : vector<2x48xf32> to vector<2x16xf32>
    %492 = arith.addf %490, %491 : vector<2x16xf32>
    %cst_326 = arith.constant 0.000000e+00 : f32
    %493 = vector.broadcast %cst_326 : f32 to vector<2x16xf32>
    %494 = arith.subf %493, %492 : vector<2x16xf32>
    %495 = math.exp %494 : vector<2x16xf32>
    %cst_327 = arith.constant 1.000000e+00 : f32
    %496 = vector.broadcast %cst_327 : f32 to vector<2x16xf32>
    %497 = arith.addf %496, %495 : vector<2x16xf32>
    %498 = tpu.reciprocal %497 {approx = true} : vector<2x16xf32> -> vector<2x16xf32>
    %499 = vector.extract_strided_slice %485 {offsets = [0, 16], sizes = [2, 16], strides = [1, 1]} : vector<2x48xf32> to vector<2x16xf32>
    %500 = vector.extract_strided_slice %489 {offsets = [0, 16], sizes = [2, 16], strides = [1, 1]} : vector<2x48xf32> to vector<2x16xf32>
    %501 = arith.addf %499, %500 : vector<2x16xf32>
    %cst_328 = arith.constant 0.000000e+00 : f32
    %502 = vector.broadcast %cst_328 : f32 to vector<2x16xf32>
    %503 = arith.subf %502, %501 : vector<2x16xf32>
    %504 = math.exp %503 : vector<2x16xf32>
    %cst_329 = arith.constant 1.000000e+00 : f32
    %505 = vector.broadcast %cst_329 : f32 to vector<2x16xf32>
    %506 = arith.addf %505, %504 : vector<2x16xf32>
    %507 = tpu.reciprocal %506 {approx = true} : vector<2x16xf32> -> vector<2x16xf32>
    %508 = vector.extract_strided_slice %485 {offsets = [0, 32], sizes = [2, 16], strides = [1, 1]} : vector<2x48xf32> to vector<2x16xf32>
    %509 = vector.extract_strided_slice %489 {offsets = [0, 32], sizes = [2, 16], strides = [1, 1]} : vector<2x48xf32> to vector<2x16xf32>
    %510 = arith.mulf %498, %509 : vector<2x16xf32>
    %511 = arith.addf %508, %510 : vector<2x16xf32>
    %512 = math.tanh %511 : vector<2x16xf32>
    %cst_330 = arith.constant 1.000000e+00 : f32
    %513 = vector.broadcast %cst_330 : f32 to vector<2x16xf32>
    %514 = arith.subf %513, %507 : vector<2x16xf32>
    %515 = arith.mulf %514, %512 : vector<2x16xf32>
    %516 = arith.mulf %507, %478 : vector<2x16xf32>
    %517 = arith.addf %515, %516 : vector<2x16xf32>
    %518 = vector.extract_strided_slice %517 {offsets = [0, 0], sizes = [1, 16], strides = [1, 1]} : vector<2x16xf32> to vector<1x16xf32>
    %c5_331 = arith.constant 5 : index
    %c0_332 = arith.constant 0 : index
    %519 = vector.load %arg19[%c5_331, %c0_332] : memref<16x16xf32, #tpu.memory_space<vmem>>, vector<1x16xf32>
    tpu.vector_store %arg19[%c5_331, %c0_332], %518 {strides = array<i32>} : memref<16x16xf32, #tpu.memory_space<vmem>>, vector<1x16xf32>,
    %520 = vector.extract_strided_slice %517 {offsets = [1, 0], sizes = [1, 16], strides = [1, 1]} : vector<2x16xf32> to vector<1x16xf32>
    %c10 = arith.constant 10 : index
    %c0_333 = arith.constant 0 : index
    %521 = vector.load %arg20[%c10, %c0_333] : memref<16x16xf32, #tpu.memory_space<vmem>>, vector<1x16xf32>
    tpu.vector_store %arg20[%c10, %c0_333], %520 {strides = array<i32>} : memref<16x16xf32, #tpu.memory_space<vmem>>, vector<1x16xf32>,
    %522 = vector.extract_strided_slice %282 {offsets = [6, 0], sizes = [1, 48], strides = [1, 1]} : vector<16x96xf32> to vector<1x48xf32>
    %523 = vector.extract_strided_slice %282 {offsets = [9, 48], sizes = [1, 48], strides = [1, 1]} : vector<16x96xf32> to vector<1x48xf32>
    %524 = tpu.concatenate %522, %523 in 0 : vector<1x48xf32>, vector<1x48xf32> -> vector<2x48xf32>
    %525 = tpu.concatenate %517, %517 in 1 : vector<2x16xf32>, vector<2x16xf32> -> vector<2x32xf32>
    %526 = arith.mulf %525, %275 : vector<2x32xf32>
    %cst_334 = arith.constant dense<0.000000e+00> : vector<2x48xf32>
    %527 = tpu.matmul %526, %284, %cst_334 {dimension_numbers = #tpu.dot_dimension_numbers<[1], [0], [0], [1], [0, 0, 1, 1], [], []>} : vector<2x32xf32>, vector<32x48xf32>, vector<2x48xf32> -> vector<2x48xf32>
    %528 = arith.addf %527, %286 : vector<2x48xf32>
    %529 = vector.extract_strided_slice %524 {offsets = [0, 0], sizes = [2, 16], strides = [1, 1]} : vector<2x48xf32> to vector<2x16xf32>
    %530 = vector.extract_strided_slice %528 {offsets = [0, 0], sizes = [2, 16], strides = [1, 1]} : vector<2x48xf32> to vector<2x16xf32>
    %531 = arith.addf %529, %530 : vector<2x16xf32>
    %cst_335 = arith.constant 0.000000e+00 : f32
    %532 = vector.broadcast %cst_335 : f32 to vector<2x16xf32>
    %533 = arith.subf %532, %531 : vector<2x16xf32>
    %534 = math.exp %533 : vector<2x16xf32>
    %cst_336 = arith.constant 1.000000e+00 : f32
    %535 = vector.broadcast %cst_336 : f32 to vector<2x16xf32>
    %536 = arith.addf %535, %534 : vector<2x16xf32>
    %537 = tpu.reciprocal %536 {approx = true} : vector<2x16xf32> -> vector<2x16xf32>
    %538 = vector.extract_strided_slice %524 {offsets = [0, 16], sizes = [2, 16], strides = [1, 1]} : vector<2x48xf32> to vector<2x16xf32>
    %539 = vector.extract_strided_slice %528 {offsets = [0, 16], sizes = [2, 16], strides = [1, 1]} : vector<2x48xf32> to vector<2x16xf32>
    %540 = arith.addf %538, %539 : vector<2x16xf32>
    %cst_337 = arith.constant 0.000000e+00 : f32
    %541 = vector.broadcast %cst_337 : f32 to vector<2x16xf32>
    %542 = arith.subf %541, %540 : vector<2x16xf32>
    %543 = math.exp %542 : vector<2x16xf32>
    %cst_338 = arith.constant 1.000000e+00 : f32
    %544 = vector.broadcast %cst_338 : f32 to vector<2x16xf32>
    %545 = arith.addf %544, %543 : vector<2x16xf32>
    %546 = tpu.reciprocal %545 {approx = true} : vector<2x16xf32> -> vector<2x16xf32>
    %547 = vector.extract_strided_slice %524 {offsets = [0, 32], sizes = [2, 16], strides = [1, 1]} : vector<2x48xf32> to vector<2x16xf32>
    %548 = vector.extract_strided_slice %528 {offsets = [0, 32], sizes = [2, 16], strides = [1, 1]} : vector<2x48xf32> to vector<2x16xf32>
    %549 = arith.mulf %537, %548 : vector<2x16xf32>
    %550 = arith.addf %547, %549 : vector<2x16xf32>
    %551 = math.tanh %550 : vector<2x16xf32>
    %cst_339 = arith.constant 1.000000e+00 : f32
    %552 = vector.broadcast %cst_339 : f32 to vector<2x16xf32>
    %553 = arith.subf %552, %546 : vector<2x16xf32>
    %554 = arith.mulf %553, %551 : vector<2x16xf32>
    %555 = arith.mulf %546, %517 : vector<2x16xf32>
    %556 = arith.addf %554, %555 : vector<2x16xf32>
    %557 = vector.extract_strided_slice %556 {offsets = [0, 0], sizes = [1, 16], strides = [1, 1]} : vector<2x16xf32> to vector<1x16xf32>
    %c6_340 = arith.constant 6 : index
    %c0_341 = arith.constant 0 : index
    %558 = vector.load %arg19[%c6_340, %c0_341] : memref<16x16xf32, #tpu.memory_space<vmem>>, vector<1x16xf32>
    tpu.vector_store %arg19[%c6_340, %c0_341], %557 {strides = array<i32>} : memref<16x16xf32, #tpu.memory_space<vmem>>, vector<1x16xf32>,
    %559 = vector.extract_strided_slice %556 {offsets = [1, 0], sizes = [1, 16], strides = [1, 1]} : vector<2x16xf32> to vector<1x16xf32>
    %c9 = arith.constant 9 : index
    %c0_342 = arith.constant 0 : index
    %560 = vector.load %arg20[%c9, %c0_342] : memref<16x16xf32, #tpu.memory_space<vmem>>, vector<1x16xf32>
    tpu.vector_store %arg20[%c9, %c0_342], %559 {strides = array<i32>} : memref<16x16xf32, #tpu.memory_space<vmem>>, vector<1x16xf32>,
    %561 = vector.extract_strided_slice %282 {offsets = [7, 0], sizes = [1, 48], strides = [1, 1]} : vector<16x96xf32> to vector<1x48xf32>
    %562 = vector.extract_strided_slice %282 {offsets = [8, 48], sizes = [1, 48], strides = [1, 1]} : vector<16x96xf32> to vector<1x48xf32>
    %563 = tpu.concatenate %561, %562 in 0 : vector<1x48xf32>, vector<1x48xf32> -> vector<2x48xf32>
    %564 = tpu.concatenate %556, %556 in 1 : vector<2x16xf32>, vector<2x16xf32> -> vector<2x32xf32>
    %565 = arith.mulf %564, %275 : vector<2x32xf32>
    %cst_343 = arith.constant dense<0.000000e+00> : vector<2x48xf32>
    %566 = tpu.matmul %565, %284, %cst_343 {dimension_numbers = #tpu.dot_dimension_numbers<[1], [0], [0], [1], [0, 0, 1, 1], [], []>} : vector<2x32xf32>, vector<32x48xf32>, vector<2x48xf32> -> vector<2x48xf32>
    %567 = arith.addf %566, %286 : vector<2x48xf32>
    %568 = vector.extract_strided_slice %563 {offsets = [0, 0], sizes = [2, 16], strides = [1, 1]} : vector<2x48xf32> to vector<2x16xf32>
    %569 = vector.extract_strided_slice %567 {offsets = [0, 0], sizes = [2, 16], strides = [1, 1]} : vector<2x48xf32> to vector<2x16xf32>
    %570 = arith.addf %568, %569 : vector<2x16xf32>
    %cst_344 = arith.constant 0.000000e+00 : f32
    %571 = vector.broadcast %cst_344 : f32 to vector<2x16xf32>
    %572 = arith.subf %571, %570 : vector<2x16xf32>
    %573 = math.exp %572 : vector<2x16xf32>
    %cst_345 = arith.constant 1.000000e+00 : f32
    %574 = vector.broadcast %cst_345 : f32 to vector<2x16xf32>
    %575 = arith.addf %574, %573 : vector<2x16xf32>
    %576 = tpu.reciprocal %575 {approx = true} : vector<2x16xf32> -> vector<2x16xf32>
    %577 = vector.extract_strided_slice %563 {offsets = [0, 16], sizes = [2, 16], strides = [1, 1]} : vector<2x48xf32> to vector<2x16xf32>
    %578 = vector.extract_strided_slice %567 {offsets = [0, 16], sizes = [2, 16], strides = [1, 1]} : vector<2x48xf32> to vector<2x16xf32>
    %579 = arith.addf %577, %578 : vector<2x16xf32>
    %cst_346 = arith.constant 0.000000e+00 : f32
    %580 = vector.broadcast %cst_346 : f32 to vector<2x16xf32>
    %581 = arith.subf %580, %579 : vector<2x16xf32>
    %582 = math.exp %581 : vector<2x16xf32>
    %cst_347 = arith.constant 1.000000e+00 : f32
    %583 = vector.broadcast %cst_347 : f32 to vector<2x16xf32>
    %584 = arith.addf %583, %582 : vector<2x16xf32>
    %585 = tpu.reciprocal %584 {approx = true} : vector<2x16xf32> -> vector<2x16xf32>
    %586 = vector.extract_strided_slice %563 {offsets = [0, 32], sizes = [2, 16], strides = [1, 1]} : vector<2x48xf32> to vector<2x16xf32>
    %587 = vector.extract_strided_slice %567 {offsets = [0, 32], sizes = [2, 16], strides = [1, 1]} : vector<2x48xf32> to vector<2x16xf32>
    %588 = arith.mulf %576, %587 : vector<2x16xf32>
    %589 = arith.addf %586, %588 : vector<2x16xf32>
    %590 = math.tanh %589 : vector<2x16xf32>
    %cst_348 = arith.constant 1.000000e+00 : f32
    %591 = vector.broadcast %cst_348 : f32 to vector<2x16xf32>
    %592 = arith.subf %591, %585 : vector<2x16xf32>
    %593 = arith.mulf %592, %590 : vector<2x16xf32>
    %594 = arith.mulf %585, %556 : vector<2x16xf32>
    %595 = arith.addf %593, %594 : vector<2x16xf32>
    %596 = vector.extract_strided_slice %595 {offsets = [0, 0], sizes = [1, 16], strides = [1, 1]} : vector<2x16xf32> to vector<1x16xf32>
    %c7_349 = arith.constant 7 : index
    %c0_350 = arith.constant 0 : index
    %597 = vector.load %arg19[%c7_349, %c0_350] : memref<16x16xf32, #tpu.memory_space<vmem>>, vector<1x16xf32>
    tpu.vector_store %arg19[%c7_349, %c0_350], %596 {strides = array<i32>} : memref<16x16xf32, #tpu.memory_space<vmem>>, vector<1x16xf32>,
    %598 = vector.extract_strided_slice %595 {offsets = [1, 0], sizes = [1, 16], strides = [1, 1]} : vector<2x16xf32> to vector<1x16xf32>
    %c8 = arith.constant 8 : index
    %c0_351 = arith.constant 0 : index
    %599 = vector.load %arg20[%c8, %c0_351] : memref<16x16xf32, #tpu.memory_space<vmem>>, vector<1x16xf32>
    tpu.vector_store %arg20[%c8, %c0_351], %598 {strides = array<i32>} : memref<16x16xf32, #tpu.memory_space<vmem>>, vector<1x16xf32>,
    %600 = vector.extract_strided_slice %282 {offsets = [8, 0], sizes = [1, 48], strides = [1, 1]} : vector<16x96xf32> to vector<1x48xf32>
    %601 = vector.extract_strided_slice %282 {offsets = [7, 48], sizes = [1, 48], strides = [1, 1]} : vector<16x96xf32> to vector<1x48xf32>
    %602 = tpu.concatenate %600, %601 in 0 : vector<1x48xf32>, vector<1x48xf32> -> vector<2x48xf32>
    %603 = tpu.concatenate %595, %595 in 1 : vector<2x16xf32>, vector<2x16xf32> -> vector<2x32xf32>
    %604 = arith.mulf %603, %275 : vector<2x32xf32>
    %cst_352 = arith.constant dense<0.000000e+00> : vector<2x48xf32>
    %605 = tpu.matmul %604, %284, %cst_352 {dimension_numbers = #tpu.dot_dimension_numbers<[1], [0], [0], [1], [0, 0, 1, 1], [], []>} : vector<2x32xf32>, vector<32x48xf32>, vector<2x48xf32> -> vector<2x48xf32>
    %606 = arith.addf %605, %286 : vector<2x48xf32>
    %607 = vector.extract_strided_slice %602 {offsets = [0, 0], sizes = [2, 16], strides = [1, 1]} : vector<2x48xf32> to vector<2x16xf32>
    %608 = vector.extract_strided_slice %606 {offsets = [0, 0], sizes = [2, 16], strides = [1, 1]} : vector<2x48xf32> to vector<2x16xf32>
    %609 = arith.addf %607, %608 : vector<2x16xf32>
    %cst_353 = arith.constant 0.000000e+00 : f32
    %610 = vector.broadcast %cst_353 : f32 to vector<2x16xf32>
    %611 = arith.subf %610, %609 : vector<2x16xf32>
    %612 = math.exp %611 : vector<2x16xf32>
    %cst_354 = arith.constant 1.000000e+00 : f32
    %613 = vector.broadcast %cst_354 : f32 to vector<2x16xf32>
    %614 = arith.addf %613, %612 : vector<2x16xf32>
    %615 = tpu.reciprocal %614 {approx = true} : vector<2x16xf32> -> vector<2x16xf32>
    %616 = vector.extract_strided_slice %602 {offsets = [0, 16], sizes = [2, 16], strides = [1, 1]} : vector<2x48xf32> to vector<2x16xf32>
    %617 = vector.extract_strided_slice %606 {offsets = [0, 16], sizes = [2, 16], strides = [1, 1]} : vector<2x48xf32> to vector<2x16xf32>
    %618 = arith.addf %616, %617 : vector<2x16xf32>
    %cst_355 = arith.constant 0.000000e+00 : f32
    %619 = vector.broadcast %cst_355 : f32 to vector<2x16xf32>
    %620 = arith.subf %619, %618 : vector<2x16xf32>
    %621 = math.exp %620 : vector<2x16xf32>
    %cst_356 = arith.constant 1.000000e+00 : f32
    %622 = vector.broadcast %cst_356 : f32 to vector<2x16xf32>
    %623 = arith.addf %622, %621 : vector<2x16xf32>
    %624 = tpu.reciprocal %623 {approx = true} : vector<2x16xf32> -> vector<2x16xf32>
    %625 = vector.extract_strided_slice %602 {offsets = [0, 32], sizes = [2, 16], strides = [1, 1]} : vector<2x48xf32> to vector<2x16xf32>
    %626 = vector.extract_strided_slice %606 {offsets = [0, 32], sizes = [2, 16], strides = [1, 1]} : vector<2x48xf32> to vector<2x16xf32>
    %627 = arith.mulf %615, %626 : vector<2x16xf32>
    %628 = arith.addf %625, %627 : vector<2x16xf32>
    %629 = math.tanh %628 : vector<2x16xf32>
    %cst_357 = arith.constant 1.000000e+00 : f32
    %630 = vector.broadcast %cst_357 : f32 to vector<2x16xf32>
    %631 = arith.subf %630, %624 : vector<2x16xf32>
    %632 = arith.mulf %631, %629 : vector<2x16xf32>
    %633 = arith.mulf %624, %595 : vector<2x16xf32>
    %634 = arith.addf %632, %633 : vector<2x16xf32>
    %635 = vector.extract_strided_slice %634 {offsets = [0, 0], sizes = [1, 16], strides = [1, 1]} : vector<2x16xf32> to vector<1x16xf32>
    %c8_358 = arith.constant 8 : index
    %c0_359 = arith.constant 0 : index
    %636 = vector.load %arg19[%c8_358, %c0_359] : memref<16x16xf32, #tpu.memory_space<vmem>>, vector<1x16xf32>
    tpu.vector_store %arg19[%c8_358, %c0_359], %635 {strides = array<i32>} : memref<16x16xf32, #tpu.memory_space<vmem>>, vector<1x16xf32>,
    %637 = vector.extract_strided_slice %634 {offsets = [1, 0], sizes = [1, 16], strides = [1, 1]} : vector<2x16xf32> to vector<1x16xf32>
    %c7_360 = arith.constant 7 : index
    %c0_361 = arith.constant 0 : index
    %638 = vector.load %arg20[%c7_360, %c0_361] : memref<16x16xf32, #tpu.memory_space<vmem>>, vector<1x16xf32>
    tpu.vector_store %arg20[%c7_360, %c0_361], %637 {strides = array<i32>} : memref<16x16xf32, #tpu.memory_space<vmem>>, vector<1x16xf32>,
    %639 = vector.extract_strided_slice %282 {offsets = [9, 0], sizes = [1, 48], strides = [1, 1]} : vector<16x96xf32> to vector<1x48xf32>
    %640 = vector.extract_strided_slice %282 {offsets = [6, 48], sizes = [1, 48], strides = [1, 1]} : vector<16x96xf32> to vector<1x48xf32>
    %641 = tpu.concatenate %639, %640 in 0 : vector<1x48xf32>, vector<1x48xf32> -> vector<2x48xf32>
    %642 = tpu.concatenate %634, %634 in 1 : vector<2x16xf32>, vector<2x16xf32> -> vector<2x32xf32>
    %643 = arith.mulf %642, %275 : vector<2x32xf32>
    %cst_362 = arith.constant dense<0.000000e+00> : vector<2x48xf32>
    %644 = tpu.matmul %643, %284, %cst_362 {dimension_numbers = #tpu.dot_dimension_numbers<[1], [0], [0], [1], [0, 0, 1, 1], [], []>} : vector<2x32xf32>, vector<32x48xf32>, vector<2x48xf32> -> vector<2x48xf32>
    %645 = arith.addf %644, %286 : vector<2x48xf32>
    %646 = vector.extract_strided_slice %641 {offsets = [0, 0], sizes = [2, 16], strides = [1, 1]} : vector<2x48xf32> to vector<2x16xf32>
    %647 = vector.extract_strided_slice %645 {offsets = [0, 0], sizes = [2, 16], strides = [1, 1]} : vector<2x48xf32> to vector<2x16xf32>
    %648 = arith.addf %646, %647 : vector<2x16xf32>
    %cst_363 = arith.constant 0.000000e+00 : f32
    %649 = vector.broadcast %cst_363 : f32 to vector<2x16xf32>
    %650 = arith.subf %649, %648 : vector<2x16xf32>
    %651 = math.exp %650 : vector<2x16xf32>
    %cst_364 = arith.constant 1.000000e+00 : f32
    %652 = vector.broadcast %cst_364 : f32 to vector<2x16xf32>
    %653 = arith.addf %652, %651 : vector<2x16xf32>
    %654 = tpu.reciprocal %653 {approx = true} : vector<2x16xf32> -> vector<2x16xf32>
    %655 = vector.extract_strided_slice %641 {offsets = [0, 16], sizes = [2, 16], strides = [1, 1]} : vector<2x48xf32> to vector<2x16xf32>
    %656 = vector.extract_strided_slice %645 {offsets = [0, 16], sizes = [2, 16], strides = [1, 1]} : vector<2x48xf32> to vector<2x16xf32>
    %657 = arith.addf %655, %656 : vector<2x16xf32>
    %cst_365 = arith.constant 0.000000e+00 : f32
    %658 = vector.broadcast %cst_365 : f32 to vector<2x16xf32>
    %659 = arith.subf %658, %657 : vector<2x16xf32>
    %660 = math.exp %659 : vector<2x16xf32>
    %cst_366 = arith.constant 1.000000e+00 : f32
    %661 = vector.broadcast %cst_366 : f32 to vector<2x16xf32>
    %662 = arith.addf %661, %660 : vector<2x16xf32>
    %663 = tpu.reciprocal %662 {approx = true} : vector<2x16xf32> -> vector<2x16xf32>
    %664 = vector.extract_strided_slice %641 {offsets = [0, 32], sizes = [2, 16], strides = [1, 1]} : vector<2x48xf32> to vector<2x16xf32>
    %665 = vector.extract_strided_slice %645 {offsets = [0, 32], sizes = [2, 16], strides = [1, 1]} : vector<2x48xf32> to vector<2x16xf32>
    %666 = arith.mulf %654, %665 : vector<2x16xf32>
    %667 = arith.addf %664, %666 : vector<2x16xf32>
    %668 = math.tanh %667 : vector<2x16xf32>
    %cst_367 = arith.constant 1.000000e+00 : f32
    %669 = vector.broadcast %cst_367 : f32 to vector<2x16xf32>
    %670 = arith.subf %669, %663 : vector<2x16xf32>
    %671 = arith.mulf %670, %668 : vector<2x16xf32>
    %672 = arith.mulf %663, %634 : vector<2x16xf32>
    %673 = arith.addf %671, %672 : vector<2x16xf32>
    %674 = vector.extract_strided_slice %673 {offsets = [0, 0], sizes = [1, 16], strides = [1, 1]} : vector<2x16xf32> to vector<1x16xf32>
    %c9_368 = arith.constant 9 : index
    %c0_369 = arith.constant 0 : index
    %675 = vector.load %arg19[%c9_368, %c0_369] : memref<16x16xf32, #tpu.memory_space<vmem>>, vector<1x16xf32>
    tpu.vector_store %arg19[%c9_368, %c0_369], %674 {strides = array<i32>} : memref<16x16xf32, #tpu.memory_space<vmem>>, vector<1x16xf32>,
    %676 = vector.extract_strided_slice %673 {offsets = [1, 0], sizes = [1, 16], strides = [1, 1]} : vector<2x16xf32> to vector<1x16xf32>
    %c6_370 = arith.constant 6 : index
    %c0_371 = arith.constant 0 : index
    %677 = vector.load %arg20[%c6_370, %c0_371] : memref<16x16xf32, #tpu.memory_space<vmem>>, vector<1x16xf32>
    tpu.vector_store %arg20[%c6_370, %c0_371], %676 {strides = array<i32>} : memref<16x16xf32, #tpu.memory_space<vmem>>, vector<1x16xf32>,
    %678 = vector.extract_strided_slice %282 {offsets = [10, 0], sizes = [1, 48], strides = [1, 1]} : vector<16x96xf32> to vector<1x48xf32>
    %679 = vector.extract_strided_slice %282 {offsets = [5, 48], sizes = [1, 48], strides = [1, 1]} : vector<16x96xf32> to vector<1x48xf32>
    %680 = tpu.concatenate %678, %679 in 0 : vector<1x48xf32>, vector<1x48xf32> -> vector<2x48xf32>
    %681 = tpu.concatenate %673, %673 in 1 : vector<2x16xf32>, vector<2x16xf32> -> vector<2x32xf32>
    %682 = arith.mulf %681, %275 : vector<2x32xf32>
    %cst_372 = arith.constant dense<0.000000e+00> : vector<2x48xf32>
    %683 = tpu.matmul %682, %284, %cst_372 {dimension_numbers = #tpu.dot_dimension_numbers<[1], [0], [0], [1], [0, 0, 1, 1], [], []>} : vector<2x32xf32>, vector<32x48xf32>, vector<2x48xf32> -> vector<2x48xf32>
    %684 = arith.addf %683, %286 : vector<2x48xf32>
    %685 = vector.extract_strided_slice %680 {offsets = [0, 0], sizes = [2, 16], strides = [1, 1]} : vector<2x48xf32> to vector<2x16xf32>
    %686 = vector.extract_strided_slice %684 {offsets = [0, 0], sizes = [2, 16], strides = [1, 1]} : vector<2x48xf32> to vector<2x16xf32>
    %687 = arith.addf %685, %686 : vector<2x16xf32>
    %cst_373 = arith.constant 0.000000e+00 : f32
    %688 = vector.broadcast %cst_373 : f32 to vector<2x16xf32>
    %689 = arith.subf %688, %687 : vector<2x16xf32>
    %690 = math.exp %689 : vector<2x16xf32>
    %cst_374 = arith.constant 1.000000e+00 : f32
    %691 = vector.broadcast %cst_374 : f32 to vector<2x16xf32>
    %692 = arith.addf %691, %690 : vector<2x16xf32>
    %693 = tpu.reciprocal %692 {approx = true} : vector<2x16xf32> -> vector<2x16xf32>
    %694 = vector.extract_strided_slice %680 {offsets = [0, 16], sizes = [2, 16], strides = [1, 1]} : vector<2x48xf32> to vector<2x16xf32>
    %695 = vector.extract_strided_slice %684 {offsets = [0, 16], sizes = [2, 16], strides = [1, 1]} : vector<2x48xf32> to vector<2x16xf32>
    %696 = arith.addf %694, %695 : vector<2x16xf32>
    %cst_375 = arith.constant 0.000000e+00 : f32
    %697 = vector.broadcast %cst_375 : f32 to vector<2x16xf32>
    %698 = arith.subf %697, %696 : vector<2x16xf32>
    %699 = math.exp %698 : vector<2x16xf32>
    %cst_376 = arith.constant 1.000000e+00 : f32
    %700 = vector.broadcast %cst_376 : f32 to vector<2x16xf32>
    %701 = arith.addf %700, %699 : vector<2x16xf32>
    %702 = tpu.reciprocal %701 {approx = true} : vector<2x16xf32> -> vector<2x16xf32>
    %703 = vector.extract_strided_slice %680 {offsets = [0, 32], sizes = [2, 16], strides = [1, 1]} : vector<2x48xf32> to vector<2x16xf32>
    %704 = vector.extract_strided_slice %684 {offsets = [0, 32], sizes = [2, 16], strides = [1, 1]} : vector<2x48xf32> to vector<2x16xf32>
    %705 = arith.mulf %693, %704 : vector<2x16xf32>
    %706 = arith.addf %703, %705 : vector<2x16xf32>
    %707 = math.tanh %706 : vector<2x16xf32>
    %cst_377 = arith.constant 1.000000e+00 : f32
    %708 = vector.broadcast %cst_377 : f32 to vector<2x16xf32>
    %709 = arith.subf %708, %702 : vector<2x16xf32>
    %710 = arith.mulf %709, %707 : vector<2x16xf32>
    %711 = arith.mulf %702, %673 : vector<2x16xf32>
    %712 = arith.addf %710, %711 : vector<2x16xf32>
    %713 = vector.extract_strided_slice %712 {offsets = [0, 0], sizes = [1, 16], strides = [1, 1]} : vector<2x16xf32> to vector<1x16xf32>
    %c10_378 = arith.constant 10 : index
    %c0_379 = arith.constant 0 : index
    %714 = vector.load %arg19[%c10_378, %c0_379] : memref<16x16xf32, #tpu.memory_space<vmem>>, vector<1x16xf32>
    tpu.vector_store %arg19[%c10_378, %c0_379], %713 {strides = array<i32>} : memref<16x16xf32, #tpu.memory_space<vmem>>, vector<1x16xf32>,
    %715 = vector.extract_strided_slice %712 {offsets = [1, 0], sizes = [1, 16], strides = [1, 1]} : vector<2x16xf32> to vector<1x16xf32>
    %c5_380 = arith.constant 5 : index
    %c0_381 = arith.constant 0 : index
    %716 = vector.load %arg20[%c5_380, %c0_381] : memref<16x16xf32, #tpu.memory_space<vmem>>, vector<1x16xf32>
    tpu.vector_store %arg20[%c5_380, %c0_381], %715 {strides = array<i32>} : memref<16x16xf32, #tpu.memory_space<vmem>>, vector<1x16xf32>,
    %717 = vector.extract_strided_slice %282 {offsets = [11, 0], sizes = [1, 48], strides = [1, 1]} : vector<16x96xf32> to vector<1x48xf32>
    %718 = vector.extract_strided_slice %282 {offsets = [4, 48], sizes = [1, 48], strides = [1, 1]} : vector<16x96xf32> to vector<1x48xf32>
    %719 = tpu.concatenate %717, %718 in 0 : vector<1x48xf32>, vector<1x48xf32> -> vector<2x48xf32>
    %720 = tpu.concatenate %712, %712 in 1 : vector<2x16xf32>, vector<2x16xf32> -> vector<2x32xf32>
    %721 = arith.mulf %720, %275 : vector<2x32xf32>
    %cst_382 = arith.constant dense<0.000000e+00> : vector<2x48xf32>
    %722 = tpu.matmul %721, %284, %cst_382 {dimension_numbers = #tpu.dot_dimension_numbers<[1], [0], [0], [1], [0, 0, 1, 1], [], []>} : vector<2x32xf32>, vector<32x48xf32>, vector<2x48xf32> -> vector<2x48xf32>
    %723 = arith.addf %722, %286 : vector<2x48xf32>
    %724 = vector.extract_strided_slice %719 {offsets = [0, 0], sizes = [2, 16], strides = [1, 1]} : vector<2x48xf32> to vector<2x16xf32>
    %725 = vector.extract_strided_slice %723 {offsets = [0, 0], sizes = [2, 16], strides = [1, 1]} : vector<2x48xf32> to vector<2x16xf32>
    %726 = arith.addf %724, %725 : vector<2x16xf32>
    %cst_383 = arith.constant 0.000000e+00 : f32
    %727 = vector.broadcast %cst_383 : f32 to vector<2x16xf32>
    %728 = arith.subf %727, %726 : vector<2x16xf32>
    %729 = math.exp %728 : vector<2x16xf32>
    %cst_384 = arith.constant 1.000000e+00 : f32
    %730 = vector.broadcast %cst_384 : f32 to vector<2x16xf32>
    %731 = arith.addf %730, %729 : vector<2x16xf32>
    %732 = tpu.reciprocal %731 {approx = true} : vector<2x16xf32> -> vector<2x16xf32>
    %733 = vector.extract_strided_slice %719 {offsets = [0, 16], sizes = [2, 16], strides = [1, 1]} : vector<2x48xf32> to vector<2x16xf32>
    %734 = vector.extract_strided_slice %723 {offsets = [0, 16], sizes = [2, 16], strides = [1, 1]} : vector<2x48xf32> to vector<2x16xf32>
    %735 = arith.addf %733, %734 : vector<2x16xf32>
    %cst_385 = arith.constant 0.000000e+00 : f32
    %736 = vector.broadcast %cst_385 : f32 to vector<2x16xf32>
    %737 = arith.subf %736, %735 : vector<2x16xf32>
    %738 = math.exp %737 : vector<2x16xf32>
    %cst_386 = arith.constant 1.000000e+00 : f32
    %739 = vector.broadcast %cst_386 : f32 to vector<2x16xf32>
    %740 = arith.addf %739, %738 : vector<2x16xf32>
    %741 = tpu.reciprocal %740 {approx = true} : vector<2x16xf32> -> vector<2x16xf32>
    %742 = vector.extract_strided_slice %719 {offsets = [0, 32], sizes = [2, 16], strides = [1, 1]} : vector<2x48xf32> to vector<2x16xf32>
    %743 = vector.extract_strided_slice %723 {offsets = [0, 32], sizes = [2, 16], strides = [1, 1]} : vector<2x48xf32> to vector<2x16xf32>
    %744 = arith.mulf %732, %743 : vector<2x16xf32>
    %745 = arith.addf %742, %744 : vector<2x16xf32>
    %746 = math.tanh %745 : vector<2x16xf32>
    %cst_387 = arith.constant 1.000000e+00 : f32
    %747 = vector.broadcast %cst_387 : f32 to vector<2x16xf32>
    %748 = arith.subf %747, %741 : vector<2x16xf32>
    %749 = arith.mulf %748, %746 : vector<2x16xf32>
    %750 = arith.mulf %741, %712 : vector<2x16xf32>
    %751 = arith.addf %749, %750 : vector<2x16xf32>
    %752 = vector.extract_strided_slice %751 {offsets = [0, 0], sizes = [1, 16], strides = [1, 1]} : vector<2x16xf32> to vector<1x16xf32>
    %c11_388 = arith.constant 11 : index
    %c0_389 = arith.constant 0 : index
    %753 = vector.load %arg19[%c11_388, %c0_389] : memref<16x16xf32, #tpu.memory_space<vmem>>, vector<1x16xf32>
    tpu.vector_store %arg19[%c11_388, %c0_389], %752 {strides = array<i32>} : memref<16x16xf32, #tpu.memory_space<vmem>>, vector<1x16xf32>,
    %754 = vector.extract_strided_slice %751 {offsets = [1, 0], sizes = [1, 16], strides = [1, 1]} : vector<2x16xf32> to vector<1x16xf32>
    %c4_390 = arith.constant 4 : index
    %c0_391 = arith.constant 0 : index
    %755 = vector.load %arg20[%c4_390, %c0_391] : memref<16x16xf32, #tpu.memory_space<vmem>>, vector<1x16xf32>
    tpu.vector_store %arg20[%c4_390, %c0_391], %754 {strides = array<i32>} : memref<16x16xf32, #tpu.memory_space<vmem>>, vector<1x16xf32>,
    %756 = vector.extract_strided_slice %282 {offsets = [12, 0], sizes = [1, 48], strides = [1, 1]} : vector<16x96xf32> to vector<1x48xf32>
    %757 = vector.extract_strided_slice %282 {offsets = [3, 48], sizes = [1, 48], strides = [1, 1]} : vector<16x96xf32> to vector<1x48xf32>
    %758 = tpu.concatenate %756, %757 in 0 : vector<1x48xf32>, vector<1x48xf32> -> vector<2x48xf32>
    %759 = tpu.concatenate %751, %751 in 1 : vector<2x16xf32>, vector<2x16xf32> -> vector<2x32xf32>
    %760 = arith.mulf %759, %275 : vector<2x32xf32>
    %cst_392 = arith.constant dense<0.000000e+00> : vector<2x48xf32>
    %761 = tpu.matmul %760, %284, %cst_392 {dimension_numbers = #tpu.dot_dimension_numbers<[1], [0], [0], [1], [0, 0, 1, 1], [], []>} : vector<2x32xf32>, vector<32x48xf32>, vector<2x48xf32> -> vector<2x48xf32>
    %762 = arith.addf %761, %286 : vector<2x48xf32>
    %763 = vector.extract_strided_slice %758 {offsets = [0, 0], sizes = [2, 16], strides = [1, 1]} : vector<2x48xf32> to vector<2x16xf32>
    %764 = vector.extract_strided_slice %762 {offsets = [0, 0], sizes = [2, 16], strides = [1, 1]} : vector<2x48xf32> to vector<2x16xf32>
    %765 = arith.addf %763, %764 : vector<2x16xf32>
    %cst_393 = arith.constant 0.000000e+00 : f32
    %766 = vector.broadcast %cst_393 : f32 to vector<2x16xf32>
    %767 = arith.subf %766, %765 : vector<2x16xf32>
    %768 = math.exp %767 : vector<2x16xf32>
    %cst_394 = arith.constant 1.000000e+00 : f32
    %769 = vector.broadcast %cst_394 : f32 to vector<2x16xf32>
    %770 = arith.addf %769, %768 : vector<2x16xf32>
    %771 = tpu.reciprocal %770 {approx = true} : vector<2x16xf32> -> vector<2x16xf32>
    %772 = vector.extract_strided_slice %758 {offsets = [0, 16], sizes = [2, 16], strides = [1, 1]} : vector<2x48xf32> to vector<2x16xf32>
    %773 = vector.extract_strided_slice %762 {offsets = [0, 16], sizes = [2, 16], strides = [1, 1]} : vector<2x48xf32> to vector<2x16xf32>
    %774 = arith.addf %772, %773 : vector<2x16xf32>
    %cst_395 = arith.constant 0.000000e+00 : f32
    %775 = vector.broadcast %cst_395 : f32 to vector<2x16xf32>
    %776 = arith.subf %775, %774 : vector<2x16xf32>
    %777 = math.exp %776 : vector<2x16xf32>
    %cst_396 = arith.constant 1.000000e+00 : f32
    %778 = vector.broadcast %cst_396 : f32 to vector<2x16xf32>
    %779 = arith.addf %778, %777 : vector<2x16xf32>
    %780 = tpu.reciprocal %779 {approx = true} : vector<2x16xf32> -> vector<2x16xf32>
    %781 = vector.extract_strided_slice %758 {offsets = [0, 32], sizes = [2, 16], strides = [1, 1]} : vector<2x48xf32> to vector<2x16xf32>
    %782 = vector.extract_strided_slice %762 {offsets = [0, 32], sizes = [2, 16], strides = [1, 1]} : vector<2x48xf32> to vector<2x16xf32>
    %783 = arith.mulf %771, %782 : vector<2x16xf32>
    %784 = arith.addf %781, %783 : vector<2x16xf32>
    %785 = math.tanh %784 : vector<2x16xf32>
    %cst_397 = arith.constant 1.000000e+00 : f32
    %786 = vector.broadcast %cst_397 : f32 to vector<2x16xf32>
    %787 = arith.subf %786, %780 : vector<2x16xf32>
    %788 = arith.mulf %787, %785 : vector<2x16xf32>
    %789 = arith.mulf %780, %751 : vector<2x16xf32>
    %790 = arith.addf %788, %789 : vector<2x16xf32>
    %791 = vector.extract_strided_slice %790 {offsets = [0, 0], sizes = [1, 16], strides = [1, 1]} : vector<2x16xf32> to vector<1x16xf32>
    %c12_398 = arith.constant 12 : index
    %c0_399 = arith.constant 0 : index
    %792 = vector.load %arg19[%c12_398, %c0_399] : memref<16x16xf32, #tpu.memory_space<vmem>>, vector<1x16xf32>
    tpu.vector_store %arg19[%c12_398, %c0_399], %791 {strides = array<i32>} : memref<16x16xf32, #tpu.memory_space<vmem>>, vector<1x16xf32>,
    %793 = vector.extract_strided_slice %790 {offsets = [1, 0], sizes = [1, 16], strides = [1, 1]} : vector<2x16xf32> to vector<1x16xf32>
    %c3_400 = arith.constant 3 : index
    %c0_401 = arith.constant 0 : index
    %794 = vector.load %arg20[%c3_400, %c0_401] : memref<16x16xf32, #tpu.memory_space<vmem>>, vector<1x16xf32>
    tpu.vector_store %arg20[%c3_400, %c0_401], %793 {strides = array<i32>} : memref<16x16xf32, #tpu.memory_space<vmem>>, vector<1x16xf32>,
    %795 = vector.extract_strided_slice %282 {offsets = [13, 0], sizes = [1, 48], strides = [1, 1]} : vector<16x96xf32> to vector<1x48xf32>
    %796 = vector.extract_strided_slice %282 {offsets = [2, 48], sizes = [1, 48], strides = [1, 1]} : vector<16x96xf32> to vector<1x48xf32>
    %797 = tpu.concatenate %795, %796 in 0 : vector<1x48xf32>, vector<1x48xf32> -> vector<2x48xf32>
    %798 = tpu.concatenate %790, %790 in 1 : vector<2x16xf32>, vector<2x16xf32> -> vector<2x32xf32>
    %799 = arith.mulf %798, %275 : vector<2x32xf32>
    %cst_402 = arith.constant dense<0.000000e+00> : vector<2x48xf32>
    %800 = tpu.matmul %799, %284, %cst_402 {dimension_numbers = #tpu.dot_dimension_numbers<[1], [0], [0], [1], [0, 0, 1, 1], [], []>} : vector<2x32xf32>, vector<32x48xf32>, vector<2x48xf32> -> vector<2x48xf32>
    %801 = arith.addf %800, %286 : vector<2x48xf32>
    %802 = vector.extract_strided_slice %797 {offsets = [0, 0], sizes = [2, 16], strides = [1, 1]} : vector<2x48xf32> to vector<2x16xf32>
    %803 = vector.extract_strided_slice %801 {offsets = [0, 0], sizes = [2, 16], strides = [1, 1]} : vector<2x48xf32> to vector<2x16xf32>
    %804 = arith.addf %802, %803 : vector<2x16xf32>
    %cst_403 = arith.constant 0.000000e+00 : f32
    %805 = vector.broadcast %cst_403 : f32 to vector<2x16xf32>
    %806 = arith.subf %805, %804 : vector<2x16xf32>
    %807 = math.exp %806 : vector<2x16xf32>
    %cst_404 = arith.constant 1.000000e+00 : f32
    %808 = vector.broadcast %cst_404 : f32 to vector<2x16xf32>
    %809 = arith.addf %808, %807 : vector<2x16xf32>
    %810 = tpu.reciprocal %809 {approx = true} : vector<2x16xf32> -> vector<2x16xf32>
    %811 = vector.extract_strided_slice %797 {offsets = [0, 16], sizes = [2, 16], strides = [1, 1]} : vector<2x48xf32> to vector<2x16xf32>
    %812 = vector.extract_strided_slice %801 {offsets = [0, 16], sizes = [2, 16], strides = [1, 1]} : vector<2x48xf32> to vector<2x16xf32>
    %813 = arith.addf %811, %812 : vector<2x16xf32>
    %cst_405 = arith.constant 0.000000e+00 : f32
    %814 = vector.broadcast %cst_405 : f32 to vector<2x16xf32>
    %815 = arith.subf %814, %813 : vector<2x16xf32>
    %816 = math.exp %815 : vector<2x16xf32>
    %cst_406 = arith.constant 1.000000e+00 : f32
    %817 = vector.broadcast %cst_406 : f32 to vector<2x16xf32>
    %818 = arith.addf %817, %816 : vector<2x16xf32>
    %819 = tpu.reciprocal %818 {approx = true} : vector<2x16xf32> -> vector<2x16xf32>
    %820 = vector.extract_strided_slice %797 {offsets = [0, 32], sizes = [2, 16], strides = [1, 1]} : vector<2x48xf32> to vector<2x16xf32>
    %821 = vector.extract_strided_slice %801 {offsets = [0, 32], sizes = [2, 16], strides = [1, 1]} : vector<2x48xf32> to vector<2x16xf32>
    %822 = arith.mulf %810, %821 : vector<2x16xf32>
    %823 = arith.addf %820, %822 : vector<2x16xf32>
    %824 = math.tanh %823 : vector<2x16xf32>
    %cst_407 = arith.constant 1.000000e+00 : f32
    %825 = vector.broadcast %cst_407 : f32 to vector<2x16xf32>
    %826 = arith.subf %825, %819 : vector<2x16xf32>
    %827 = arith.mulf %826, %824 : vector<2x16xf32>
    %828 = arith.mulf %819, %790 : vector<2x16xf32>
    %829 = arith.addf %827, %828 : vector<2x16xf32>
    %830 = vector.extract_strided_slice %829 {offsets = [0, 0], sizes = [1, 16], strides = [1, 1]} : vector<2x16xf32> to vector<1x16xf32>
    %c13_408 = arith.constant 13 : index
    %c0_409 = arith.constant 0 : index
    %831 = vector.load %arg19[%c13_408, %c0_409] : memref<16x16xf32, #tpu.memory_space<vmem>>, vector<1x16xf32>
    tpu.vector_store %arg19[%c13_408, %c0_409], %830 {strides = array<i32>} : memref<16x16xf32, #tpu.memory_space<vmem>>, vector<1x16xf32>,
    %832 = vector.extract_strided_slice %829 {offsets = [1, 0], sizes = [1, 16], strides = [1, 1]} : vector<2x16xf32> to vector<1x16xf32>
    %c2_410 = arith.constant 2 : index
    %c0_411 = arith.constant 0 : index
    %833 = vector.load %arg20[%c2_410, %c0_411] : memref<16x16xf32, #tpu.memory_space<vmem>>, vector<1x16xf32>
    tpu.vector_store %arg20[%c2_410, %c0_411], %832 {strides = array<i32>} : memref<16x16xf32, #tpu.memory_space<vmem>>, vector<1x16xf32>,
    %834 = vector.extract_strided_slice %282 {offsets = [14, 0], sizes = [1, 48], strides = [1, 1]} : vector<16x96xf32> to vector<1x48xf32>
    %835 = vector.extract_strided_slice %282 {offsets = [1, 48], sizes = [1, 48], strides = [1, 1]} : vector<16x96xf32> to vector<1x48xf32>
    %836 = tpu.concatenate %834, %835 in 0 : vector<1x48xf32>, vector<1x48xf32> -> vector<2x48xf32>
    %837 = tpu.concatenate %829, %829 in 1 : vector<2x16xf32>, vector<2x16xf32> -> vector<2x32xf32>
    %838 = arith.mulf %837, %275 : vector<2x32xf32>
    %cst_412 = arith.constant dense<0.000000e+00> : vector<2x48xf32>
    %839 = tpu.matmul %838, %284, %cst_412 {dimension_numbers = #tpu.dot_dimension_numbers<[1], [0], [0], [1], [0, 0, 1, 1], [], []>} : vector<2x32xf32>, vector<32x48xf32>, vector<2x48xf32> -> vector<2x48xf32>
    %840 = arith.addf %839, %286 : vector<2x48xf32>
    %841 = vector.extract_strided_slice %836 {offsets = [0, 0], sizes = [2, 16], strides = [1, 1]} : vector<2x48xf32> to vector<2x16xf32>
    %842 = vector.extract_strided_slice %840 {offsets = [0, 0], sizes = [2, 16], strides = [1, 1]} : vector<2x48xf32> to vector<2x16xf32>
    %843 = arith.addf %841, %842 : vector<2x16xf32>
    %cst_413 = arith.constant 0.000000e+00 : f32
    %844 = vector.broadcast %cst_413 : f32 to vector<2x16xf32>
    %845 = arith.subf %844, %843 : vector<2x16xf32>
    %846 = math.exp %845 : vector<2x16xf32>
    %cst_414 = arith.constant 1.000000e+00 : f32
    %847 = vector.broadcast %cst_414 : f32 to vector<2x16xf32>
    %848 = arith.addf %847, %846 : vector<2x16xf32>
    %849 = tpu.reciprocal %848 {approx = true} : vector<2x16xf32> -> vector<2x16xf32>
    %850 = vector.extract_strided_slice %836 {offsets = [0, 16], sizes = [2, 16], strides = [1, 1]} : vector<2x48xf32> to vector<2x16xf32>
    %851 = vector.extract_strided_slice %840 {offsets = [0, 16], sizes = [2, 16], strides = [1, 1]} : vector<2x48xf32> to vector<2x16xf32>
    %852 = arith.addf %850, %851 : vector<2x16xf32>
    %cst_415 = arith.constant 0.000000e+00 : f32
    %853 = vector.broadcast %cst_415 : f32 to vector<2x16xf32>
    %854 = arith.subf %853, %852 : vector<2x16xf32>
    %855 = math.exp %854 : vector<2x16xf32>
    %cst_416 = arith.constant 1.000000e+00 : f32
    %856 = vector.broadcast %cst_416 : f32 to vector<2x16xf32>
    %857 = arith.addf %856, %855 : vector<2x16xf32>
    %858 = tpu.reciprocal %857 {approx = true} : vector<2x16xf32> -> vector<2x16xf32>
    %859 = vector.extract_strided_slice %836 {offsets = [0, 32], sizes = [2, 16], strides = [1, 1]} : vector<2x48xf32> to vector<2x16xf32>
    %860 = vector.extract_strided_slice %840 {offsets = [0, 32], sizes = [2, 16], strides = [1, 1]} : vector<2x48xf32> to vector<2x16xf32>
    %861 = arith.mulf %849, %860 : vector<2x16xf32>
    %862 = arith.addf %859, %861 : vector<2x16xf32>
    %863 = math.tanh %862 : vector<2x16xf32>
    %cst_417 = arith.constant 1.000000e+00 : f32
    %864 = vector.broadcast %cst_417 : f32 to vector<2x16xf32>
    %865 = arith.subf %864, %858 : vector<2x16xf32>
    %866 = arith.mulf %865, %863 : vector<2x16xf32>
    %867 = arith.mulf %858, %829 : vector<2x16xf32>
    %868 = arith.addf %866, %867 : vector<2x16xf32>
    %869 = vector.extract_strided_slice %868 {offsets = [0, 0], sizes = [1, 16], strides = [1, 1]} : vector<2x16xf32> to vector<1x16xf32>
    %c14_418 = arith.constant 14 : index
    %c0_419 = arith.constant 0 : index
    %870 = vector.load %arg19[%c14_418, %c0_419] : memref<16x16xf32, #tpu.memory_space<vmem>>, vector<1x16xf32>
    tpu.vector_store %arg19[%c14_418, %c0_419], %869 {strides = array<i32>} : memref<16x16xf32, #tpu.memory_space<vmem>>, vector<1x16xf32>,
    %871 = vector.extract_strided_slice %868 {offsets = [1, 0], sizes = [1, 16], strides = [1, 1]} : vector<2x16xf32> to vector<1x16xf32>
    %c1_420 = arith.constant 1 : index
    %c0_421 = arith.constant 0 : index
    %872 = vector.load %arg20[%c1_420, %c0_421] : memref<16x16xf32, #tpu.memory_space<vmem>>, vector<1x16xf32>
    tpu.vector_store %arg20[%c1_420, %c0_421], %871 {strides = array<i32>} : memref<16x16xf32, #tpu.memory_space<vmem>>, vector<1x16xf32>,
    %873 = vector.extract_strided_slice %282 {offsets = [15, 0], sizes = [1, 48], strides = [1, 1]} : vector<16x96xf32> to vector<1x48xf32>
    %874 = vector.extract_strided_slice %282 {offsets = [0, 48], sizes = [1, 48], strides = [1, 1]} : vector<16x96xf32> to vector<1x48xf32>
    %875 = tpu.concatenate %873, %874 in 0 : vector<1x48xf32>, vector<1x48xf32> -> vector<2x48xf32>
    %876 = tpu.concatenate %868, %868 in 1 : vector<2x16xf32>, vector<2x16xf32> -> vector<2x32xf32>
    %877 = arith.mulf %876, %275 : vector<2x32xf32>
    %cst_422 = arith.constant dense<0.000000e+00> : vector<2x48xf32>
    %878 = tpu.matmul %877, %284, %cst_422 {dimension_numbers = #tpu.dot_dimension_numbers<[1], [0], [0], [1], [0, 0, 1, 1], [], []>} : vector<2x32xf32>, vector<32x48xf32>, vector<2x48xf32> -> vector<2x48xf32>
    %879 = arith.addf %878, %286 : vector<2x48xf32>
    %880 = vector.extract_strided_slice %875 {offsets = [0, 0], sizes = [2, 16], strides = [1, 1]} : vector<2x48xf32> to vector<2x16xf32>
    %881 = vector.extract_strided_slice %879 {offsets = [0, 0], sizes = [2, 16], strides = [1, 1]} : vector<2x48xf32> to vector<2x16xf32>
    %882 = arith.addf %880, %881 : vector<2x16xf32>
    %cst_423 = arith.constant 0.000000e+00 : f32
    %883 = vector.broadcast %cst_423 : f32 to vector<2x16xf32>
    %884 = arith.subf %883, %882 : vector<2x16xf32>
    %885 = math.exp %884 : vector<2x16xf32>
    %cst_424 = arith.constant 1.000000e+00 : f32
    %886 = vector.broadcast %cst_424 : f32 to vector<2x16xf32>
    %887 = arith.addf %886, %885 : vector<2x16xf32>
    %888 = tpu.reciprocal %887 {approx = true} : vector<2x16xf32> -> vector<2x16xf32>
    %889 = vector.extract_strided_slice %875 {offsets = [0, 16], sizes = [2, 16], strides = [1, 1]} : vector<2x48xf32> to vector<2x16xf32>
    %890 = vector.extract_strided_slice %879 {offsets = [0, 16], sizes = [2, 16], strides = [1, 1]} : vector<2x48xf32> to vector<2x16xf32>
    %891 = arith.addf %889, %890 : vector<2x16xf32>
    %cst_425 = arith.constant 0.000000e+00 : f32
    %892 = vector.broadcast %cst_425 : f32 to vector<2x16xf32>
    %893 = arith.subf %892, %891 : vector<2x16xf32>
    %894 = math.exp %893 : vector<2x16xf32>
    %cst_426 = arith.constant 1.000000e+00 : f32
    %895 = vector.broadcast %cst_426 : f32 to vector<2x16xf32>
    %896 = arith.addf %895, %894 : vector<2x16xf32>
    %897 = tpu.reciprocal %896 {approx = true} : vector<2x16xf32> -> vector<2x16xf32>
    %898 = vector.extract_strided_slice %875 {offsets = [0, 32], sizes = [2, 16], strides = [1, 1]} : vector<2x48xf32> to vector<2x16xf32>
    %899 = vector.extract_strided_slice %879 {offsets = [0, 32], sizes = [2, 16], strides = [1, 1]} : vector<2x48xf32> to vector<2x16xf32>
    %900 = arith.mulf %888, %899 : vector<2x16xf32>
    %901 = arith.addf %898, %900 : vector<2x16xf32>
    %902 = math.tanh %901 : vector<2x16xf32>
    %cst_427 = arith.constant 1.000000e+00 : f32
    %903 = vector.broadcast %cst_427 : f32 to vector<2x16xf32>
    %904 = arith.subf %903, %897 : vector<2x16xf32>
    %905 = arith.mulf %904, %902 : vector<2x16xf32>
    %906 = arith.mulf %897, %868 : vector<2x16xf32>
    %907 = arith.addf %905, %906 : vector<2x16xf32>
    %908 = vector.extract_strided_slice %907 {offsets = [0, 0], sizes = [1, 16], strides = [1, 1]} : vector<2x16xf32> to vector<1x16xf32>
    %c15_428 = arith.constant 15 : index
    %c0_429 = arith.constant 0 : index
    %909 = vector.load %arg19[%c15_428, %c0_429] : memref<16x16xf32, #tpu.memory_space<vmem>>, vector<1x16xf32>
    tpu.vector_store %arg19[%c15_428, %c0_429], %908 {strides = array<i32>} : memref<16x16xf32, #tpu.memory_space<vmem>>, vector<1x16xf32>,
    %910 = vector.extract_strided_slice %907 {offsets = [1, 0], sizes = [1, 16], strides = [1, 1]} : vector<2x16xf32> to vector<1x16xf32>
    %c0_430 = arith.constant 0 : index
    %c0_431 = arith.constant 0 : index
    %911 = vector.load %arg20[%c0_430, %c0_431] : memref<16x16xf32, #tpu.memory_space<vmem>>, vector<1x16xf32>
    tpu.vector_store %arg20[%c0_430, %c0_431], %910 {strides = array<i32>} : memref<16x16xf32, #tpu.memory_space<vmem>>, vector<1x16xf32>,
    %c0_432 = arith.constant 0 : index
    %c0_433 = arith.constant 0 : index
    %912 = vector.load %arg19[%c0_432, %c0_433] : memref<16x16xf32, #tpu.memory_space<vmem>>, vector<16x16xf32>
    %c0_434 = arith.constant 0 : index
    %c0_435 = arith.constant 0 : index
    %913 = vector.load %arg20[%c0_434, %c0_435] : memref<16x16xf32, #tpu.memory_space<vmem>>, vector<16x16xf32>
    %914 = tpu.concatenate %912, %913 in 1 : vector<16x16xf32>, vector<16x16xf32> -> vector<16x32xf32>
    %c1_436 = arith.constant 1 : index
    %c0_437 = arith.constant 0 : index
    %c0_438 = arith.constant 0 : index
    %915 = vector.load %arg11[%c1_436, %c0_437, %c0_438] : memref<2x32x96xf32, #tpu.memory_space<vmem>>, vector<1x32x96xf32>
    %916 = vector.shape_cast %915 : vector<1x32x96xf32> to vector<32x96xf32>
    %cst_439 = arith.constant dense<0.000000e+00> : vector<16x96xf32>
    %917 = tpu.matmul %914, %916, %cst_439 {dimension_numbers = #tpu.dot_dimension_numbers<[1], [0], [0], [1], [0, 0, 1, 1], [], []>} : vector<16x32xf32>, vector<32x96xf32>, vector<16x96xf32> -> vector<16x96xf32>
    %c1_440 = arith.constant 1 : index
    %c0_441 = arith.constant 0 : index
    %c0_442 = arith.constant 0 : index
    %918 = vector.load %arg12[%c1_440, %c0_441, %c0_442] : memref<2x1x96xf32, #tpu.memory_space<vmem>>, vector<1x1x96xf32>
    %919 = vector.shape_cast %918 : vector<1x1x96xf32> to vector<1x96xf32>
    %920 = vector.broadcast %919 : vector<1x96xf32> to vector<16x96xf32>
    %921 = arith.addf %917, %920 : vector<16x96xf32>
    %c1_443 = arith.constant 1 : index
    %c0_444 = arith.constant 0 : index
    %c0_445 = arith.constant 0 : index
    %922 = vector.load %arg13[%c1_443, %c0_444, %c0_445] : memref<2x32x48xf32, #tpu.memory_space<vmem>>, vector<1x32x48xf32>
    %923 = vector.shape_cast %922 : vector<1x32x48xf32> to vector<32x48xf32>
    %c1_446 = arith.constant 1 : index
    %c0_447 = arith.constant 0 : index
    %c0_448 = arith.constant 0 : index
    %924 = vector.load %arg14[%c1_446, %c0_447, %c0_448] : memref<2x2x48xf32, #tpu.memory_space<vmem>>, vector<1x2x48xf32>
    %925 = vector.shape_cast %924 : vector<1x2x48xf32> to vector<2x48xf32>
    %cst_449 = arith.constant 0.000000e+00 : f32
    %926 = vector.broadcast %cst_449 : f32 to vector<2x16xf32>
    %927 = vector.extract_strided_slice %921 {offsets = [0, 0], sizes = [1, 48], strides = [1, 1]} : vector<16x96xf32> to vector<1x48xf32>
    %928 = vector.extract_strided_slice %921 {offsets = [15, 48], sizes = [1, 48], strides = [1, 1]} : vector<16x96xf32> to vector<1x48xf32>
    %929 = tpu.concatenate %927, %928 in 0 : vector<1x48xf32>, vector<1x48xf32> -> vector<2x48xf32>
    %930 = tpu.concatenate %926, %926 in 1 : vector<2x16xf32>, vector<2x16xf32> -> vector<2x32xf32>
    %931 = arith.mulf %930, %275 : vector<2x32xf32>
    %cst_450 = arith.constant dense<0.000000e+00> : vector<2x48xf32>
    %932 = tpu.matmul %931, %923, %cst_450 {dimension_numbers = #tpu.dot_dimension_numbers<[1], [0], [0], [1], [0, 0, 1, 1], [], []>} : vector<2x32xf32>, vector<32x48xf32>, vector<2x48xf32> -> vector<2x48xf32>
    %933 = arith.addf %932, %925 : vector<2x48xf32>
    %934 = vector.extract_strided_slice %929 {offsets = [0, 0], sizes = [2, 16], strides = [1, 1]} : vector<2x48xf32> to vector<2x16xf32>
    %935 = vector.extract_strided_slice %933 {offsets = [0, 0], sizes = [2, 16], strides = [1, 1]} : vector<2x48xf32> to vector<2x16xf32>
    %936 = arith.addf %934, %935 : vector<2x16xf32>
    %cst_451 = arith.constant 0.000000e+00 : f32
    %937 = vector.broadcast %cst_451 : f32 to vector<2x16xf32>
    %938 = arith.subf %937, %936 : vector<2x16xf32>
    %939 = math.exp %938 : vector<2x16xf32>
    %cst_452 = arith.constant 1.000000e+00 : f32
    %940 = vector.broadcast %cst_452 : f32 to vector<2x16xf32>
    %941 = arith.addf %940, %939 : vector<2x16xf32>
    %942 = tpu.reciprocal %941 {approx = true} : vector<2x16xf32> -> vector<2x16xf32>
    %943 = vector.extract_strided_slice %929 {offsets = [0, 16], sizes = [2, 16], strides = [1, 1]} : vector<2x48xf32> to vector<2x16xf32>
    %944 = vector.extract_strided_slice %933 {offsets = [0, 16], sizes = [2, 16], strides = [1, 1]} : vector<2x48xf32> to vector<2x16xf32>
    %945 = arith.addf %943, %944 : vector<2x16xf32>
    %cst_453 = arith.constant 0.000000e+00 : f32
    %946 = vector.broadcast %cst_453 : f32 to vector<2x16xf32>
    %947 = arith.subf %946, %945 : vector<2x16xf32>
    %948 = math.exp %947 : vector<2x16xf32>
    %cst_454 = arith.constant 1.000000e+00 : f32
    %949 = vector.broadcast %cst_454 : f32 to vector<2x16xf32>
    %950 = arith.addf %949, %948 : vector<2x16xf32>
    %951 = tpu.reciprocal %950 {approx = true} : vector<2x16xf32> -> vector<2x16xf32>
    %952 = vector.extract_strided_slice %929 {offsets = [0, 32], sizes = [2, 16], strides = [1, 1]} : vector<2x48xf32> to vector<2x16xf32>
    %953 = vector.extract_strided_slice %933 {offsets = [0, 32], sizes = [2, 16], strides = [1, 1]} : vector<2x48xf32> to vector<2x16xf32>
    %954 = arith.mulf %942, %953 : vector<2x16xf32>
    %955 = arith.addf %952, %954 : vector<2x16xf32>
    %956 = math.tanh %955 : vector<2x16xf32>
    %cst_455 = arith.constant 1.000000e+00 : f32
    %957 = vector.broadcast %cst_455 : f32 to vector<2x16xf32>
    %958 = arith.subf %957, %951 : vector<2x16xf32>
    %959 = arith.mulf %958, %956 : vector<2x16xf32>
    %960 = arith.mulf %951, %926 : vector<2x16xf32>
    %961 = arith.addf %959, %960 : vector<2x16xf32>
    %962 = vector.extract_strided_slice %961 {offsets = [0, 0], sizes = [1, 16], strides = [1, 1]} : vector<2x16xf32> to vector<1x16xf32>
    %c0_456 = arith.constant 0 : index
    %c0_457 = arith.constant 0 : index
    %963 = vector.load %arg19[%c0_456, %c0_457] : memref<16x16xf32, #tpu.memory_space<vmem>>, vector<1x16xf32>
    tpu.vector_store %arg19[%c0_456, %c0_457], %962 {strides = array<i32>} : memref<16x16xf32, #tpu.memory_space<vmem>>, vector<1x16xf32>,
    %964 = vector.extract_strided_slice %961 {offsets = [1, 0], sizes = [1, 16], strides = [1, 1]} : vector<2x16xf32> to vector<1x16xf32>
    %c15_458 = arith.constant 15 : index
    %c0_459 = arith.constant 0 : index
    %965 = vector.load %arg20[%c15_458, %c0_459] : memref<16x16xf32, #tpu.memory_space<vmem>>, vector<1x16xf32>
    tpu.vector_store %arg20[%c15_458, %c0_459], %964 {strides = array<i32>} : memref<16x16xf32, #tpu.memory_space<vmem>>, vector<1x16xf32>,
    %966 = vector.extract_strided_slice %921 {offsets = [1, 0], sizes = [1, 48], strides = [1, 1]} : vector<16x96xf32> to vector<1x48xf32>
    %967 = vector.extract_strided_slice %921 {offsets = [14, 48], sizes = [1, 48], strides = [1, 1]} : vector<16x96xf32> to vector<1x48xf32>
    %968 = tpu.concatenate %966, %967 in 0 : vector<1x48xf32>, vector<1x48xf32> -> vector<2x48xf32>
    %969 = tpu.concatenate %961, %961 in 1 : vector<2x16xf32>, vector<2x16xf32> -> vector<2x32xf32>
    %970 = arith.mulf %969, %275 : vector<2x32xf32>
    %cst_460 = arith.constant dense<0.000000e+00> : vector<2x48xf32>
    %971 = tpu.matmul %970, %923, %cst_460 {dimension_numbers = #tpu.dot_dimension_numbers<[1], [0], [0], [1], [0, 0, 1, 1], [], []>} : vector<2x32xf32>, vector<32x48xf32>, vector<2x48xf32> -> vector<2x48xf32>
    %972 = arith.addf %971, %925 : vector<2x48xf32>
    %973 = vector.extract_strided_slice %968 {offsets = [0, 0], sizes = [2, 16], strides = [1, 1]} : vector<2x48xf32> to vector<2x16xf32>
    %974 = vector.extract_strided_slice %972 {offsets = [0, 0], sizes = [2, 16], strides = [1, 1]} : vector<2x48xf32> to vector<2x16xf32>
    %975 = arith.addf %973, %974 : vector<2x16xf32>
    %cst_461 = arith.constant 0.000000e+00 : f32
    %976 = vector.broadcast %cst_461 : f32 to vector<2x16xf32>
    %977 = arith.subf %976, %975 : vector<2x16xf32>
    %978 = math.exp %977 : vector<2x16xf32>
    %cst_462 = arith.constant 1.000000e+00 : f32
    %979 = vector.broadcast %cst_462 : f32 to vector<2x16xf32>
    %980 = arith.addf %979, %978 : vector<2x16xf32>
    %981 = tpu.reciprocal %980 {approx = true} : vector<2x16xf32> -> vector<2x16xf32>
    %982 = vector.extract_strided_slice %968 {offsets = [0, 16], sizes = [2, 16], strides = [1, 1]} : vector<2x48xf32> to vector<2x16xf32>
    %983 = vector.extract_strided_slice %972 {offsets = [0, 16], sizes = [2, 16], strides = [1, 1]} : vector<2x48xf32> to vector<2x16xf32>
    %984 = arith.addf %982, %983 : vector<2x16xf32>
    %cst_463 = arith.constant 0.000000e+00 : f32
    %985 = vector.broadcast %cst_463 : f32 to vector<2x16xf32>
    %986 = arith.subf %985, %984 : vector<2x16xf32>
    %987 = math.exp %986 : vector<2x16xf32>
    %cst_464 = arith.constant 1.000000e+00 : f32
    %988 = vector.broadcast %cst_464 : f32 to vector<2x16xf32>
    %989 = arith.addf %988, %987 : vector<2x16xf32>
    %990 = tpu.reciprocal %989 {approx = true} : vector<2x16xf32> -> vector<2x16xf32>
    %991 = vector.extract_strided_slice %968 {offsets = [0, 32], sizes = [2, 16], strides = [1, 1]} : vector<2x48xf32> to vector<2x16xf32>
    %992 = vector.extract_strided_slice %972 {offsets = [0, 32], sizes = [2, 16], strides = [1, 1]} : vector<2x48xf32> to vector<2x16xf32>
    %993 = arith.mulf %981, %992 : vector<2x16xf32>
    %994 = arith.addf %991, %993 : vector<2x16xf32>
    %995 = math.tanh %994 : vector<2x16xf32>
    %cst_465 = arith.constant 1.000000e+00 : f32
    %996 = vector.broadcast %cst_465 : f32 to vector<2x16xf32>
    %997 = arith.subf %996, %990 : vector<2x16xf32>
    %998 = arith.mulf %997, %995 : vector<2x16xf32>
    %999 = arith.mulf %990, %961 : vector<2x16xf32>
    %1000 = arith.addf %998, %999 : vector<2x16xf32>
    %1001 = vector.extract_strided_slice %1000 {offsets = [0, 0], sizes = [1, 16], strides = [1, 1]} : vector<2x16xf32> to vector<1x16xf32>
    %c1_466 = arith.constant 1 : index
    %c0_467 = arith.constant 0 : index
    %1002 = vector.load %arg19[%c1_466, %c0_467] : memref<16x16xf32, #tpu.memory_space<vmem>>, vector<1x16xf32>
    tpu.vector_store %arg19[%c1_466, %c0_467], %1001 {strides = array<i32>} : memref<16x16xf32, #tpu.memory_space<vmem>>, vector<1x16xf32>,
    %1003 = vector.extract_strided_slice %1000 {offsets = [1, 0], sizes = [1, 16], strides = [1, 1]} : vector<2x16xf32> to vector<1x16xf32>
    %c14_468 = arith.constant 14 : index
    %c0_469 = arith.constant 0 : index
    %1004 = vector.load %arg20[%c14_468, %c0_469] : memref<16x16xf32, #tpu.memory_space<vmem>>, vector<1x16xf32>
    tpu.vector_store %arg20[%c14_468, %c0_469], %1003 {strides = array<i32>} : memref<16x16xf32, #tpu.memory_space<vmem>>, vector<1x16xf32>,
    %1005 = vector.extract_strided_slice %921 {offsets = [2, 0], sizes = [1, 48], strides = [1, 1]} : vector<16x96xf32> to vector<1x48xf32>
    %1006 = vector.extract_strided_slice %921 {offsets = [13, 48], sizes = [1, 48], strides = [1, 1]} : vector<16x96xf32> to vector<1x48xf32>
    %1007 = tpu.concatenate %1005, %1006 in 0 : vector<1x48xf32>, vector<1x48xf32> -> vector<2x48xf32>
    %1008 = tpu.concatenate %1000, %1000 in 1 : vector<2x16xf32>, vector<2x16xf32> -> vector<2x32xf32>
    %1009 = arith.mulf %1008, %275 : vector<2x32xf32>
    %cst_470 = arith.constant dense<0.000000e+00> : vector<2x48xf32>
    %1010 = tpu.matmul %1009, %923, %cst_470 {dimension_numbers = #tpu.dot_dimension_numbers<[1], [0], [0], [1], [0, 0, 1, 1], [], []>} : vector<2x32xf32>, vector<32x48xf32>, vector<2x48xf32> -> vector<2x48xf32>
    %1011 = arith.addf %1010, %925 : vector<2x48xf32>
    %1012 = vector.extract_strided_slice %1007 {offsets = [0, 0], sizes = [2, 16], strides = [1, 1]} : vector<2x48xf32> to vector<2x16xf32>
    %1013 = vector.extract_strided_slice %1011 {offsets = [0, 0], sizes = [2, 16], strides = [1, 1]} : vector<2x48xf32> to vector<2x16xf32>
    %1014 = arith.addf %1012, %1013 : vector<2x16xf32>
    %cst_471 = arith.constant 0.000000e+00 : f32
    %1015 = vector.broadcast %cst_471 : f32 to vector<2x16xf32>
    %1016 = arith.subf %1015, %1014 : vector<2x16xf32>
    %1017 = math.exp %1016 : vector<2x16xf32>
    %cst_472 = arith.constant 1.000000e+00 : f32
    %1018 = vector.broadcast %cst_472 : f32 to vector<2x16xf32>
    %1019 = arith.addf %1018, %1017 : vector<2x16xf32>
    %1020 = tpu.reciprocal %1019 {approx = true} : vector<2x16xf32> -> vector<2x16xf32>
    %1021 = vector.extract_strided_slice %1007 {offsets = [0, 16], sizes = [2, 16], strides = [1, 1]} : vector<2x48xf32> to vector<2x16xf32>
    %1022 = vector.extract_strided_slice %1011 {offsets = [0, 16], sizes = [2, 16], strides = [1, 1]} : vector<2x48xf32> to vector<2x16xf32>
    %1023 = arith.addf %1021, %1022 : vector<2x16xf32>
    %cst_473 = arith.constant 0.000000e+00 : f32
    %1024 = vector.broadcast %cst_473 : f32 to vector<2x16xf32>
    %1025 = arith.subf %1024, %1023 : vector<2x16xf32>
    %1026 = math.exp %1025 : vector<2x16xf32>
    %cst_474 = arith.constant 1.000000e+00 : f32
    %1027 = vector.broadcast %cst_474 : f32 to vector<2x16xf32>
    %1028 = arith.addf %1027, %1026 : vector<2x16xf32>
    %1029 = tpu.reciprocal %1028 {approx = true} : vector<2x16xf32> -> vector<2x16xf32>
    %1030 = vector.extract_strided_slice %1007 {offsets = [0, 32], sizes = [2, 16], strides = [1, 1]} : vector<2x48xf32> to vector<2x16xf32>
    %1031 = vector.extract_strided_slice %1011 {offsets = [0, 32], sizes = [2, 16], strides = [1, 1]} : vector<2x48xf32> to vector<2x16xf32>
    %1032 = arith.mulf %1020, %1031 : vector<2x16xf32>
    %1033 = arith.addf %1030, %1032 : vector<2x16xf32>
    %1034 = math.tanh %1033 : vector<2x16xf32>
    %cst_475 = arith.constant 1.000000e+00 : f32
    %1035 = vector.broadcast %cst_475 : f32 to vector<2x16xf32>
    %1036 = arith.subf %1035, %1029 : vector<2x16xf32>
    %1037 = arith.mulf %1036, %1034 : vector<2x16xf32>
    %1038 = arith.mulf %1029, %1000 : vector<2x16xf32>
    %1039 = arith.addf %1037, %1038 : vector<2x16xf32>
    %1040 = vector.extract_strided_slice %1039 {offsets = [0, 0], sizes = [1, 16], strides = [1, 1]} : vector<2x16xf32> to vector<1x16xf32>
    %c2_476 = arith.constant 2 : index
    %c0_477 = arith.constant 0 : index
    %1041 = vector.load %arg19[%c2_476, %c0_477] : memref<16x16xf32, #tpu.memory_space<vmem>>, vector<1x16xf32>
    tpu.vector_store %arg19[%c2_476, %c0_477], %1040 {strides = array<i32>} : memref<16x16xf32, #tpu.memory_space<vmem>>, vector<1x16xf32>,
    %1042 = vector.extract_strided_slice %1039 {offsets = [1, 0], sizes = [1, 16], strides = [1, 1]} : vector<2x16xf32> to vector<1x16xf32>
    %c13_478 = arith.constant 13 : index
    %c0_479 = arith.constant 0 : index
    %1043 = vector.load %arg20[%c13_478, %c0_479] : memref<16x16xf32, #tpu.memory_space<vmem>>, vector<1x16xf32>
    tpu.vector_store %arg20[%c13_478, %c0_479], %1042 {strides = array<i32>} : memref<16x16xf32, #tpu.memory_space<vmem>>, vector<1x16xf32>,
    %1044 = vector.extract_strided_slice %921 {offsets = [3, 0], sizes = [1, 48], strides = [1, 1]} : vector<16x96xf32> to vector<1x48xf32>
    %1045 = vector.extract_strided_slice %921 {offsets = [12, 48], sizes = [1, 48], strides = [1, 1]} : vector<16x96xf32> to vector<1x48xf32>
    %1046 = tpu.concatenate %1044, %1045 in 0 : vector<1x48xf32>, vector<1x48xf32> -> vector<2x48xf32>
    %1047 = tpu.concatenate %1039, %1039 in 1 : vector<2x16xf32>, vector<2x16xf32> -> vector<2x32xf32>
    %1048 = arith.mulf %1047, %275 : vector<2x32xf32>
    %cst_480 = arith.constant dense<0.000000e+00> : vector<2x48xf32>
    %1049 = tpu.matmul %1048, %923, %cst_480 {dimension_numbers = #tpu.dot_dimension_numbers<[1], [0], [0], [1], [0, 0, 1, 1], [], []>} : vector<2x32xf32>, vector<32x48xf32>, vector<2x48xf32> -> vector<2x48xf32>
    %1050 = arith.addf %1049, %925 : vector<2x48xf32>
    %1051 = vector.extract_strided_slice %1046 {offsets = [0, 0], sizes = [2, 16], strides = [1, 1]} : vector<2x48xf32> to vector<2x16xf32>
    %1052 = vector.extract_strided_slice %1050 {offsets = [0, 0], sizes = [2, 16], strides = [1, 1]} : vector<2x48xf32> to vector<2x16xf32>
    %1053 = arith.addf %1051, %1052 : vector<2x16xf32>
    %cst_481 = arith.constant 0.000000e+00 : f32
    %1054 = vector.broadcast %cst_481 : f32 to vector<2x16xf32>
    %1055 = arith.subf %1054, %1053 : vector<2x16xf32>
    %1056 = math.exp %1055 : vector<2x16xf32>
    %cst_482 = arith.constant 1.000000e+00 : f32
    %1057 = vector.broadcast %cst_482 : f32 to vector<2x16xf32>
    %1058 = arith.addf %1057, %1056 : vector<2x16xf32>
    %1059 = tpu.reciprocal %1058 {approx = true} : vector<2x16xf32> -> vector<2x16xf32>
    %1060 = vector.extract_strided_slice %1046 {offsets = [0, 16], sizes = [2, 16], strides = [1, 1]} : vector<2x48xf32> to vector<2x16xf32>
    %1061 = vector.extract_strided_slice %1050 {offsets = [0, 16], sizes = [2, 16], strides = [1, 1]} : vector<2x48xf32> to vector<2x16xf32>
    %1062 = arith.addf %1060, %1061 : vector<2x16xf32>
    %cst_483 = arith.constant 0.000000e+00 : f32
    %1063 = vector.broadcast %cst_483 : f32 to vector<2x16xf32>
    %1064 = arith.subf %1063, %1062 : vector<2x16xf32>
    %1065 = math.exp %1064 : vector<2x16xf32>
    %cst_484 = arith.constant 1.000000e+00 : f32
    %1066 = vector.broadcast %cst_484 : f32 to vector<2x16xf32>
    %1067 = arith.addf %1066, %1065 : vector<2x16xf32>
    %1068 = tpu.reciprocal %1067 {approx = true} : vector<2x16xf32> -> vector<2x16xf32>
    %1069 = vector.extract_strided_slice %1046 {offsets = [0, 32], sizes = [2, 16], strides = [1, 1]} : vector<2x48xf32> to vector<2x16xf32>
    %1070 = vector.extract_strided_slice %1050 {offsets = [0, 32], sizes = [2, 16], strides = [1, 1]} : vector<2x48xf32> to vector<2x16xf32>
    %1071 = arith.mulf %1059, %1070 : vector<2x16xf32>
    %1072 = arith.addf %1069, %1071 : vector<2x16xf32>
    %1073 = math.tanh %1072 : vector<2x16xf32>
    %cst_485 = arith.constant 1.000000e+00 : f32
    %1074 = vector.broadcast %cst_485 : f32 to vector<2x16xf32>
    %1075 = arith.subf %1074, %1068 : vector<2x16xf32>
    %1076 = arith.mulf %1075, %1073 : vector<2x16xf32>
    %1077 = arith.mulf %1068, %1039 : vector<2x16xf32>
    %1078 = arith.addf %1076, %1077 : vector<2x16xf32>
    %1079 = vector.extract_strided_slice %1078 {offsets = [0, 0], sizes = [1, 16], strides = [1, 1]} : vector<2x16xf32> to vector<1x16xf32>
    %c3_486 = arith.constant 3 : index
    %c0_487 = arith.constant 0 : index
    %1080 = vector.load %arg19[%c3_486, %c0_487] : memref<16x16xf32, #tpu.memory_space<vmem>>, vector<1x16xf32>
    tpu.vector_store %arg19[%c3_486, %c0_487], %1079 {strides = array<i32>} : memref<16x16xf32, #tpu.memory_space<vmem>>, vector<1x16xf32>,
    %1081 = vector.extract_strided_slice %1078 {offsets = [1, 0], sizes = [1, 16], strides = [1, 1]} : vector<2x16xf32> to vector<1x16xf32>
    %c12_488 = arith.constant 12 : index
    %c0_489 = arith.constant 0 : index
    %1082 = vector.load %arg20[%c12_488, %c0_489] : memref<16x16xf32, #tpu.memory_space<vmem>>, vector<1x16xf32>
    tpu.vector_store %arg20[%c12_488, %c0_489], %1081 {strides = array<i32>} : memref<16x16xf32, #tpu.memory_space<vmem>>, vector<1x16xf32>,
    %1083 = vector.extract_strided_slice %921 {offsets = [4, 0], sizes = [1, 48], strides = [1, 1]} : vector<16x96xf32> to vector<1x48xf32>
    %1084 = vector.extract_strided_slice %921 {offsets = [11, 48], sizes = [1, 48], strides = [1, 1]} : vector<16x96xf32> to vector<1x48xf32>
    %1085 = tpu.concatenate %1083, %1084 in 0 : vector<1x48xf32>, vector<1x48xf32> -> vector<2x48xf32>
    %1086 = tpu.concatenate %1078, %1078 in 1 : vector<2x16xf32>, vector<2x16xf32> -> vector<2x32xf32>
    %1087 = arith.mulf %1086, %275 : vector<2x32xf32>
    %cst_490 = arith.constant dense<0.000000e+00> : vector<2x48xf32>
    %1088 = tpu.matmul %1087, %923, %cst_490 {dimension_numbers = #tpu.dot_dimension_numbers<[1], [0], [0], [1], [0, 0, 1, 1], [], []>} : vector<2x32xf32>, vector<32x48xf32>, vector<2x48xf32> -> vector<2x48xf32>
    %1089 = arith.addf %1088, %925 : vector<2x48xf32>
    %1090 = vector.extract_strided_slice %1085 {offsets = [0, 0], sizes = [2, 16], strides = [1, 1]} : vector<2x48xf32> to vector<2x16xf32>
    %1091 = vector.extract_strided_slice %1089 {offsets = [0, 0], sizes = [2, 16], strides = [1, 1]} : vector<2x48xf32> to vector<2x16xf32>
    %1092 = arith.addf %1090, %1091 : vector<2x16xf32>
    %cst_491 = arith.constant 0.000000e+00 : f32
    %1093 = vector.broadcast %cst_491 : f32 to vector<2x16xf32>
    %1094 = arith.subf %1093, %1092 : vector<2x16xf32>
    %1095 = math.exp %1094 : vector<2x16xf32>
    %cst_492 = arith.constant 1.000000e+00 : f32
    %1096 = vector.broadcast %cst_492 : f32 to vector<2x16xf32>
    %1097 = arith.addf %1096, %1095 : vector<2x16xf32>
    %1098 = tpu.reciprocal %1097 {approx = true} : vector<2x16xf32> -> vector<2x16xf32>
    %1099 = vector.extract_strided_slice %1085 {offsets = [0, 16], sizes = [2, 16], strides = [1, 1]} : vector<2x48xf32> to vector<2x16xf32>
    %1100 = vector.extract_strided_slice %1089 {offsets = [0, 16], sizes = [2, 16], strides = [1, 1]} : vector<2x48xf32> to vector<2x16xf32>
    %1101 = arith.addf %1099, %1100 : vector<2x16xf32>
    %cst_493 = arith.constant 0.000000e+00 : f32
    %1102 = vector.broadcast %cst_493 : f32 to vector<2x16xf32>
    %1103 = arith.subf %1102, %1101 : vector<2x16xf32>
    %1104 = math.exp %1103 : vector<2x16xf32>
    %cst_494 = arith.constant 1.000000e+00 : f32
    %1105 = vector.broadcast %cst_494 : f32 to vector<2x16xf32>
    %1106 = arith.addf %1105, %1104 : vector<2x16xf32>
    %1107 = tpu.reciprocal %1106 {approx = true} : vector<2x16xf32> -> vector<2x16xf32>
    %1108 = vector.extract_strided_slice %1085 {offsets = [0, 32], sizes = [2, 16], strides = [1, 1]} : vector<2x48xf32> to vector<2x16xf32>
    %1109 = vector.extract_strided_slice %1089 {offsets = [0, 32], sizes = [2, 16], strides = [1, 1]} : vector<2x48xf32> to vector<2x16xf32>
    %1110 = arith.mulf %1098, %1109 : vector<2x16xf32>
    %1111 = arith.addf %1108, %1110 : vector<2x16xf32>
    %1112 = math.tanh %1111 : vector<2x16xf32>
    %cst_495 = arith.constant 1.000000e+00 : f32
    %1113 = vector.broadcast %cst_495 : f32 to vector<2x16xf32>
    %1114 = arith.subf %1113, %1107 : vector<2x16xf32>
    %1115 = arith.mulf %1114, %1112 : vector<2x16xf32>
    %1116 = arith.mulf %1107, %1078 : vector<2x16xf32>
    %1117 = arith.addf %1115, %1116 : vector<2x16xf32>
    %1118 = vector.extract_strided_slice %1117 {offsets = [0, 0], sizes = [1, 16], strides = [1, 1]} : vector<2x16xf32> to vector<1x16xf32>
    %c4_496 = arith.constant 4 : index
    %c0_497 = arith.constant 0 : index
    %1119 = vector.load %arg19[%c4_496, %c0_497] : memref<16x16xf32, #tpu.memory_space<vmem>>, vector<1x16xf32>
    tpu.vector_store %arg19[%c4_496, %c0_497], %1118 {strides = array<i32>} : memref<16x16xf32, #tpu.memory_space<vmem>>, vector<1x16xf32>,
    %1120 = vector.extract_strided_slice %1117 {offsets = [1, 0], sizes = [1, 16], strides = [1, 1]} : vector<2x16xf32> to vector<1x16xf32>
    %c11_498 = arith.constant 11 : index
    %c0_499 = arith.constant 0 : index
    %1121 = vector.load %arg20[%c11_498, %c0_499] : memref<16x16xf32, #tpu.memory_space<vmem>>, vector<1x16xf32>
    tpu.vector_store %arg20[%c11_498, %c0_499], %1120 {strides = array<i32>} : memref<16x16xf32, #tpu.memory_space<vmem>>, vector<1x16xf32>,
    %1122 = vector.extract_strided_slice %921 {offsets = [5, 0], sizes = [1, 48], strides = [1, 1]} : vector<16x96xf32> to vector<1x48xf32>
    %1123 = vector.extract_strided_slice %921 {offsets = [10, 48], sizes = [1, 48], strides = [1, 1]} : vector<16x96xf32> to vector<1x48xf32>
    %1124 = tpu.concatenate %1122, %1123 in 0 : vector<1x48xf32>, vector<1x48xf32> -> vector<2x48xf32>
    %1125 = tpu.concatenate %1117, %1117 in 1 : vector<2x16xf32>, vector<2x16xf32> -> vector<2x32xf32>
    %1126 = arith.mulf %1125, %275 : vector<2x32xf32>
    %cst_500 = arith.constant dense<0.000000e+00> : vector<2x48xf32>
    %1127 = tpu.matmul %1126, %923, %cst_500 {dimension_numbers = #tpu.dot_dimension_numbers<[1], [0], [0], [1], [0, 0, 1, 1], [], []>} : vector<2x32xf32>, vector<32x48xf32>, vector<2x48xf32> -> vector<2x48xf32>
    %1128 = arith.addf %1127, %925 : vector<2x48xf32>
    %1129 = vector.extract_strided_slice %1124 {offsets = [0, 0], sizes = [2, 16], strides = [1, 1]} : vector<2x48xf32> to vector<2x16xf32>
    %1130 = vector.extract_strided_slice %1128 {offsets = [0, 0], sizes = [2, 16], strides = [1, 1]} : vector<2x48xf32> to vector<2x16xf32>
    %1131 = arith.addf %1129, %1130 : vector<2x16xf32>
    %cst_501 = arith.constant 0.000000e+00 : f32
    %1132 = vector.broadcast %cst_501 : f32 to vector<2x16xf32>
    %1133 = arith.subf %1132, %1131 : vector<2x16xf32>
    %1134 = math.exp %1133 : vector<2x16xf32>
    %cst_502 = arith.constant 1.000000e+00 : f32
    %1135 = vector.broadcast %cst_502 : f32 to vector<2x16xf32>
    %1136 = arith.addf %1135, %1134 : vector<2x16xf32>
    %1137 = tpu.reciprocal %1136 {approx = true} : vector<2x16xf32> -> vector<2x16xf32>
    %1138 = vector.extract_strided_slice %1124 {offsets = [0, 16], sizes = [2, 16], strides = [1, 1]} : vector<2x48xf32> to vector<2x16xf32>
    %1139 = vector.extract_strided_slice %1128 {offsets = [0, 16], sizes = [2, 16], strides = [1, 1]} : vector<2x48xf32> to vector<2x16xf32>
    %1140 = arith.addf %1138, %1139 : vector<2x16xf32>
    %cst_503 = arith.constant 0.000000e+00 : f32
    %1141 = vector.broadcast %cst_503 : f32 to vector<2x16xf32>
    %1142 = arith.subf %1141, %1140 : vector<2x16xf32>
    %1143 = math.exp %1142 : vector<2x16xf32>
    %cst_504 = arith.constant 1.000000e+00 : f32
    %1144 = vector.broadcast %cst_504 : f32 to vector<2x16xf32>
    %1145 = arith.addf %1144, %1143 : vector<2x16xf32>
    %1146 = tpu.reciprocal %1145 {approx = true} : vector<2x16xf32> -> vector<2x16xf32>
    %1147 = vector.extract_strided_slice %1124 {offsets = [0, 32], sizes = [2, 16], strides = [1, 1]} : vector<2x48xf32> to vector<2x16xf32>
    %1148 = vector.extract_strided_slice %1128 {offsets = [0, 32], sizes = [2, 16], strides = [1, 1]} : vector<2x48xf32> to vector<2x16xf32>
    %1149 = arith.mulf %1137, %1148 : vector<2x16xf32>
    %1150 = arith.addf %1147, %1149 : vector<2x16xf32>
    %1151 = math.tanh %1150 : vector<2x16xf32>
    %cst_505 = arith.constant 1.000000e+00 : f32
    %1152 = vector.broadcast %cst_505 : f32 to vector<2x16xf32>
    %1153 = arith.subf %1152, %1146 : vector<2x16xf32>
    %1154 = arith.mulf %1153, %1151 : vector<2x16xf32>
    %1155 = arith.mulf %1146, %1117 : vector<2x16xf32>
    %1156 = arith.addf %1154, %1155 : vector<2x16xf32>
    %1157 = vector.extract_strided_slice %1156 {offsets = [0, 0], sizes = [1, 16], strides = [1, 1]} : vector<2x16xf32> to vector<1x16xf32>
    %c5_506 = arith.constant 5 : index
    %c0_507 = arith.constant 0 : index
    %1158 = vector.load %arg19[%c5_506, %c0_507] : memref<16x16xf32, #tpu.memory_space<vmem>>, vector<1x16xf32>
    tpu.vector_store %arg19[%c5_506, %c0_507], %1157 {strides = array<i32>} : memref<16x16xf32, #tpu.memory_space<vmem>>, vector<1x16xf32>,
    %1159 = vector.extract_strided_slice %1156 {offsets = [1, 0], sizes = [1, 16], strides = [1, 1]} : vector<2x16xf32> to vector<1x16xf32>
    %c10_508 = arith.constant 10 : index
    %c0_509 = arith.constant 0 : index
    %1160 = vector.load %arg20[%c10_508, %c0_509] : memref<16x16xf32, #tpu.memory_space<vmem>>, vector<1x16xf32>
    tpu.vector_store %arg20[%c10_508, %c0_509], %1159 {strides = array<i32>} : memref<16x16xf32, #tpu.memory_space<vmem>>, vector<1x16xf32>,
    %1161 = vector.extract_strided_slice %921 {offsets = [6, 0], sizes = [1, 48], strides = [1, 1]} : vector<16x96xf32> to vector<1x48xf32>
    %1162 = vector.extract_strided_slice %921 {offsets = [9, 48], sizes = [1, 48], strides = [1, 1]} : vector<16x96xf32> to vector<1x48xf32>
    %1163 = tpu.concatenate %1161, %1162 in 0 : vector<1x48xf32>, vector<1x48xf32> -> vector<2x48xf32>
    %1164 = tpu.concatenate %1156, %1156 in 1 : vector<2x16xf32>, vector<2x16xf32> -> vector<2x32xf32>
    %1165 = arith.mulf %1164, %275 : vector<2x32xf32>
    %cst_510 = arith.constant dense<0.000000e+00> : vector<2x48xf32>
    %1166 = tpu.matmul %1165, %923, %cst_510 {dimension_numbers = #tpu.dot_dimension_numbers<[1], [0], [0], [1], [0, 0, 1, 1], [], []>} : vector<2x32xf32>, vector<32x48xf32>, vector<2x48xf32> -> vector<2x48xf32>
    %1167 = arith.addf %1166, %925 : vector<2x48xf32>
    %1168 = vector.extract_strided_slice %1163 {offsets = [0, 0], sizes = [2, 16], strides = [1, 1]} : vector<2x48xf32> to vector<2x16xf32>
    %1169 = vector.extract_strided_slice %1167 {offsets = [0, 0], sizes = [2, 16], strides = [1, 1]} : vector<2x48xf32> to vector<2x16xf32>
    %1170 = arith.addf %1168, %1169 : vector<2x16xf32>
    %cst_511 = arith.constant 0.000000e+00 : f32
    %1171 = vector.broadcast %cst_511 : f32 to vector<2x16xf32>
    %1172 = arith.subf %1171, %1170 : vector<2x16xf32>
    %1173 = math.exp %1172 : vector<2x16xf32>
    %cst_512 = arith.constant 1.000000e+00 : f32
    %1174 = vector.broadcast %cst_512 : f32 to vector<2x16xf32>
    %1175 = arith.addf %1174, %1173 : vector<2x16xf32>
    %1176 = tpu.reciprocal %1175 {approx = true} : vector<2x16xf32> -> vector<2x16xf32>
    %1177 = vector.extract_strided_slice %1163 {offsets = [0, 16], sizes = [2, 16], strides = [1, 1]} : vector<2x48xf32> to vector<2x16xf32>
    %1178 = vector.extract_strided_slice %1167 {offsets = [0, 16], sizes = [2, 16], strides = [1, 1]} : vector<2x48xf32> to vector<2x16xf32>
    %1179 = arith.addf %1177, %1178 : vector<2x16xf32>
    %cst_513 = arith.constant 0.000000e+00 : f32
    %1180 = vector.broadcast %cst_513 : f32 to vector<2x16xf32>
    %1181 = arith.subf %1180, %1179 : vector<2x16xf32>
    %1182 = math.exp %1181 : vector<2x16xf32>
    %cst_514 = arith.constant 1.000000e+00 : f32
    %1183 = vector.broadcast %cst_514 : f32 to vector<2x16xf32>
    %1184 = arith.addf %1183, %1182 : vector<2x16xf32>
    %1185 = tpu.reciprocal %1184 {approx = true} : vector<2x16xf32> -> vector<2x16xf32>
    %1186 = vector.extract_strided_slice %1163 {offsets = [0, 32], sizes = [2, 16], strides = [1, 1]} : vector<2x48xf32> to vector<2x16xf32>
    %1187 = vector.extract_strided_slice %1167 {offsets = [0, 32], sizes = [2, 16], strides = [1, 1]} : vector<2x48xf32> to vector<2x16xf32>
    %1188 = arith.mulf %1176, %1187 : vector<2x16xf32>
    %1189 = arith.addf %1186, %1188 : vector<2x16xf32>
    %1190 = math.tanh %1189 : vector<2x16xf32>
    %cst_515 = arith.constant 1.000000e+00 : f32
    %1191 = vector.broadcast %cst_515 : f32 to vector<2x16xf32>
    %1192 = arith.subf %1191, %1185 : vector<2x16xf32>
    %1193 = arith.mulf %1192, %1190 : vector<2x16xf32>
    %1194 = arith.mulf %1185, %1156 : vector<2x16xf32>
    %1195 = arith.addf %1193, %1194 : vector<2x16xf32>
    %1196 = vector.extract_strided_slice %1195 {offsets = [0, 0], sizes = [1, 16], strides = [1, 1]} : vector<2x16xf32> to vector<1x16xf32>
    %c6_516 = arith.constant 6 : index
    %c0_517 = arith.constant 0 : index
    %1197 = vector.load %arg19[%c6_516, %c0_517] : memref<16x16xf32, #tpu.memory_space<vmem>>, vector<1x16xf32>
    tpu.vector_store %arg19[%c6_516, %c0_517], %1196 {strides = array<i32>} : memref<16x16xf32, #tpu.memory_space<vmem>>, vector<1x16xf32>,
    %1198 = vector.extract_strided_slice %1195 {offsets = [1, 0], sizes = [1, 16], strides = [1, 1]} : vector<2x16xf32> to vector<1x16xf32>
    %c9_518 = arith.constant 9 : index
    %c0_519 = arith.constant 0 : index
    %1199 = vector.load %arg20[%c9_518, %c0_519] : memref<16x16xf32, #tpu.memory_space<vmem>>, vector<1x16xf32>
    tpu.vector_store %arg20[%c9_518, %c0_519], %1198 {strides = array<i32>} : memref<16x16xf32, #tpu.memory_space<vmem>>, vector<1x16xf32>,
    %1200 = vector.extract_strided_slice %921 {offsets = [7, 0], sizes = [1, 48], strides = [1, 1]} : vector<16x96xf32> to vector<1x48xf32>
    %1201 = vector.extract_strided_slice %921 {offsets = [8, 48], sizes = [1, 48], strides = [1, 1]} : vector<16x96xf32> to vector<1x48xf32>
    %1202 = tpu.concatenate %1200, %1201 in 0 : vector<1x48xf32>, vector<1x48xf32> -> vector<2x48xf32>
    %1203 = tpu.concatenate %1195, %1195 in 1 : vector<2x16xf32>, vector<2x16xf32> -> vector<2x32xf32>
    %1204 = arith.mulf %1203, %275 : vector<2x32xf32>
    %cst_520 = arith.constant dense<0.000000e+00> : vector<2x48xf32>
    %1205 = tpu.matmul %1204, %923, %cst_520 {dimension_numbers = #tpu.dot_dimension_numbers<[1], [0], [0], [1], [0, 0, 1, 1], [], []>} : vector<2x32xf32>, vector<32x48xf32>, vector<2x48xf32> -> vector<2x48xf32>
    %1206 = arith.addf %1205, %925 : vector<2x48xf32>
    %1207 = vector.extract_strided_slice %1202 {offsets = [0, 0], sizes = [2, 16], strides = [1, 1]} : vector<2x48xf32> to vector<2x16xf32>
    %1208 = vector.extract_strided_slice %1206 {offsets = [0, 0], sizes = [2, 16], strides = [1, 1]} : vector<2x48xf32> to vector<2x16xf32>
    %1209 = arith.addf %1207, %1208 : vector<2x16xf32>
    %cst_521 = arith.constant 0.000000e+00 : f32
    %1210 = vector.broadcast %cst_521 : f32 to vector<2x16xf32>
    %1211 = arith.subf %1210, %1209 : vector<2x16xf32>
    %1212 = math.exp %1211 : vector<2x16xf32>
    %cst_522 = arith.constant 1.000000e+00 : f32
    %1213 = vector.broadcast %cst_522 : f32 to vector<2x16xf32>
    %1214 = arith.addf %1213, %1212 : vector<2x16xf32>
    %1215 = tpu.reciprocal %1214 {approx = true} : vector<2x16xf32> -> vector<2x16xf32>
    %1216 = vector.extract_strided_slice %1202 {offsets = [0, 16], sizes = [2, 16], strides = [1, 1]} : vector<2x48xf32> to vector<2x16xf32>
    %1217 = vector.extract_strided_slice %1206 {offsets = [0, 16], sizes = [2, 16], strides = [1, 1]} : vector<2x48xf32> to vector<2x16xf32>
    %1218 = arith.addf %1216, %1217 : vector<2x16xf32>
    %cst_523 = arith.constant 0.000000e+00 : f32
    %1219 = vector.broadcast %cst_523 : f32 to vector<2x16xf32>
    %1220 = arith.subf %1219, %1218 : vector<2x16xf32>
    %1221 = math.exp %1220 : vector<2x16xf32>
    %cst_524 = arith.constant 1.000000e+00 : f32
    %1222 = vector.broadcast %cst_524 : f32 to vector<2x16xf32>
    %1223 = arith.addf %1222, %1221 : vector<2x16xf32>
    %1224 = tpu.reciprocal %1223 {approx = true} : vector<2x16xf32> -> vector<2x16xf32>
    %1225 = vector.extract_strided_slice %1202 {offsets = [0, 32], sizes = [2, 16], strides = [1, 1]} : vector<2x48xf32> to vector<2x16xf32>
    %1226 = vector.extract_strided_slice %1206 {offsets = [0, 32], sizes = [2, 16], strides = [1, 1]} : vector<2x48xf32> to vector<2x16xf32>
    %1227 = arith.mulf %1215, %1226 : vector<2x16xf32>
    %1228 = arith.addf %1225, %1227 : vector<2x16xf32>
    %1229 = math.tanh %1228 : vector<2x16xf32>
    %cst_525 = arith.constant 1.000000e+00 : f32
    %1230 = vector.broadcast %cst_525 : f32 to vector<2x16xf32>
    %1231 = arith.subf %1230, %1224 : vector<2x16xf32>
    %1232 = arith.mulf %1231, %1229 : vector<2x16xf32>
    %1233 = arith.mulf %1224, %1195 : vector<2x16xf32>
    %1234 = arith.addf %1232, %1233 : vector<2x16xf32>
    %1235 = vector.extract_strided_slice %1234 {offsets = [0, 0], sizes = [1, 16], strides = [1, 1]} : vector<2x16xf32> to vector<1x16xf32>
    %c7_526 = arith.constant 7 : index
    %c0_527 = arith.constant 0 : index
    %1236 = vector.load %arg19[%c7_526, %c0_527] : memref<16x16xf32, #tpu.memory_space<vmem>>, vector<1x16xf32>
    tpu.vector_store %arg19[%c7_526, %c0_527], %1235 {strides = array<i32>} : memref<16x16xf32, #tpu.memory_space<vmem>>, vector<1x16xf32>,
    %1237 = vector.extract_strided_slice %1234 {offsets = [1, 0], sizes = [1, 16], strides = [1, 1]} : vector<2x16xf32> to vector<1x16xf32>
    %c8_528 = arith.constant 8 : index
    %c0_529 = arith.constant 0 : index
    %1238 = vector.load %arg20[%c8_528, %c0_529] : memref<16x16xf32, #tpu.memory_space<vmem>>, vector<1x16xf32>
    tpu.vector_store %arg20[%c8_528, %c0_529], %1237 {strides = array<i32>} : memref<16x16xf32, #tpu.memory_space<vmem>>, vector<1x16xf32>,
    %1239 = vector.extract_strided_slice %921 {offsets = [8, 0], sizes = [1, 48], strides = [1, 1]} : vector<16x96xf32> to vector<1x48xf32>
    %1240 = vector.extract_strided_slice %921 {offsets = [7, 48], sizes = [1, 48], strides = [1, 1]} : vector<16x96xf32> to vector<1x48xf32>
    %1241 = tpu.concatenate %1239, %1240 in 0 : vector<1x48xf32>, vector<1x48xf32> -> vector<2x48xf32>
    %1242 = tpu.concatenate %1234, %1234 in 1 : vector<2x16xf32>, vector<2x16xf32> -> vector<2x32xf32>
    %1243 = arith.mulf %1242, %275 : vector<2x32xf32>
    %cst_530 = arith.constant dense<0.000000e+00> : vector<2x48xf32>
    %1244 = tpu.matmul %1243, %923, %cst_530 {dimension_numbers = #tpu.dot_dimension_numbers<[1], [0], [0], [1], [0, 0, 1, 1], [], []>} : vector<2x32xf32>, vector<32x48xf32>, vector<2x48xf32> -> vector<2x48xf32>
    %1245 = arith.addf %1244, %925 : vector<2x48xf32>
    %1246 = vector.extract_strided_slice %1241 {offsets = [0, 0], sizes = [2, 16], strides = [1, 1]} : vector<2x48xf32> to vector<2x16xf32>
    %1247 = vector.extract_strided_slice %1245 {offsets = [0, 0], sizes = [2, 16], strides = [1, 1]} : vector<2x48xf32> to vector<2x16xf32>
    %1248 = arith.addf %1246, %1247 : vector<2x16xf32>
    %cst_531 = arith.constant 0.000000e+00 : f32
    %1249 = vector.broadcast %cst_531 : f32 to vector<2x16xf32>
    %1250 = arith.subf %1249, %1248 : vector<2x16xf32>
    %1251 = math.exp %1250 : vector<2x16xf32>
    %cst_532 = arith.constant 1.000000e+00 : f32
    %1252 = vector.broadcast %cst_532 : f32 to vector<2x16xf32>
    %1253 = arith.addf %1252, %1251 : vector<2x16xf32>
    %1254 = tpu.reciprocal %1253 {approx = true} : vector<2x16xf32> -> vector<2x16xf32>
    %1255 = vector.extract_strided_slice %1241 {offsets = [0, 16], sizes = [2, 16], strides = [1, 1]} : vector<2x48xf32> to vector<2x16xf32>
    %1256 = vector.extract_strided_slice %1245 {offsets = [0, 16], sizes = [2, 16], strides = [1, 1]} : vector<2x48xf32> to vector<2x16xf32>
    %1257 = arith.addf %1255, %1256 : vector<2x16xf32>
    %cst_533 = arith.constant 0.000000e+00 : f32
    %1258 = vector.broadcast %cst_533 : f32 to vector<2x16xf32>
    %1259 = arith.subf %1258, %1257 : vector<2x16xf32>
    %1260 = math.exp %1259 : vector<2x16xf32>
    %cst_534 = arith.constant 1.000000e+00 : f32
    %1261 = vector.broadcast %cst_534 : f32 to vector<2x16xf32>
    %1262 = arith.addf %1261, %1260 : vector<2x16xf32>
    %1263 = tpu.reciprocal %1262 {approx = true} : vector<2x16xf32> -> vector<2x16xf32>
    %1264 = vector.extract_strided_slice %1241 {offsets = [0, 32], sizes = [2, 16], strides = [1, 1]} : vector<2x48xf32> to vector<2x16xf32>
    %1265 = vector.extract_strided_slice %1245 {offsets = [0, 32], sizes = [2, 16], strides = [1, 1]} : vector<2x48xf32> to vector<2x16xf32>
    %1266 = arith.mulf %1254, %1265 : vector<2x16xf32>
    %1267 = arith.addf %1264, %1266 : vector<2x16xf32>
    %1268 = math.tanh %1267 : vector<2x16xf32>
    %cst_535 = arith.constant 1.000000e+00 : f32
    %1269 = vector.broadcast %cst_535 : f32 to vector<2x16xf32>
    %1270 = arith.subf %1269, %1263 : vector<2x16xf32>
    %1271 = arith.mulf %1270, %1268 : vector<2x16xf32>
    %1272 = arith.mulf %1263, %1234 : vector<2x16xf32>
    %1273 = arith.addf %1271, %1272 : vector<2x16xf32>
    %1274 = vector.extract_strided_slice %1273 {offsets = [0, 0], sizes = [1, 16], strides = [1, 1]} : vector<2x16xf32> to vector<1x16xf32>
    %c8_536 = arith.constant 8 : index
    %c0_537 = arith.constant 0 : index
    %1275 = vector.load %arg19[%c8_536, %c0_537] : memref<16x16xf32, #tpu.memory_space<vmem>>, vector<1x16xf32>
    tpu.vector_store %arg19[%c8_536, %c0_537], %1274 {strides = array<i32>} : memref<16x16xf32, #tpu.memory_space<vmem>>, vector<1x16xf32>,
    %1276 = vector.extract_strided_slice %1273 {offsets = [1, 0], sizes = [1, 16], strides = [1, 1]} : vector<2x16xf32> to vector<1x16xf32>
    %c7_538 = arith.constant 7 : index
    %c0_539 = arith.constant 0 : index
    %1277 = vector.load %arg20[%c7_538, %c0_539] : memref<16x16xf32, #tpu.memory_space<vmem>>, vector<1x16xf32>
    tpu.vector_store %arg20[%c7_538, %c0_539], %1276 {strides = array<i32>} : memref<16x16xf32, #tpu.memory_space<vmem>>, vector<1x16xf32>,
    %1278 = vector.extract_strided_slice %921 {offsets = [9, 0], sizes = [1, 48], strides = [1, 1]} : vector<16x96xf32> to vector<1x48xf32>
    %1279 = vector.extract_strided_slice %921 {offsets = [6, 48], sizes = [1, 48], strides = [1, 1]} : vector<16x96xf32> to vector<1x48xf32>
    %1280 = tpu.concatenate %1278, %1279 in 0 : vector<1x48xf32>, vector<1x48xf32> -> vector<2x48xf32>
    %1281 = tpu.concatenate %1273, %1273 in 1 : vector<2x16xf32>, vector<2x16xf32> -> vector<2x32xf32>
    %1282 = arith.mulf %1281, %275 : vector<2x32xf32>
    %cst_540 = arith.constant dense<0.000000e+00> : vector<2x48xf32>
    %1283 = tpu.matmul %1282, %923, %cst_540 {dimension_numbers = #tpu.dot_dimension_numbers<[1], [0], [0], [1], [0, 0, 1, 1], [], []>} : vector<2x32xf32>, vector<32x48xf32>, vector<2x48xf32> -> vector<2x48xf32>
    %1284 = arith.addf %1283, %925 : vector<2x48xf32>
    %1285 = vector.extract_strided_slice %1280 {offsets = [0, 0], sizes = [2, 16], strides = [1, 1]} : vector<2x48xf32> to vector<2x16xf32>
    %1286 = vector.extract_strided_slice %1284 {offsets = [0, 0], sizes = [2, 16], strides = [1, 1]} : vector<2x48xf32> to vector<2x16xf32>
    %1287 = arith.addf %1285, %1286 : vector<2x16xf32>
    %cst_541 = arith.constant 0.000000e+00 : f32
    %1288 = vector.broadcast %cst_541 : f32 to vector<2x16xf32>
    %1289 = arith.subf %1288, %1287 : vector<2x16xf32>
    %1290 = math.exp %1289 : vector<2x16xf32>
    %cst_542 = arith.constant 1.000000e+00 : f32
    %1291 = vector.broadcast %cst_542 : f32 to vector<2x16xf32>
    %1292 = arith.addf %1291, %1290 : vector<2x16xf32>
    %1293 = tpu.reciprocal %1292 {approx = true} : vector<2x16xf32> -> vector<2x16xf32>
    %1294 = vector.extract_strided_slice %1280 {offsets = [0, 16], sizes = [2, 16], strides = [1, 1]} : vector<2x48xf32> to vector<2x16xf32>
    %1295 = vector.extract_strided_slice %1284 {offsets = [0, 16], sizes = [2, 16], strides = [1, 1]} : vector<2x48xf32> to vector<2x16xf32>
    %1296 = arith.addf %1294, %1295 : vector<2x16xf32>
    %cst_543 = arith.constant 0.000000e+00 : f32
    %1297 = vector.broadcast %cst_543 : f32 to vector<2x16xf32>
    %1298 = arith.subf %1297, %1296 : vector<2x16xf32>
    %1299 = math.exp %1298 : vector<2x16xf32>
    %cst_544 = arith.constant 1.000000e+00 : f32
    %1300 = vector.broadcast %cst_544 : f32 to vector<2x16xf32>
    %1301 = arith.addf %1300, %1299 : vector<2x16xf32>
    %1302 = tpu.reciprocal %1301 {approx = true} : vector<2x16xf32> -> vector<2x16xf32>
    %1303 = vector.extract_strided_slice %1280 {offsets = [0, 32], sizes = [2, 16], strides = [1, 1]} : vector<2x48xf32> to vector<2x16xf32>
    %1304 = vector.extract_strided_slice %1284 {offsets = [0, 32], sizes = [2, 16], strides = [1, 1]} : vector<2x48xf32> to vector<2x16xf32>
    %1305 = arith.mulf %1293, %1304 : vector<2x16xf32>
    %1306 = arith.addf %1303, %1305 : vector<2x16xf32>
    %1307 = math.tanh %1306 : vector<2x16xf32>
    %cst_545 = arith.constant 1.000000e+00 : f32
    %1308 = vector.broadcast %cst_545 : f32 to vector<2x16xf32>
    %1309 = arith.subf %1308, %1302 : vector<2x16xf32>
    %1310 = arith.mulf %1309, %1307 : vector<2x16xf32>
    %1311 = arith.mulf %1302, %1273 : vector<2x16xf32>
    %1312 = arith.addf %1310, %1311 : vector<2x16xf32>
    %1313 = vector.extract_strided_slice %1312 {offsets = [0, 0], sizes = [1, 16], strides = [1, 1]} : vector<2x16xf32> to vector<1x16xf32>
    %c9_546 = arith.constant 9 : index
    %c0_547 = arith.constant 0 : index
    %1314 = vector.load %arg19[%c9_546, %c0_547] : memref<16x16xf32, #tpu.memory_space<vmem>>, vector<1x16xf32>
    tpu.vector_store %arg19[%c9_546, %c0_547], %1313 {strides = array<i32>} : memref<16x16xf32, #tpu.memory_space<vmem>>, vector<1x16xf32>,
    %1315 = vector.extract_strided_slice %1312 {offsets = [1, 0], sizes = [1, 16], strides = [1, 1]} : vector<2x16xf32> to vector<1x16xf32>
    %c6_548 = arith.constant 6 : index
    %c0_549 = arith.constant 0 : index
    %1316 = vector.load %arg20[%c6_548, %c0_549] : memref<16x16xf32, #tpu.memory_space<vmem>>, vector<1x16xf32>
    tpu.vector_store %arg20[%c6_548, %c0_549], %1315 {strides = array<i32>} : memref<16x16xf32, #tpu.memory_space<vmem>>, vector<1x16xf32>,
    %1317 = vector.extract_strided_slice %921 {offsets = [10, 0], sizes = [1, 48], strides = [1, 1]} : vector<16x96xf32> to vector<1x48xf32>
    %1318 = vector.extract_strided_slice %921 {offsets = [5, 48], sizes = [1, 48], strides = [1, 1]} : vector<16x96xf32> to vector<1x48xf32>
    %1319 = tpu.concatenate %1317, %1318 in 0 : vector<1x48xf32>, vector<1x48xf32> -> vector<2x48xf32>
    %1320 = tpu.concatenate %1312, %1312 in 1 : vector<2x16xf32>, vector<2x16xf32> -> vector<2x32xf32>
    %1321 = arith.mulf %1320, %275 : vector<2x32xf32>
    %cst_550 = arith.constant dense<0.000000e+00> : vector<2x48xf32>
    %1322 = tpu.matmul %1321, %923, %cst_550 {dimension_numbers = #tpu.dot_dimension_numbers<[1], [0], [0], [1], [0, 0, 1, 1], [], []>} : vector<2x32xf32>, vector<32x48xf32>, vector<2x48xf32> -> vector<2x48xf32>
    %1323 = arith.addf %1322, %925 : vector<2x48xf32>
    %1324 = vector.extract_strided_slice %1319 {offsets = [0, 0], sizes = [2, 16], strides = [1, 1]} : vector<2x48xf32> to vector<2x16xf32>
    %1325 = vector.extract_strided_slice %1323 {offsets = [0, 0], sizes = [2, 16], strides = [1, 1]} : vector<2x48xf32> to vector<2x16xf32>
    %1326 = arith.addf %1324, %1325 : vector<2x16xf32>
    %cst_551 = arith.constant 0.000000e+00 : f32
    %1327 = vector.broadcast %cst_551 : f32 to vector<2x16xf32>
    %1328 = arith.subf %1327, %1326 : vector<2x16xf32>
    %1329 = math.exp %1328 : vector<2x16xf32>
    %cst_552 = arith.constant 1.000000e+00 : f32
    %1330 = vector.broadcast %cst_552 : f32 to vector<2x16xf32>
    %1331 = arith.addf %1330, %1329 : vector<2x16xf32>
    %1332 = tpu.reciprocal %1331 {approx = true} : vector<2x16xf32> -> vector<2x16xf32>
    %1333 = vector.extract_strided_slice %1319 {offsets = [0, 16], sizes = [2, 16], strides = [1, 1]} : vector<2x48xf32> to vector<2x16xf32>
    %1334 = vector.extract_strided_slice %1323 {offsets = [0, 16], sizes = [2, 16], strides = [1, 1]} : vector<2x48xf32> to vector<2x16xf32>
    %1335 = arith.addf %1333, %1334 : vector<2x16xf32>
    %cst_553 = arith.constant 0.000000e+00 : f32
    %1336 = vector.broadcast %cst_553 : f32 to vector<2x16xf32>
    %1337 = arith.subf %1336, %1335 : vector<2x16xf32>
    %1338 = math.exp %1337 : vector<2x16xf32>
    %cst_554 = arith.constant 1.000000e+00 : f32
    %1339 = vector.broadcast %cst_554 : f32 to vector<2x16xf32>
    %1340 = arith.addf %1339, %1338 : vector<2x16xf32>
    %1341 = tpu.reciprocal %1340 {approx = true} : vector<2x16xf32> -> vector<2x16xf32>
    %1342 = vector.extract_strided_slice %1319 {offsets = [0, 32], sizes = [2, 16], strides = [1, 1]} : vector<2x48xf32> to vector<2x16xf32>
    %1343 = vector.extract_strided_slice %1323 {offsets = [0, 32], sizes = [2, 16], strides = [1, 1]} : vector<2x48xf32> to vector<2x16xf32>
    %1344 = arith.mulf %1332, %1343 : vector<2x16xf32>
    %1345 = arith.addf %1342, %1344 : vector<2x16xf32>
    %1346 = math.tanh %1345 : vector<2x16xf32>
    %cst_555 = arith.constant 1.000000e+00 : f32
    %1347 = vector.broadcast %cst_555 : f32 to vector<2x16xf32>
    %1348 = arith.subf %1347, %1341 : vector<2x16xf32>
    %1349 = arith.mulf %1348, %1346 : vector<2x16xf32>
    %1350 = arith.mulf %1341, %1312 : vector<2x16xf32>
    %1351 = arith.addf %1349, %1350 : vector<2x16xf32>
    %1352 = vector.extract_strided_slice %1351 {offsets = [0, 0], sizes = [1, 16], strides = [1, 1]} : vector<2x16xf32> to vector<1x16xf32>
    %c10_556 = arith.constant 10 : index
    %c0_557 = arith.constant 0 : index
    %1353 = vector.load %arg19[%c10_556, %c0_557] : memref<16x16xf32, #tpu.memory_space<vmem>>, vector<1x16xf32>
    tpu.vector_store %arg19[%c10_556, %c0_557], %1352 {strides = array<i32>} : memref<16x16xf32, #tpu.memory_space<vmem>>, vector<1x16xf32>,
    %1354 = vector.extract_strided_slice %1351 {offsets = [1, 0], sizes = [1, 16], strides = [1, 1]} : vector<2x16xf32> to vector<1x16xf32>
    %c5_558 = arith.constant 5 : index
    %c0_559 = arith.constant 0 : index
    %1355 = vector.load %arg20[%c5_558, %c0_559] : memref<16x16xf32, #tpu.memory_space<vmem>>, vector<1x16xf32>
    tpu.vector_store %arg20[%c5_558, %c0_559], %1354 {strides = array<i32>} : memref<16x16xf32, #tpu.memory_space<vmem>>, vector<1x16xf32>,
    %1356 = vector.extract_strided_slice %921 {offsets = [11, 0], sizes = [1, 48], strides = [1, 1]} : vector<16x96xf32> to vector<1x48xf32>
    %1357 = vector.extract_strided_slice %921 {offsets = [4, 48], sizes = [1, 48], strides = [1, 1]} : vector<16x96xf32> to vector<1x48xf32>
    %1358 = tpu.concatenate %1356, %1357 in 0 : vector<1x48xf32>, vector<1x48xf32> -> vector<2x48xf32>
    %1359 = tpu.concatenate %1351, %1351 in 1 : vector<2x16xf32>, vector<2x16xf32> -> vector<2x32xf32>
    %1360 = arith.mulf %1359, %275 : vector<2x32xf32>
    %cst_560 = arith.constant dense<0.000000e+00> : vector<2x48xf32>
    %1361 = tpu.matmul %1360, %923, %cst_560 {dimension_numbers = #tpu.dot_dimension_numbers<[1], [0], [0], [1], [0, 0, 1, 1], [], []>} : vector<2x32xf32>, vector<32x48xf32>, vector<2x48xf32> -> vector<2x48xf32>
    %1362 = arith.addf %1361, %925 : vector<2x48xf32>
    %1363 = vector.extract_strided_slice %1358 {offsets = [0, 0], sizes = [2, 16], strides = [1, 1]} : vector<2x48xf32> to vector<2x16xf32>
    %1364 = vector.extract_strided_slice %1362 {offsets = [0, 0], sizes = [2, 16], strides = [1, 1]} : vector<2x48xf32> to vector<2x16xf32>
    %1365 = arith.addf %1363, %1364 : vector<2x16xf32>
    %cst_561 = arith.constant 0.000000e+00 : f32
    %1366 = vector.broadcast %cst_561 : f32 to vector<2x16xf32>
    %1367 = arith.subf %1366, %1365 : vector<2x16xf32>
    %1368 = math.exp %1367 : vector<2x16xf32>
    %cst_562 = arith.constant 1.000000e+00 : f32
    %1369 = vector.broadcast %cst_562 : f32 to vector<2x16xf32>
    %1370 = arith.addf %1369, %1368 : vector<2x16xf32>
    %1371 = tpu.reciprocal %1370 {approx = true} : vector<2x16xf32> -> vector<2x16xf32>
    %1372 = vector.extract_strided_slice %1358 {offsets = [0, 16], sizes = [2, 16], strides = [1, 1]} : vector<2x48xf32> to vector<2x16xf32>
    %1373 = vector.extract_strided_slice %1362 {offsets = [0, 16], sizes = [2, 16], strides = [1, 1]} : vector<2x48xf32> to vector<2x16xf32>
    %1374 = arith.addf %1372, %1373 : vector<2x16xf32>
    %cst_563 = arith.constant 0.000000e+00 : f32
    %1375 = vector.broadcast %cst_563 : f32 to vector<2x16xf32>
    %1376 = arith.subf %1375, %1374 : vector<2x16xf32>
    %1377 = math.exp %1376 : vector<2x16xf32>
    %cst_564 = arith.constant 1.000000e+00 : f32
    %1378 = vector.broadcast %cst_564 : f32 to vector<2x16xf32>
    %1379 = arith.addf %1378, %1377 : vector<2x16xf32>
    %1380 = tpu.reciprocal %1379 {approx = true} : vector<2x16xf32> -> vector<2x16xf32>
    %1381 = vector.extract_strided_slice %1358 {offsets = [0, 32], sizes = [2, 16], strides = [1, 1]} : vector<2x48xf32> to vector<2x16xf32>
    %1382 = vector.extract_strided_slice %1362 {offsets = [0, 32], sizes = [2, 16], strides = [1, 1]} : vector<2x48xf32> to vector<2x16xf32>
    %1383 = arith.mulf %1371, %1382 : vector<2x16xf32>
    %1384 = arith.addf %1381, %1383 : vector<2x16xf32>
    %1385 = math.tanh %1384 : vector<2x16xf32>
    %cst_565 = arith.constant 1.000000e+00 : f32
    %1386 = vector.broadcast %cst_565 : f32 to vector<2x16xf32>
    %1387 = arith.subf %1386, %1380 : vector<2x16xf32>
    %1388 = arith.mulf %1387, %1385 : vector<2x16xf32>
    %1389 = arith.mulf %1380, %1351 : vector<2x16xf32>
    %1390 = arith.addf %1388, %1389 : vector<2x16xf32>
    %1391 = vector.extract_strided_slice %1390 {offsets = [0, 0], sizes = [1, 16], strides = [1, 1]} : vector<2x16xf32> to vector<1x16xf32>
    %c11_566 = arith.constant 11 : index
    %c0_567 = arith.constant 0 : index
    %1392 = vector.load %arg19[%c11_566, %c0_567] : memref<16x16xf32, #tpu.memory_space<vmem>>, vector<1x16xf32>
    tpu.vector_store %arg19[%c11_566, %c0_567], %1391 {strides = array<i32>} : memref<16x16xf32, #tpu.memory_space<vmem>>, vector<1x16xf32>,
    %1393 = vector.extract_strided_slice %1390 {offsets = [1, 0], sizes = [1, 16], strides = [1, 1]} : vector<2x16xf32> to vector<1x16xf32>
    %c4_568 = arith.constant 4 : index
    %c0_569 = arith.constant 0 : index
    %1394 = vector.load %arg20[%c4_568, %c0_569] : memref<16x16xf32, #tpu.memory_space<vmem>>, vector<1x16xf32>
    tpu.vector_store %arg20[%c4_568, %c0_569], %1393 {strides = array<i32>} : memref<16x16xf32, #tpu.memory_space<vmem>>, vector<1x16xf32>,
    %1395 = vector.extract_strided_slice %921 {offsets = [12, 0], sizes = [1, 48], strides = [1, 1]} : vector<16x96xf32> to vector<1x48xf32>
    %1396 = vector.extract_strided_slice %921 {offsets = [3, 48], sizes = [1, 48], strides = [1, 1]} : vector<16x96xf32> to vector<1x48xf32>
    %1397 = tpu.concatenate %1395, %1396 in 0 : vector<1x48xf32>, vector<1x48xf32> -> vector<2x48xf32>
    %1398 = tpu.concatenate %1390, %1390 in 1 : vector<2x16xf32>, vector<2x16xf32> -> vector<2x32xf32>
    %1399 = arith.mulf %1398, %275 : vector<2x32xf32>
    %cst_570 = arith.constant dense<0.000000e+00> : vector<2x48xf32>
    %1400 = tpu.matmul %1399, %923, %cst_570 {dimension_numbers = #tpu.dot_dimension_numbers<[1], [0], [0], [1], [0, 0, 1, 1], [], []>} : vector<2x32xf32>, vector<32x48xf32>, vector<2x48xf32> -> vector<2x48xf32>
    %1401 = arith.addf %1400, %925 : vector<2x48xf32>
    %1402 = vector.extract_strided_slice %1397 {offsets = [0, 0], sizes = [2, 16], strides = [1, 1]} : vector<2x48xf32> to vector<2x16xf32>
    %1403 = vector.extract_strided_slice %1401 {offsets = [0, 0], sizes = [2, 16], strides = [1, 1]} : vector<2x48xf32> to vector<2x16xf32>
    %1404 = arith.addf %1402, %1403 : vector<2x16xf32>
    %cst_571 = arith.constant 0.000000e+00 : f32
    %1405 = vector.broadcast %cst_571 : f32 to vector<2x16xf32>
    %1406 = arith.subf %1405, %1404 : vector<2x16xf32>
    %1407 = math.exp %1406 : vector<2x16xf32>
    %cst_572 = arith.constant 1.000000e+00 : f32
    %1408 = vector.broadcast %cst_572 : f32 to vector<2x16xf32>
    %1409 = arith.addf %1408, %1407 : vector<2x16xf32>
    %1410 = tpu.reciprocal %1409 {approx = true} : vector<2x16xf32> -> vector<2x16xf32>
    %1411 = vector.extract_strided_slice %1397 {offsets = [0, 16], sizes = [2, 16], strides = [1, 1]} : vector<2x48xf32> to vector<2x16xf32>
    %1412 = vector.extract_strided_slice %1401 {offsets = [0, 16], sizes = [2, 16], strides = [1, 1]} : vector<2x48xf32> to vector<2x16xf32>
    %1413 = arith.addf %1411, %1412 : vector<2x16xf32>
    %cst_573 = arith.constant 0.000000e+00 : f32
    %1414 = vector.broadcast %cst_573 : f32 to vector<2x16xf32>
    %1415 = arith.subf %1414, %1413 : vector<2x16xf32>
    %1416 = math.exp %1415 : vector<2x16xf32>
    %cst_574 = arith.constant 1.000000e+00 : f32
    %1417 = vector.broadcast %cst_574 : f32 to vector<2x16xf32>
    %1418 = arith.addf %1417, %1416 : vector<2x16xf32>
    %1419 = tpu.reciprocal %1418 {approx = true} : vector<2x16xf32> -> vector<2x16xf32>
    %1420 = vector.extract_strided_slice %1397 {offsets = [0, 32], sizes = [2, 16], strides = [1, 1]} : vector<2x48xf32> to vector<2x16xf32>
    %1421 = vector.extract_strided_slice %1401 {offsets = [0, 32], sizes = [2, 16], strides = [1, 1]} : vector<2x48xf32> to vector<2x16xf32>
    %1422 = arith.mulf %1410, %1421 : vector<2x16xf32>
    %1423 = arith.addf %1420, %1422 : vector<2x16xf32>
    %1424 = math.tanh %1423 : vector<2x16xf32>
    %cst_575 = arith.constant 1.000000e+00 : f32
    %1425 = vector.broadcast %cst_575 : f32 to vector<2x16xf32>
    %1426 = arith.subf %1425, %1419 : vector<2x16xf32>
    %1427 = arith.mulf %1426, %1424 : vector<2x16xf32>
    %1428 = arith.mulf %1419, %1390 : vector<2x16xf32>
    %1429 = arith.addf %1427, %1428 : vector<2x16xf32>
    %1430 = vector.extract_strided_slice %1429 {offsets = [0, 0], sizes = [1, 16], strides = [1, 1]} : vector<2x16xf32> to vector<1x16xf32>
    %c12_576 = arith.constant 12 : index
    %c0_577 = arith.constant 0 : index
    %1431 = vector.load %arg19[%c12_576, %c0_577] : memref<16x16xf32, #tpu.memory_space<vmem>>, vector<1x16xf32>
    tpu.vector_store %arg19[%c12_576, %c0_577], %1430 {strides = array<i32>} : memref<16x16xf32, #tpu.memory_space<vmem>>, vector<1x16xf32>,
    %1432 = vector.extract_strided_slice %1429 {offsets = [1, 0], sizes = [1, 16], strides = [1, 1]} : vector<2x16xf32> to vector<1x16xf32>
    %c3_578 = arith.constant 3 : index
    %c0_579 = arith.constant 0 : index
    %1433 = vector.load %arg20[%c3_578, %c0_579] : memref<16x16xf32, #tpu.memory_space<vmem>>, vector<1x16xf32>
    tpu.vector_store %arg20[%c3_578, %c0_579], %1432 {strides = array<i32>} : memref<16x16xf32, #tpu.memory_space<vmem>>, vector<1x16xf32>,
    %1434 = vector.extract_strided_slice %921 {offsets = [13, 0], sizes = [1, 48], strides = [1, 1]} : vector<16x96xf32> to vector<1x48xf32>
    %1435 = vector.extract_strided_slice %921 {offsets = [2, 48], sizes = [1, 48], strides = [1, 1]} : vector<16x96xf32> to vector<1x48xf32>
    %1436 = tpu.concatenate %1434, %1435 in 0 : vector<1x48xf32>, vector<1x48xf32> -> vector<2x48xf32>
    %1437 = tpu.concatenate %1429, %1429 in 1 : vector<2x16xf32>, vector<2x16xf32> -> vector<2x32xf32>
    %1438 = arith.mulf %1437, %275 : vector<2x32xf32>
    %cst_580 = arith.constant dense<0.000000e+00> : vector<2x48xf32>
    %1439 = tpu.matmul %1438, %923, %cst_580 {dimension_numbers = #tpu.dot_dimension_numbers<[1], [0], [0], [1], [0, 0, 1, 1], [], []>} : vector<2x32xf32>, vector<32x48xf32>, vector<2x48xf32> -> vector<2x48xf32>
    %1440 = arith.addf %1439, %925 : vector<2x48xf32>
    %1441 = vector.extract_strided_slice %1436 {offsets = [0, 0], sizes = [2, 16], strides = [1, 1]} : vector<2x48xf32> to vector<2x16xf32>
    %1442 = vector.extract_strided_slice %1440 {offsets = [0, 0], sizes = [2, 16], strides = [1, 1]} : vector<2x48xf32> to vector<2x16xf32>
    %1443 = arith.addf %1441, %1442 : vector<2x16xf32>
    %cst_581 = arith.constant 0.000000e+00 : f32
    %1444 = vector.broadcast %cst_581 : f32 to vector<2x16xf32>
    %1445 = arith.subf %1444, %1443 : vector<2x16xf32>
    %1446 = math.exp %1445 : vector<2x16xf32>
    %cst_582 = arith.constant 1.000000e+00 : f32
    %1447 = vector.broadcast %cst_582 : f32 to vector<2x16xf32>
    %1448 = arith.addf %1447, %1446 : vector<2x16xf32>
    %1449 = tpu.reciprocal %1448 {approx = true} : vector<2x16xf32> -> vector<2x16xf32>
    %1450 = vector.extract_strided_slice %1436 {offsets = [0, 16], sizes = [2, 16], strides = [1, 1]} : vector<2x48xf32> to vector<2x16xf32>
    %1451 = vector.extract_strided_slice %1440 {offsets = [0, 16], sizes = [2, 16], strides = [1, 1]} : vector<2x48xf32> to vector<2x16xf32>
    %1452 = arith.addf %1450, %1451 : vector<2x16xf32>
    %cst_583 = arith.constant 0.000000e+00 : f32
    %1453 = vector.broadcast %cst_583 : f32 to vector<2x16xf32>
    %1454 = arith.subf %1453, %1452 : vector<2x16xf32>
    %1455 = math.exp %1454 : vector<2x16xf32>
    %cst_584 = arith.constant 1.000000e+00 : f32
    %1456 = vector.broadcast %cst_584 : f32 to vector<2x16xf32>
    %1457 = arith.addf %1456, %1455 : vector<2x16xf32>
    %1458 = tpu.reciprocal %1457 {approx = true} : vector<2x16xf32> -> vector<2x16xf32>
    %1459 = vector.extract_strided_slice %1436 {offsets = [0, 32], sizes = [2, 16], strides = [1, 1]} : vector<2x48xf32> to vector<2x16xf32>
    %1460 = vector.extract_strided_slice %1440 {offsets = [0, 32], sizes = [2, 16], strides = [1, 1]} : vector<2x48xf32> to vector<2x16xf32>
    %1461 = arith.mulf %1449, %1460 : vector<2x16xf32>
    %1462 = arith.addf %1459, %1461 : vector<2x16xf32>
    %1463 = math.tanh %1462 : vector<2x16xf32>
    %cst_585 = arith.constant 1.000000e+00 : f32
    %1464 = vector.broadcast %cst_585 : f32 to vector<2x16xf32>
    %1465 = arith.subf %1464, %1458 : vector<2x16xf32>
    %1466 = arith.mulf %1465, %1463 : vector<2x16xf32>
    %1467 = arith.mulf %1458, %1429 : vector<2x16xf32>
    %1468 = arith.addf %1466, %1467 : vector<2x16xf32>
    %1469 = vector.extract_strided_slice %1468 {offsets = [0, 0], sizes = [1, 16], strides = [1, 1]} : vector<2x16xf32> to vector<1x16xf32>
    %c13_586 = arith.constant 13 : index
    %c0_587 = arith.constant 0 : index
    %1470 = vector.load %arg19[%c13_586, %c0_587] : memref<16x16xf32, #tpu.memory_space<vmem>>, vector<1x16xf32>
    tpu.vector_store %arg19[%c13_586, %c0_587], %1469 {strides = array<i32>} : memref<16x16xf32, #tpu.memory_space<vmem>>, vector<1x16xf32>,
    %1471 = vector.extract_strided_slice %1468 {offsets = [1, 0], sizes = [1, 16], strides = [1, 1]} : vector<2x16xf32> to vector<1x16xf32>
    %c2_588 = arith.constant 2 : index
    %c0_589 = arith.constant 0 : index
    %1472 = vector.load %arg20[%c2_588, %c0_589] : memref<16x16xf32, #tpu.memory_space<vmem>>, vector<1x16xf32>
    tpu.vector_store %arg20[%c2_588, %c0_589], %1471 {strides = array<i32>} : memref<16x16xf32, #tpu.memory_space<vmem>>, vector<1x16xf32>,
    %1473 = vector.extract_strided_slice %921 {offsets = [14, 0], sizes = [1, 48], strides = [1, 1]} : vector<16x96xf32> to vector<1x48xf32>
    %1474 = vector.extract_strided_slice %921 {offsets = [1, 48], sizes = [1, 48], strides = [1, 1]} : vector<16x96xf32> to vector<1x48xf32>
    %1475 = tpu.concatenate %1473, %1474 in 0 : vector<1x48xf32>, vector<1x48xf32> -> vector<2x48xf32>
    %1476 = tpu.concatenate %1468, %1468 in 1 : vector<2x16xf32>, vector<2x16xf32> -> vector<2x32xf32>
    %1477 = arith.mulf %1476, %275 : vector<2x32xf32>
    %cst_590 = arith.constant dense<0.000000e+00> : vector<2x48xf32>
    %1478 = tpu.matmul %1477, %923, %cst_590 {dimension_numbers = #tpu.dot_dimension_numbers<[1], [0], [0], [1], [0, 0, 1, 1], [], []>} : vector<2x32xf32>, vector<32x48xf32>, vector<2x48xf32> -> vector<2x48xf32>
    %1479 = arith.addf %1478, %925 : vector<2x48xf32>
    %1480 = vector.extract_strided_slice %1475 {offsets = [0, 0], sizes = [2, 16], strides = [1, 1]} : vector<2x48xf32> to vector<2x16xf32>
    %1481 = vector.extract_strided_slice %1479 {offsets = [0, 0], sizes = [2, 16], strides = [1, 1]} : vector<2x48xf32> to vector<2x16xf32>
    %1482 = arith.addf %1480, %1481 : vector<2x16xf32>
    %cst_591 = arith.constant 0.000000e+00 : f32
    %1483 = vector.broadcast %cst_591 : f32 to vector<2x16xf32>
    %1484 = arith.subf %1483, %1482 : vector<2x16xf32>
    %1485 = math.exp %1484 : vector<2x16xf32>
    %cst_592 = arith.constant 1.000000e+00 : f32
    %1486 = vector.broadcast %cst_592 : f32 to vector<2x16xf32>
    %1487 = arith.addf %1486, %1485 : vector<2x16xf32>
    %1488 = tpu.reciprocal %1487 {approx = true} : vector<2x16xf32> -> vector<2x16xf32>
    %1489 = vector.extract_strided_slice %1475 {offsets = [0, 16], sizes = [2, 16], strides = [1, 1]} : vector<2x48xf32> to vector<2x16xf32>
    %1490 = vector.extract_strided_slice %1479 {offsets = [0, 16], sizes = [2, 16], strides = [1, 1]} : vector<2x48xf32> to vector<2x16xf32>
    %1491 = arith.addf %1489, %1490 : vector<2x16xf32>
    %cst_593 = arith.constant 0.000000e+00 : f32
    %1492 = vector.broadcast %cst_593 : f32 to vector<2x16xf32>
    %1493 = arith.subf %1492, %1491 : vector<2x16xf32>
    %1494 = math.exp %1493 : vector<2x16xf32>
    %cst_594 = arith.constant 1.000000e+00 : f32
    %1495 = vector.broadcast %cst_594 : f32 to vector<2x16xf32>
    %1496 = arith.addf %1495, %1494 : vector<2x16xf32>
    %1497 = tpu.reciprocal %1496 {approx = true} : vector<2x16xf32> -> vector<2x16xf32>
    %1498 = vector.extract_strided_slice %1475 {offsets = [0, 32], sizes = [2, 16], strides = [1, 1]} : vector<2x48xf32> to vector<2x16xf32>
    %1499 = vector.extract_strided_slice %1479 {offsets = [0, 32], sizes = [2, 16], strides = [1, 1]} : vector<2x48xf32> to vector<2x16xf32>
    %1500 = arith.mulf %1488, %1499 : vector<2x16xf32>
    %1501 = arith.addf %1498, %1500 : vector<2x16xf32>
    %1502 = math.tanh %1501 : vector<2x16xf32>
    %cst_595 = arith.constant 1.000000e+00 : f32
    %1503 = vector.broadcast %cst_595 : f32 to vector<2x16xf32>
    %1504 = arith.subf %1503, %1497 : vector<2x16xf32>
    %1505 = arith.mulf %1504, %1502 : vector<2x16xf32>
    %1506 = arith.mulf %1497, %1468 : vector<2x16xf32>
    %1507 = arith.addf %1505, %1506 : vector<2x16xf32>
    %1508 = vector.extract_strided_slice %1507 {offsets = [0, 0], sizes = [1, 16], strides = [1, 1]} : vector<2x16xf32> to vector<1x16xf32>
    %c14_596 = arith.constant 14 : index
    %c0_597 = arith.constant 0 : index
    %1509 = vector.load %arg19[%c14_596, %c0_597] : memref<16x16xf32, #tpu.memory_space<vmem>>, vector<1x16xf32>
    tpu.vector_store %arg19[%c14_596, %c0_597], %1508 {strides = array<i32>} : memref<16x16xf32, #tpu.memory_space<vmem>>, vector<1x16xf32>,
    %1510 = vector.extract_strided_slice %1507 {offsets = [1, 0], sizes = [1, 16], strides = [1, 1]} : vector<2x16xf32> to vector<1x16xf32>
    %c1_598 = arith.constant 1 : index
    %c0_599 = arith.constant 0 : index
    %1511 = vector.load %arg20[%c1_598, %c0_599] : memref<16x16xf32, #tpu.memory_space<vmem>>, vector<1x16xf32>
    tpu.vector_store %arg20[%c1_598, %c0_599], %1510 {strides = array<i32>} : memref<16x16xf32, #tpu.memory_space<vmem>>, vector<1x16xf32>,
    %1512 = vector.extract_strided_slice %921 {offsets = [15, 0], sizes = [1, 48], strides = [1, 1]} : vector<16x96xf32> to vector<1x48xf32>
    %1513 = vector.extract_strided_slice %921 {offsets = [0, 48], sizes = [1, 48], strides = [1, 1]} : vector<16x96xf32> to vector<1x48xf32>
    %1514 = tpu.concatenate %1512, %1513 in 0 : vector<1x48xf32>, vector<1x48xf32> -> vector<2x48xf32>
    %1515 = tpu.concatenate %1507, %1507 in 1 : vector<2x16xf32>, vector<2x16xf32> -> vector<2x32xf32>
    %1516 = arith.mulf %1515, %275 : vector<2x32xf32>
    %cst_600 = arith.constant dense<0.000000e+00> : vector<2x48xf32>
    %1517 = tpu.matmul %1516, %923, %cst_600 {dimension_numbers = #tpu.dot_dimension_numbers<[1], [0], [0], [1], [0, 0, 1, 1], [], []>} : vector<2x32xf32>, vector<32x48xf32>, vector<2x48xf32> -> vector<2x48xf32>
    %1518 = arith.addf %1517, %925 : vector<2x48xf32>
    %1519 = vector.extract_strided_slice %1514 {offsets = [0, 0], sizes = [2, 16], strides = [1, 1]} : vector<2x48xf32> to vector<2x16xf32>
    %1520 = vector.extract_strided_slice %1518 {offsets = [0, 0], sizes = [2, 16], strides = [1, 1]} : vector<2x48xf32> to vector<2x16xf32>
    %1521 = arith.addf %1519, %1520 : vector<2x16xf32>
    %cst_601 = arith.constant 0.000000e+00 : f32
    %1522 = vector.broadcast %cst_601 : f32 to vector<2x16xf32>
    %1523 = arith.subf %1522, %1521 : vector<2x16xf32>
    %1524 = math.exp %1523 : vector<2x16xf32>
    %cst_602 = arith.constant 1.000000e+00 : f32
    %1525 = vector.broadcast %cst_602 : f32 to vector<2x16xf32>
    %1526 = arith.addf %1525, %1524 : vector<2x16xf32>
    %1527 = tpu.reciprocal %1526 {approx = true} : vector<2x16xf32> -> vector<2x16xf32>
    %1528 = vector.extract_strided_slice %1514 {offsets = [0, 16], sizes = [2, 16], strides = [1, 1]} : vector<2x48xf32> to vector<2x16xf32>
    %1529 = vector.extract_strided_slice %1518 {offsets = [0, 16], sizes = [2, 16], strides = [1, 1]} : vector<2x48xf32> to vector<2x16xf32>
    %1530 = arith.addf %1528, %1529 : vector<2x16xf32>
    %cst_603 = arith.constant 0.000000e+00 : f32
    %1531 = vector.broadcast %cst_603 : f32 to vector<2x16xf32>
    %1532 = arith.subf %1531, %1530 : vector<2x16xf32>
    %1533 = math.exp %1532 : vector<2x16xf32>
    %cst_604 = arith.constant 1.000000e+00 : f32
    %1534 = vector.broadcast %cst_604 : f32 to vector<2x16xf32>
    %1535 = arith.addf %1534, %1533 : vector<2x16xf32>
    %1536 = tpu.reciprocal %1535 {approx = true} : vector<2x16xf32> -> vector<2x16xf32>
    %1537 = vector.extract_strided_slice %1514 {offsets = [0, 32], sizes = [2, 16], strides = [1, 1]} : vector<2x48xf32> to vector<2x16xf32>
    %1538 = vector.extract_strided_slice %1518 {offsets = [0, 32], sizes = [2, 16], strides = [1, 1]} : vector<2x48xf32> to vector<2x16xf32>
    %1539 = arith.mulf %1527, %1538 : vector<2x16xf32>
    %1540 = arith.addf %1537, %1539 : vector<2x16xf32>
    %1541 = math.tanh %1540 : vector<2x16xf32>
    %cst_605 = arith.constant 1.000000e+00 : f32
    %1542 = vector.broadcast %cst_605 : f32 to vector<2x16xf32>
    %1543 = arith.subf %1542, %1536 : vector<2x16xf32>
    %1544 = arith.mulf %1543, %1541 : vector<2x16xf32>
    %1545 = arith.mulf %1536, %1507 : vector<2x16xf32>
    %1546 = arith.addf %1544, %1545 : vector<2x16xf32>
    %1547 = vector.extract_strided_slice %1546 {offsets = [0, 0], sizes = [1, 16], strides = [1, 1]} : vector<2x16xf32> to vector<1x16xf32>
    %c15_606 = arith.constant 15 : index
    %c0_607 = arith.constant 0 : index
    %1548 = vector.load %arg19[%c15_606, %c0_607] : memref<16x16xf32, #tpu.memory_space<vmem>>, vector<1x16xf32>
    tpu.vector_store %arg19[%c15_606, %c0_607], %1547 {strides = array<i32>} : memref<16x16xf32, #tpu.memory_space<vmem>>, vector<1x16xf32>,
    %1549 = vector.extract_strided_slice %1546 {offsets = [1, 0], sizes = [1, 16], strides = [1, 1]} : vector<2x16xf32> to vector<1x16xf32>
    %c0_608 = arith.constant 0 : index
    %c0_609 = arith.constant 0 : index
    %1550 = vector.load %arg20[%c0_608, %c0_609] : memref<16x16xf32, #tpu.memory_space<vmem>>, vector<1x16xf32>
    tpu.vector_store %arg20[%c0_608, %c0_609], %1549 {strides = array<i32>} : memref<16x16xf32, #tpu.memory_space<vmem>>, vector<1x16xf32>,
    %c0_610 = arith.constant 0 : index
    %c0_611 = arith.constant 0 : index
    %1551 = vector.load %arg19[%c0_610, %c0_611] : memref<16x16xf32, #tpu.memory_space<vmem>>, vector<16x16xf32>
    %c0_612 = arith.constant 0 : index
    %c0_613 = arith.constant 0 : index
    %1552 = vector.load %arg20[%c0_612, %c0_613] : memref<16x16xf32, #tpu.memory_space<vmem>>, vector<16x16xf32>
    %1553 = tpu.concatenate %1551, %1552 in 1 : vector<16x16xf32>, vector<16x16xf32> -> vector<16x32xf32>
    %c0_614 = arith.constant 0 : index
    %c0_615 = arith.constant 0 : index
    %c0_616 = arith.constant 0 : index
    %1554 = vector.load %arg15[%c0_614, %c0_615, %c0_616] : memref<1x16x32xf32, #tpu.memory_space<vmem>>, vector<1x16x32xf32>
    %1555 = vector.shape_cast %1554 : vector<1x16x32xf32> to vector<16x32xf32>
    %1556 = vector.shape_cast %1553 : vector<16x32xf32> to vector<1x16x32xf32>
    tpu.vector_store %arg15[%c0_614, %c0_615, %c0_616], %1556 {strides = array<i32>} : memref<1x16x32xf32, #tpu.memory_space<vmem>>, vector<1x16x32xf32>,
    return
  }
  func.func @transform_0(%arg0: i32) -> (i32, i32, i32) {
    %c0_i32 = arith.constant 0 : i32
    %c0_i32_0 = arith.constant 0 : i32
    %c0_i32_1 = arith.constant 0 : i32
    return %arg0, %c0_i32, %c0_i32_0 : i32, i32, i32
  }
  func.func @transform_1(%arg0: i32) -> (i32, i32) {
    %c0_i32 = arith.constant 0 : i32
    %c0_i32_0 = arith.constant 0 : i32
    %c0_i32_1 = arith.constant 0 : i32
    return %c0_i32, %c0_i32_0 : i32, i32
  }
  func.func @transform_2(%arg0: i32) -> (i32, i32, i32) {
    %c0_i32 = arith.constant 0 : i32
    %c0_i32_0 = arith.constant 0 : i32
    %c0_i32_1 = arith.constant 0 : i32
    %c0_i32_2 = arith.constant 0 : i32
    return %c0_i32, %c0_i32_0, %c0_i32_1 : i32, i32, i32
  }
  func.func @transform_3(%arg0: i32) -> (i32, i32, i32) {
    %c0_i32 = arith.constant 0 : i32
    %c0_i32_0 = arith.constant 0 : i32
    %c0_i32_1 = arith.constant 0 : i32
    %c0_i32_2 = arith.constant 0 : i32
    return %c0_i32, %c0_i32_0, %c0_i32_1 : i32, i32, i32
  }
  func.func @transform_4(%arg0: i32) -> (i32, i32) {
    %c0_i32 = arith.constant 0 : i32
    %c0_i32_0 = arith.constant 0 : i32
    %c0_i32_1 = arith.constant 0 : i32
    return %c0_i32, %c0_i32_0 : i32, i32
  }
  func.func @transform_5(%arg0: i32) -> (i32, i32) {
    %c0_i32 = arith.constant 0 : i32
    %c0_i32_0 = arith.constant 0 : i32
    %c0_i32_1 = arith.constant 0 : i32
    return %c0_i32, %c0_i32_0 : i32, i32
  }
  func.func @transform_6(%arg0: i32) -> (i32, i32) {
    %c0_i32 = arith.constant 0 : i32
    %c0_i32_0 = arith.constant 0 : i32
    %c0_i32_1 = arith.constant 0 : i32
    return %c0_i32, %c0_i32_0 : i32, i32
  }
  func.func @transform_7(%arg0: i32) -> (i32, i32) {
    %c0_i32 = arith.constant 0 : i32
    %c0_i32_0 = arith.constant 0 : i32
    %c0_i32_1 = arith.constant 0 : i32
    return %c0_i32, %c0_i32_0 : i32, i32
  }
  func.func @transform_8(%arg0: i32) -> (i32, i32, i32) {
    %c0_i32 = arith.constant 0 : i32
    %c0_i32_0 = arith.constant 0 : i32
    %c0_i32_1 = arith.constant 0 : i32
    %c0_i32_2 = arith.constant 0 : i32
    return %c0_i32, %c0_i32_0, %c0_i32_1 : i32, i32, i32
  }
  func.func @transform_9(%arg0: i32) -> (i32, i32, i32) {
    %c0_i32 = arith.constant 0 : i32
    %c0_i32_0 = arith.constant 0 : i32
    %c0_i32_1 = arith.constant 0 : i32
    %c0_i32_2 = arith.constant 0 : i32
    return %c0_i32, %c0_i32_0, %c0_i32_1 : i32, i32, i32
  }
  func.func @transform_10(%arg0: i32) -> (i32, i32, i32) {
    %c0_i32 = arith.constant 0 : i32
    %c0_i32_0 = arith.constant 0 : i32
    %c0_i32_1 = arith.constant 0 : i32
    %c0_i32_2 = arith.constant 0 : i32
    return %c0_i32, %c0_i32_0, %c0_i32_1 : i32, i32, i32
  }
  func.func @transform_11(%arg0: i32) -> (i32, i32, i32) {
    %c0_i32 = arith.constant 0 : i32
    %c0_i32_0 = arith.constant 0 : i32
    %c0_i32_1 = arith.constant 0 : i32
    %c0_i32_2 = arith.constant 0 : i32
    return %c0_i32, %c0_i32_0, %c0_i32_1 : i32, i32, i32
  }
  func.func @transform_12(%arg0: i32) -> (i32, i32, i32) {
    %c0_i32 = arith.constant 0 : i32
    %c0_i32_0 = arith.constant 0 : i32
    %c0_i32_1 = arith.constant 0 : i32
    %c0_i32_2 = arith.constant 0 : i32
    return %c0_i32, %c0_i32_0, %c0_i32_1 : i32, i32, i32
  }
  func.func @transform_13(%arg0: i32) -> (i32, i32, i32) {
    %c0_i32 = arith.constant 0 : i32
    %c0_i32_0 = arith.constant 0 : i32
    %c0_i32_1 = arith.constant 0 : i32
    %c0_i32_2 = arith.constant 0 : i32
    return %c0_i32, %c0_i32_0, %c0_i32_1 : i32, i32, i32
  }
  func.func @transform_14(%arg0: i32) -> (i32, i32, i32) {
    %c0_i32 = arith.constant 0 : i32
    %c0_i32_0 = arith.constant 0 : i32
    %c0_i32_1 = arith.constant 0 : i32
    return %arg0, %c0_i32, %c0_i32_0 : i32, i32, i32
  }
}

</mosaic_0001>

<llo_original>
// kernel: tpu_custom_call.1
$region0: #{tpu_custom_call.1}
  #allocation0 [shape = 'u32[]', space=smem, size = 0x4, offset = 0x4, fixed_abs, tag = 'smem constant byte address 0x4 - core index']
  #allocation1 [shape = 'u32[144,128]{1,0:T(1,128)}', space=vmem, size = 0x12000, scoped, tag = 'internal scratch']
  #allocation2 [shape = 'f32[23,32]{1,0:T(8,128)}', space=vmem, size = 0x3000, scoped, tag = 'scratch operand']
  #allocation3 [shape = 'f32[18,256]{1,0:T(8,128)}', space=vmem, size = 0x6000, scoped, tag = 'scratch operand']
  #allocation4 [shape = 'f32[18,32]{1,0:T(8,128)}', space=vmem, size = 0x3000, scoped, tag = 'scratch operand']
  #allocation5 [shape = 'f32[16,16]{1,0:T(8,128)}', space=vmem, size = 0x2000, scoped, tag = 'scratch operand']
  #allocation6 [shape = 'f32[16,16]{1,0:T(8,128)}', space=vmem, size = 0x2000, scoped, tag = 'scratch operand']
  %s0 = inlined_call_operand.vmem [shape: f32[2,16,32], index: 0, kind: input, shape index: {}]
  %s1 = inlined_call_operand.vmem [shape: f32[32,32], index: 1, kind: input, shape index: {}]
  %s2 = inlined_call_operand.vmem [shape: f32[7,256,32], index: 2, kind: input, shape index: {}]
  %s3 = inlined_call_operand.vmem [shape: f32[8,1,32], index: 3, kind: input, shape index: {}]
  %s4 = inlined_call_operand.vmem [shape: f32[768,32], index: 4, kind: input, shape index: {}]
  %s5 = inlined_call_operand.vmem [shape: f32[1,32], index: 5, kind: input, shape index: {}]
  %s6 = inlined_call_operand.vmem [shape: f32[96,32], index: 6, kind: input, shape index: {}]
  %s7 = inlined_call_operand.vmem [shape: f32[1,32], index: 7, kind: input, shape index: {}]
  %s8 = inlined_call_operand.vmem [shape: f32[4,32,64], index: 8, kind: input, shape index: {}]
  %s9 = inlined_call_operand.vmem [shape: f32[4,1,64], index: 9, kind: input, shape index: {}]
  %s10 = inlined_call_operand.vmem [shape: f32[2,32,96], index: 10, kind: input, shape index: {}]
  %s11 = inlined_call_operand.vmem [shape: f32[2,1,96], index: 11, kind: input, shape index: {}]
  %s12 = inlined_call_operand.vmem [shape: f32[2,32,48], index: 12, kind: input, shape index: {}]
  %s13 = inlined_call_operand.vmem [shape: f32[2,2,48], index: 13, kind: input, shape index: {}]
  %s14 = inlined_call_operand.hbm [shape: f32[2,16,32], index: 14, kind: output, shape index: {}]
  %s15 = sld [smem:[#allocation0]]
  $region89: #{tpu_custom_call.1} parent=0
    _
  %s17 = ssub.s32 1, %s15
  %s18 = scalar_select 0, %s17, %s15
  $region1: #{tpu_custom_call.1} parent=0
    #allocation7 [shape = 'u8[16384]{0}', space=vmem, size = 0x4000, scoped, tag = 'output window, operand 0']
    #allocation8 [shape = 's32[2]{0}', space=sflag, size = 0x8, scoped, tag = 'scoped memory for tpu_custom_call.1']
    %19 = vsyncpa [#allocation8], 0
    %s20 = scalar_lea.sflag [#allocation8], 1
    %21 = vsyncpa %s20, 0
    loop: start=0, step=1, limit=4
    $region2: #{tpu_custom_call.1} parent=1 // loop_pre_header
      _
    $region3: #{tpu_custom_call.1} parent=1 // loop_header
      %s23 = sphi 0, %s27
      %p24 = scmp.ge.s32.totalorder %s23, 4
      %s33 = sphi 0, %s35
      %s36 = sphi 0, %s33
      %s37 = sphi 0, %s36
      %s53 = sphi 0, %s37
      %s57 = sphi 0, %s57
      %s59 = sphi 0, %s57
      %s60 = sphi 0, %s59
      %s74 = sphi 0, %s60
      %s78 = sphi 0, %s78
      %s80 = sphi 0, %s78
      %s81 = sphi 0, %s80
      %s95 = sphi 0, %s81
      %s99 = sphi 0, %s99
      %s101 = sphi 0, %s99
      %s102 = sphi 0, %s101
      %s116 = sphi 0, %s102
      %s120 = sphi 0, %s120
      %s122 = sphi 0, %s120
      %s123 = sphi 0, %s122
      %s137 = sphi 0, %s123
      %s141 = sphi 0, %s141
      %s143 = sphi 0, %s141
      %s144 = sphi 0, %s143
      %s158 = sphi 0, %s144
      %s162 = sphi 0, %s162
      %s164 = sphi 0, %s162
      %s165 = sphi 0, %s164
      %s179 = sphi 0, %s165
      %s183 = sphi 0, %s183
      %s185 = sphi 0, %s183
      %s186 = sphi 0, %s185
      %s200 = sphi 0, %s186
      %s204 = sphi 0, %s204
      %s206 = sphi 0, %s204
      %s207 = sphi 0, %s206
      %s221 = sphi 0, %s207
      %s225 = sphi 0, %s225
      %s227 = sphi 0, %s225
      %s228 = sphi 0, %s227
      %s242 = sphi 0, %s228
      %s246 = sphi 0, %s246
      %s248 = sphi 0, %s246
      %s249 = sphi 0, %s248
      %s263 = sphi 0, %s249
      %s267 = sphi 0, %s267
      %s269 = sphi 0, %s267
      %s270 = sphi 0, %s269
      %s284 = sphi 0, %s270
      %s288 = sphi 0, %s288
      %s290 = sphi 0, %s288
      %s291 = sphi 0, %s290
      %s305 = sphi 0, %s291
      %s309 = sphi 0, %s309
      %s311 = sphi 0, %s309
      %s312 = sphi 0, %s311
      %s326 = sphi 0, %s312
      %s332 = sphi 0, %s334
      %s335 = sphi 0, %s332
      %s336 = sphi 0, %s335
      %s352 = sphi 0, %s336
    $region4: #{tpu_custom_call.1} parent=1 // loop_header_branch
      %26 = sbr.rel (%p24) target = $region8
    $region5: #{tpu_custom_call.1} parent=1 // loop_body
      %s28 = ssub.s32 %s23, 1
      %s29 = ssub.s32 %s23, 2
      %s30 = sadd.s32 %s23, 1
      %s31 = ssub.s32 %s23, %s30
      %p32 = scmp.eq.s32.totalorder %s31, 0
      %s34 = sadd.s32 %s33, 1
      %s35 = scalar_select %p32, %s33, %s34
      %p38 = pneg %p32
      %p39 = scmp.eq.s32.totalorder %s23, 1
      %p40 = por %p38, %p39
      %p41 = scmp.ne.s32.totalorder %s33, %s36
      %p42 = scmp.eq.s32.totalorder %s23, 0
      %p43 = por %p41, %p42
      %p44 = scmp.ne.s32.totalorder %s33, %s36
      %p45 = scmp.eq.s32.totalorder %s28, 1
      %p46 = por %p44, %p45
      %p47 = scmp.ne.s32.totalorder %s36, %s37
      %p48 = scmp.eq.s32.totalorder %s28, 0
      %p49 = por %p47, %p48
      %p50 = scmp.ne.s32.totalorder %s36, %s37
      %p51 = scmp.eq.s32.totalorder %s29, 1
      %p52 = por %p50, %p51
      %p54 = scmp.ne.s32.totalorder %s37, %s53
      %p55 = scmp.eq.s32.totalorder %s29, 0
      %p56 = por %p54, %p55
      %s58 = sadd.s32 %s57, 1
      %p61 = scmp.eq.s32.totalorder %s23, 1
      %p62 = scmp.ne.s32.totalorder %s57, %s59
      %p63 = scmp.eq.s32.totalorder %s23, 0
      %p64 = por %p62, %p63
      %p65 = scmp.ne.s32.totalorder %s57, %s59
      %p66 = scmp.eq.s32.totalorder %s28, 1
      %p67 = por %p65, %p66
      %p68 = scmp.ne.s32.totalorder %s59, %s60
      %p69 = scmp.eq.s32.totalorder %s28, 0
      %p70 = por %p68, %p69
      %p71 = scmp.ne.s32.totalorder %s59, %s60
      %p72 = scmp.eq.s32.totalorder %s29, 1
      %p73 = por %p71, %p72
      %p75 = scmp.ne.s32.totalorder %s60, %s74
      %p76 = scmp.eq.s32.totalorder %s29, 0
      %p77 = por %p75, %p76
      %s79 = sadd.s32 %s78, 1
      %p82 = scmp.eq.s32.totalorder %s23, 1
      %p83 = scmp.ne.s32.totalorder %s78, %s80
      %p84 = scmp.eq.s32.totalorder %s23, 0
      %p85 = por %p83, %p84
      %p86 = scmp.ne.s32.totalorder %s78, %s80
      %p87 = scmp.eq.s32.totalorder %s28, 1
      %p88 = por %p86, %p87
      %p89 = scmp.ne.s32.totalorder %s80, %s81
      %p90 = scmp.eq.s32.totalorder %s28, 0
      %p91 = por %p89, %p90
      %p92 = scmp.ne.s32.totalorder %s80, %s81
      %p93 = scmp.eq.s32.totalorder %s29, 1
      %p94 = por %p92, %p93
      %p96 = scmp.ne.s32.totalorder %s81, %s95
      %p97 = scmp.eq.s32.totalorder %s29, 0
      %p98 = por %p96, %p97
      %s100 = sadd.s32 %s99, 1
      %p103 = scmp.eq.s32.totalorder %s23, 1
      %p104 = scmp.ne.s32.totalorder %s99, %s101
      %p105 = scmp.eq.s32.totalorder %s23, 0
      %p106 = por %p104, %p105
      %p107 = scmp.ne.s32.totalorder %s99, %s101
      %p108 = scmp.eq.s32.totalorder %s28, 1
      %p109 = por %p107, %p108
      %p110 = scmp.ne.s32.totalorder %s101, %s102
      %p111 = scmp.eq.s32.totalorder %s28, 0
      %p112 = por %p110, %p111
      %p113 = scmp.ne.s32.totalorder %s101, %s102
      %p114 = scmp.eq.s32.totalorder %s29, 1
      %p115 = por %p113, %p114
      %p117 = scmp.ne.s32.totalorder %s102, %s116
      %p118 = scmp.eq.s32.totalorder %s29, 0
      %p119 = por %p117, %p118
      %s121 = sadd.s32 %s120, 1
      %p124 = scmp.eq.s32.totalorder %s23, 1
      %p125 = scmp.ne.s32.totalorder %s120, %s122
      %p126 = scmp.eq.s32.totalorder %s23, 0
      %p127 = por %p125, %p126
      %p128 = scmp.ne.s32.totalorder %s120, %s122
      %p129 = scmp.eq.s32.totalorder %s28, 1
      %p130 = por %p128, %p129
      %p131 = scmp.ne.s32.totalorder %s122, %s123
      %p132 = scmp.eq.s32.totalorder %s28, 0
      %p133 = por %p131, %p132
      %p134 = scmp.ne.s32.totalorder %s122, %s123
      %p135 = scmp.eq.s32.totalorder %s29, 1
      %p136 = por %p134, %p135
      %p138 = scmp.ne.s32.totalorder %s123, %s137
      %p139 = scmp.eq.s32.totalorder %s29, 0
      %p140 = por %p138, %p139
      %s142 = sadd.s32 %s141, 1
      %p145 = scmp.eq.s32.totalorder %s23, 1
      %p146 = scmp.ne.s32.totalorder %s141, %s143
      %p147 = scmp.eq.s32.totalorder %s23, 0
      %p148 = por %p146, %p147
      %p149 = scmp.ne.s32.totalorder %s141, %s143
      %p150 = scmp.eq.s32.totalorder %s28, 1
      %p151 = por %p149, %p150
      %p152 = scmp.ne.s32.totalorder %s143, %s144
      %p153 = scmp.eq.s32.totalorder %s28, 0
      %p154 = por %p152, %p153
      %p155 = scmp.ne.s32.totalorder %s143, %s144
      %p156 = scmp.eq.s32.totalorder %s29, 1
      %p157 = por %p155, %p156
      %p159 = scmp.ne.s32.totalorder %s144, %s158
      %p160 = scmp.eq.s32.totalorder %s29, 0
      %p161 = por %p159, %p160
      %s163 = sadd.s32 %s162, 1
      %p166 = scmp.eq.s32.totalorder %s23, 1
      %p167 = scmp.ne.s32.totalorder %s162, %s164
      %p168 = scmp.eq.s32.totalorder %s23, 0
      %p169 = por %p167, %p168
      %p170 = scmp.ne.s32.totalorder %s162, %s164
      %p171 = scmp.eq.s32.totalorder %s28, 1
      %p172 = por %p170, %p171
      %p173 = scmp.ne.s32.totalorder %s164, %s165
      %p174 = scmp.eq.s32.totalorder %s28, 0
      %p175 = por %p173, %p174
      %p176 = scmp.ne.s32.totalorder %s164, %s165
      %p177 = scmp.eq.s32.totalorder %s29, 1
      %p178 = por %p176, %p177
      %p180 = scmp.ne.s32.totalorder %s165, %s179
      %p181 = scmp.eq.s32.totalorder %s29, 0
      %p182 = por %p180, %p181
      %s184 = sadd.s32 %s183, 1
      %p187 = scmp.eq.s32.totalorder %s23, 1
      %p188 = scmp.ne.s32.totalorder %s183, %s185
      %p189 = scmp.eq.s32.totalorder %s23, 0
      %p190 = por %p188, %p189
      %p191 = scmp.ne.s32.totalorder %s183, %s185
      %p192 = scmp.eq.s32.totalorder %s28, 1
      %p193 = por %p191, %p192
      %p194 = scmp.ne.s32.totalorder %s185, %s186
      %p195 = scmp.eq.s32.totalorder %s28, 0
      %p196 = por %p194, %p195
      %p197 = scmp.ne.s32.totalorder %s185, %s186
      %p198 = scmp.eq.s32.totalorder %s29, 1
      %p199 = por %p197, %p198
      %p201 = scmp.ne.s32.totalorder %s186, %s200
      %p202 = scmp.eq.s32.totalorder %s29, 0
      %p203 = por %p201, %p202
      %s205 = sadd.s32 %s204, 1
      %p208 = scmp.eq.s32.totalorder %s23, 1
      %p209 = scmp.ne.s32.totalorder %s204, %s206
      %p210 = scmp.eq.s32.totalorder %s23, 0
      %p211 = por %p209, %p210
      %p212 = scmp.ne.s32.totalorder %s204, %s206
      %p213 = scmp.eq.s32.totalorder %s28, 1
      %p214 = por %p212, %p213
      %p215 = scmp.ne.s32.totalorder %s206, %s207
      %p216 = scmp.eq.s32.totalorder %s28, 0
      %p217 = por %p215, %p216
      %p218 = scmp.ne.s32.totalorder %s206, %s207
      %p219 = scmp.eq.s32.totalorder %s29, 1
      %p220 = por %p218, %p219
      %p222 = scmp.ne.s32.totalorder %s207, %s221
      %p223 = scmp.eq.s32.totalorder %s29, 0
      %p224 = por %p222, %p223
      %s226 = sadd.s32 %s225, 1
      %p229 = scmp.eq.s32.totalorder %s23, 1
      %p230 = scmp.ne.s32.totalorder %s225, %s227
      %p231 = scmp.eq.s32.totalorder %s23, 0
      %p232 = por %p230, %p231
      %p233 = scmp.ne.s32.totalorder %s225, %s227
      %p234 = scmp.eq.s32.totalorder %s28, 1
      %p235 = por %p233, %p234
      %p236 = scmp.ne.s32.totalorder %s227, %s228
      %p237 = scmp.eq.s32.totalorder %s28, 0
      %p238 = por %p236, %p237
      %p239 = scmp.ne.s32.totalorder %s227, %s228
      %p240 = scmp.eq.s32.totalorder %s29, 1
      %p241 = por %p239, %p240
      %p243 = scmp.ne.s32.totalorder %s228, %s242
      %p244 = scmp.eq.s32.totalorder %s29, 0
      %p245 = por %p243, %p244
      %s247 = sadd.s32 %s246, 1
      %p250 = scmp.eq.s32.totalorder %s23, 1
      %p251 = scmp.ne.s32.totalorder %s246, %s248
      %p252 = scmp.eq.s32.totalorder %s23, 0
      %p253 = por %p251, %p252
      %p254 = scmp.ne.s32.totalorder %s246, %s248
      %p255 = scmp.eq.s32.totalorder %s28, 1
      %p256 = por %p254, %p255
      %p257 = scmp.ne.s32.totalorder %s248, %s249
      %p258 = scmp.eq.s32.totalorder %s28, 0
      %p259 = por %p257, %p258
      %p260 = scmp.ne.s32.totalorder %s248, %s249
      %p261 = scmp.eq.s32.totalorder %s29, 1
      %p262 = por %p260, %p261
      %p264 = scmp.ne.s32.totalorder %s249, %s263
      %p265 = scmp.eq.s32.totalorder %s29, 0
      %p266 = por %p264, %p265
      %s268 = sadd.s32 %s267, 1
      %p271 = scmp.eq.s32.totalorder %s23, 1
      %p272 = scmp.ne.s32.totalorder %s267, %s269
      %p273 = scmp.eq.s32.totalorder %s23, 0
      %p274 = por %p272, %p273
      %p275 = scmp.ne.s32.totalorder %s267, %s269
      %p276 = scmp.eq.s32.totalorder %s28, 1
      %p277 = por %p275, %p276
      %p278 = scmp.ne.s32.totalorder %s269, %s270
      %p279 = scmp.eq.s32.totalorder %s28, 0
      %p280 = por %p278, %p279
      %p281 = scmp.ne.s32.totalorder %s269, %s270
      %p282 = scmp.eq.s32.totalorder %s29, 1
      %p283 = por %p281, %p282
      %p285 = scmp.ne.s32.totalorder %s270, %s284
      %p286 = scmp.eq.s32.totalorder %s29, 0
      %p287 = por %p285, %p286
      %s289 = sadd.s32 %s288, 1
      %p292 = scmp.eq.s32.totalorder %s23, 1
      %p293 = scmp.ne.s32.totalorder %s288, %s290
      %p294 = scmp.eq.s32.totalorder %s23, 0
      %p295 = por %p293, %p294
      %p296 = scmp.ne.s32.totalorder %s288, %s290
      %p297 = scmp.eq.s32.totalorder %s28, 1
      %p298 = por %p296, %p297
      %p299 = scmp.ne.s32.totalorder %s290, %s291
      %p300 = scmp.eq.s32.totalorder %s28, 0
      %p301 = por %p299, %p300
      %p302 = scmp.ne.s32.totalorder %s290, %s291
      %p303 = scmp.eq.s32.totalorder %s29, 1
      %p304 = por %p302, %p303
      %p306 = scmp.ne.s32.totalorder %s291, %s305
      %p307 = scmp.eq.s32.totalorder %s29, 0
      %p308 = por %p306, %p307
      %s310 = sadd.s32 %s309, 1
      %p313 = scmp.eq.s32.totalorder %s23, 1
      %p314 = scmp.ne.s32.totalorder %s309, %s311
      %p315 = scmp.eq.s32.totalorder %s23, 0
      %p316 = por %p314, %p315
      %p317 = scmp.ne.s32.totalorder %s309, %s311
      %p318 = scmp.eq.s32.totalorder %s28, 1
      %p319 = por %p317, %p318
      %p320 = scmp.ne.s32.totalorder %s311, %s312
      %p321 = scmp.eq.s32.totalorder %s28, 0
      %p322 = por %p320, %p321
      %p323 = scmp.ne.s32.totalorder %s311, %s312
      %p324 = scmp.eq.s32.totalorder %s29, 1
      %p325 = por %p323, %p324
      %p327 = scmp.ne.s32.totalorder %s312, %s326
      %p328 = scmp.eq.s32.totalorder %s29, 0
      %p329 = por %p327, %p328
      %s330 = ssub.s32 %s23, %s30
      %p331 = scmp.eq.s32.totalorder %s330, 0
      %s333 = sadd.s32 %s332, 1
      %s334 = scalar_select %p331, %s332, %s333
      %p337 = pneg %p331
      %p338 = scmp.eq.s32.totalorder %s23, 1
      %p339 = por %p337, %p338
      %p340 = scmp.ne.s32.totalorder %s332, %s335
      %p341 = scmp.eq.s32.totalorder %s23, 0
      %p342 = por %p340, %p341
      %p343 = scmp.ne.s32.totalorder %s332, %s335
      %p344 = scmp.eq.s32.totalorder %s28, 1
      %p345 = por %p343, %p344
      %p346 = scmp.ne.s32.totalorder %s335, %s336
      %p347 = scmp.eq.s32.totalorder %s28, 0
      %p348 = por %p346, %p347
      %p349 = scmp.ne.s32.totalorder %s335, %s336
      %p350 = scmp.eq.s32.totalorder %s29, 1
      %p351 = por %p349, %p350
      %p353 = scmp.ne.s32.totalorder %s336, %s352
      %p354 = scmp.eq.s32.totalorder %s29, 0
      %p355 = por %p353, %p354
      %p356 = scmp.le.s32.totalorder 1, %s23
      %p357 = scmp.lt.s32.totalorder %s23, 3
      %p358 = pnand %p356, %p357
      %p359 = pneg %p358
      // Predicated region
      $region9: #{tpu_custom_call.1} parent=5 // pred_check
        _
      $region10: #{tpu_custom_call.1} parent=5 // pred_check_branch
        %361 = sbr.rel (%p358) target = $region12
      $region11: #{tpu_custom_call.1} parent=5 // pred_region
        %s362 = ssub.s32 %s23, 1
        // Predicated region
        $region13: #{tpu_custom_call.1} parent=11 // pred_check
          %p363 = pneg %p70
        $region14: #{tpu_custom_call.1} parent=11 // pred_check_branch
          %365 = sbr.rel (%p363) target = $region16
        $region15: #{tpu_custom_call.1} parent=11 // pred_region
          _
        $region16: #{tpu_custom_call.1} parent=11 // pred_fallthru
          _
        // Predicated region
        $region17: #{tpu_custom_call.1} parent=11 // pred_check
          %p366 = pneg %p91
        $region18: #{tpu_custom_call.1} parent=11 // pred_check_branch
          %368 = sbr.rel (%p366) target = $region20
        $region19: #{tpu_custom_call.1} parent=11 // pred_region
          _
        $region20: #{tpu_custom_call.1} parent=11 // pred_fallthru
          _
        // Predicated region
        $region21: #{tpu_custom_call.1} parent=11 // pred_check
          %p369 = pneg %p112
        $region22: #{tpu_custom_call.1} parent=11 // pred_check_branch
          %371 = sbr.rel (%p369) target = $region24
        $region23: #{tpu_custom_call.1} parent=11 // pred_region
          _
        $region24: #{tpu_custom_call.1} parent=11 // pred_fallthru
          _
        // Predicated region
        $region25: #{tpu_custom_call.1} parent=11 // pred_check
          %p372 = pneg %p133
        $region26: #{tpu_custom_call.1} parent=11 // pred_check_branch
          %374 = sbr.rel (%p372) target = $region28
        $region27: #{tpu_custom_call.1} parent=11 // pred_region
          _
        $region28: #{tpu_custom_call.1} parent=11 // pred_fallthru
          _
        // Predicated region
        $region29: #{tpu_custom_call.1} parent=11 // pred_check
          %p375 = pneg %p154
        $region30: #{tpu_custom_call.1} parent=11 // pred_check_branch
          %377 = sbr.rel (%p375) target = $region32
        $region31: #{tpu_custom_call.1} parent=11 // pred_region
          _
        $region32: #{tpu_custom_call.1} parent=11 // pred_fallthru
          _
        // Predicated region
        $region33: #{tpu_custom_call.1} parent=11 // pred_check
          %p378 = pneg %p175
        $region34: #{tpu_custom_call.1} parent=11 // pred_check_branch
          %380 = sbr.rel (%p378) target = $region36
        $region35: #{tpu_custom_call.1} parent=11 // pred_region
          _
        $region36: #{tpu_custom_call.1} parent=11 // pred_fallthru
          _
        // Predicated region
        $region37: #{tpu_custom_call.1} parent=11 // pred_check
          %p381 = pneg %p196
        $region38: #{tpu_custom_call.1} parent=11 // pred_check_branch
          %383 = sbr.rel (%p381) target = $region40
        $region39: #{tpu_custom_call.1} parent=11 // pred_region
          _
        $region40: #{tpu_custom_call.1} parent=11 // pred_fallthru
          _
        // Predicated region
        $region41: #{tpu_custom_call.1} parent=11 // pred_check
          %p384 = pneg %p217
        $region42: #{tpu_custom_call.1} parent=11 // pred_check_branch
          %386 = sbr.rel (%p384) target = $region44
        $region43: #{tpu_custom_call.1} parent=11 // pred_region
          _
        $region44: #{tpu_custom_call.1} parent=11 // pred_fallthru
          _
        // Predicated region
        $region45: #{tpu_custom_call.1} parent=11 // pred_check
          %p387 = pneg %p238
        $region46: #{tpu_custom_call.1} parent=11 // pred_check_branch
          %389 = sbr.rel (%p387) target = $region48
        $region47: #{tpu_custom_call.1} parent=11 // pred_region
          _
        $region48: #{tpu_custom_call.1} parent=11 // pred_fallthru
          _
        // Predicated region
        $region49: #{tpu_custom_call.1} parent=11 // pred_check
          %p390 = pneg %p259
        $region50: #{tpu_custom_call.1} parent=11 // pred_check_branch
          %392 = sbr.rel (%p390) target = $region52
        $region51: #{tpu_custom_call.1} parent=11 // pred_region
          _
        $region52: #{tpu_custom_call.1} parent=11 // pred_fallthru
          _
        // Predicated region
        $region53: #{tpu_custom_call.1} parent=11 // pred_check
          %p393 = pneg %p280
        $region54: #{tpu_custom_call.1} parent=11 // pred_check_branch
          %395 = sbr.rel (%p393) target = $region56
        $region55: #{tpu_custom_call.1} parent=11 // pred_region
          _
        $region56: #{tpu_custom_call.1} parent=11 // pred_fallthru
          _
        // Predicated region
        $region57: #{tpu_custom_call.1} parent=11 // pred_check
          %p396 = pneg %p301
        $region58: #{tpu_custom_call.1} parent=11 // pred_check_branch
          %398 = sbr.rel (%p396) target = $region60
        $region59: #{tpu_custom_call.1} parent=11 // pred_region
          _
        $region60: #{tpu_custom_call.1} parent=11 // pred_fallthru
          _
        // Predicated region
        $region61: #{tpu_custom_call.1} parent=11 // pred_check
          %p399 = pneg %p322
        $region62: #{tpu_custom_call.1} parent=11 // pred_check_branch
          %401 = sbr.rel (%p399) target = $region64
        $region63: #{tpu_custom_call.1} parent=11 // pred_region
          _
        $region64: #{tpu_custom_call.1} parent=11 // pred_fallthru
          _
      $region12: #{tpu_custom_call.1} parent=5 // pred_fallthru
        _
      %p402 = scmp.lt.s32.totalorder %s23, 2
      // Predicated region
      $region65: #{tpu_custom_call.1} parent=5 // pred_check
        %p403 = pneg %p402
      $region66: #{tpu_custom_call.1} parent=5 // pred_check_branch
        %405 = sbr.rel (%p403) target = $region68
      $region67: #{tpu_custom_call.1} parent=5 // pred_region
        // Predicated region
        $region69: #{tpu_custom_call.1} parent=67 // pred_check
          %p406 = pneg %p43
        $region70: #{tpu_custom_call.1} parent=67 // pred_check_branch
          %408 = sbr.rel (%p406) target = $region72
        $region71: #{tpu_custom_call.1} parent=67 // pred_region
          %p409 = scmp.lt.s32.totalorder %s23, 1
          %s410 = scalar_select %p409, %s23, 1
          %s411 = smul.addr %s410, 2
          %s412 = smul.addr %s411, 8
          %s413 = scalar_lea.vmem %s0, %s412
        $region72: #{tpu_custom_call.1} parent=67 // pred_fallthru
          _
      $region68: #{tpu_custom_call.1} parent=5 // pred_fallthru
        _
      %p414 = scmp.le.s32.totalorder 1, %s23
      %p415 = scmp.lt.s32.totalorder %s23, 3
      %p416 = pnand %p414, %p415
      %p417 = pneg %p416
      // Predicated region
      $region73: #{tpu_custom_call.1} parent=5 // pred_check
        _
      $region74: #{tpu_custom_call.1} parent=5 // pred_check_branch
        %419 = sbr.rel (%p416) target = $region76
      $region75: #{tpu_custom_call.1} parent=5 // pred_region
        %s420 = ssub.s32 %s23, 1
        %p421 = scmp.lt.s32.totalorder %s28, 1
        %s422 = scalar_select %p421, %s28, 1
        %s423 = smul.addr %s422, 2
        %s424 = smul.addr %s423, 8
        %s425 = scalar_lea.vmem %s0, %s424
        %p426 = pneg %p49
        %p427 = pneg %p46
        %p428 = pneg %p70
        %p429 = pneg %p67
        %p430 = pneg %p91
        %p431 = pneg %p88
        %p432 = pneg %p112
        %p433 = pneg %p109
        %p434 = pneg %p133
        %p435 = pneg %p130
        %p436 = pneg %p154
        %p437 = pneg %p151
        %p438 = pneg %p175
        %p439 = pneg %p172
        %p440 = pneg %p196
        %p441 = pneg %p193
        %p442 = pneg %p217
        %p443 = pneg %p214
        %p444 = pneg %p238
        %p445 = pneg %p235
        %p446 = pneg %p259
        %p447 = pneg %p256
        %p448 = pneg %p280
        %p449 = pneg %p277
        %p450 = pneg %p301
        %p451 = pneg %p298
        %p452 = pneg %p322
        %p453 = pneg %p319
        %p454 = pneg %p348
        %p455 = pneg %p345
        %s456 = sand.u32 %s335, 1
        %s457 = scalar_lea.sflag [#allocation8], %s456
        %s458 = sand.u32 %s335, 1
        %s459 = smul.addr %s458, 16
        %s460 = scalar_lea.vmem [#allocation7], %s459
        %p461 = scmp.lt.s32.totalorder %s28, 1
        %s462 = scalar_select %p461, %s28, 1
        %s463 = smul.addr %s462, 2
        %s464 = smul.addr %s463, 8
        %s465 = scalar_lea.vmem %s0, %s464
        %v466 = vld [vmem:[%s465] sm:$0xff]
        %v467 = vld [vmem:[%s465 + $0x8] sm:$0xff]
        %vm468 = vcmask 261120
        %469 = vst.msk [vmem:[#allocation2] sm:$0xff] %vm468, 0.0
        %470 = vst.msk [vmem:[#allocation2 + $0x8] sm:$0xff] %vm468, 0.0
        %vm471 = vcmask 260096
        %472 = vst.msk [vmem:[#allocation2 + $0x10] sm:$0x7f] %vm471, 0.0
        %473 = vst [vmem:[#allocation3] sm:$0xff] 0.0
        %474 = vst [vmem:[#allocation3 + $0x8] sm:$0xff] 0.0
        %475 = vst [vmem:[#allocation3 + $0x10] sm:$0xff] 0.0
        %476 = vst [vmem:[#allocation3 + $0x18] sm:$0xff] 0.0
        %477 = vst [vmem:[#allocation3 + $0x20] sm:$0x3] 0.0
        %478 = vst [vmem:[#allocation3 + $0x28] sm:$0x3] 0.0
        %479 = vst.msk [vmem:[#allocation4] sm:$0xff] %vm468, 0.0
        %480 = vst.msk [vmem:[#allocation4 + $0x8] sm:$0xff] %vm468, 0.0
        %vm481 = vcmask 254976
        %482 = vst.msk [vmem:[#allocation4 + $0x10] sm:$0x3] %vm481, 0.0
        %v483 = vld [vmem:[%s1] sm:$0xff]
        %v484 = vld [vmem:[%s1 + $0x8] sm:$0xff]
        %v485 = vld [vmem:[%s1 + $0x10] sm:$0xff]
        %v486 = vld [vmem:[%s1 + $0x18] sm:$0xff]
        %v487 = vld [vmem:[%s3] sm:$0x1]
        %v489 = vlaneseq
        %v490 = vshrl.u32 %v489, 7
        %v491 = vsub.s32 0, %v490
        %v492 = vrot.slane %v487, %v491
        %v495 = vsel %vm468, %v466, 0
        %v498 = vsel %vm468, %v467, 0
        %500 = vmatprep.subr.mxu0 0.0
        %501 = vmatpush1.msra.mxu0 0.0
        %502 = vmatprep.subr.mxu0 0.0
        %503 = vmatpush1.msra.mxu0 0.0
        %504 = vmatprep.subr.mxu0 0.0
        %505 = vmatpush1.msra.mxu0 0.0
        %506 = vmatprep.subr.mxu0 0.0
        %507 = vmatpush1.msra.mxu0 0.0
        %508 = vmatprep.subr.mxu0 0.0
        %509 = vmatpush1.msra.mxu0 0.0
        %510 = vmatprep.subr.mxu0 0.0
        %511 = vmatpush1.msra.mxu0 0.0
        %512 = vmatprep.subr.mxu0 0.0
        %513 = vmatpush1.msra.mxu0 0.0
        %514 = vmatprep.subr.mxu0 0.0
        %515 = vmatpush1.msra.mxu0 0.0
        %516 = vmatprep.subr.mxu0 0.0
        %517 = vmatpush1.msra.mxu0 0.0
        %518 = vmatprep.subr.mxu0 0.0
        %519 = vmatpush1.msra.mxu0 0.0
        %520 = vmatprep.subr.mxu0 0.0
        %521 = vmatpush1.msra.mxu0 0.0
        %522 = vmatprep.subr.mxu0 0.0
        %523 = vmatpush1.msra.mxu0 0.0
        %524 = vmatprep.subr.mxu0 0.0
        %525 = vmatpush1.msra.mxu0 %v486
        %526 = vmatprep.subr.mxu0 0.0
        %527 = vmatpush1.msra.mxu0 %v485
        %528 = vmatprep.subr.mxu0 0.0
        %529 = vmatpush1.msra.mxu0 %v484
        %530 = vmatprep.subr.mxu0 0.0
        %531 = vmatpush1.msra.mxu0 %v483
        %532 = vmatprep.subr.mxu0 0.0
        %533 = vmatpush2.msra.mxu0 0.0
        %534 = vmatprep.subr.mxu0 0.0
        %535 = vmatpush2.msra.mxu0 0.0
        %536 = vmatprep.subr.mxu0 0.0
        %537 = vmatpush2.msra.mxu0 0.0
        %538 = vmatprep.subr.mxu0 0.0
        %539 = vmatpush2.msra.mxu0 0.0
        %540 = vmatprep.subr.mxu0 0.0
        %541 = vmatpush2.msra.mxu0 0.0
        %542 = vmatprep.subr.mxu0 0.0
        %543 = vmatpush2.msra.mxu0 0.0
        %544 = vmatprep.subr.mxu0 0.0
        %545 = vmatpush2.msra.mxu0 0.0
        %546 = vmatprep.subr.mxu0 0.0
        %547 = vmatpush2.msra.mxu0 0.0
        %548 = vmatprep.subr.mxu0 0.0
        %549 = vmatpush2.msra.mxu0 0.0
        %550 = vmatprep.subr.mxu0 0.0
        %551 = vmatpush2.msra.mxu0 0.0
        %552 = vmatprep.subr.mxu0 0.0
        %553 = vmatpush2.msra.mxu0 0.0
        %554 = vmatprep.subr.mxu0 0.0
        %555 = vmatpush2.msra.mxu0 0.0
        %556 = vmatprep.subr.mxu0 0.0
        %557 = vmatpush2.msra.mxu0 0.0
        %558 = vmatprep.subr.mxu0 0.0
        %559 = vmatpush2.msra.mxu0 0.0
        %560 = vmatprep.subr.mxu0 0.0
        %561 = vmatpush2.msra.mxu0 0.0
        %562 = vmatprep.subr.mxu0 0.0
        %563 = vmatpush2.msra.mxu0 0.0
        %564 = vmatprep.mubr.f32.mxu0 0.0
        %565 = vmatmul.mubr.f32.gmra.mxu0 %v495
        %v566 = vpop.f32.mrf.mxu0
        %v567 = vadd.f32 %v492, %v566
        %v568 = vpop.f32.mrf.mxu0
        %569 = vmatprep.mubr.f32.mxu0 0.0
        %570 = vmatmul.mubr.f32.gmra.mxu0 %v498
        %v571 = vpop.f32.mrf.mxu0
        %v572 = vadd.f32 %v492, %v571
        %v573 = vpop.f32.mrf.mxu0
        %574 = vdwg.mxu0
        %v575 = vmax.f32 %v567, 0.0
        %v576 = vmax.f32 %v572, 0.0
        %577 = vst.msk [vmem:[#allocation2 + $0x4] sm:$0xff] %vm468, %v575
        %578 = vst.msk [vmem:[#allocation2 + $0xc] sm:$0xff] %vm468, %v576
        %v579 = vld [vmem:[#allocation2] sm:$0xff]
        %v580 = vld [vmem:[#allocation2 + $0x8] sm:$0xff]
        %v581 = vld [vmem:[#allocation2 + $0x1] sm:$0xff]
        %v582 = vld [vmem:[#allocation2 + $0x9] sm:$0xff]
        %v583 = vld [vmem:[#allocation2 + $0x2] sm:$0xff]
        %v584 = vld [vmem:[#allocation2 + $0xa] sm:$0xff]
        %v585 = vld [vmem:[#allocation2 + $0x3] sm:$0xff]
        %v586 = vld [vmem:[#allocation2 + $0xb] sm:$0xff]
        %v587 = vld [vmem:[#allocation2 + $0x4] sm:$0xff]
        %v588 = vld [vmem:[#allocation2 + $0xc] sm:$0xff]
        %v589 = vld [vmem:[#allocation2 + $0x5] sm:$0xff]
        %v590 = vld [vmem:[#allocation2 + $0xd] sm:$0xff]
        %v591 = vld [vmem:[#allocation2 + $0x6] sm:$0xff]
        %v592 = vld [vmem:[#allocation2 + $0xe] sm:$0xff]
        %v593 = vld [vmem:[#allocation2 + $0x7] sm:$0xff]
        %v594 = vld [vmem:[#allocation2 + $0xf] sm:$0xff]
        %597 = vrot.lane.b32.xlu0 %v581, 32
        %v598 = vpop.permute.xlu0 %597
        %599 = vrot.lane.b32.xlu0 %v582, 32
        %v600 = vpop.permute.xlu0 %599
        %605 = vrot.lane.b32.xlu0 %v583, 64
        %v606 = vpop.permute.xlu0 %605
        %607 = vrot.lane.b32.xlu0 %v584, 64
        %v608 = vpop.permute.xlu0 %607
        %613 = vrot.lane.b32.xlu0 %v585, 96
        %v614 = vpop.permute.xlu0 %613
        %615 = vrot.lane.b32.xlu0 %v586, 96
        %v616 = vpop.permute.xlu0 %615
        %621 = vrot.lane.b32.xlu0 %v589, 32
        %v622 = vpop.permute.xlu0 %621
        %623 = vrot.lane.b32.xlu0 %v590, 32
        %v624 = vpop.permute.xlu0 %623
        %629 = vrot.lane.b32.xlu0 %v591, 64
        %v630 = vpop.permute.xlu0 %629
        %631 = vrot.lane.b32.xlu0 %v592, 64
        %v632 = vpop.permute.xlu0 %631
        %637 = vrot.lane.b32.xlu0 %v593, 96
        %v638 = vpop.permute.xlu0 %637
        %639 = vrot.lane.b32.xlu0 %v594, 96
        %v640 = vpop.permute.xlu0 %639
        %v643 = vsel %vm468, %v579, %v598
        %v644 = vsel %vm468, %v580, %v600
        %vm645 = vcmask 523264
        %v646 = vsel %vm645, %v643, %v606
        %v647 = vsel %vm645, %v644, %v608
        %vm648 = vcmask 785408
        %v649 = vsel %vm648, %v646, %v614
        %v650 = vsel %vm648, %v647, %v616
        %v651 = vsel %vm468, %v587, %v622
        %v652 = vsel %vm468, %v588, %v624
        %v653 = vsel %vm645, %v651, %v630
        %v654 = vsel %vm645, %v652, %v632
        %v655 = vsel %vm648, %v653, %v638
        %v656 = vsel %vm648, %v654, %v640
        %v657 = vld [vmem:[%s2] sm:$0xff]
        %v658 = vld [vmem:[%s2 + $0x8] sm:$0xff]
        %v659 = vld [vmem:[%s2 + $0x10] sm:$0xff]
        %v660 = vld [vmem:[%s2 + $0x18] sm:$0xff]
        %v661 = vld [vmem:[%s2 + $0x20] sm:$0xff]
        %v662 = vld [vmem:[%s2 + $0x28] sm:$0xff]
        %v663 = vld [vmem:[%s2 + $0x30] sm:$0xff]
        %v664 = vld [vmem:[%s2 + $0x38] sm:$0xff]
        %v665 = vld [vmem:[%s2 + $0x40] sm:$0xff]
        %v666 = vld [vmem:[%s2 + $0x48] sm:$0xff]
        %v667 = vld [vmem:[%s2 + $0x50] sm:$0xff]
        %v668 = vld [vmem:[%s2 + $0x58] sm:$0xff]
        %v669 = vld [vmem:[%s2 + $0x60] sm:$0xff]
        %v670 = vld [vmem:[%s2 + $0x68] sm:$0xff]
        %v671 = vld [vmem:[%s2 + $0x70] sm:$0xff]
        %v672 = vld [vmem:[%s2 + $0x78] sm:$0xff]
        %v673 = vld [vmem:[%s2 + $0x80] sm:$0xff]
        %v674 = vld [vmem:[%s2 + $0x88] sm:$0xff]
        %v675 = vld [vmem:[%s2 + $0x90] sm:$0xff]
        %v676 = vld [vmem:[%s2 + $0x98] sm:$0xff]
        %v677 = vld [vmem:[%s2 + $0xa0] sm:$0xff]
        %v678 = vld [vmem:[%s2 + $0xa8] sm:$0xff]
        %v679 = vld [vmem:[%s2 + $0xb0] sm:$0xff]
        %v680 = vld [vmem:[%s2 + $0xb8] sm:$0xff]
        %v681 = vld [vmem:[%s2 + $0xc0] sm:$0xff]
        %v682 = vld [vmem:[%s2 + $0xc8] sm:$0xff]
        %v683 = vld [vmem:[%s2 + $0xd0] sm:$0xff]
        %v684 = vld [vmem:[%s2 + $0xd8] sm:$0xff]
        %v685 = vld [vmem:[%s2 + $0xe0] sm:$0xff]
        %v686 = vld [vmem:[%s2 + $0xe8] sm:$0xff]
        %v687 = vld [vmem:[%s2 + $0xf0] sm:$0xff]
        %v688 = vld [vmem:[%s2 + $0xf8] sm:$0xff]
        %s689 = scalar_lea.vmem %s3, 1
        %v690 = vld [vmem:[%s689] sm:$0x1]
        %v692 = vlaneseq
        %v693 = vshrl.u32 %v692, 7
        %v694 = vsub.s32 0, %v693
        %v695 = vrot.slane %v690, %v694
        %697 = vmatprep.subr.mxu0 0.0
        %698 = vmatpush1.msra.mxu0 %v672
        %699 = vmatprep.subr.mxu0 0.0
        %700 = vmatpush1.msra.mxu0 %v671
        %701 = vmatprep.subr.mxu0 0.0
        %702 = vmatpush1.msra.mxu0 %v670
        %703 = vmatprep.subr.mxu0 0.0
        %704 = vmatpush1.msra.mxu0 %v669
        %705 = vmatprep.subr.mxu0 0.0
        %706 = vmatpush1.msra.mxu0 %v668
        %707 = vmatprep.subr.mxu0 0.0
        %708 = vmatpush1.msra.mxu0 %v667
        %709 = vmatprep.subr.mxu0 0.0
        %710 = vmatpush1.msra.mxu0 %v666
        %711 = vmatprep.subr.mxu0 0.0
        %712 = vmatpush1.msra.mxu0 %v665
        %713 = vmatprep.subr.mxu0 0.0
        %714 = vmatpush1.msra.mxu0 %v664
        %715 = vmatprep.subr.mxu0 0.0
        %716 = vmatpush1.msra.mxu0 %v663
        %717 = vmatprep.subr.mxu0 0.0
        %718 = vmatpush1.msra.mxu0 %v662
        %719 = vmatprep.subr.mxu0 0.0
        %720 = vmatpush1.msra.mxu0 %v661
        %721 = vmatprep.subr.mxu0 0.0
        %722 = vmatpush1.msra.mxu0 %v660
        %723 = vmatprep.subr.mxu0 0.0
        %724 = vmatpush1.msra.mxu0 %v659
        %725 = vmatprep.subr.mxu0 0.0
        %726 = vmatpush1.msra.mxu0 %v658
        %727 = vmatprep.subr.mxu0 0.0
        %728 = vmatpush1.msra.mxu0 %v657
        %729 = vmatprep.subr.mxu0 0.0
        %730 = vmatpush2.msra.mxu0 %v688
        %731 = vmatprep.subr.mxu0 0.0
        %732 = vmatpush2.msra.mxu0 %v687
        %733 = vmatprep.subr.mxu0 0.0
        %734 = vmatpush2.msra.mxu0 %v686
        %735 = vmatprep.subr.mxu0 0.0
        %736 = vmatpush2.msra.mxu0 %v685
        %737 = vmatprep.subr.mxu0 0.0
        %738 = vmatpush2.msra.mxu0 %v684
        %739 = vmatprep.subr.mxu0 0.0
        %740 = vmatpush2.msra.mxu0 %v683
        %741 = vmatprep.subr.mxu0 0.0
        %742 = vmatpush2.msra.mxu0 %v682
        %743 = vmatprep.subr.mxu0 0.0
        %744 = vmatpush2.msra.mxu0 %v681
        %745 = vmatprep.subr.mxu0 0.0
        %746 = vmatpush2.msra.mxu0 %v680
        %747 = vmatprep.subr.mxu0 0.0
        %748 = vmatpush2.msra.mxu0 %v679
        %749 = vmatprep.subr.mxu0 0.0
        %750 = vmatpush2.msra.mxu0 %v678
        %751 = vmatprep.subr.mxu0 0.0
        %752 = vmatpush2.msra.mxu0 %v677
        %753 = vmatprep.subr.mxu0 0.0
        %754 = vmatpush2.msra.mxu0 %v676
        %755 = vmatprep.subr.mxu0 0.0
        %756 = vmatpush2.msra.mxu0 %v675
        %757 = vmatprep.subr.mxu0 0.0
        %758 = vmatpush2.msra.mxu0 %v674
        %759 = vmatprep.subr.mxu0 0.0
        %760 = vmatpush2.msra.mxu0 %v673
        %761 = vmatprep.mubr.f32.mxu0 %v655
        %762 = vmatmul.mubr.f32.gmra.mxu0 %v649
        %v763 = vpop.f32.mrf.mxu0
        %v764 = vadd.f32 %v695, %v763
        %v765 = vpop.f32.mrf.mxu0
        %766 = vmatprep.mubr.f32.mxu0 %v656
        %767 = vmatmul.mubr.f32.gmra.mxu0 %v650
        %v768 = vpop.f32.mrf.mxu0
        %v769 = vadd.f32 %v695, %v768
        %v770 = vpop.f32.mrf.mxu0
        %771 = vdwg.mxu0
        %v772 = vmax.f32 %v764, 0.0
        %v773 = vmax.f32 %v769, 0.0
        %774 = vst.msk [vmem:[#allocation2 + $0x4] sm:$0xff] %vm468, %v772
        %775 = vst.msk [vmem:[#allocation2 + $0xc] sm:$0xff] %vm468, %v773
        %v776 = vld [vmem:[#allocation2] sm:$0xff]
        %v777 = vld [vmem:[#allocation2 + $0x8] sm:$0xff]
        %v778 = vld [vmem:[#allocation2 + $0x1] sm:$0xff]
        %v779 = vld [vmem:[#allocation2 + $0x9] sm:$0xff]
        %v780 = vld [vmem:[#allocation2 + $0x2] sm:$0xff]
        %v781 = vld [vmem:[#allocation2 + $0xa] sm:$0xff]
        %v782 = vld [vmem:[#allocation2 + $0x3] sm:$0xff]
        %v783 = vld [vmem:[#allocation2 + $0xb] sm:$0xff]
        %v784 = vld [vmem:[#allocation2 + $0x4] sm:$0xff]
        %v785 = vld [vmem:[#allocation2 + $0xc] sm:$0xff]
        %v786 = vld [vmem:[#allocation2 + $0x5] sm:$0xff]
        %v787 = vld [vmem:[#allocation2 + $0xd] sm:$0xff]
        %v788 = vld [vmem:[#allocation2 + $0x6] sm:$0xff]
        %v789 = vld [vmem:[#allocation2 + $0xe] sm:$0xff]
        %v790 = vld [vmem:[#allocation2 + $0x7] sm:$0xff]
        %v791 = vld [vmem:[#allocation2 + $0xf] sm:$0xff]
        %794 = vrot.lane.b32.xlu0 %v778, 32
        %v795 = vpop.permute.xlu0 %794
        %796 = vrot.lane.b32.xlu0 %v779, 32
        %v797 = vpop.permute.xlu0 %796
        %802 = vrot.lane.b32.xlu0 %v780, 64
        %v803 = vpop.permute.xlu0 %802
        %804 = vrot.lane.b32.xlu0 %v781, 64
        %v805 = vpop.permute.xlu0 %804
        %810 = vrot.lane.b32.xlu0 %v782, 96
        %v811 = vpop.permute.xlu0 %810
        %812 = vrot.lane.b32.xlu0 %v783, 96
        %v813 = vpop.permute.xlu0 %812
        %818 = vrot.lane.b32.xlu0 %v786, 32
        %v819 = vpop.permute.xlu0 %818
        %820 = vrot.lane.b32.xlu0 %v787, 32
        %v821 = vpop.permute.xlu0 %820
        %826 = vrot.lane.b32.xlu0 %v788, 64
        %v827 = vpop.permute.xlu0 %826
        %828 = vrot.lane.b32.xlu0 %v789, 64
        %v829 = vpop.permute.xlu0 %828
        %834 = vrot.lane.b32.xlu0 %v790, 96
        %v835 = vpop.permute.xlu0 %834
        %836 = vrot.lane.b32.xlu0 %v791, 96
        %v837 = vpop.permute.xlu0 %836
        %v840 = vsel %vm468, %v776, %v795
        %v841 = vsel %vm468, %v777, %v797
        %v842 = vsel %vm645, %v840, %v803
        %v843 = vsel %vm645, %v841, %v805
        %v844 = vsel %vm648, %v842, %v811
        %v845 = vsel %vm648, %v843, %v813
        %v846 = vsel %vm468, %v784, %v819
        %v847 = vsel %vm468, %v785, %v821
        %v848 = vsel %vm645, %v846, %v827
        %v849 = vsel %vm645, %v847, %v829
        %v850 = vsel %vm648, %v848, %v835
        %v851 = vsel %vm648, %v849, %v837
        %s852 = scalar_lea.vmem %s2, 256
        %v853 = vld [vmem:[%s852] sm:$0xff]
        %v854 = vld [vmem:[%s852 + $0x8] sm:$0xff]
        %v855 = vld [vmem:[%s852 + $0x10] sm:$0xff]
        %v856 = vld [vmem:[%s852 + $0x18] sm:$0xff]
        %v857 = vld [vmem:[%s852 + $0x20] sm:$0xff]
        %v858 = vld [vmem:[%s852 + $0x28] sm:$0xff]
        %v859 = vld [vmem:[%s852 + $0x30] sm:$0xff]
        %v860 = vld [vmem:[%s852 + $0x38] sm:$0xff]
        %v861 = vld [vmem:[%s852 + $0x40] sm:$0xff]
        %v862 = vld [vmem:[%s852 + $0x48] sm:$0xff]
        %v863 = vld [vmem:[%s852 + $0x50] sm:$0xff]
        %v864 = vld [vmem:[%s852 + $0x58] sm:$0xff]
        %v865 = vld [vmem:[%s852 + $0x60] sm:$0xff]
        %v866 = vld [vmem:[%s852 + $0x68] sm:$0xff]
        %v867 = vld [vmem:[%s852 + $0x70] sm:$0xff]
        %v868 = vld [vmem:[%s852 + $0x78] sm:$0xff]
        %v869 = vld [vmem:[%s852 + $0x80] sm:$0xff]
        %v870 = vld [vmem:[%s852 + $0x88] sm:$0xff]
        %v871 = vld [vmem:[%s852 + $0x90] sm:$0xff]
        %v872 = vld [vmem:[%s852 + $0x98] sm:$0xff]
        %v873 = vld [vmem:[%s852 + $0xa0] sm:$0xff]
        %v874 = vld [vmem:[%s852 + $0xa8] sm:$0xff]
        %v875 = vld [vmem:[%s852 + $0xb0] sm:$0xff]
        %v876 = vld [vmem:[%s852 + $0xb8] sm:$0xff]
        %v877 = vld [vmem:[%s852 + $0xc0] sm:$0xff]
        %v878 = vld [vmem:[%s852 + $0xc8] sm:$0xff]
        %v879 = vld [vmem:[%s852 + $0xd0] sm:$0xff]
        %v880 = vld [vmem:[%s852 + $0xd8] sm:$0xff]
        %v881 = vld [vmem:[%s852 + $0xe0] sm:$0xff]
        %v882 = vld [vmem:[%s852 + $0xe8] sm:$0xff]
        %v883 = vld [vmem:[%s852 + $0xf0] sm:$0xff]
        %v884 = vld [vmem:[%s852 + $0xf8] sm:$0xff]
        %s885 = scalar_lea.vmem %s3, 2
        %v886 = vld [vmem:[%s885] sm:$0x1]
        %v888 = vlaneseq
        %v889 = vshrl.u32 %v888, 7
        %v890 = vsub.s32 0, %v889
        %v891 = vrot.slane %v886, %v890
        %893 = vmatprep.subr.mxu0 0.0
        %894 = vmatpush1.msra.mxu0 %v868
        %895 = vmatprep.subr.mxu0 0.0
        %896 = vmatpush1.msra.mxu0 %v867
        %897 = vmatprep.subr.mxu0 0.0
        %898 = vmatpush1.msra.mxu0 %v866
        %899 = vmatprep.subr.mxu0 0.0
        %900 = vmatpush1.msra.mxu0 %v865
        %901 = vmatprep.subr.mxu0 0.0
        %902 = vmatpush1.msra.mxu0 %v864
        %903 = vmatprep.subr.mxu0 0.0
        %904 = vmatpush1.msra.mxu0 %v863
        %905 = vmatprep.subr.mxu0 0.0
        %906 = vmatpush1.msra.mxu0 %v862
        %907 = vmatprep.subr.mxu0 0.0
        %908 = vmatpush1.msra.mxu0 %v861
        %909 = vmatprep.subr.mxu0 0.0
        %910 = vmatpush1.msra.mxu0 %v860
        %911 = vmatprep.subr.mxu0 0.0
        %912 = vmatpush1.msra.mxu0 %v859
        %913 = vmatprep.subr.mxu0 0.0
        %914 = vmatpush1.msra.mxu0 %v858
        %915 = vmatprep.subr.mxu0 0.0
        %916 = vmatpush1.msra.mxu0 %v857
        %917 = vmatprep.subr.mxu0 0.0
        %918 = vmatpush1.msra.mxu0 %v856
        %919 = vmatprep.subr.mxu0 0.0
        %920 = vmatpush1.msra.mxu0 %v855
        %921 = vmatprep.subr.mxu0 0.0
        %922 = vmatpush1.msra.mxu0 %v854
        %923 = vmatprep.subr.mxu0 0.0
        %924 = vmatpush1.msra.mxu0 %v853
        %925 = vmatprep.subr.mxu0 0.0
        %926 = vmatpush2.msra.mxu0 %v884
        %927 = vmatprep.subr.mxu0 0.0
        %928 = vmatpush2.msra.mxu0 %v883
        %929 = vmatprep.subr.mxu0 0.0
        %930 = vmatpush2.msra.mxu0 %v882
        %931 = vmatprep.subr.mxu0 0.0
        %932 = vmatpush2.msra.mxu0 %v881
        %933 = vmatprep.subr.mxu0 0.0
        %934 = vmatpush2.msra.mxu0 %v880
        %935 = vmatprep.subr.mxu0 0.0
        %936 = vmatpush2.msra.mxu0 %v879
        %937 = vmatprep.subr.mxu0 0.0
        %938 = vmatpush2.msra.mxu0 %v878
        %939 = vmatprep.subr.mxu0 0.0
        %940 = vmatpush2.msra.mxu0 %v877
        %941 = vmatprep.subr.mxu0 0.0
        %942 = vmatpush2.msra.mxu0 %v876
        %943 = vmatprep.subr.mxu0 0.0
        %944 = vmatpush2.msra.mxu0 %v875
        %945 = vmatprep.subr.mxu0 0.0
        %946 = vmatpush2.msra.mxu0 %v874
        %947 = vmatprep.subr.mxu0 0.0
        %948 = vmatpush2.msra.mxu0 %v873
        %949 = vmatprep.subr.mxu0 0.0
        %950 = vmatpush2.msra.mxu0 %v872
        %951 = vmatprep.subr.mxu0 0.0
        %952 = vmatpush2.msra.mxu0 %v871
        %953 = vmatprep.subr.mxu0 0.0
        %954 = vmatpush2.msra.mxu0 %v870
        %955 = vmatprep.subr.mxu0 0.0
        %956 = vmatpush2.msra.mxu0 %v869
        %957 = vmatprep.mubr.f32.mxu0 %v850
        %958 = vmatmul.mubr.f32.gmra.mxu0 %v844
        %v959 = vpop.f32.mrf.mxu0
        %v960 = vadd.f32 %v891, %v959
        %v961 = vpop.f32.mrf.mxu0
        %962 = vmatprep.mubr.f32.mxu0 %v851
        %963 = vmatmul.mubr.f32.gmra.mxu0 %v845
        %v964 = vpop.f32.mrf.mxu0
        %v965 = vadd.f32 %v891, %v964
        %v966 = vpop.f32.mrf.mxu0
        %967 = vdwg.mxu0
        %v968 = vmax.f32 %v960, 0.0
        %v969 = vmax.f32 %v965, 0.0
        %970 = vst.msk [vmem:[#allocation2 + $0x4] sm:$0xff] %vm468, %v968
        %971 = vst.msk [vmem:[#allocation2 + $0xc] sm:$0xff] %vm468, %v969
        %v972 = vld [vmem:[#allocation2] sm:$0xff]
        %v973 = vld [vmem:[#allocation2 + $0x8] sm:$0xff]
        %v974 = vld [vmem:[#allocation2 + $0x1] sm:$0xff]
        %v975 = vld [vmem:[#allocation2 + $0x9] sm:$0xff]
        %v976 = vld [vmem:[#allocation2 + $0x2] sm:$0xff]
        %v977 = vld [vmem:[#allocation2 + $0xa] sm:$0xff]
        %v978 = vld [vmem:[#allocation2 + $0x3] sm:$0xff]
        %v979 = vld [vmem:[#allocation2 + $0xb] sm:$0xff]
        %v980 = vld [vmem:[#allocation2 + $0x4] sm:$0xff]
        %v981 = vld [vmem:[#allocation2 + $0xc] sm:$0xff]
        %v982 = vld [vmem:[#allocation2 + $0x5] sm:$0xff]
        %v983 = vld [vmem:[#allocation2 + $0xd] sm:$0xff]
        %v984 = vld [vmem:[#allocation2 + $0x6] sm:$0xff]
        %v985 = vld [vmem:[#allocation2 + $0xe] sm:$0xff]
        %v986 = vld [vmem:[#allocation2 + $0x7] sm:$0xff]
        %v987 = vld [vmem:[#allocation2 + $0xf] sm:$0xff]
        %990 = vrot.lane.b32.xlu0 %v974, 32
        %v991 = vpop.permute.xlu0 %990
        %992 = vrot.lane.b32.xlu0 %v975, 32
        %v993 = vpop.permute.xlu0 %992
        %998 = vrot.lane.b32.xlu0 %v976, 64
        %v999 = vpop.permute.xlu0 %998
        %1000 = vrot.lane.b32.xlu0 %v977, 64
        %v1001 = vpop.permute.xlu0 %1000
        %1006 = vrot.lane.b32.xlu0 %v978, 96
        %v1007 = vpop.permute.xlu0 %1006
        %1008 = vrot.lane.b32.xlu0 %v979, 96
        %v1009 = vpop.permute.xlu0 %1008
        %1014 = vrot.lane.b32.xlu0 %v982, 32
        %v1015 = vpop.permute.xlu0 %1014
        %1016 = vrot.lane.b32.xlu0 %v983, 32
        %v1017 = vpop.permute.xlu0 %1016
        %1022 = vrot.lane.b32.xlu0 %v984, 64
        %v1023 = vpop.permute.xlu0 %1022
        %1024 = vrot.lane.b32.xlu0 %v985, 64
        %v1025 = vpop.permute.xlu0 %1024
        %1030 = vrot.lane.b32.xlu0 %v986, 96
        %v1031 = vpop.permute.xlu0 %1030
        %1032 = vrot.lane.b32.xlu0 %v987, 96
        %v1033 = vpop.permute.xlu0 %1032
        %v1036 = vsel %vm468, %v972, %v991
        %v1037 = vsel %vm468, %v973, %v993
        %v1038 = vsel %vm645, %v1036, %v999
        %v1039 = vsel %vm645, %v1037, %v1001
        %v1040 = vsel %vm648, %v1038, %v1007
        %v1041 = vsel %vm648, %v1039, %v1009
        %v1042 = vsel %vm468, %v980, %v1015
        %v1043 = vsel %vm468, %v981, %v1017
        %v1044 = vsel %vm645, %v1042, %v1023
        %v1045 = vsel %vm645, %v1043, %v1025
        %v1046 = vsel %vm648, %v1044, %v1031
        %v1047 = vsel %vm648, %v1045, %v1033
        %s1048 = scalar_lea.vmem %s2, 512
        %v1049 = vld [vmem:[%s1048] sm:$0xff]
        %v1050 = vld [vmem:[%s1048 + $0x8] sm:$0xff]
        %v1051 = vld [vmem:[%s1048 + $0x10] sm:$0xff]
        %v1052 = vld [vmem:[%s1048 + $0x18] sm:$0xff]
        %v1053 = vld [vmem:[%s1048 + $0x20] sm:$0xff]
        %v1054 = vld [vmem:[%s1048 + $0x28] sm:$0xff]
        %v1055 = vld [vmem:[%s1048 + $0x30] sm:$0xff]
        %v1056 = vld [vmem:[%s1048 + $0x38] sm:$0xff]
        %v1057 = vld [vmem:[%s1048 + $0x40] sm:$0xff]
        %v1058 = vld [vmem:[%s1048 + $0x48] sm:$0xff]
        %v1059 = vld [vmem:[%s1048 + $0x50] sm:$0xff]
        %v1060 = vld [vmem:[%s1048 + $0x58] sm:$0xff]
        %v1061 = vld [vmem:[%s1048 + $0x60] sm:$0xff]
        %v1062 = vld [vmem:[%s1048 + $0x68] sm:$0xff]
        %v1063 = vld [vmem:[%s1048 + $0x70] sm:$0xff]
        %v1064 = vld [vmem:[%s1048 + $0x78] sm:$0xff]
        %v1065 = vld [vmem:[%s1048 + $0x80] sm:$0xff]
        %v1066 = vld [vmem:[%s1048 + $0x88] sm:$0xff]
        %v1067 = vld [vmem:[%s1048 + $0x90] sm:$0xff]
        %v1068 = vld [vmem:[%s1048 + $0x98] sm:$0xff]
        %v1069 = vld [vmem:[%s1048 + $0xa0] sm:$0xff]
        %v1070 = vld [vmem:[%s1048 + $0xa8] sm:$0xff]
        %v1071 = vld [vmem:[%s1048 + $0xb0] sm:$0xff]
        %v1072 = vld [vmem:[%s1048 + $0xb8] sm:$0xff]
        %v1073 = vld [vmem:[%s1048 + $0xc0] sm:$0xff]
        %v1074 = vld [vmem:[%s1048 + $0xc8] sm:$0xff]
        %v1075 = vld [vmem:[%s1048 + $0xd0] sm:$0xff]
        %v1076 = vld [vmem:[%s1048 + $0xd8] sm:$0xff]
        %v1077 = vld [vmem:[%s1048 + $0xe0] sm:$0xff]
        %v1078 = vld [vmem:[%s1048 + $0xe8] sm:$0xff]
        %v1079 = vld [vmem:[%s1048 + $0xf0] sm:$0xff]
        %v1080 = vld [vmem:[%s1048 + $0xf8] sm:$0xff]
        %s1081 = scalar_lea.vmem %s3, 3
        %v1082 = vld [vmem:[%s1081] sm:$0x1]
        %v1084 = vlaneseq
        %v1085 = vshrl.u32 %v1084, 7
        %v1086 = vsub.s32 0, %v1085
        %v1087 = vrot.slane %v1082, %v1086
        %1089 = vmatprep.subr.mxu0 0.0
        %1090 = vmatpush1.msra.mxu0 %v1064
        %1091 = vmatprep.subr.mxu0 0.0
        %1092 = vmatpush1.msra.mxu0 %v1063
        %1093 = vmatprep.subr.mxu0 0.0
        %1094 = vmatpush1.msra.mxu0 %v1062
        %1095 = vmatprep.subr.mxu0 0.0
        %1096 = vmatpush1.msra.mxu0 %v1061
        %1097 = vmatprep.subr.mxu0 0.0
        %1098 = vmatpush1.msra.mxu0 %v1060
        %1099 = vmatprep.subr.mxu0 0.0
        %1100 = vmatpush1.msra.mxu0 %v1059
        %1101 = vmatprep.subr.mxu0 0.0
        %1102 = vmatpush1.msra.mxu0 %v1058
        %1103 = vmatprep.subr.mxu0 0.0
        %1104 = vmatpush1.msra.mxu0 %v1057
        %1105 = vmatprep.subr.mxu0 0.0
        %1106 = vmatpush1.msra.mxu0 %v1056
        %1107 = vmatprep.subr.mxu0 0.0
        %1108 = vmatpush1.msra.mxu0 %v1055
        %1109 = vmatprep.subr.mxu0 0.0
        %1110 = vmatpush1.msra.mxu0 %v1054
        %1111 = vmatprep.subr.mxu0 0.0
        %1112 = vmatpush1.msra.mxu0 %v1053
        %1113 = vmatprep.subr.mxu0 0.0
        %1114 = vmatpush1.msra.mxu0 %v1052
        %1115 = vmatprep.subr.mxu0 0.0
        %1116 = vmatpush1.msra.mxu0 %v1051
        %1117 = vmatprep.subr.mxu0 0.0
        %1118 = vmatpush1.msra.mxu0 %v1050
        %1119 = vmatprep.subr.mxu0 0.0
        %1120 = vmatpush1.msra.mxu0 %v1049
        %1121 = vmatprep.subr.mxu0 0.0
        %1122 = vmatpush2.msra.mxu0 %v1080
        %1123 = vmatprep.subr.mxu0 0.0
        %1124 = vmatpush2.msra.mxu0 %v1079
        %1125 = vmatprep.subr.mxu0 0.0
        %1126 = vmatpush2.msra.mxu0 %v1078
        %1127 = vmatprep.subr.mxu0 0.0
        %1128 = vmatpush2.msra.mxu0 %v1077
        %1129 = vmatprep.subr.mxu0 0.0
        %1130 = vmatpush2.msra.mxu0 %v1076
        %1131 = vmatprep.subr.mxu0 0.0
        %1132 = vmatpush2.msra.mxu0 %v1075
        %1133 = vmatprep.subr.mxu0 0.0
        %1134 = vmatpush2.msra.mxu0 %v1074
        %1135 = vmatprep.subr.mxu0 0.0
        %1136 = vmatpush2.msra.mxu0 %v1073
        %1137 = vmatprep.subr.mxu0 0.0
        %1138 = vmatpush2.msra.mxu0 %v1072
        %1139 = vmatprep.subr.mxu0 0.0
        %1140 = vmatpush2.msra.mxu0 %v1071
        %1141 = vmatprep.subr.mxu0 0.0
        %1142 = vmatpush2.msra.mxu0 %v1070
        %1143 = vmatprep.subr.mxu0 0.0
        %1144 = vmatpush2.msra.mxu0 %v1069
        %1145 = vmatprep.subr.mxu0 0.0
        %1146 = vmatpush2.msra.mxu0 %v1068
        %1147 = vmatprep.subr.mxu0 0.0
        %1148 = vmatpush2.msra.mxu0 %v1067
        %1149 = vmatprep.subr.mxu0 0.0
        %1150 = vmatpush2.msra.mxu0 %v1066
        %1151 = vmatprep.subr.mxu0 0.0
        %1152 = vmatpush2.msra.mxu0 %v1065
        %1153 = vmatprep.mubr.f32.mxu0 %v1046
        %1154 = vmatmul.mubr.f32.gmra.mxu0 %v1040
        %v1155 = vpop.f32.mrf.mxu0
        %v1156 = vadd.f32 %v1087, %v1155
        %v1157 = vpop.f32.mrf.mxu0
        %1158 = vmatprep.mubr.f32.mxu0 %v1047
        %1159 = vmatmul.mubr.f32.gmra.mxu0 %v1041
        %v1160 = vpop.f32.mrf.mxu0
        %v1161 = vadd.f32 %v1087, %v1160
        %v1162 = vpop.f32.mrf.mxu0
        %1163 = vdwg.mxu0
        %v1164 = vmax.f32 %v1156, 0.0
        %v1165 = vmax.f32 %v1161, 0.0
        %1166 = vst.msk [vmem:[#allocation2 + $0x4] sm:$0xff] %vm468, %v1164
        %1167 = vst.msk [vmem:[#allocation2 + $0xc] sm:$0xff] %vm468, %v1165
        %v1168 = vld [vmem:[#allocation2] sm:$0xff]
        %v1169 = vld [vmem:[#allocation2 + $0x8] sm:$0xff]
        %v1170 = vld [vmem:[#allocation2 + $0x1] sm:$0xff]
        %v1171 = vld [vmem:[#allocation2 + $0x9] sm:$0xff]
        %v1172 = vld [vmem:[#allocation2 + $0x2] sm:$0xff]
        %v1173 = vld [vmem:[#allocation2 + $0xa] sm:$0xff]
        %v1174 = vld [vmem:[#allocation2 + $0x3] sm:$0xff]
        %v1175 = vld [vmem:[#allocation2 + $0xb] sm:$0xff]
        %v1176 = vld [vmem:[#allocation2 + $0x4] sm:$0xff]
        %v1177 = vld [vmem:[#allocation2 + $0xc] sm:$0xff]
        %v1178 = vld [vmem:[#allocation2 + $0x5] sm:$0xff]
        %v1179 = vld [vmem:[#allocation2 + $0xd] sm:$0xff]
        %v1180 = vld [vmem:[#allocation2 + $0x6] sm:$0xff]
        %v1181 = vld [vmem:[#allocation2 + $0xe] sm:$0xff]
        %v1182 = vld [vmem:[#allocation2 + $0x7] sm:$0xff]
        %v1183 = vld [vmem:[#allocation2 + $0xf] sm:$0xff]
        %1186 = vrot.lane.b32.xlu0 %v1170, 32
        %v1187 = vpop.permute.xlu0 %1186
        %1188 = vrot.lane.b32.xlu0 %v1171, 32
        %v1189 = vpop.permute.xlu0 %1188
        %1194 = vrot.lane.b32.xlu0 %v1172, 64
        %v1195 = vpop.permute.xlu0 %1194
        %1196 = vrot.lane.b32.xlu0 %v1173, 64
        %v1197 = vpop.permute.xlu0 %1196
        %1202 = vrot.lane.b32.xlu0 %v1174, 96
        %v1203 = vpop.permute.xlu0 %1202
        %1204 = vrot.lane.b32.xlu0 %v1175, 96
        %v1205 = vpop.permute.xlu0 %1204
        %1210 = vrot.lane.b32.xlu0 %v1178, 32
        %v1211 = vpop.permute.xlu0 %1210
        %1212 = vrot.lane.b32.xlu0 %v1179, 32
        %v1213 = vpop.permute.xlu0 %1212
        %1218 = vrot.lane.b32.xlu0 %v1180, 64
        %v1219 = vpop.permute.xlu0 %1218
        %1220 = vrot.lane.b32.xlu0 %v1181, 64
        %v1221 = vpop.permute.xlu0 %1220
        %1226 = vrot.lane.b32.xlu0 %v1182, 96
        %v1227 = vpop.permute.xlu0 %1226
        %1228 = vrot.lane.b32.xlu0 %v1183, 96
        %v1229 = vpop.permute.xlu0 %1228
        %v1232 = vsel %vm468, %v1168, %v1187
        %v1233 = vsel %vm468, %v1169, %v1189
        %v1234 = vsel %vm645, %v1232, %v1195
        %v1235 = vsel %vm645, %v1233, %v1197
        %v1236 = vsel %vm648, %v1234, %v1203
        %v1237 = vsel %vm648, %v1235, %v1205
        %v1238 = vsel %vm468, %v1176, %v1211
        %v1239 = vsel %vm468, %v1177, %v1213
        %v1240 = vsel %vm645, %v1238, %v1219
        %v1241 = vsel %vm645, %v1239, %v1221
        %v1242 = vsel %vm648, %v1240, %v1227
        %v1243 = vsel %vm648, %v1241, %v1229
        %s1244 = scalar_lea.vmem %s2, 768
        %v1245 = vld [vmem:[%s1244] sm:$0xff]
        %v1246 = vld [vmem:[%s1244 + $0x8] sm:$0xff]
        %v1247 = vld [vmem:[%s1244 + $0x10] sm:$0xff]
        %v1248 = vld [vmem:[%s1244 + $0x18] sm:$0xff]
        %v1249 = vld [vmem:[%s1244 + $0x20] sm:$0xff]
        %v1250 = vld [vmem:[%s1244 + $0x28] sm:$0xff]
        %v1251 = vld [vmem:[%s1244 + $0x30] sm:$0xff]
        %v1252 = vld [vmem:[%s1244 + $0x38] sm:$0xff]
        %v1253 = vld [vmem:[%s1244 + $0x40] sm:$0xff]
        %v1254 = vld [vmem:[%s1244 + $0x48] sm:$0xff]
        %v1255 = vld [vmem:[%s1244 + $0x50] sm:$0xff]
        %v1256 = vld [vmem:[%s1244 + $0x58] sm:$0xff]
        %v1257 = vld [vmem:[%s1244 + $0x60] sm:$0xff]
        %v1258 = vld [vmem:[%s1244 + $0x68] sm:$0xff]
        %v1259 = vld [vmem:[%s1244 + $0x70] sm:$0xff]
        %v1260 = vld [vmem:[%s1244 + $0x78] sm:$0xff]
        %v1261 = vld [vmem:[%s1244 + $0x80] sm:$0xff]
        %v1262 = vld [vmem:[%s1244 + $0x88] sm:$0xff]
        %v1263 = vld [vmem:[%s1244 + $0x90] sm:$0xff]
        %v1264 = vld [vmem:[%s1244 + $0x98] sm:$0xff]
        %v1265 = vld [vmem:[%s1244 + $0xa0] sm:$0xff]
        %v1266 = vld [vmem:[%s1244 + $0xa8] sm:$0xff]
        %v1267 = vld [vmem:[%s1244 + $0xb0] sm:$0xff]
        %v1268 = vld [vmem:[%s1244 + $0xb8] sm:$0xff]
        %v1269 = vld [vmem:[%s1244 + $0xc0] sm:$0xff]
        %v1270 = vld [vmem:[%s1244 + $0xc8] sm:$0xff]
        %v1271 = vld [vmem:[%s1244 + $0xd0] sm:$0xff]
        %v1272 = vld [vmem:[%s1244 + $0xd8] sm:$0xff]
        %v1273 = vld [vmem:[%s1244 + $0xe0] sm:$0xff]
        %v1274 = vld [vmem:[%s1244 + $0xe8] sm:$0xff]
        %v1275 = vld [vmem:[%s1244 + $0xf0] sm:$0xff]
        %v1276 = vld [vmem:[%s1244 + $0xf8] sm:$0xff]
        %s1277 = scalar_lea.vmem %s3, 4
        %v1278 = vld [vmem:[%s1277] sm:$0x1]
        %v1280 = vlaneseq
        %v1281 = vshrl.u32 %v1280, 7
        %v1282 = vsub.s32 0, %v1281
        %v1283 = vrot.slane %v1278, %v1282
        %1285 = vmatprep.subr.mxu0 0.0
        %1286 = vmatpush1.msra.mxu0 %v1260
        %1287 = vmatprep.subr.mxu0 0.0
        %1288 = vmatpush1.msra.mxu0 %v1259
        %1289 = vmatprep.subr.mxu0 0.0
        %1290 = vmatpush1.msra.mxu0 %v1258
        %1291 = vmatprep.subr.mxu0 0.0
        %1292 = vmatpush1.msra.mxu0 %v1257
        %1293 = vmatprep.subr.mxu0 0.0
        %1294 = vmatpush1.msra.mxu0 %v1256
        %1295 = vmatprep.subr.mxu0 0.0
        %1296 = vmatpush1.msra.mxu0 %v1255
        %1297 = vmatprep.subr.mxu0 0.0
        %1298 = vmatpush1.msra.mxu0 %v1254
        %1299 = vmatprep.subr.mxu0 0.0
        %1300 = vmatpush1.msra.mxu0 %v1253
        %1301 = vmatprep.subr.mxu0 0.0
        %1302 = vmatpush1.msra.mxu0 %v1252
        %1303 = vmatprep.subr.mxu0 0.0
        %1304 = vmatpush1.msra.mxu0 %v1251
        %1305 = vmatprep.subr.mxu0 0.0
        %1306 = vmatpush1.msra.mxu0 %v1250
        %1307 = vmatprep.subr.mxu0 0.0
        %1308 = vmatpush1.msra.mxu0 %v1249
        %1309 = vmatprep.subr.mxu0 0.0
        %1310 = vmatpush1.msra.mxu0 %v1248
        %1311 = vmatprep.subr.mxu0 0.0
        %1312 = vmatpush1.msra.mxu0 %v1247
        %1313 = vmatprep.subr.mxu0 0.0
        %1314 = vmatpush1.msra.mxu0 %v1246
        %1315 = vmatprep.subr.mxu0 0.0
        %1316 = vmatpush1.msra.mxu0 %v1245
        %1317 = vmatprep.subr.mxu0 0.0
        %1318 = vmatpush2.msra.mxu0 %v1276
        %1319 = vmatprep.subr.mxu0 0.0
        %1320 = vmatpush2.msra.mxu0 %v1275
        %1321 = vmatprep.subr.mxu0 0.0
        %1322 = vmatpush2.msra.mxu0 %v1274
        %1323 = vmatprep.subr.mxu0 0.0
        %1324 = vmatpush2.msra.mxu0 %v1273
        %1325 = vmatprep.subr.mxu0 0.0
        %1326 = vmatpush2.msra.mxu0 %v1272
        %1327 = vmatprep.subr.mxu0 0.0
        %1328 = vmatpush2.msra.mxu0 %v1271
        %1329 = vmatprep.subr.mxu0 0.0
        %1330 = vmatpush2.msra.mxu0 %v1270
        %1331 = vmatprep.subr.mxu0 0.0
        %1332 = vmatpush2.msra.mxu0 %v1269
        %1333 = vmatprep.subr.mxu0 0.0
        %1334 = vmatpush2.msra.mxu0 %v1268
        %1335 = vmatprep.subr.mxu0 0.0
        %1336 = vmatpush2.msra.mxu0 %v1267
        %1337 = vmatprep.subr.mxu0 0.0
        %1338 = vmatpush2.msra.mxu0 %v1266
        %1339 = vmatprep.subr.mxu0 0.0
        %1340 = vmatpush2.msra.mxu0 %v1265
        %1341 = vmatprep.subr.mxu0 0.0
        %1342 = vmatpush2.msra.mxu0 %v1264
        %1343 = vmatprep.subr.mxu0 0.0
        %1344 = vmatpush2.msra.mxu0 %v1263
        %1345 = vmatprep.subr.mxu0 0.0
        %1346 = vmatpush2.msra.mxu0 %v1262
        %1347 = vmatprep.subr.mxu0 0.0
        %1348 = vmatpush2.msra.mxu0 %v1261
        %1349 = vmatprep.mubr.f32.mxu0 %v1242
        %1350 = vmatmul.mubr.f32.gmra.mxu0 %v1236
        %v1351 = vpop.f32.mrf.mxu0
        %v1352 = vadd.f32 %v1283, %v1351
        %v1353 = vpop.f32.mrf.mxu0
        %1354 = vmatprep.mubr.f32.mxu0 %v1243
        %1355 = vmatmul.mubr.f32.gmra.mxu0 %v1237
        %v1356 = vpop.f32.mrf.mxu0
        %v1357 = vadd.f32 %v1283, %v1356
        %v1358 = vpop.f32.mrf.mxu0
        %1359 = vdwg.mxu0
        %v1360 = vmax.f32 %v1352, 0.0
        %v1361 = vmax.f32 %v1357, 0.0
        %1362 = vst.msk [vmem:[#allocation2 + $0x4] sm:$0xff] %vm468, %v1360
        %1363 = vst.msk [vmem:[#allocation2 + $0xc] sm:$0xff] %vm468, %v1361
        %v1364 = vld [vmem:[#allocation2] sm:$0xff]
        %v1365 = vld [vmem:[#allocation2 + $0x8] sm:$0xff]
        %v1366 = vld [vmem:[#allocation2 + $0x1] sm:$0xff]
        %v1367 = vld [vmem:[#allocation2 + $0x9] sm:$0xff]
        %v1368 = vld [vmem:[#allocation2 + $0x2] sm:$0xff]
        %v1369 = vld [vmem:[#allocation2 + $0xa] sm:$0xff]
        %v1370 = vld [vmem:[#allocation2 + $0x3] sm:$0xff]
        %v1371 = vld [vmem:[#allocation2 + $0xb] sm:$0xff]
        %v1372 = vld [vmem:[#allocation2 + $0x4] sm:$0xff]
        %v1373 = vld [vmem:[#allocation2 + $0xc] sm:$0xff]
        %v1374 = vld [vmem:[#allocation2 + $0x5] sm:$0xff]
        %v1375 = vld [vmem:[#allocation2 + $0xd] sm:$0xff]
        %v1376 = vld [vmem:[#allocation2 + $0x6] sm:$0xff]
        %v1377 = vld [vmem:[#allocation2 + $0xe] sm:$0xff]
        %v1378 = vld [vmem:[#allocation2 + $0x7] sm:$0xff]
        %v1379 = vld [vmem:[#allocation2 + $0xf] sm:$0xff]
        %1382 = vrot.lane.b32.xlu0 %v1366, 32
        %v1383 = vpop.permute.xlu0 %1382
        %1384 = vrot.lane.b32.xlu0 %v1367, 32
        %v1385 = vpop.permute.xlu0 %1384
        %1390 = vrot.lane.b32.xlu0 %v1368, 64
        %v1391 = vpop.permute.xlu0 %1390
        %1392 = vrot.lane.b32.xlu0 %v1369, 64
        %v1393 = vpop.permute.xlu0 %1392
        %1398 = vrot.lane.b32.xlu0 %v1370, 96
        %v1399 = vpop.permute.xlu0 %1398
        %1400 = vrot.lane.b32.xlu0 %v1371, 96
        %v1401 = vpop.permute.xlu0 %1400
        %1406 = vrot.lane.b32.xlu0 %v1374, 32
        %v1407 = vpop.permute.xlu0 %1406
        %1408 = vrot.lane.b32.xlu0 %v1375, 32
        %v1409 = vpop.permute.xlu0 %1408
        %1414 = vrot.lane.b32.xlu0 %v1376, 64
        %v1415 = vpop.permute.xlu0 %1414
        %1416 = vrot.lane.b32.xlu0 %v1377, 64
        %v1417 = vpop.permute.xlu0 %1416
        %1422 = vrot.lane.b32.xlu0 %v1378, 96
        %v1423 = vpop.permute.xlu0 %1422
        %1424 = vrot.lane.b32.xlu0 %v1379, 96
        %v1425 = vpop.permute.xlu0 %1424
        %v1428 = vsel %vm468, %v1364, %v1383
        %v1429 = vsel %vm468, %v1365, %v1385
        %v1430 = vsel %vm645, %v1428, %v1391
        %v1431 = vsel %vm645, %v1429, %v1393
        %v1432 = vsel %vm648, %v1430, %v1399
        %v1433 = vsel %vm648, %v1431, %v1401
        %v1434 = vsel %vm468, %v1372, %v1407
        %v1435 = vsel %vm468, %v1373, %v1409
        %v1436 = vsel %vm645, %v1434, %v1415
        %v1437 = vsel %vm645, %v1435, %v1417
        %v1438 = vsel %vm648, %v1436, %v1423
        %v1439 = vsel %vm648, %v1437, %v1425
        %s1440 = scalar_lea.vmem %s2, 1024
        %v1441 = vld [vmem:[%s1440] sm:$0xff]
        %v1442 = vld [vmem:[%s1440 + $0x8] sm:$0xff]
        %v1443 = vld [vmem:[%s1440 + $0x10] sm:$0xff]
        %v1444 = vld [vmem:[%s1440 + $0x18] sm:$0xff]
        %v1445 = vld [vmem:[%s1440 + $0x20] sm:$0xff]
        %v1446 = vld [vmem:[%s1440 + $0x28] sm:$0xff]
        %v1447 = vld [vmem:[%s1440 + $0x30] sm:$0xff]
        %v1448 = vld [vmem:[%s1440 + $0x38] sm:$0xff]
        %v1449 = vld [vmem:[%s1440 + $0x40] sm:$0xff]
        %v1450 = vld [vmem:[%s1440 + $0x48] sm:$0xff]
        %v1451 = vld [vmem:[%s1440 + $0x50] sm:$0xff]
        %v1452 = vld [vmem:[%s1440 + $0x58] sm:$0xff]
        %v1453 = vld [vmem:[%s1440 + $0x60] sm:$0xff]
        %v1454 = vld [vmem:[%s1440 + $0x68] sm:$0xff]
        %v1455 = vld [vmem:[%s1440 + $0x70] sm:$0xff]
        %v1456 = vld [vmem:[%s1440 + $0x78] sm:$0xff]
        %v1457 = vld [vmem:[%s1440 + $0x80] sm:$0xff]
        %v1458 = vld [vmem:[%s1440 + $0x88] sm:$0xff]
        %v1459 = vld [vmem:[%s1440 + $0x90] sm:$0xff]
        %v1460 = vld [vmem:[%s1440 + $0x98] sm:$0xff]
        %v1461 = vld [vmem:[%s1440 + $0xa0] sm:$0xff]
        %v1462 = vld [vmem:[%s1440 + $0xa8] sm:$0xff]
        %v1463 = vld [vmem:[%s1440 + $0xb0] sm:$0xff]
        %v1464 = vld [vmem:[%s1440 + $0xb8] sm:$0xff]
        %v1465 = vld [vmem:[%s1440 + $0xc0] sm:$0xff]
        %v1466 = vld [vmem:[%s1440 + $0xc8] sm:$0xff]
        %v1467 = vld [vmem:[%s1440 + $0xd0] sm:$0xff]
        %v1468 = vld [vmem:[%s1440 + $0xd8] sm:$0xff]
        %v1469 = vld [vmem:[%s1440 + $0xe0] sm:$0xff]
        %v1470 = vld [vmem:[%s1440 + $0xe8] sm:$0xff]
        %v1471 = vld [vmem:[%s1440 + $0xf0] sm:$0xff]
        %v1472 = vld [vmem:[%s1440 + $0xf8] sm:$0xff]
        %s1473 = scalar_lea.vmem %s3, 5
        %v1474 = vld [vmem:[%s1473] sm:$0x1]
        %v1476 = vlaneseq
        %v1477 = vshrl.u32 %v1476, 7
        %v1478 = vsub.s32 0, %v1477
        %v1479 = vrot.slane %v1474, %v1478
        %1481 = vmatprep.subr.mxu0 0.0
        %1482 = vmatpush1.msra.mxu0 %v1456
        %1483 = vmatprep.subr.mxu0 0.0
        %1484 = vmatpush1.msra.mxu0 %v1455
        %1485 = vmatprep.subr.mxu0 0.0
        %1486 = vmatpush1.msra.mxu0 %v1454
        %1487 = vmatprep.subr.mxu0 0.0
        %1488 = vmatpush1.msra.mxu0 %v1453
        %1489 = vmatprep.subr.mxu0 0.0
        %1490 = vmatpush1.msra.mxu0 %v1452
        %1491 = vmatprep.subr.mxu0 0.0
        %1492 = vmatpush1.msra.mxu0 %v1451
        %1493 = vmatprep.subr.mxu0 0.0
        %1494 = vmatpush1.msra.mxu0 %v1450
        %1495 = vmatprep.subr.mxu0 0.0
        %1496 = vmatpush1.msra.mxu0 %v1449
        %1497 = vmatprep.subr.mxu0 0.0
        %1498 = vmatpush1.msra.mxu0 %v1448
        %1499 = vmatprep.subr.mxu0 0.0
        %1500 = vmatpush1.msra.mxu0 %v1447
        %1501 = vmatprep.subr.mxu0 0.0
        %1502 = vmatpush1.msra.mxu0 %v1446
        %1503 = vmatprep.subr.mxu0 0.0
        %1504 = vmatpush1.msra.mxu0 %v1445
        %1505 = vmatprep.subr.mxu0 0.0
        %1506 = vmatpush1.msra.mxu0 %v1444
        %1507 = vmatprep.subr.mxu0 0.0
        %1508 = vmatpush1.msra.mxu0 %v1443
        %1509 = vmatprep.subr.mxu0 0.0
        %1510 = vmatpush1.msra.mxu0 %v1442
        %1511 = vmatprep.subr.mxu0 0.0
        %1512 = vmatpush1.msra.mxu0 %v1441
        %1513 = vmatprep.subr.mxu0 0.0
        %1514 = vmatpush2.msra.mxu0 %v1472
        %1515 = vmatprep.subr.mxu0 0.0
        %1516 = vmatpush2.msra.mxu0 %v1471
        %1517 = vmatprep.subr.mxu0 0.0
        %1518 = vmatpush2.msra.mxu0 %v1470
        %1519 = vmatprep.subr.mxu0 0.0
        %1520 = vmatpush2.msra.mxu0 %v1469
        %1521 = vmatprep.subr.mxu0 0.0
        %1522 = vmatpush2.msra.mxu0 %v1468
        %1523 = vmatprep.subr.mxu0 0.0
        %1524 = vmatpush2.msra.mxu0 %v1467
        %1525 = vmatprep.subr.mxu0 0.0
        %1526 = vmatpush2.msra.mxu0 %v1466
        %1527 = vmatprep.subr.mxu0 0.0
        %1528 = vmatpush2.msra.mxu0 %v1465
        %1529 = vmatprep.subr.mxu0 0.0
        %1530 = vmatpush2.msra.mxu0 %v1464
        %1531 = vmatprep.subr.mxu0 0.0
        %1532 = vmatpush2.msra.mxu0 %v1463
        %1533 = vmatprep.subr.mxu0 0.0
        %1534 = vmatpush2.msra.mxu0 %v1462
        %1535 = vmatprep.subr.mxu0 0.0
        %1536 = vmatpush2.msra.mxu0 %v1461
        %1537 = vmatprep.subr.mxu0 0.0
        %1538 = vmatpush2.msra.mxu0 %v1460
        %1539 = vmatprep.subr.mxu0 0.0
        %1540 = vmatpush2.msra.mxu0 %v1459
        %1541 = vmatprep.subr.mxu0 0.0
        %1542 = vmatpush2.msra.mxu0 %v1458
        %1543 = vmatprep.subr.mxu0 0.0
        %1544 = vmatpush2.msra.mxu0 %v1457
        %1545 = vmatprep.mubr.f32.mxu0 %v1438
        %1546 = vmatmul.mubr.f32.gmra.mxu0 %v1432
        %v1547 = vpop.f32.mrf.mxu0
        %v1548 = vadd.f32 %v1479, %v1547
        %v1549 = vpop.f32.mrf.mxu0
        %1550 = vmatprep.mubr.f32.mxu0 %v1439
        %1551 = vmatmul.mubr.f32.gmra.mxu0 %v1433
        %v1552 = vpop.f32.mrf.mxu0
        %v1553 = vadd.f32 %v1479, %v1552
        %v1554 = vpop.f32.mrf.mxu0
        %1555 = vdwg.mxu0
        %v1556 = vmax.f32 %v1548, 0.0
        %v1557 = vmax.f32 %v1553, 0.0
        %1558 = vst.msk [vmem:[#allocation2 + $0x4] sm:$0xff] %vm468, %v1556
        %1559 = vst.msk [vmem:[#allocation2 + $0xc] sm:$0xff] %vm468, %v1557
        %v1560 = vld [vmem:[#allocation2] sm:$0xff]
        %v1561 = vld [vmem:[#allocation2 + $0x8] sm:$0xff]
        %v1562 = vld [vmem:[#allocation2 + $0x1] sm:$0xff]
        %v1563 = vld [vmem:[#allocation2 + $0x9] sm:$0xff]
        %v1564 = vld [vmem:[#allocation2 + $0x2] sm:$0xff]
        %v1565 = vld [vmem:[#allocation2 + $0xa] sm:$0xff]
        %v1566 = vld [vmem:[#allocation2 + $0x3] sm:$0xff]
        %v1567 = vld [vmem:[#allocation2 + $0xb] sm:$0xff]
        %v1568 = vld [vmem:[#allocation2 + $0x4] sm:$0xff]
        %v1569 = vld [vmem:[#allocation2 + $0xc] sm:$0xff]
        %v1570 = vld [vmem:[#allocation2 + $0x5] sm:$0xff]
        %v1571 = vld [vmem:[#allocation2 + $0xd] sm:$0xff]
        %v1572 = vld [vmem:[#allocation2 + $0x6] sm:$0xff]
        %v1573 = vld [vmem:[#allocation2 + $0xe] sm:$0xff]
        %v1574 = vld [vmem:[#allocation2 + $0x7] sm:$0xff]
        %v1575 = vld [vmem:[#allocation2 + $0xf] sm:$0xff]
        %1578 = vrot.lane.b32.xlu0 %v1562, 32
        %v1579 = vpop.permute.xlu0 %1578
        %1580 = vrot.lane.b32.xlu0 %v1563, 32
        %v1581 = vpop.permute.xlu0 %1580
        %1586 = vrot.lane.b32.xlu0 %v1564, 64
        %v1587 = vpop.permute.xlu0 %1586
        %1588 = vrot.lane.b32.xlu0 %v1565, 64
        %v1589 = vpop.permute.xlu0 %1588
        %1594 = vrot.lane.b32.xlu0 %v1566, 96
        %v1595 = vpop.permute.xlu0 %1594
        %1596 = vrot.lane.b32.xlu0 %v1567, 96
        %v1597 = vpop.permute.xlu0 %1596
        %1602 = vrot.lane.b32.xlu0 %v1570, 32
        %v1603 = vpop.permute.xlu0 %1602
        %1604 = vrot.lane.b32.xlu0 %v1571, 32
        %v1605 = vpop.permute.xlu0 %1604
        %1610 = vrot.lane.b32.xlu0 %v1572, 64
        %v1611 = vpop.permute.xlu0 %1610
        %1612 = vrot.lane.b32.xlu0 %v1573, 64
        %v1613 = vpop.permute.xlu0 %1612
        %1618 = vrot.lane.b32.xlu0 %v1574, 96
        %v1619 = vpop.permute.xlu0 %1618
        %1620 = vrot.lane.b32.xlu0 %v1575, 96
        %v1621 = vpop.permute.xlu0 %1620
        %v1624 = vsel %vm468, %v1560, %v1579
        %v1625 = vsel %vm468, %v1561, %v1581
        %v1626 = vsel %vm645, %v1624, %v1587
        %v1627 = vsel %vm645, %v1625, %v1589
        %v1628 = vsel %vm648, %v1626, %v1595
        %v1629 = vsel %vm648, %v1627, %v1597
        %v1630 = vsel %vm468, %v1568, %v1603
        %v1631 = vsel %vm468, %v1569, %v1605
        %v1632 = vsel %vm645, %v1630, %v1611
        %v1633 = vsel %vm645, %v1631, %v1613
        %v1634 = vsel %vm648, %v1632, %v1619
        %v1635 = vsel %vm648, %v1633, %v1621
        %s1636 = scalar_lea.vmem %s2, 1280
        %v1637 = vld [vmem:[%s1636] sm:$0xff]
        %v1638 = vld [vmem:[%s1636 + $0x8] sm:$0xff]
        %v1639 = vld [vmem:[%s1636 + $0x10] sm:$0xff]
        %v1640 = vld [vmem:[%s1636 + $0x18] sm:$0xff]
        %v1641 = vld [vmem:[%s1636 + $0x20] sm:$0xff]
        %v1642 = vld [vmem:[%s1636 + $0x28] sm:$0xff]
        %v1643 = vld [vmem:[%s1636 + $0x30] sm:$0xff]
        %v1644 = vld [vmem:[%s1636 + $0x38] sm:$0xff]
        %v1645 = vld [vmem:[%s1636 + $0x40] sm:$0xff]
        %v1646 = vld [vmem:[%s1636 + $0x48] sm:$0xff]
        %v1647 = vld [vmem:[%s1636 + $0x50] sm:$0xff]
        %v1648 = vld [vmem:[%s1636 + $0x58] sm:$0xff]
        %v1649 = vld [vmem:[%s1636 + $0x60] sm:$0xff]
        %v1650 = vld [vmem:[%s1636 + $0x68] sm:$0xff]
        %v1651 = vld [vmem:[%s1636 + $0x70] sm:$0xff]
        %v1652 = vld [vmem:[%s1636 + $0x78] sm:$0xff]
        %v1653 = vld [vmem:[%s1636 + $0x80] sm:$0xff]
        %v1654 = vld [vmem:[%s1636 + $0x88] sm:$0xff]
        %v1655 = vld [vmem:[%s1636 + $0x90] sm:$0xff]
        %v1656 = vld [vmem:[%s1636 + $0x98] sm:$0xff]
        %v1657 = vld [vmem:[%s1636 + $0xa0] sm:$0xff]
        %v1658 = vld [vmem:[%s1636 + $0xa8] sm:$0xff]
        %v1659 = vld [vmem:[%s1636 + $0xb0] sm:$0xff]
        %v1660 = vld [vmem:[%s1636 + $0xb8] sm:$0xff]
        %v1661 = vld [vmem:[%s1636 + $0xc0] sm:$0xff]
        %v1662 = vld [vmem:[%s1636 + $0xc8] sm:$0xff]
        %v1663 = vld [vmem:[%s1636 + $0xd0] sm:$0xff]
        %v1664 = vld [vmem:[%s1636 + $0xd8] sm:$0xff]
        %v1665 = vld [vmem:[%s1636 + $0xe0] sm:$0xff]
        %v1666 = vld [vmem:[%s1636 + $0xe8] sm:$0xff]
        %v1667 = vld [vmem:[%s1636 + $0xf0] sm:$0xff]
        %v1668 = vld [vmem:[%s1636 + $0xf8] sm:$0xff]
        %s1669 = scalar_lea.vmem %s3, 6
        %v1670 = vld [vmem:[%s1669] sm:$0x1]
        %v1672 = vlaneseq
        %v1673 = vshrl.u32 %v1672, 7
        %v1674 = vsub.s32 0, %v1673
        %v1675 = vrot.slane %v1670, %v1674
        %1677 = vmatprep.subr.mxu0 0.0
        %1678 = vmatpush1.msra.mxu0 %v1652
        %1679 = vmatprep.subr.mxu0 0.0
        %1680 = vmatpush1.msra.mxu0 %v1651
        %1681 = vmatprep.subr.mxu0 0.0
        %1682 = vmatpush1.msra.mxu0 %v1650
        %1683 = vmatprep.subr.mxu0 0.0
        %1684 = vmatpush1.msra.mxu0 %v1649
        %1685 = vmatprep.subr.mxu0 0.0
        %1686 = vmatpush1.msra.mxu0 %v1648
        %1687 = vmatprep.subr.mxu0 0.0
        %1688 = vmatpush1.msra.mxu0 %v1647
        %1689 = vmatprep.subr.mxu0 0.0
        %1690 = vmatpush1.msra.mxu0 %v1646
        %1691 = vmatprep.subr.mxu0 0.0
        %1692 = vmatpush1.msra.mxu0 %v1645
        %1693 = vmatprep.subr.mxu0 0.0
        %1694 = vmatpush1.msra.mxu0 %v1644
        %1695 = vmatprep.subr.mxu0 0.0
        %1696 = vmatpush1.msra.mxu0 %v1643
        %1697 = vmatprep.subr.mxu0 0.0
        %1698 = vmatpush1.msra.mxu0 %v1642
        %1699 = vmatprep.subr.mxu0 0.0
        %1700 = vmatpush1.msra.mxu0 %v1641
        %1701 = vmatprep.subr.mxu0 0.0
        %1702 = vmatpush1.msra.mxu0 %v1640
        %1703 = vmatprep.subr.mxu0 0.0
        %1704 = vmatpush1.msra.mxu0 %v1639
        %1705 = vmatprep.subr.mxu0 0.0
        %1706 = vmatpush1.msra.mxu0 %v1638
        %1707 = vmatprep.subr.mxu0 0.0
        %1708 = vmatpush1.msra.mxu0 %v1637
        %1709 = vmatprep.subr.mxu0 0.0
        %1710 = vmatpush2.msra.mxu0 %v1668
        %1711 = vmatprep.subr.mxu0 0.0
        %1712 = vmatpush2.msra.mxu0 %v1667
        %1713 = vmatprep.subr.mxu0 0.0
        %1714 = vmatpush2.msra.mxu0 %v1666
        %1715 = vmatprep.subr.mxu0 0.0
        %1716 = vmatpush2.msra.mxu0 %v1665
        %1717 = vmatprep.subr.mxu0 0.0
        %1718 = vmatpush2.msra.mxu0 %v1664
        %1719 = vmatprep.subr.mxu0 0.0
        %1720 = vmatpush2.msra.mxu0 %v1663
        %1721 = vmatprep.subr.mxu0 0.0
        %1722 = vmatpush2.msra.mxu0 %v1662
        %1723 = vmatprep.subr.mxu0 0.0
        %1724 = vmatpush2.msra.mxu0 %v1661
        %1725 = vmatprep.subr.mxu0 0.0
        %1726 = vmatpush2.msra.mxu0 %v1660
        %1727 = vmatprep.subr.mxu0 0.0
        %1728 = vmatpush2.msra.mxu0 %v1659
        %1729 = vmatprep.subr.mxu0 0.0
        %1730 = vmatpush2.msra.mxu0 %v1658
        %1731 = vmatprep.subr.mxu0 0.0
        %1732 = vmatpush2.msra.mxu0 %v1657
        %1733 = vmatprep.subr.mxu0 0.0
        %1734 = vmatpush2.msra.mxu0 %v1656
        %1735 = vmatprep.subr.mxu0 0.0
        %1736 = vmatpush2.msra.mxu0 %v1655
        %1737 = vmatprep.subr.mxu0 0.0
        %1738 = vmatpush2.msra.mxu0 %v1654
        %1739 = vmatprep.subr.mxu0 0.0
        %1740 = vmatpush2.msra.mxu0 %v1653
        %1741 = vmatprep.mubr.f32.mxu0 %v1634
        %1742 = vmatmul.mubr.f32.gmra.mxu0 %v1628
        %v1743 = vpop.f32.mrf.mxu0
        %v1744 = vadd.f32 %v1675, %v1743
        %v1745 = vpop.f32.mrf.mxu0
        %1746 = vmatprep.mubr.f32.mxu0 %v1635
        %1747 = vmatmul.mubr.f32.gmra.mxu0 %v1629
        %v1748 = vpop.f32.mrf.mxu0
        %v1749 = vadd.f32 %v1675, %v1748
        %v1750 = vpop.f32.mrf.mxu0
        %1751 = vdwg.mxu0
        %v1752 = vmax.f32 %v1744, 0.0
        %v1753 = vmax.f32 %v1749, 0.0
        %1754 = vst.msk [vmem:[#allocation2 + $0x4] sm:$0xff] %vm468, %v1752
        %1755 = vst.msk [vmem:[#allocation2 + $0xc] sm:$0xff] %vm468, %v1753
        %v1756 = vld [vmem:[#allocation2] sm:$0xff]
        %v1757 = vld [vmem:[#allocation2 + $0x8] sm:$0xff]
        %v1758 = vld [vmem:[#allocation2 + $0x1] sm:$0xff]
        %v1759 = vld [vmem:[#allocation2 + $0x9] sm:$0xff]
        %v1760 = vld [vmem:[#allocation2 + $0x2] sm:$0xff]
        %v1761 = vld [vmem:[#allocation2 + $0xa] sm:$0xff]
        %v1762 = vld [vmem:[#allocation2 + $0x3] sm:$0xff]
        %v1763 = vld [vmem:[#allocation2 + $0xb] sm:$0xff]
        %v1764 = vld [vmem:[#allocation2 + $0x4] sm:$0xff]
        %v1765 = vld [vmem:[#allocation2 + $0xc] sm:$0xff]
        %v1766 = vld [vmem:[#allocation2 + $0x5] sm:$0xff]
        %v1767 = vld [vmem:[#allocation2 + $0xd] sm:$0xff]
        %v1768 = vld [vmem:[#allocation2 + $0x6] sm:$0xff]
        %v1769 = vld [vmem:[#allocation2 + $0xe] sm:$0xff]
        %v1770 = vld [vmem:[#allocation2 + $0x7] sm:$0xff]
        %v1771 = vld [vmem:[#allocation2 + $0xf] sm:$0xff]
        %1774 = vrot.lane.b32.xlu0 %v1758, 32
        %v1775 = vpop.permute.xlu0 %1774
        %1776 = vrot.lane.b32.xlu0 %v1759, 32
        %v1777 = vpop.permute.xlu0 %1776
        %1782 = vrot.lane.b32.xlu0 %v1760, 64
        %v1783 = vpop.permute.xlu0 %1782
        %1784 = vrot.lane.b32.xlu0 %v1761, 64
        %v1785 = vpop.permute.xlu0 %1784
        %1790 = vrot.lane.b32.xlu0 %v1762, 96
        %v1791 = vpop.permute.xlu0 %1790
        %1792 = vrot.lane.b32.xlu0 %v1763, 96
        %v1793 = vpop.permute.xlu0 %1792
        %1798 = vrot.lane.b32.xlu0 %v1766, 32
        %v1799 = vpop.permute.xlu0 %1798
        %1800 = vrot.lane.b32.xlu0 %v1767, 32
        %v1801 = vpop.permute.xlu0 %1800
        %1806 = vrot.lane.b32.xlu0 %v1768, 64
        %v1807 = vpop.permute.xlu0 %1806
        %1808 = vrot.lane.b32.xlu0 %v1769, 64
        %v1809 = vpop.permute.xlu0 %1808
        %1814 = vrot.lane.b32.xlu0 %v1770, 96
        %v1815 = vpop.permute.xlu0 %1814
        %1816 = vrot.lane.b32.xlu0 %v1771, 96
        %v1817 = vpop.permute.xlu0 %1816
        %v1820 = vsel %vm468, %v1756, %v1775
        %v1821 = vsel %vm468, %v1757, %v1777
        %v1822 = vsel %vm645, %v1820, %v1783
        %v1823 = vsel %vm645, %v1821, %v1785
        %v1824 = vsel %vm648, %v1822, %v1791
        %v1825 = vsel %vm648, %v1823, %v1793
        %v1826 = vsel %vm468, %v1764, %v1799
        %v1827 = vsel %vm468, %v1765, %v1801
        %v1828 = vsel %vm645, %v1826, %v1807
        %v1829 = vsel %vm645, %v1827, %v1809
        %v1830 = vsel %vm648, %v1828, %v1815
        %v1831 = vsel %vm648, %v1829, %v1817
        %s1832 = scalar_lea.vmem %s2, 1536
        %v1833 = vld [vmem:[%s1832] sm:$0xff]
        %v1834 = vld [vmem:[%s1832 + $0x8] sm:$0xff]
        %v1835 = vld [vmem:[%s1832 + $0x10] sm:$0xff]
        %v1836 = vld [vmem:[%s1832 + $0x18] sm:$0xff]
        %v1837 = vld [vmem:[%s1832 + $0x20] sm:$0xff]
        %v1838 = vld [vmem:[%s1832 + $0x28] sm:$0xff]
        %v1839 = vld [vmem:[%s1832 + $0x30] sm:$0xff]
        %v1840 = vld [vmem:[%s1832 + $0x38] sm:$0xff]
        %v1841 = vld [vmem:[%s1832 + $0x40] sm:$0xff]
        %v1842 = vld [vmem:[%s1832 + $0x48] sm:$0xff]
        %v1843 = vld [vmem:[%s1832 + $0x50] sm:$0xff]
        %v1844 = vld [vmem:[%s1832 + $0x58] sm:$0xff]
        %v1845 = vld [vmem:[%s1832 + $0x60] sm:$0xff]
        %v1846 = vld [vmem:[%s1832 + $0x68] sm:$0xff]
        %v1847 = vld [vmem:[%s1832 + $0x70] sm:$0xff]
        %v1848 = vld [vmem:[%s1832 + $0x78] sm:$0xff]
        %v1849 = vld [vmem:[%s1832 + $0x80] sm:$0xff]
        %v1850 = vld [vmem:[%s1832 + $0x88] sm:$0xff]
        %v1851 = vld [vmem:[%s1832 + $0x90] sm:$0xff]
        %v1852 = vld [vmem:[%s1832 + $0x98] sm:$0xff]
        %v1853 = vld [vmem:[%s1832 + $0xa0] sm:$0xff]
        %v1854 = vld [vmem:[%s1832 + $0xa8] sm:$0xff]
        %v1855 = vld [vmem:[%s1832 + $0xb0] sm:$0xff]
        %v1856 = vld [vmem:[%s1832 + $0xb8] sm:$0xff]
        %v1857 = vld [vmem:[%s1832 + $0xc0] sm:$0xff]
        %v1858 = vld [vmem:[%s1832 + $0xc8] sm:$0xff]
        %v1859 = vld [vmem:[%s1832 + $0xd0] sm:$0xff]
        %v1860 = vld [vmem:[%s1832 + $0xd8] sm:$0xff]
        %v1861 = vld [vmem:[%s1832 + $0xe0] sm:$0xff]
        %v1862 = vld [vmem:[%s1832 + $0xe8] sm:$0xff]
        %v1863 = vld [vmem:[%s1832 + $0xf0] sm:$0xff]
        %v1864 = vld [vmem:[%s1832 + $0xf8] sm:$0xff]
        %s1865 = scalar_lea.vmem %s3, 7
        %v1866 = vld [vmem:[%s1865] sm:$0x1]
        %v1868 = vlaneseq
        %v1869 = vshrl.u32 %v1868, 7
        %v1870 = vsub.s32 0, %v1869
        %v1871 = vrot.slane %v1866, %v1870
        %1873 = vmatprep.subr.mxu0 0.0
        %1874 = vmatpush1.msra.mxu0 %v1848
        %1875 = vmatprep.subr.mxu0 0.0
        %1876 = vmatpush1.msra.mxu0 %v1847
        %1877 = vmatprep.subr.mxu0 0.0
        %1878 = vmatpush1.msra.mxu0 %v1846
        %1879 = vmatprep.subr.mxu0 0.0
        %1880 = vmatpush1.msra.mxu0 %v1845
        %1881 = vmatprep.subr.mxu0 0.0
        %1882 = vmatpush1.msra.mxu0 %v1844
        %1883 = vmatprep.subr.mxu0 0.0
        %1884 = vmatpush1.msra.mxu0 %v1843
        %1885 = vmatprep.subr.mxu0 0.0
        %1886 = vmatpush1.msra.mxu0 %v1842
        %1887 = vmatprep.subr.mxu0 0.0
        %1888 = vmatpush1.msra.mxu0 %v1841
        %1889 = vmatprep.subr.mxu0 0.0
        %1890 = vmatpush1.msra.mxu0 %v1840
        %1891 = vmatprep.subr.mxu0 0.0
        %1892 = vmatpush1.msra.mxu0 %v1839
        %1893 = vmatprep.subr.mxu0 0.0
        %1894 = vmatpush1.msra.mxu0 %v1838
        %1895 = vmatprep.subr.mxu0 0.0
        %1896 = vmatpush1.msra.mxu0 %v1837
        %1897 = vmatprep.subr.mxu0 0.0
        %1898 = vmatpush1.msra.mxu0 %v1836
        %1899 = vmatprep.subr.mxu0 0.0
        %1900 = vmatpush1.msra.mxu0 %v1835
        %1901 = vmatprep.subr.mxu0 0.0
        %1902 = vmatpush1.msra.mxu0 %v1834
        %1903 = vmatprep.subr.mxu0 0.0
        %1904 = vmatpush1.msra.mxu0 %v1833
        %1905 = vmatprep.subr.mxu0 0.0
        %1906 = vmatpush2.msra.mxu0 %v1864
        %1907 = vmatprep.subr.mxu0 0.0
        %1908 = vmatpush2.msra.mxu0 %v1863
        %1909 = vmatprep.subr.mxu0 0.0
        %1910 = vmatpush2.msra.mxu0 %v1862
        %1911 = vmatprep.subr.mxu0 0.0
        %1912 = vmatpush2.msra.mxu0 %v1861
        %1913 = vmatprep.subr.mxu0 0.0
        %1914 = vmatpush2.msra.mxu0 %v1860
        %1915 = vmatprep.subr.mxu0 0.0
        %1916 = vmatpush2.msra.mxu0 %v1859
        %1917 = vmatprep.subr.mxu0 0.0
        %1918 = vmatpush2.msra.mxu0 %v1858
        %1919 = vmatprep.subr.mxu0 0.0
        %1920 = vmatpush2.msra.mxu0 %v1857
        %1921 = vmatprep.subr.mxu0 0.0
        %1922 = vmatpush2.msra.mxu0 %v1856
        %1923 = vmatprep.subr.mxu0 0.0
        %1924 = vmatpush2.msra.mxu0 %v1855
        %1925 = vmatprep.subr.mxu0 0.0
        %1926 = vmatpush2.msra.mxu0 %v1854
        %1927 = vmatprep.subr.mxu0 0.0
        %1928 = vmatpush2.msra.mxu0 %v1853
        %1929 = vmatprep.subr.mxu0 0.0
        %1930 = vmatpush2.msra.mxu0 %v1852
        %1931 = vmatprep.subr.mxu0 0.0
        %1932 = vmatpush2.msra.mxu0 %v1851
        %1933 = vmatprep.subr.mxu0 0.0
        %1934 = vmatpush2.msra.mxu0 %v1850
        %1935 = vmatprep.subr.mxu0 0.0
        %1936 = vmatpush2.msra.mxu0 %v1849
        %1937 = vmatprep.mubr.f32.mxu0 %v1830
        %1938 = vmatmul.mubr.f32.gmra.mxu0 %v1824
        %v1939 = vpop.f32.mrf.mxu0
        %v1940 = vadd.f32 %v1871, %v1939
        %v1941 = vpop.f32.mrf.mxu0
        %1942 = vmatprep.mubr.f32.mxu0 %v1831
        %1943 = vmatmul.mubr.f32.gmra.mxu0 %v1825
        %v1944 = vpop.f32.mrf.mxu0
        %v1945 = vadd.f32 %v1871, %v1944
        %v1946 = vpop.f32.mrf.mxu0
        %1947 = vdwg.mxu0
        %v1948 = vmax.f32 %v1940, 0.0
        %v1949 = vmax.f32 %v1945, 0.0
        %1952 = vrot.lane.b32.xlu0 %v772, 32
        %v1953 = vpop.permute.xlu0 %1952
        %1954 = vrot.lane.b32.xlu0 %v773, 32
        %v1955 = vpop.permute.xlu0 %1954
        %1960 = vrot.lane.b32.xlu0 %v968, 64
        %v1961 = vpop.permute.xlu0 %1960
        %1962 = vrot.lane.b32.xlu0 %v969, 64
        %v1963 = vpop.permute.xlu0 %1962
        %1968 = vrot.lane.b32.xlu0 %v1164, 96
        %v1969 = vpop.permute.xlu0 %1968
        %1970 = vrot.lane.b32.xlu0 %v1165, 96
        %v1971 = vpop.permute.xlu0 %1970
        %1976 = vrot.lane.b32.xlu0 %v1556, 32
        %v1977 = vpop.permute.xlu0 %1976
        %1978 = vrot.lane.b32.xlu0 %v1557, 32
        %v1979 = vpop.permute.xlu0 %1978
        %1984 = vrot.lane.b32.xlu0 %v1752, 64
        %v1985 = vpop.permute.xlu0 %1984
        %1986 = vrot.lane.b32.xlu0 %v1753, 64
        %v1987 = vpop.permute.xlu0 %1986
        %1992 = vrot.lane.b32.xlu0 %v1948, 96
        %v1993 = vpop.permute.xlu0 %1992
        %1994 = vrot.lane.b32.xlu0 %v1949, 96
        %v1995 = vpop.permute.xlu0 %1994
        %v1998 = vsel %vm468, %v575, %v1953
        %v1999 = vsel %vm468, %v576, %v1955
        %v2000 = vsel %vm645, %v1998, %v1961
        %v2001 = vsel %vm645, %v1999, %v1963
        %v2002 = vsel %vm648, %v2000, %v1969
        %v2003 = vsel %vm648, %v2001, %v1971
        %v2004 = vsel %vm468, %v1360, %v1977
        %v2005 = vsel %vm468, %v1361, %v1979
        %v2006 = vsel %vm645, %v2004, %v1985
        %v2007 = vsel %vm645, %v2005, %v1987
        %v2008 = vsel %vm648, %v2006, %v1993
        %v2009 = vsel %vm648, %v2007, %v1995
        %v2012 = vcombine.low %v2002, %v2008
        %v2014 = vunpack.c.l.s4 1966171168
        %v2015 = vunpack.c.0.s8 %v2014
        %v2016 = vlaneseq
        %v2017 = vshrl.u32 %v2016, 7
        %v2018 = vsub.s32 %v2015, %v2017
        %v2019 = vrot.slane %v2012, %v2018
        %v2021 = vunpack.c.l.s4 1966171168
        %v2022 = vunpack.c.0.s8 %v2021
        %v2023 = vlaneseq
        %v2024 = vshrl.u32 %v2023, 7
        %v2025 = vsub.s32 %v2022, %v2024
        %v2026 = vrot.slane %v2019, %v2025
        %v2028 = vlaneseq
        %vm2029 = vcmp.ge.s32.totalorder %v2028, 0
        %vm2030 = vcmp.lt.s32.totalorder %v2028, 256
        %vm2031 = vmand %vm2029, %vm2030
        %s2032 = scalar_lea.vmem [#allocation3], 1
        %2033 = vst.msk [vmem:[%s2032] ss:$8 sm:$0x3] %vm2031, %v2026
        %2034 = vst.msk [vmem:[%s2032] ss:$8 sm:$0x0] %vm2031, %v2026
        %vm2037 = vcmask 1040384
        %v2038 = vrot.slane %v2002, 7
        %v2039 = vrot.slane %v2008, 7
        %v2040 = vrot.slane %v2003, 7
        %v2041 = vsel %vm2037, %v2038, %v2040
        %v2042 = vrot.slane %v2009, 7
        %v2043 = vsel %vm2037, %v2039, %v2042
        %v2048 = vmax.f32 %v2002, %v2038
        %v2049 = vmax.f32 %v2008, %v2039
        %v2050 = vmax.f32 %v2003, %v2041
        %v2051 = vmax.f32 %v2009, %v2043
        %v2056 = vrot.slane %v2048, 7
        %v2057 = vrot.slane %v2049, 7
        %v2058 = vrot.slane %v2050, 7
        %v2059 = vsel %vm2037, %v2056, %v2058
        %v2060 = vrot.slane %v2051, 7
        %v2061 = vsel %vm2037, %v2057, %v2060
        %2068 = vst [vmem:[#allocation3] sm:$0xfc] %v2056
        %2069 = vst [vmem:[#allocation3 + $0x8] sm:$0xfc] %v2057
        %2070 = vst [vmem:[#allocation3 + $0x10] sm:$0xff] %v2059
        %2071 = vst [vmem:[#allocation3 + $0x18] sm:$0xff] %v2061
        %2072 = vst [vmem:[#allocation3 + $0x20] sm:$0x1] %v2058
        %2073 = vst [vmem:[#allocation3 + $0x28] sm:$0x1] %v2060
        %v2074 = vld [vmem:[#allocation3] sm:$0xff]
        %v2075 = vld [vmem:[#allocation3 + $0x8] sm:$0xff]
        %v2076 = vld [vmem:[#allocation3 + $0x10] sm:$0xff]
        %v2077 = vld [vmem:[#allocation3 + $0x18] sm:$0xff]
        %v2078 = vld [vmem:[#allocation3] sm:$0xfe]
        %v2079 = vld [vmem:[#allocation3 + $0x8] sm:$0xfe]
        %v2080 = vld [vmem:[#allocation3 + $0x20] sm:$0x1]
        %v2081 = vld [vmem:[#allocation3 + $0x28] sm:$0x1]
        %v2082 = vld [vmem:[#allocation3] sm:$0xfc]
        %v2083 = vld [vmem:[#allocation3 + $0x8] sm:$0xfc]
        %v2084 = vld [vmem:[#allocation3 + $0x20] sm:$0x3]
        %v2085 = vld [vmem:[#allocation3 + $0x28] sm:$0x3]
        %vm2092 = vcmask 1046528
        %v2093 = vrot.slane %v2078, 1
        %v2094 = vrot.slane %v2076, 1
        %v2095 = vsel %vm2092, %v2093, %v2094
        %v2096 = vrot.slane %v2079, 1
        %v2097 = vrot.slane %v2077, 1
        %v2098 = vsel %vm2092, %v2096, %v2097
        %v2099 = vrot.slane %v2080, 1
        %v2100 = vsel %vm2092, %v2094, %v2099
        %v2101 = vrot.slane %v2081, 1
        %v2102 = vsel %vm2092, %v2097, %v2101
        %vm2111 = vcmask 1045504
        %v2112 = vrot.slane %v2082, 2
        %v2113 = vrot.slane %v2076, 2
        %v2114 = vsel %vm2111, %v2112, %v2113
        %v2115 = vrot.slane %v2083, 2
        %v2116 = vrot.slane %v2077, 2
        %v2117 = vsel %vm2111, %v2115, %v2116
        %v2118 = vrot.slane %v2084, 2
        %v2119 = vsel %vm2111, %v2113, %v2118
        %v2120 = vrot.slane %v2085, 2
        %v2121 = vsel %vm2111, %v2116, %v2120
        %v2126 = vld [vmem:[%s4] sm:$0xff]
        %v2127 = vld [vmem:[%s4 + $0x8] sm:$0xff]
        %v2128 = vld [vmem:[%s4 + $0x10] sm:$0xff]
        %v2129 = vld [vmem:[%s4 + $0x18] sm:$0xff]
        %v2130 = vld [vmem:[%s4 + $0x20] sm:$0xff]
        %v2131 = vld [vmem:[%s4 + $0x28] sm:$0xff]
        %v2132 = vld [vmem:[%s4 + $0x30] sm:$0xff]
        %v2133 = vld [vmem:[%s4 + $0x38] sm:$0xff]
        %v2134 = vld [vmem:[%s4 + $0x40] sm:$0xff]
        %v2135 = vld [vmem:[%s4 + $0x48] sm:$0xff]
        %v2136 = vld [vmem:[%s4 + $0x50] sm:$0xff]
        %v2137 = vld [vmem:[%s4 + $0x58] sm:$0xff]
        %v2138 = vld [vmem:[%s4 + $0x60] sm:$0xff]
        %v2139 = vld [vmem:[%s4 + $0x68] sm:$0xff]
        %v2140 = vld [vmem:[%s4 + $0x70] sm:$0xff]
        %v2141 = vld [vmem:[%s4 + $0x78] sm:$0xff]
        %v2142 = vld [vmem:[%s4 + $0x80] sm:$0xff]
        %v2143 = vld [vmem:[%s4 + $0x88] sm:$0xff]
        %v2144 = vld [vmem:[%s4 + $0x90] sm:$0xff]
        %v2145 = vld [vmem:[%s4 + $0x98] sm:$0xff]
        %v2146 = vld [vmem:[%s4 + $0xa0] sm:$0xff]
        %v2147 = vld [vmem:[%s4 + $0xa8] sm:$0xff]
        %v2148 = vld [vmem:[%s4 + $0xb0] sm:$0xff]
        %v2149 = vld [vmem:[%s4 + $0xb8] sm:$0xff]
        %v2150 = vld [vmem:[%s4 + $0xc0] sm:$0xff]
        %v2151 = vld [vmem:[%s4 + $0xc8] sm:$0xff]
        %v2152 = vld [vmem:[%s4 + $0xd0] sm:$0xff]
        %v2153 = vld [vmem:[%s4 + $0xd8] sm:$0xff]
        %v2154 = vld [vmem:[%s4 + $0xe0] sm:$0xff]
        %v2155 = vld [vmem:[%s4 + $0xe8] sm:$0xff]
        %v2156 = vld [vmem:[%s4 + $0xf0] sm:$0xff]
        %v2157 = vld [vmem:[%s4 + $0xf8] sm:$0xff]
        %v2158 = vld [vmem:[%s4 + $0x100] sm:$0xff]
        %v2159 = vld [vmem:[%s4 + $0x108] sm:$0xff]
        %v2160 = vld [vmem:[%s4 + $0x110] sm:$0xff]
        %v2161 = vld [vmem:[%s4 + $0x118] sm:$0xff]
        %v2162 = vld [vmem:[%s4 + $0x120] sm:$0xff]
        %v2163 = vld [vmem:[%s4 + $0x128] sm:$0xff]
        %v2164 = vld [vmem:[%s4 + $0x130] sm:$0xff]
        %v2165 = vld [vmem:[%s4 + $0x138] sm:$0xff]
        %v2166 = vld [vmem:[%s4 + $0x140] sm:$0xff]
        %v2167 = vld [vmem:[%s4 + $0x148] sm:$0xff]
        %v2168 = vld [vmem:[%s4 + $0x150] sm:$0xff]
        %v2169 = vld [vmem:[%s4 + $0x158] sm:$0xff]
        %v2170 = vld [vmem:[%s4 + $0x160] sm:$0xff]
        %v2171 = vld [vmem:[%s4 + $0x168] sm:$0xff]
        %v2172 = vld [vmem:[%s4 + $0x170] sm:$0xff]
        %v2173 = vld [vmem:[%s4 + $0x178] sm:$0xff]
        %v2174 = vld [vmem:[%s4 + $0x180] sm:$0xff]
        %v2175 = vld [vmem:[%s4 + $0x188] sm:$0xff]
        %v2176 = vld [vmem:[%s4 + $0x190] sm:$0xff]
        %v2177 = vld [vmem:[%s4 + $0x198] sm:$0xff]
        %v2178 = vld [vmem:[%s4 + $0x1a0] sm:$0xff]
        %v2179 = vld [vmem:[%s4 + $0x1a8] sm:$0xff]
        %v2180 = vld [vmem:[%s4 + $0x1b0] sm:$0xff]
        %v2181 = vld [vmem:[%s4 + $0x1b8] sm:$0xff]
        %v2182 = vld [vmem:[%s4 + $0x1c0] sm:$0xff]
        %v2183 = vld [vmem:[%s4 + $0x1c8] sm:$0xff]
        %v2184 = vld [vmem:[%s4 + $0x1d0] sm:$0xff]
        %v2185 = vld [vmem:[%s4 + $0x1d8] sm:$0xff]
        %v2186 = vld [vmem:[%s4 + $0x1e0] sm:$0xff]
        %v2187 = vld [vmem:[%s4 + $0x1e8] sm:$0xff]
        %v2188 = vld [vmem:[%s4 + $0x1f0] sm:$0xff]
        %v2189 = vld [vmem:[%s4 + $0x1f8] sm:$0xff]
        %v2190 = vld [vmem:[%s4 + $0x200] sm:$0xff]
        %v2191 = vld [vmem:[%s4 + $0x208] sm:$0xff]
        %v2192 = vld [vmem:[%s4 + $0x210] sm:$0xff]
        %v2193 = vld [vmem:[%s4 + $0x218] sm:$0xff]
        %v2194 = vld [vmem:[%s4 + $0x220] sm:$0xff]
        %v2195 = vld [vmem:[%s4 + $0x228] sm:$0xff]
        %v2196 = vld [vmem:[%s4 + $0x230] sm:$0xff]
        %v2197 = vld [vmem:[%s4 + $0x238] sm:$0xff]
        %v2198 = vld [vmem:[%s4 + $0x240] sm:$0xff]
        %v2199 = vld [vmem:[%s4 + $0x248] sm:$0xff]
        %v2200 = vld [vmem:[%s4 + $0x250] sm:$0xff]
        %v2201 = vld [vmem:[%s4 + $0x258] sm:$0xff]
        %v2202 = vld [vmem:[%s4 + $0x260] sm:$0xff]
        %v2203 = vld [vmem:[%s4 + $0x268] sm:$0xff]
        %v2204 = vld [vmem:[%s4 + $0x270] sm:$0xff]
        %v2205 = vld [vmem:[%s4 + $0x278] sm:$0xff]
        %v2206 = vld [vmem:[%s4 + $0x280] sm:$0xff]
        %v2207 = vld [vmem:[%s4 + $0x288] sm:$0xff]
        %v2208 = vld [vmem:[%s4 + $0x290] sm:$0xff]
        %v2209 = vld [vmem:[%s4 + $0x298] sm:$0xff]
        %v2210 = vld [vmem:[%s4 + $0x2a0] sm:$0xff]
        %v2211 = vld [vmem:[%s4 + $0x2a8] sm:$0xff]
        %v2212 = vld [vmem:[%s4 + $0x2b0] sm:$0xff]
        %v2213 = vld [vmem:[%s4 + $0x2b8] sm:$0xff]
        %v2214 = vld [vmem:[%s4 + $0x2c0] sm:$0xff]
        %v2215 = vld [vmem:[%s4 + $0x2c8] sm:$0xff]
        %v2216 = vld [vmem:[%s4 + $0x2d0] sm:$0xff]
        %v2217 = vld [vmem:[%s4 + $0x2d8] sm:$0xff]
        %v2218 = vld [vmem:[%s4 + $0x2e0] sm:$0xff]
        %v2219 = vld [vmem:[%s4 + $0x2e8] sm:$0xff]
        %v2220 = vld [vmem:[%s4 + $0x2f0] sm:$0xff]
        %v2221 = vld [vmem:[%s4 + $0x2f8] sm:$0xff]
        %v2222 = vld [vmem:[%s5] sm:$0x1]
        %v2224 = vlaneseq
        %v2225 = vshrl.u32 %v2224, 7
        %v2226 = vsub.s32 0, %v2225
        %v2227 = vrot.slane %v2222, %v2226
        %2229 = vmatprep.subr.mxu0 0.0
        %2230 = vmatpush1.msra.mxu0 %v2141
        %2231 = vmatprep.subr.mxu0 0.0
        %2232 = vmatpush1.msra.mxu0 %v2140
        %2233 = vmatprep.subr.mxu0 0.0
        %2234 = vmatpush1.msra.mxu0 %v2139
        %2235 = vmatprep.subr.mxu0 0.0
        %2236 = vmatpush1.msra.mxu0 %v2138
        %2237 = vmatprep.subr.mxu0 0.0
        %2238 = vmatpush1.msra.mxu0 %v2137
        %2239 = vmatprep.subr.mxu0 0.0
        %2240 = vmatpush1.msra.mxu0 %v2136
        %2241 = vmatprep.subr.mxu0 0.0
        %2242 = vmatpush1.msra.mxu0 %v2135
        %2243 = vmatprep.subr.mxu0 0.0
        %2244 = vmatpush1.msra.mxu0 %v2134
        %2245 = vmatprep.subr.mxu0 0.0
        %2246 = vmatpush1.msra.mxu0 %v2133
        %2247 = vmatprep.subr.mxu0 0.0
        %2248 = vmatpush1.msra.mxu0 %v2132
        %2249 = vmatprep.subr.mxu0 0.0
        %2250 = vmatpush1.msra.mxu0 %v2131
        %2251 = vmatprep.subr.mxu0 0.0
        %2252 = vmatpush1.msra.mxu0 %v2130
        %2253 = vmatprep.subr.mxu0 0.0
        %2254 = vmatpush1.msra.mxu0 %v2129
        %2255 = vmatprep.subr.mxu0 0.0
        %2256 = vmatpush1.msra.mxu0 %v2128
        %2257 = vmatprep.subr.mxu0 0.0
        %2258 = vmatpush1.msra.mxu0 %v2127
        %2259 = vmatprep.subr.mxu0 0.0
        %2260 = vmatpush1.msra.mxu0 %v2126
        %2261 = vmatprep.subr.mxu0 0.0
        %2262 = vmatpush2.msra.mxu0 %v2157
        %2263 = vmatprep.subr.mxu0 0.0
        %2264 = vmatpush2.msra.mxu0 %v2156
        %2265 = vmatprep.subr.mxu0 0.0
        %2266 = vmatpush2.msra.mxu0 %v2155
        %2267 = vmatprep.subr.mxu0 0.0
        %2268 = vmatpush2.msra.mxu0 %v2154
        %2269 = vmatprep.subr.mxu0 0.0
        %2270 = vmatpush2.msra.mxu0 %v2153
        %2271 = vmatprep.subr.mxu0 0.0
        %2272 = vmatpush2.msra.mxu0 %v2152
        %2273 = vmatprep.subr.mxu0 0.0
        %2274 = vmatpush2.msra.mxu0 %v2151
        %2275 = vmatprep.subr.mxu0 0.0
        %2276 = vmatpush2.msra.mxu0 %v2150
        %2277 = vmatprep.subr.mxu0 0.0
        %2278 = vmatpush2.msra.mxu0 %v2149
        %2279 = vmatprep.subr.mxu0 0.0
        %2280 = vmatpush2.msra.mxu0 %v2148
        %2281 = vmatprep.subr.mxu0 0.0
        %2282 = vmatpush2.msra.mxu0 %v2147
        %2283 = vmatprep.subr.mxu0 0.0
        %2284 = vmatpush2.msra.mxu0 %v2146
        %2285 = vmatprep.subr.mxu0 0.0
        %2286 = vmatpush2.msra.mxu0 %v2145
        %2287 = vmatprep.subr.mxu0 0.0
        %2288 = vmatpush2.msra.mxu0 %v2144
        %2289 = vmatprep.subr.mxu0 0.0
        %2290 = vmatpush2.msra.mxu0 %v2143
        %2291 = vmatprep.subr.mxu0 0.0
        %2292 = vmatpush2.msra.mxu0 %v2142
        %2293 = vmatprep.mubr.f32.mxu0 %v2075
        %2294 = vmatmul.mubr.f32.gmra.mxu0 %v2074
        %v2295 = vpop.f32.mrf.mxu0
        %v2296 = vadd.f32 %v2227, %v2295
        %v2297 = vpop.f32.mrf.mxu0
        %2298 = vmatprep.mubr.f32.mxu0 %v2077
        %2299 = vmatmul.mubr.f32.gmra.mxu0 %v2076
        %v2300 = vpop.f32.mrf.mxu0
        %v2301 = vadd.f32 %v2227, %v2300
        %v2302 = vpop.f32.mrf.mxu0
        %2303 = vdwg.mxu0
        %2304 = vmatprep.subr.mxu0 0.0
        %2305 = vmatpush1.msra.mxu0 %v2173
        %2306 = vmatprep.subr.mxu0 0.0
        %2307 = vmatpush1.msra.mxu0 %v2172
        %2308 = vmatprep.subr.mxu0 0.0
        %2309 = vmatpush1.msra.mxu0 %v2171
        %2310 = vmatprep.subr.mxu0 0.0
        %2311 = vmatpush1.msra.mxu0 %v2170
        %2312 = vmatprep.subr.mxu0 0.0
        %2313 = vmatpush1.msra.mxu0 %v2169
        %2314 = vmatprep.subr.mxu0 0.0
        %2315 = vmatpush1.msra.mxu0 %v2168
        %2316 = vmatprep.subr.mxu0 0.0
        %2317 = vmatpush1.msra.mxu0 %v2167
        %2318 = vmatprep.subr.mxu0 0.0
        %2319 = vmatpush1.msra.mxu0 %v2166
        %2320 = vmatprep.subr.mxu0 0.0
        %2321 = vmatpush1.msra.mxu0 %v2165
        %2322 = vmatprep.subr.mxu0 0.0
        %2323 = vmatpush1.msra.mxu0 %v2164
        %2324 = vmatprep.subr.mxu0 0.0
        %2325 = vmatpush1.msra.mxu0 %v2163
        %2326 = vmatprep.subr.mxu0 0.0
        %2327 = vmatpush1.msra.mxu0 %v2162
        %2328 = vmatprep.subr.mxu0 0.0
        %2329 = vmatpush1.msra.mxu0 %v2161
        %2330 = vmatprep.subr.mxu0 0.0
        %2331 = vmatpush1.msra.mxu0 %v2160
        %2332 = vmatprep.subr.mxu0 0.0
        %2333 = vmatpush1.msra.mxu0 %v2159
        %2334 = vmatprep.subr.mxu0 0.0
        %2335 = vmatpush1.msra.mxu0 %v2158
        %2336 = vmatprep.subr.mxu0 0.0
        %2337 = vmatpush2.msra.mxu0 %v2189
        %2338 = vmatprep.subr.mxu0 0.0
        %2339 = vmatpush2.msra.mxu0 %v2188
        %2340 = vmatprep.subr.mxu0 0.0
        %2341 = vmatpush2.msra.mxu0 %v2187
        %2342 = vmatprep.subr.mxu0 0.0
        %2343 = vmatpush2.msra.mxu0 %v2186
        %2344 = vmatprep.subr.mxu0 0.0
        %2345 = vmatpush2.msra.mxu0 %v2185
        %2346 = vmatprep.subr.mxu0 0.0
        %2347 = vmatpush2.msra.mxu0 %v2184
        %2348 = vmatprep.subr.mxu0 0.0
        %2349 = vmatpush2.msra.mxu0 %v2183
        %2350 = vmatprep.subr.mxu0 0.0
        %2351 = vmatpush2.msra.mxu0 %v2182
        %2352 = vmatprep.subr.mxu0 0.0
        %2353 = vmatpush2.msra.mxu0 %v2181
        %2354 = vmatprep.subr.mxu0 0.0
        %2355 = vmatpush2.msra.mxu0 %v2180
        %2356 = vmatprep.subr.mxu0 0.0
        %2357 = vmatpush2.msra.mxu0 %v2179
        %2358 = vmatprep.subr.mxu0 0.0
        %2359 = vmatpush2.msra.mxu0 %v2178
        %2360 = vmatprep.subr.mxu0 0.0
        %2361 = vmatpush2.msra.mxu0 %v2177
        %2362 = vmatprep.subr.mxu0 0.0
        %2363 = vmatpush2.msra.mxu0 %v2176
        %2364 = vmatprep.subr.mxu0 0.0
        %2365 = vmatpush2.msra.mxu0 %v2175
        %2366 = vmatprep.subr.mxu0 0.0
        %2367 = vmatpush2.msra.mxu0 %v2174
        %2368 = vmatprep.mubr.f32.mxu0 %v2098
        %2369 = vmatmul.mubr.f32.gmra.mxu0 %v2095
        %v2370 = vpop.f32.mrf.mxu0
        %v2371 = vadd.f32 %v2296, %v2370
        %v2372 = vpop.f32.mrf.mxu0
        %2373 = vmatprep.mubr.f32.mxu0 %v2102
        %2374 = vmatmul.mubr.f32.gmra.mxu0 %v2100
        %v2375 = vpop.f32.mrf.mxu0
        %v2376 = vadd.f32 %v2301, %v2375
        %v2377 = vpop.f32.mrf.mxu0
        %2378 = vdwg.mxu0
        %2379 = vmatprep.subr.mxu0 0.0
        %2380 = vmatpush1.msra.mxu0 %v2205
        %2381 = vmatprep.subr.mxu0 0.0
        %2382 = vmatpush1.msra.mxu0 %v2204
        %2383 = vmatprep.subr.mxu0 0.0
        %2384 = vmatpush1.msra.mxu0 %v2203
        %2385 = vmatprep.subr.mxu0 0.0
        %2386 = vmatpush1.msra.mxu0 %v2202
        %2387 = vmatprep.subr.mxu0 0.0
        %2388 = vmatpush1.msra.mxu0 %v2201
        %2389 = vmatprep.subr.mxu0 0.0
        %2390 = vmatpush1.msra.mxu0 %v2200
        %2391 = vmatprep.subr.mxu0 0.0
        %2392 = vmatpush1.msra.mxu0 %v2199
        %2393 = vmatprep.subr.mxu0 0.0
        %2394 = vmatpush1.msra.mxu0 %v2198
        %2395 = vmatprep.subr.mxu0 0.0
        %2396 = vmatpush1.msra.mxu0 %v2197
        %2397 = vmatprep.subr.mxu0 0.0
        %2398 = vmatpush1.msra.mxu0 %v2196
        %2399 = vmatprep.subr.mxu0 0.0
        %2400 = vmatpush1.msra.mxu0 %v2195
        %2401 = vmatprep.subr.mxu0 0.0
        %2402 = vmatpush1.msra.mxu0 %v2194
        %2403 = vmatprep.subr.mxu0 0.0
        %2404 = vmatpush1.msra.mxu0 %v2193
        %2405 = vmatprep.subr.mxu0 0.0
        %2406 = vmatpush1.msra.mxu0 %v2192
        %2407 = vmatprep.subr.mxu0 0.0
        %2408 = vmatpush1.msra.mxu0 %v2191
        %2409 = vmatprep.subr.mxu0 0.0
        %2410 = vmatpush1.msra.mxu0 %v2190
        %2411 = vmatprep.subr.mxu0 0.0
        %2412 = vmatpush2.msra.mxu0 %v2221
        %2413 = vmatprep.subr.mxu0 0.0
        %2414 = vmatpush2.msra.mxu0 %v2220
        %2415 = vmatprep.subr.mxu0 0.0
        %2416 = vmatpush2.msra.mxu0 %v2219
        %2417 = vmatprep.subr.mxu0 0.0
        %2418 = vmatpush2.msra.mxu0 %v2218
        %2419 = vmatprep.subr.mxu0 0.0
        %2420 = vmatpush2.msra.mxu0 %v2217
        %2421 = vmatprep.subr.mxu0 0.0
        %2422 = vmatpush2.msra.mxu0 %v2216
        %2423 = vmatprep.subr.mxu0 0.0
        %2424 = vmatpush2.msra.mxu0 %v2215
        %2425 = vmatprep.subr.mxu0 0.0
        %2426 = vmatpush2.msra.mxu0 %v2214
        %2427 = vmatprep.subr.mxu0 0.0
        %2428 = vmatpush2.msra.mxu0 %v2213
        %2429 = vmatprep.subr.mxu0 0.0
        %2430 = vmatpush2.msra.mxu0 %v2212
        %2431 = vmatprep.subr.mxu0 0.0
        %2432 = vmatpush2.msra.mxu0 %v2211
        %2433 = vmatprep.subr.mxu0 0.0
        %2434 = vmatpush2.msra.mxu0 %v2210
        %2435 = vmatprep.subr.mxu0 0.0
        %2436 = vmatpush2.msra.mxu0 %v2209
        %2437 = vmatprep.subr.mxu0 0.0
        %2438 = vmatpush2.msra.mxu0 %v2208
        %2439 = vmatprep.subr.mxu0 0.0
        %2440 = vmatpush2.msra.mxu0 %v2207
        %2441 = vmatprep.subr.mxu0 0.0
        %2442 = vmatpush2.msra.mxu0 %v2206
        %2443 = vmatprep.mubr.f32.mxu0 %v2117
        %2444 = vmatmul.mubr.f32.gmra.mxu0 %v2114
        %v2445 = vpop.f32.mrf.mxu0
        %v2446 = vadd.f32 %v2371, %v2445
        %v2447 = vpop.f32.mrf.mxu0
        %2448 = vmatprep.mubr.f32.mxu0 %v2121
        %2449 = vmatmul.mubr.f32.gmra.mxu0 %v2119
        %v2450 = vpop.f32.mrf.mxu0
        %v2451 = vadd.f32 %v2376, %v2450
        %v2452 = vpop.f32.mrf.mxu0
        %2453 = vdwg.mxu0
        %v2454 = vmax.f32 %v2446, 0.0
        %v2455 = vmax.f32 %v2451, 0.0
        %2456 = vst.msk [vmem:[#allocation4 + $0x1] sm:$0xff] %vm468, %v2454
        %2457 = vst.msk [vmem:[#allocation4 + $0x9] sm:$0xff] %vm468, %v2455
        %v2458 = vld [vmem:[#allocation4] sm:$0xff]
        %v2459 = vld [vmem:[#allocation4 + $0x8] sm:$0xff]
        %v2460 = vld [vmem:[#allocation4 + $0x1] sm:$0xff]
        %v2461 = vld [vmem:[#allocation4 + $0x9] sm:$0xff]
        %v2462 = vld [vmem:[#allocation4 + $0x2] sm:$0xff]
        %v2463 = vld [vmem:[#allocation4 + $0xa] sm:$0xff]
        %2466 = vrot.lane.b32.xlu0 %v2460, 32
        %v2467 = vpop.permute.xlu0 %2466
        %2468 = vrot.lane.b32.xlu0 %v2461, 32
        %v2469 = vpop.permute.xlu0 %2468
        %2474 = vrot.lane.b32.xlu0 %v2462, 64
        %v2475 = vpop.permute.xlu0 %2474
        %2476 = vrot.lane.b32.xlu0 %v2463, 64
        %v2477 = vpop.permute.xlu0 %2476
        %v2480 = vsel %vm468, %v2458, %v2467
        %v2481 = vsel %vm468, %v2459, %v2469
        %v2482 = vsel %vm645, %v2480, %v2475
        %v2483 = vsel %vm645, %v2481, %v2477
        %v2484 = vld [vmem:[%s6] sm:$0xff]
        %v2485 = vld [vmem:[%s6 + $0x8] sm:$0xff]
        %v2486 = vld [vmem:[%s6 + $0x10] sm:$0xff]
        %v2487 = vld [vmem:[%s6 + $0x18] sm:$0xff]
        %v2488 = vld [vmem:[%s6 + $0x20] sm:$0xff]
        %v2489 = vld [vmem:[%s6 + $0x28] sm:$0xff]
        %v2490 = vld [vmem:[%s6 + $0x30] sm:$0xff]
        %v2491 = vld [vmem:[%s6 + $0x38] sm:$0xff]
        %v2492 = vld [vmem:[%s6 + $0x40] sm:$0xff]
        %v2493 = vld [vmem:[%s6 + $0x48] sm:$0xff]
        %v2494 = vld [vmem:[%s6 + $0x50] sm:$0xff]
        %v2495 = vld [vmem:[%s6 + $0x58] sm:$0xff]
        %v2496 = vld [vmem:[%s7] sm:$0x1]
        %v2498 = vlaneseq
        %v2499 = vshrl.u32 %v2498, 7
        %v2500 = vsub.s32 0, %v2499
        %v2501 = vrot.slane %v2496, %v2500
        %v2504 = vsel %vm648, %v2482, 0
        %v2507 = vsel %vm648, %v2483, 0
        %2509 = vmatprep.subr.mxu0 0.0
        %2510 = vmatpush1.msra.mxu0 0.0
        %2511 = vmatprep.subr.mxu0 0.0
        %2512 = vmatpush1.msra.mxu0 0.0
        %2513 = vmatprep.subr.mxu0 0.0
        %2514 = vmatpush1.msra.mxu0 0.0
        %2515 = vmatprep.subr.mxu0 0.0
        %2516 = vmatpush1.msra.mxu0 0.0
        %2517 = vmatprep.subr.mxu0 0.0
        %2518 = vmatpush1.msra.mxu0 %v2495
        %2519 = vmatprep.subr.mxu0 0.0
        %2520 = vmatpush1.msra.mxu0 %v2494
        %2521 = vmatprep.subr.mxu0 0.0
        %2522 = vmatpush1.msra.mxu0 %v2493
        %2523 = vmatprep.subr.mxu0 0.0
        %2524 = vmatpush1.msra.mxu0 %v2492
        %2525 = vmatprep.subr.mxu0 0.0
        %2526 = vmatpush1.msra.mxu0 %v2491
        %2527 = vmatprep.subr.mxu0 0.0
        %2528 = vmatpush1.msra.mxu0 %v2490
        %2529 = vmatprep.subr.mxu0 0.0
        %2530 = vmatpush1.msra.mxu0 %v2489
        %2531 = vmatprep.subr.mxu0 0.0
        %2532 = vmatpush1.msra.mxu0 %v2488
        %2533 = vmatprep.subr.mxu0 0.0
        %2534 = vmatpush1.msra.mxu0 %v2487
        %2535 = vmatprep.subr.mxu0 0.0
        %2536 = vmatpush1.msra.mxu0 %v2486
        %2537 = vmatprep.subr.mxu0 0.0
        %2538 = vmatpush1.msra.mxu0 %v2485
        %2539 = vmatprep.subr.mxu0 0.0
        %2540 = vmatpush1.msra.mxu0 %v2484
        %2541 = vmatprep.subr.mxu0 0.0
        %2542 = vmatpush2.msra.mxu0 0.0
        %2543 = vmatprep.subr.mxu0 0.0
        %2544 = vmatpush2.msra.mxu0 0.0
        %2545 = vmatprep.subr.mxu0 0.0
        %2546 = vmatpush2.msra.mxu0 0.0
        %2547 = vmatprep.subr.mxu0 0.0
        %2548 = vmatpush2.msra.mxu0 0.0
        %2549 = vmatprep.subr.mxu0 0.0
        %2550 = vmatpush2.msra.mxu0 0.0
        %2551 = vmatprep.subr.mxu0 0.0
        %2552 = vmatpush2.msra.mxu0 0.0
        %2553 = vmatprep.subr.mxu0 0.0
        %2554 = vmatpush2.msra.mxu0 0.0
        %2555 = vmatprep.subr.mxu0 0.0
        %2556 = vmatpush2.msra.mxu0 0.0
        %2557 = vmatprep.subr.mxu0 0.0
        %2558 = vmatpush2.msra.mxu0 0.0
        %2559 = vmatprep.subr.mxu0 0.0
        %2560 = vmatpush2.msra.mxu0 0.0
        %2561 = vmatprep.subr.mxu0 0.0
        %2562 = vmatpush2.msra.mxu0 0.0
        %2563 = vmatprep.subr.mxu0 0.0
        %2564 = vmatpush2.msra.mxu0 0.0
        %2565 = vmatprep.subr.mxu0 0.0
        %2566 = vmatpush2.msra.mxu0 0.0
        %2567 = vmatprep.subr.mxu0 0.0
        %2568 = vmatpush2.msra.mxu0 0.0
        %2569 = vmatprep.subr.mxu0 0.0
        %2570 = vmatpush2.msra.mxu0 0.0
        %2571 = vmatprep.subr.mxu0 0.0
        %2572 = vmatpush2.msra.mxu0 0.0
        %2573 = vmatprep.mubr.f32.mxu0 0.0
        %2574 = vmatmul.mubr.f32.gmra.mxu0 %v2504
        %v2575 = vpop.f32.mrf.mxu0
        %v2576 = vadd.f32 %v2501, %v2575
        %v2577 = vpop.f32.mrf.mxu0
        %2578 = vmatprep.mubr.f32.mxu0 0.0
        %2579 = vmatmul.mubr.f32.gmra.mxu0 %v2507
        %v2580 = vpop.f32.mrf.mxu0
        %v2581 = vadd.f32 %v2501, %v2580
        %v2582 = vpop.f32.mrf.mxu0
        %2583 = vdwg.mxu0
        %v2584 = vadd.f32 %v2576, %v466
        %v2585 = vadd.f32 %v2581, %v467
        %v2586 = vld [vmem:[%s8] sm:$0xff]
        %v2587 = vld [vmem:[%s8 + $0x8] sm:$0xff]
        %v2588 = vld [vmem:[%s8 + $0x10] sm:$0xff]
        %v2589 = vld [vmem:[%s8 + $0x18] sm:$0xff]
        %v2590 = vld [vmem:[%s9] sm:$0x1]
        %v2592 = vlaneseq
        %v2593 = vshrl.u32 %v2592, 7
        %v2594 = vsub.s32 0, %v2593
        %v2595 = vrot.slane %v2590, %v2594
        %v2598 = vsel %vm468, %v2584, 0
        %v2601 = vsel %vm468, %v2585, 0
        %2603 = vmatprep.subr.mxu0 0.0
        %2604 = vmatpush1.msra.mxu0 0.0
        %2605 = vmatprep.subr.mxu0 0.0
        %2606 = vmatpush1.msra.mxu0 0.0
        %2607 = vmatprep.subr.mxu0 0.0
        %2608 = vmatpush1.msra.mxu0 0.0
        %2609 = vmatprep.subr.mxu0 0.0
        %2610 = vmatpush1.msra.mxu0 0.0
        %2611 = vmatprep.subr.mxu0 0.0
        %2612 = vmatpush1.msra.mxu0 0.0
        %2613 = vmatprep.subr.mxu0 0.0
        %2614 = vmatpush1.msra.mxu0 0.0
        %2615 = vmatprep.subr.mxu0 0.0
        %2616 = vmatpush1.msra.mxu0 0.0
        %2617 = vmatprep.subr.mxu0 0.0
        %2618 = vmatpush1.msra.mxu0 0.0
        %2619 = vmatprep.subr.mxu0 0.0
        %2620 = vmatpush1.msra.mxu0 0.0
        %2621 = vmatprep.subr.mxu0 0.0
        %2622 = vmatpush1.msra.mxu0 0.0
        %2623 = vmatprep.subr.mxu0 0.0
        %2624 = vmatpush1.msra.mxu0 0.0
        %2625 = vmatprep.subr.mxu0 0.0
        %2626 = vmatpush1.msra.mxu0 0.0
        %2627 = vmatprep.subr.mxu0 0.0
        %2628 = vmatpush1.msra.mxu0 %v2589
        %2629 = vmatprep.subr.mxu0 0.0
        %2630 = vmatpush1.msra.mxu0 %v2588
        %2631 = vmatprep.subr.mxu0 0.0
        %2632 = vmatpush1.msra.mxu0 %v2587
        %2633 = vmatprep.subr.mxu0 0.0
        %2634 = vmatpush1.msra.mxu0 %v2586
        %2635 = vmatprep.subr.mxu0 0.0
        %2636 = vmatpush2.msra.mxu0 0.0
        %2637 = vmatprep.subr.mxu0 0.0
        %2638 = vmatpush2.msra.mxu0 0.0
        %2639 = vmatprep.subr.mxu0 0.0
        %2640 = vmatpush2.msra.mxu0 0.0
        %2641 = vmatprep.subr.mxu0 0.0
        %2642 = vmatpush2.msra.mxu0 0.0
        %2643 = vmatprep.subr.mxu0 0.0
        %2644 = vmatpush2.msra.mxu0 0.0
        %2645 = vmatprep.subr.mxu0 0.0
        %2646 = vmatpush2.msra.mxu0 0.0
        %2647 = vmatprep.subr.mxu0 0.0
        %2648 = vmatpush2.msra.mxu0 0.0
        %2649 = vmatprep.subr.mxu0 0.0
        %2650 = vmatpush2.msra.mxu0 0.0
        %2651 = vmatprep.subr.mxu0 0.0
        %2652 = vmatpush2.msra.mxu0 0.0
        %2653 = vmatprep.subr.mxu0 0.0
        %2654 = vmatpush2.msra.mxu0 0.0
        %2655 = vmatprep.subr.mxu0 0.0
        %2656 = vmatpush2.msra.mxu0 0.0
        %2657 = vmatprep.subr.mxu0 0.0
        %2658 = vmatpush2.msra.mxu0 0.0
        %2659 = vmatprep.subr.mxu0 0.0
        %2660 = vmatpush2.msra.mxu0 0.0
        %2661 = vmatprep.subr.mxu0 0.0
        %2662 = vmatpush2.msra.mxu0 0.0
        %2663 = vmatprep.subr.mxu0 0.0
        %2664 = vmatpush2.msra.mxu0 0.0
        %2665 = vmatprep.subr.mxu0 0.0
        %2666 = vmatpush2.msra.mxu0 0.0
        %2667 = vmatprep.mubr.f32.mxu0 0.0
        %2668 = vmatmul.mubr.f32.gmra.mxu0 %v2598
        %v2669 = vpop.f32.mrf.mxu0
        %v2670 = vadd.f32 %v2595, %v2669
        %v2671 = vpop.f32.mrf.mxu0
        %2672 = vmatprep.mubr.f32.mxu0 0.0
        %2673 = vmatmul.mubr.f32.gmra.mxu0 %v2601
        %v2674 = vpop.f32.mrf.mxu0
        %v2675 = vadd.f32 %v2595, %v2674
        %v2676 = vpop.f32.mrf.mxu0
        %2677 = vdwg.mxu0
        %v2678 = vmax.f32 %v2670, 0.0
        %v2679 = vmax.f32 %v2675, 0.0
        %v2680 = vsub.f32 0.0, %v2670
        %v2681 = vsub.f32 0.0, %v2675
        %v2682 = vmul.f32 %v2680, 1.442695
        %v2683 = vpow.pop %v2682
        %v2684 = vmul.f32 %v2681, 1.442695
        %v2685 = vpow.pop %v2684
        %v2686 = vadd.f32 %v2683, 1.0
        %v2687 = vadd.f32 %v2685, 1.0
        %v2688 = vrcp.pop %v2686
        %v2689 = vrcp.pop %v2687
        %2692 = vrot.lane.b32.xlu0 %v2688, 96
        %v2693 = vpop.permute.xlu0 %2692
        %2694 = vrot.lane.b32.xlu0 %v2689, 96
        %v2695 = vpop.permute.xlu0 %2694
        %v2698 = vmul.f32 %v2678, %v2693
        %v2699 = vmul.f32 %v2679, %v2695
        %v2700 = vsub.f32 1.0, %v2688
        %v2701 = vsub.f32 1.0, %v2689
        %2704 = vrot.lane.b32.xlu0 %v2700, 96
        %v2705 = vpop.permute.xlu0 %2704
        %2706 = vrot.lane.b32.xlu0 %v2701, 96
        %v2707 = vpop.permute.xlu0 %2706
        %v2710 = vmul.f32 %v2584, %v2705
        %v2711 = vmul.f32 %v2585, %v2707
        %v2712 = vadd.f32 %v2698, %v2710
        %v2713 = vadd.f32 %v2699, %v2711
        %s2714 = scalar_lea.vmem %s8, 32
        %v2715 = vld [vmem:[%s2714] sm:$0xff]
        %v2716 = vld [vmem:[%s2714 + $0x8] sm:$0xff]
        %v2717 = vld [vmem:[%s2714 + $0x10] sm:$0xff]
        %v2718 = vld [vmem:[%s2714 + $0x18] sm:$0xff]
        %s2719 = scalar_lea.vmem %s9, 1
        %v2720 = vld [vmem:[%s2719] sm:$0x1]
        %v2722 = vlaneseq
        %v2723 = vshrl.u32 %v2722, 7
        %v2724 = vsub.s32 0, %v2723
        %v2725 = vrot.slane %v2720, %v2724
        %v2728 = vsel %vm468, %v2712, 0
        %v2731 = vsel %vm468, %v2713, 0
        %2733 = vmatprep.subr.mxu0 0.0
        %2734 = vmatpush1.msra.mxu0 0.0
        %2735 = vmatprep.subr.mxu0 0.0
        %2736 = vmatpush1.msra.mxu0 0.0
        %2737 = vmatprep.subr.mxu0 0.0
        %2738 = vmatpush1.msra.mxu0 0.0
        %2739 = vmatprep.subr.mxu0 0.0
        %2740 = vmatpush1.msra.mxu0 0.0
        %2741 = vmatprep.subr.mxu0 0.0
        %2742 = vmatpush1.msra.mxu0 0.0
        %2743 = vmatprep.subr.mxu0 0.0
        %2744 = vmatpush1.msra.mxu0 0.0
        %2745 = vmatprep.subr.mxu0 0.0
        %2746 = vmatpush1.msra.mxu0 0.0
        %2747 = vmatprep.subr.mxu0 0.0
        %2748 = vmatpush1.msra.mxu0 0.0
        %2749 = vmatprep.subr.mxu0 0.0
        %2750 = vmatpush1.msra.mxu0 0.0
        %2751 = vmatprep.subr.mxu0 0.0
        %2752 = vmatpush1.msra.mxu0 0.0
        %2753 = vmatprep.subr.mxu0 0.0
        %2754 = vmatpush1.msra.mxu0 0.0
        %2755 = vmatprep.subr.mxu0 0.0
        %2756 = vmatpush1.msra.mxu0 0.0
        %2757 = vmatprep.subr.mxu0 0.0
        %2758 = vmatpush1.msra.mxu0 %v2718
        %2759 = vmatprep.subr.mxu0 0.0
        %2760 = vmatpush1.msra.mxu0 %v2717
        %2761 = vmatprep.subr.mxu0 0.0
        %2762 = vmatpush1.msra.mxu0 %v2716
        %2763 = vmatprep.subr.mxu0 0.0
        %2764 = vmatpush1.msra.mxu0 %v2715
        %2765 = vmatprep.subr.mxu0 0.0
        %2766 = vmatpush2.msra.mxu0 0.0
        %2767 = vmatprep.subr.mxu0 0.0
        %2768 = vmatpush2.msra.mxu0 0.0
        %2769 = vmatprep.subr.mxu0 0.0
        %2770 = vmatpush2.msra.mxu0 0.0
        %2771 = vmatprep.subr.mxu0 0.0
        %2772 = vmatpush2.msra.mxu0 0.0
        %2773 = vmatprep.subr.mxu0 0.0
        %2774 = vmatpush2.msra.mxu0 0.0
        %2775 = vmatprep.subr.mxu0 0.0
        %2776 = vmatpush2.msra.mxu0 0.0
        %2777 = vmatprep.subr.mxu0 0.0
        %2778 = vmatpush2.msra.mxu0 0.0
        %2779 = vmatprep.subr.mxu0 0.0
        %2780 = vmatpush2.msra.mxu0 0.0
        %2781 = vmatprep.subr.mxu0 0.0
        %2782 = vmatpush2.msra.mxu0 0.0
        %2783 = vmatprep.subr.mxu0 0.0
        %2784 = vmatpush2.msra.mxu0 0.0
        %2785 = vmatprep.subr.mxu0 0.0
        %2786 = vmatpush2.msra.mxu0 0.0
        %2787 = vmatprep.subr.mxu0 0.0
        %2788 = vmatpush2.msra.mxu0 0.0
        %2789 = vmatprep.subr.mxu0 0.0
        %2790 = vmatpush2.msra.mxu0 0.0
        %2791 = vmatprep.subr.mxu0 0.0
        %2792 = vmatpush2.msra.mxu0 0.0
        %2793 = vmatprep.subr.mxu0 0.0
        %2794 = vmatpush2.msra.mxu0 0.0
        %2795 = vmatprep.subr.mxu0 0.0
        %2796 = vmatpush2.msra.mxu0 0.0
        %2797 = vmatprep.mubr.f32.mxu0 0.0
        %2798 = vmatmul.mubr.f32.gmra.mxu0 %v2728
        %v2799 = vpop.f32.mrf.mxu0
        %v2800 = vadd.f32 %v2725, %v2799
        %v2801 = vpop.f32.mrf.mxu0
        %2802 = vmatprep.mubr.f32.mxu0 0.0
        %2803 = vmatmul.mubr.f32.gmra.mxu0 %v2731
        %v2804 = vpop.f32.mrf.mxu0
        %v2805 = vadd.f32 %v2725, %v2804
        %v2806 = vpop.f32.mrf.mxu0
        %2807 = vdwg.mxu0
        %v2808 = vmax.f32 %v2800, 0.0
        %v2809 = vmax.f32 %v2805, 0.0
        %v2810 = vsub.f32 0.0, %v2800
        %v2811 = vsub.f32 0.0, %v2805
        %v2812 = vmul.f32 %v2810, 1.442695
        %v2813 = vpow.pop %v2812
        %v2814 = vmul.f32 %v2811, 1.442695
        %v2815 = vpow.pop %v2814
        %v2816 = vadd.f32 %v2813, 1.0
        %v2817 = vadd.f32 %v2815, 1.0
        %v2818 = vrcp.pop %v2816
        %v2819 = vrcp.pop %v2817
        %2822 = vrot.lane.b32.xlu0 %v2818, 96
        %v2823 = vpop.permute.xlu0 %2822
        %2824 = vrot.lane.b32.xlu0 %v2819, 96
        %v2825 = vpop.permute.xlu0 %2824
        %v2828 = vmul.f32 %v2808, %v2823
        %v2829 = vmul.f32 %v2809, %v2825
        %v2830 = vsub.f32 1.0, %v2818
        %v2831 = vsub.f32 1.0, %v2819
        %2834 = vrot.lane.b32.xlu0 %v2830, 96
        %v2835 = vpop.permute.xlu0 %2834
        %2836 = vrot.lane.b32.xlu0 %v2831, 96
        %v2837 = vpop.permute.xlu0 %2836
        %v2840 = vmul.f32 %v2712, %v2835
        %v2841 = vmul.f32 %v2713, %v2837
        %v2842 = vadd.f32 %v2828, %v2840
        %v2843 = vadd.f32 %v2829, %v2841
        %s2844 = scalar_lea.vmem %s8, 64
        %v2845 = vld [vmem:[%s2844] sm:$0xff]
        %v2846 = vld [vmem:[%s2844 + $0x8] sm:$0xff]
        %v2847 = vld [vmem:[%s2844 + $0x10] sm:$0xff]
        %v2848 = vld [vmem:[%s2844 + $0x18] sm:$0xff]
        %s2849 = scalar_lea.vmem %s9, 2
        %v2850 = vld [vmem:[%s2849] sm:$0x1]
        %v2852 = vlaneseq
        %v2853 = vshrl.u32 %v2852, 7
        %v2854 = vsub.s32 0, %v2853
        %v2855 = vrot.slane %v2850, %v2854
        %v2858 = vsel %vm468, %v2842, 0
        %v2861 = vsel %vm468, %v2843, 0
        %2863 = vmatprep.subr.mxu0 0.0
        %2864 = vmatpush1.msra.mxu0 0.0
        %2865 = vmatprep.subr.mxu0 0.0
        %2866 = vmatpush1.msra.mxu0 0.0
        %2867 = vmatprep.subr.mxu0 0.0
        %2868 = vmatpush1.msra.mxu0 0.0
        %2869 = vmatprep.subr.mxu0 0.0
        %2870 = vmatpush1.msra.mxu0 0.0
        %2871 = vmatprep.subr.mxu0 0.0
        %2872 = vmatpush1.msra.mxu0 0.0
        %2873 = vmatprep.subr.mxu0 0.0
        %2874 = vmatpush1.msra.mxu0 0.0
        %2875 = vmatprep.subr.mxu0 0.0
        %2876 = vmatpush1.msra.mxu0 0.0
        %2877 = vmatprep.subr.mxu0 0.0
        %2878 = vmatpush1.msra.mxu0 0.0
        %2879 = vmatprep.subr.mxu0 0.0
        %2880 = vmatpush1.msra.mxu0 0.0
        %2881 = vmatprep.subr.mxu0 0.0
        %2882 = vmatpush1.msra.mxu0 0.0
        %2883 = vmatprep.subr.mxu0 0.0
        %2884 = vmatpush1.msra.mxu0 0.0
        %2885 = vmatprep.subr.mxu0 0.0
        %2886 = vmatpush1.msra.mxu0 0.0
        %2887 = vmatprep.subr.mxu0 0.0
        %2888 = vmatpush1.msra.mxu0 %v2848
        %2889 = vmatprep.subr.mxu0 0.0
        %2890 = vmatpush1.msra.mxu0 %v2847
        %2891 = vmatprep.subr.mxu0 0.0
        %2892 = vmatpush1.msra.mxu0 %v2846
        %2893 = vmatprep.subr.mxu0 0.0
        %2894 = vmatpush1.msra.mxu0 %v2845
        %2895 = vmatprep.subr.mxu0 0.0
        %2896 = vmatpush2.msra.mxu0 0.0
        %2897 = vmatprep.subr.mxu0 0.0
        %2898 = vmatpush2.msra.mxu0 0.0
        %2899 = vmatprep.subr.mxu0 0.0
        %2900 = vmatpush2.msra.mxu0 0.0
        %2901 = vmatprep.subr.mxu0 0.0
        %2902 = vmatpush2.msra.mxu0 0.0
        %2903 = vmatprep.subr.mxu0 0.0
        %2904 = vmatpush2.msra.mxu0 0.0
        %2905 = vmatprep.subr.mxu0 0.0
        %2906 = vmatpush2.msra.mxu0 0.0
        %2907 = vmatprep.subr.mxu0 0.0
        %2908 = vmatpush2.msra.mxu0 0.0
        %2909 = vmatprep.subr.mxu0 0.0
        %2910 = vmatpush2.msra.mxu0 0.0
        %2911 = vmatprep.subr.mxu0 0.0
        %2912 = vmatpush2.msra.mxu0 0.0
        %2913 = vmatprep.subr.mxu0 0.0
        %2914 = vmatpush2.msra.mxu0 0.0
        %2915 = vmatprep.subr.mxu0 0.0
        %2916 = vmatpush2.msra.mxu0 0.0
        %2917 = vmatprep.subr.mxu0 0.0
        %2918 = vmatpush2.msra.mxu0 0.0
        %2919 = vmatprep.subr.mxu0 0.0
        %2920 = vmatpush2.msra.mxu0 0.0
        %2921 = vmatprep.subr.mxu0 0.0
        %2922 = vmatpush2.msra.mxu0 0.0
        %2923 = vmatprep.subr.mxu0 0.0
        %2924 = vmatpush2.msra.mxu0 0.0
        %2925 = vmatprep.subr.mxu0 0.0
        %2926 = vmatpush2.msra.mxu0 0.0
        %2927 = vmatprep.mubr.f32.mxu0 0.0
        %2928 = vmatmul.mubr.f32.gmra.mxu0 %v2858
        %v2929 = vpop.f32.mrf.mxu0
        %v2930 = vadd.f32 %v2855, %v2929
        %v2931 = vpop.f32.mrf.mxu0
        %2932 = vmatprep.mubr.f32.mxu0 0.0
        %2933 = vmatmul.mubr.f32.gmra.mxu0 %v2861
        %v2934 = vpop.f32.mrf.mxu0
        %v2935 = vadd.f32 %v2855, %v2934
        %v2936 = vpop.f32.mrf.mxu0
        %2937 = vdwg.mxu0
        %v2938 = vmax.f32 %v2930, 0.0
        %v2939 = vmax.f32 %v2935, 0.0
        %v2940 = vsub.f32 0.0, %v2930
        %v2941 = vsub.f32 0.0, %v2935
        %v2942 = vmul.f32 %v2940, 1.442695
        %v2943 = vpow.pop %v2942
        %v2944 = vmul.f32 %v2941, 1.442695
        %v2945 = vpow.pop %v2944
        %v2946 = vadd.f32 %v2943, 1.0
        %v2947 = vadd.f32 %v2945, 1.0
        %v2948 = vrcp.pop %v2946
        %v2949 = vrcp.pop %v2947
        %2952 = vrot.lane.b32.xlu0 %v2948, 96
        %v2953 = vpop.permute.xlu0 %2952
        %2954 = vrot.lane.b32.xlu0 %v2949, 96
        %v2955 = vpop.permute.xlu0 %2954
        %v2958 = vmul.f32 %v2938, %v2953
        %v2959 = vmul.f32 %v2939, %v2955
        %v2960 = vsub.f32 1.0, %v2948
        %v2961 = vsub.f32 1.0, %v2949
        %2964 = vrot.lane.b32.xlu0 %v2960, 96
        %v2965 = vpop.permute.xlu0 %2964
        %2966 = vrot.lane.b32.xlu0 %v2961, 96
        %v2967 = vpop.permute.xlu0 %2966
        %v2970 = vmul.f32 %v2842, %v2965
        %v2971 = vmul.f32 %v2843, %v2967
        %v2972 = vadd.f32 %v2958, %v2970
        %v2973 = vadd.f32 %v2959, %v2971
        %s2974 = scalar_lea.vmem %s8, 96
        %v2975 = vld [vmem:[%s2974] sm:$0xff]
        %v2976 = vld [vmem:[%s2974 + $0x8] sm:$0xff]
        %v2977 = vld [vmem:[%s2974 + $0x10] sm:$0xff]
        %v2978 = vld [vmem:[%s2974 + $0x18] sm:$0xff]
        %s2979 = scalar_lea.vmem %s9, 3
        %v2980 = vld [vmem:[%s2979] sm:$0x1]
        %v2982 = vlaneseq
        %v2983 = vshrl.u32 %v2982, 7
        %v2984 = vsub.s32 0, %v2983
        %v2985 = vrot.slane %v2980, %v2984
        %v2988 = vsel %vm468, %v2972, 0
        %v2991 = vsel %vm468, %v2973, 0
        %2993 = vmatprep.subr.mxu0 0.0
        %2994 = vmatpush1.msra.mxu0 0.0
        %2995 = vmatprep.subr.mxu0 0.0
        %2996 = vmatpush1.msra.mxu0 0.0
        %2997 = vmatprep.subr.mxu0 0.0
        %2998 = vmatpush1.msra.mxu0 0.0
        %2999 = vmatprep.subr.mxu0 0.0
        %3000 = vmatpush1.msra.mxu0 0.0
        %3001 = vmatprep.subr.mxu0 0.0
        %3002 = vmatpush1.msra.mxu0 0.0
        %3003 = vmatprep.subr.mxu0 0.0
        %3004 = vmatpush1.msra.mxu0 0.0
        %3005 = vmatprep.subr.mxu0 0.0
        %3006 = vmatpush1.msra.mxu0 0.0
        %3007 = vmatprep.subr.mxu0 0.0
        %3008 = vmatpush1.msra.mxu0 0.0
        %3009 = vmatprep.subr.mxu0 0.0
        %3010 = vmatpush1.msra.mxu0 0.0
        %3011 = vmatprep.subr.mxu0 0.0
        %3012 = vmatpush1.msra.mxu0 0.0
        %3013 = vmatprep.subr.mxu0 0.0
        %3014 = vmatpush1.msra.mxu0 0.0
        %3015 = vmatprep.subr.mxu0 0.0
        %3016 = vmatpush1.msra.mxu0 0.0
        %3017 = vmatprep.subr.mxu0 0.0
        %3018 = vmatpush1.msra.mxu0 %v2978
        %3019 = vmatprep.subr.mxu0 0.0
        %3020 = vmatpush1.msra.mxu0 %v2977
        %3021 = vmatprep.subr.mxu0 0.0
        %3022 = vmatpush1.msra.mxu0 %v2976
        %3023 = vmatprep.subr.mxu0 0.0
        %3024 = vmatpush1.msra.mxu0 %v2975
        %3025 = vmatprep.subr.mxu0 0.0
        %3026 = vmatpush2.msra.mxu0 0.0
        %3027 = vmatprep.subr.mxu0 0.0
        %3028 = vmatpush2.msra.mxu0 0.0
        %3029 = vmatprep.subr.mxu0 0.0
        %3030 = vmatpush2.msra.mxu0 0.0
        %3031 = vmatprep.subr.mxu0 0.0
        %3032 = vmatpush2.msra.mxu0 0.0
        %3033 = vmatprep.subr.mxu0 0.0
        %3034 = vmatpush2.msra.mxu0 0.0
        %3035 = vmatprep.subr.mxu0 0.0
        %3036 = vmatpush2.msra.mxu0 0.0
        %3037 = vmatprep.subr.mxu0 0.0
        %3038 = vmatpush2.msra.mxu0 0.0
        %3039 = vmatprep.subr.mxu0 0.0
        %3040 = vmatpush2.msra.mxu0 0.0
        %3041 = vmatprep.subr.mxu0 0.0
        %3042 = vmatpush2.msra.mxu0 0.0
        %3043 = vmatprep.subr.mxu0 0.0
        %3044 = vmatpush2.msra.mxu0 0.0
        %3045 = vmatprep.subr.mxu0 0.0
        %3046 = vmatpush2.msra.mxu0 0.0
        %3047 = vmatprep.subr.mxu0 0.0
        %3048 = vmatpush2.msra.mxu0 0.0
        %3049 = vmatprep.subr.mxu0 0.0
        %3050 = vmatpush2.msra.mxu0 0.0
        %3051 = vmatprep.subr.mxu0 0.0
        %3052 = vmatpush2.msra.mxu0 0.0
        %3053 = vmatprep.subr.mxu0 0.0
        %3054 = vmatpush2.msra.mxu0 0.0
        %3055 = vmatprep.subr.mxu0 0.0
        %3056 = vmatpush2.msra.mxu0 0.0
        %3057 = vmatprep.mubr.f32.mxu0 0.0
        %3058 = vmatmul.mubr.f32.gmra.mxu0 %v2988
        %v3059 = vpop.f32.mrf.mxu0
        %v3060 = vadd.f32 %v2985, %v3059
        %v3061 = vpop.f32.mrf.mxu0
        %3062 = vmatprep.mubr.f32.mxu0 0.0
        %3063 = vmatmul.mubr.f32.gmra.mxu0 %v2991
        %v3064 = vpop.f32.mrf.mxu0
        %v3065 = vadd.f32 %v2985, %v3064
        %v3066 = vpop.f32.mrf.mxu0
        %3067 = vdwg.mxu0
        %v3068 = vmax.f32 %v3060, 0.0
        %v3069 = vmax.f32 %v3065, 0.0
        %v3070 = vsub.f32 0.0, %v3060
        %v3071 = vsub.f32 0.0, %v3065
        %v3072 = vmul.f32 %v3070, 1.442695
        %v3073 = vpow.pop %v3072
        %v3074 = vmul.f32 %v3071, 1.442695
        %v3075 = vpow.pop %v3074
        %v3076 = vadd.f32 %v3073, 1.0
        %v3077 = vadd.f32 %v3075, 1.0
        %v3078 = vrcp.pop %v3076
        %v3079 = vrcp.pop %v3077
        %3082 = vrot.lane.b32.xlu0 %v3078, 96
        %v3083 = vpop.permute.xlu0 %3082
        %3084 = vrot.lane.b32.xlu0 %v3079, 96
        %v3085 = vpop.permute.xlu0 %3084
        %v3088 = vmul.f32 %v3068, %v3083
        %v3089 = vmul.f32 %v3069, %v3085
        %v3090 = vsub.f32 1.0, %v3078
        %v3091 = vsub.f32 1.0, %v3079
        %3094 = vrot.lane.b32.xlu0 %v3090, 96
        %v3095 = vpop.permute.xlu0 %3094
        %3096 = vrot.lane.b32.xlu0 %v3091, 96
        %v3097 = vpop.permute.xlu0 %3096
        %v3100 = vmul.f32 %v2972, %v3095
        %v3101 = vmul.f32 %v2973, %v3097
        %v3102 = vadd.f32 %v3088, %v3100
        %v3103 = vadd.f32 %v3089, %v3101
        %v3104 = vlaneseq
        %v3105 = vshrl.u32 %v3104, 7
        %v3106 = vlaneseq
        %v3107 = vand.u32 %v3106, 127
        %vm3108 = vcmp.ge.s32.totalorder %v3107, 16
        %vm3109 = vcmp.eq.s32.totalorder %v3105, 1
        %vm3110 = vmxor %vm3108, %vm3109
        %vm3111 = vmxor %vm3110, 1
        %v3112 = vsel %vm3111, 1, 0
        %v3113 = vcvt.s32.f32 %v3112
        %v3114 = vld [vmem:[%s10] sm:$0xff]
        %v3115 = vld [vmem:[%s10 + $0x8] sm:$0xff]
        %v3116 = vld [vmem:[%s10 + $0x10] sm:$0xff]
        %v3117 = vld [vmem:[%s10 + $0x18] sm:$0xff]
        %v3118 = vld [vmem:[%s11] sm:$0x1]
        %v3120 = vlaneseq
        %v3121 = vshrl.u32 %v3120, 7
        %v3122 = vsub.s32 0, %v3121
        %v3123 = vrot.slane %v3118, %v3122
        %v3126 = vsel %vm468, %v3102, 0
        %v3129 = vsel %vm468, %v3103, 0
        %3131 = vmatprep.subr.mxu0 0.0
        %3132 = vmatpush1.msra.mxu0 0.0
        %3133 = vmatprep.subr.mxu0 0.0
        %3134 = vmatpush1.msra.mxu0 0.0
        %3135 = vmatprep.subr.mxu0 0.0
        %3136 = vmatpush1.msra.mxu0 0.0
        %3137 = vmatprep.subr.mxu0 0.0
        %3138 = vmatpush1.msra.mxu0 0.0
        %3139 = vmatprep.subr.mxu0 0.0
        %3140 = vmatpush1.msra.mxu0 0.0
        %3141 = vmatprep.subr.mxu0 0.0
        %3142 = vmatpush1.msra.mxu0 0.0
        %3143 = vmatprep.subr.mxu0 0.0
        %3144 = vmatpush1.msra.mxu0 0.0
        %3145 = vmatprep.subr.mxu0 0.0
        %3146 = vmatpush1.msra.mxu0 0.0
        %3147 = vmatprep.subr.mxu0 0.0
        %3148 = vmatpush1.msra.mxu0 0.0
        %3149 = vmatprep.subr.mxu0 0.0
        %3150 = vmatpush1.msra.mxu0 0.0
        %3151 = vmatprep.subr.mxu0 0.0
        %3152 = vmatpush1.msra.mxu0 0.0
        %3153 = vmatprep.subr.mxu0 0.0
        %3154 = vmatpush1.msra.mxu0 0.0
        %3155 = vmatprep.subr.mxu0 0.0
        %3156 = vmatpush1.msra.mxu0 %v3117
        %3157 = vmatprep.subr.mxu0 0.0
        %3158 = vmatpush1.msra.mxu0 %v3116
        %3159 = vmatprep.subr.mxu0 0.0
        %3160 = vmatpush1.msra.mxu0 %v3115
        %3161 = vmatprep.subr.mxu0 0.0
        %3162 = vmatpush1.msra.mxu0 %v3114
        %3163 = vmatprep.subr.mxu0 0.0
        %3164 = vmatpush2.msra.mxu0 0.0
        %3165 = vmatprep.subr.mxu0 0.0
        %3166 = vmatpush2.msra.mxu0 0.0
        %3167 = vmatprep.subr.mxu0 0.0
        %3168 = vmatpush2.msra.mxu0 0.0
        %3169 = vmatprep.subr.mxu0 0.0
        %3170 = vmatpush2.msra.mxu0 0.0
        %3171 = vmatprep.subr.mxu0 0.0
        %3172 = vmatpush2.msra.mxu0 0.0
        %3173 = vmatprep.subr.mxu0 0.0
        %3174 = vmatpush2.msra.mxu0 0.0
        %3175 = vmatprep.subr.mxu0 0.0
        %3176 = vmatpush2.msra.mxu0 0.0
        %3177 = vmatprep.subr.mxu0 0.0
        %3178 = vmatpush2.msra.mxu0 0.0
        %3179 = vmatprep.subr.mxu0 0.0
        %3180 = vmatpush2.msra.mxu0 0.0
        %3181 = vmatprep.subr.mxu0 0.0
        %3182 = vmatpush2.msra.mxu0 0.0
        %3183 = vmatprep.subr.mxu0 0.0
        %3184 = vmatpush2.msra.mxu0 0.0
        %3185 = vmatprep.subr.mxu0 0.0
        %3186 = vmatpush2.msra.mxu0 0.0
        %3187 = vmatprep.subr.mxu0 0.0
        %3188 = vmatpush2.msra.mxu0 0.0
        %3189 = vmatprep.subr.mxu0 0.0
        %3190 = vmatpush2.msra.mxu0 0.0
        %3191 = vmatprep.subr.mxu0 0.0
        %3192 = vmatpush2.msra.mxu0 0.0
        %3193 = vmatprep.subr.mxu0 0.0
        %3194 = vmatpush2.msra.mxu0 0.0
        %3195 = vmatprep.mubr.f32.mxu0 0.0
        %3196 = vmatmul.mubr.f32.gmra.mxu0 %v3126
        %v3197 = vpop.f32.mrf.mxu0
        %v3198 = vadd.f32 %v3123, %v3197
        %v3199 = vpop.f32.mrf.mxu0
        %3200 = vmatprep.mubr.f32.mxu0 0.0
        %3201 = vmatmul.mubr.f32.gmra.mxu0 %v3129
        %v3202 = vpop.f32.mrf.mxu0
        %v3203 = vadd.f32 %v3123, %v3202
        %v3204 = vpop.f32.mrf.mxu0
        %3205 = vdwg.mxu0
        %v3206 = vld [vmem:[%s12] sm:$0xff]
        %v3207 = vld [vmem:[%s12 + $0x8] sm:$0xff]
        %v3208 = vld [vmem:[%s12 + $0x10] sm:$0xff]
        %v3209 = vld [vmem:[%s12 + $0x18] sm:$0xff]
        %v3210 = vld [vmem:[%s13] sm:$0x3]
        %v3212 = vrot.slane %v3203, 6
        %3213 = vrot.lane.b32.xlu0 %v3212, 80
        %v3214 = vpop.permute.xlu0 %3213
        %v3216 = vsel %vm2037, %v3198, %v3214
        %v3217 = vmul.f32 %v3113, 0.0
        %v3219 = vsel %vm468, %v3217, 0
        %3221 = vmatprep.subr.mxu0 0.0
        %3222 = vmatpush1.msra.mxu0 0.0
        %3223 = vmatprep.subr.mxu0 0.0
        %3224 = vmatpush1.msra.mxu0 0.0
        %3225 = vmatprep.subr.mxu0 0.0
        %3226 = vmatpush1.msra.mxu0 0.0
        %3227 = vmatprep.subr.mxu0 0.0
        %3228 = vmatpush1.msra.mxu0 0.0
        %3229 = vmatprep.subr.mxu0 0.0
        %3230 = vmatpush1.msra.mxu0 0.0
        %3231 = vmatprep.subr.mxu0 0.0
        %3232 = vmatpush1.msra.mxu0 0.0
        %3233 = vmatprep.subr.mxu0 0.0
        %3234 = vmatpush1.msra.mxu0 0.0
        %3235 = vmatprep.subr.mxu0 0.0
        %3236 = vmatpush1.msra.mxu0 0.0
        %3237 = vmatprep.subr.mxu0 0.0
        %3238 = vmatpush1.msra.mxu0 0.0
        %3239 = vmatprep.subr.mxu0 0.0
        %3240 = vmatpush1.msra.mxu0 0.0
        %3241 = vmatprep.subr.mxu0 0.0
        %3242 = vmatpush1.msra.mxu0 0.0
        %3243 = vmatprep.subr.mxu0 0.0
        %3244 = vmatpush1.msra.mxu0 0.0
        %3245 = vmatprep.subr.mxu0 0.0
        %3246 = vmatpush1.msra.mxu0 %v3209
        %3247 = vmatprep.subr.mxu0 0.0
        %3248 = vmatpush1.msra.mxu0 %v3208
        %3249 = vmatprep.subr.mxu0 0.0
        %3250 = vmatpush1.msra.mxu0 %v3207
        %3251 = vmatprep.subr.mxu0 0.0
        %3252 = vmatpush1.msra.mxu0 %v3206
        %3253 = vmatprep.subr.mxu0 0.0
        %3254 = vmatpush2.msra.mxu0 0.0
        %3255 = vmatprep.subr.mxu0 0.0
        %3256 = vmatpush2.msra.mxu0 0.0
        %3257 = vmatprep.subr.mxu0 0.0
        %3258 = vmatpush2.msra.mxu0 0.0
        %3259 = vmatprep.subr.mxu0 0.0
        %3260 = vmatpush2.msra.mxu0 0.0
        %3261 = vmatprep.subr.mxu0 0.0
        %3262 = vmatpush2.msra.mxu0 0.0
        %3263 = vmatprep.subr.mxu0 0.0
        %3264 = vmatpush2.msra.mxu0 0.0
        %3265 = vmatprep.subr.mxu0 0.0
        %3266 = vmatpush2.msra.mxu0 0.0
        %3267 = vmatprep.subr.mxu0 0.0
        %3268 = vmatpush2.msra.mxu0 0.0
        %3269 = vmatprep.subr.mxu0 0.0
        %3270 = vmatpush2.msra.mxu0 0.0
        %3271 = vmatprep.subr.mxu0 0.0
        %3272 = vmatpush2.msra.mxu0 0.0
        %3273 = vmatprep.subr.mxu0 0.0
        %3274 = vmatpush2.msra.mxu0 0.0
        %3275 = vmatprep.subr.mxu0 0.0
        %3276 = vmatpush2.msra.mxu0 0.0
        %3277 = vmatprep.subr.mxu0 0.0
        %3278 = vmatpush2.msra.mxu0 0.0
        %3279 = vmatprep.subr.mxu0 0.0
        %3280 = vmatpush2.msra.mxu0 0.0
        %3281 = vmatprep.subr.mxu0 0.0
        %3282 = vmatpush2.msra.mxu0 0.0
        %3283 = vmatprep.subr.mxu0 0.0
        %3284 = vmatpush2.msra.mxu0 0.0
        %3285 = vmatprep.mubr.f32.mxu0 0.0
        %3286 = vmatmul.mubr.f32.gmra.mxu0 %v3219
        %v3287 = vpop.f32.mrf.mxu0
        %v3288 = vadd.f32 %v3210, %v3287
        %v3289 = vpop.f32.mrf.mxu0
        %3290 = vdwg.mxu0
        %v3291 = vadd.f32 %v3216, %v3288
        %v3292 = vsub.f32 0.0, %v3291
        %v3293 = vmul.f32 %v3292, 1.442695
        %v3294 = vpow.pop %v3293
        %v3295 = vadd.f32 %v3294, 1.0
        %v3296 = vrcp.pop %v3295
        %3298 = vrot.lane.b32.xlu0 %v3288, 96
        %v3299 = vpop.permute.xlu0 %3298
        %v3301 = vmul.f32 %v3296, %v3299
        %3303 = vrot.lane.b32.xlu0 %v3301, 32
        %v3304 = vpop.permute.xlu0 %3303
        %v3306 = vadd.f32 %v3216, %v3304
        %v3307 = vtanh.pop %v3306
        %v3308 = vsub.f32 1.0, %v3296
        %3310 = vrot.lane.b32.xlu0 %v3307, 112
        %v3311 = vpop.permute.xlu0 %3310
        %v3313 = vmul.f32 %v3308, %v3311
        %v3314 = vmul.f32 %v3296, 0.0
        %v3315 = vadd.f32 %v3313, %v3314
        %3317 = vrot.lane.b32.xlu0 %v3315, 112
        %v3318 = vpop.permute.xlu0 %3317
        %vm3320 = vcmask 122880
        %3321 = vst.msk [vmem:[#allocation5] sm:$0x1] %vm3320, %v3318
        %vm3322 = vcmask 123905
        %3323 = vst.msk [vmem:[#allocation6 + $0xe] sm:$0x2] %vm3322, %v3318
        %v3325 = vrot.slane %v3198, 1
        %v3327 = vrot.slane %v3203, 5
        %3328 = vrot.lane.b32.xlu0 %v3327, 80
        %v3329 = vpop.permute.xlu0 %3328
        %v3331 = vsel %vm2037, %v3325, %v3329
        %vm3332 = vcmask 130048
        %v3333 = vsel %vm3332, %v3318, %v3315
        %v3334 = vmul.f32 %v3333, %v3113
        %v3336 = vsel %vm468, %v3334, 0
        %3338 = vmatprep.subr.mxu0 0.0
        %3339 = vmatpush1.msra.mxu0 0.0
        %3340 = vmatprep.subr.mxu0 0.0
        %3341 = vmatpush1.msra.mxu0 0.0
        %3342 = vmatprep.subr.mxu0 0.0
        %3343 = vmatpush1.msra.mxu0 0.0
        %3344 = vmatprep.subr.mxu0 0.0
        %3345 = vmatpush1.msra.mxu0 0.0
        %3346 = vmatprep.subr.mxu0 0.0
        %3347 = vmatpush1.msra.mxu0 0.0
        %3348 = vmatprep.subr.mxu0 0.0
        %3349 = vmatpush1.msra.mxu0 0.0
        %3350 = vmatprep.subr.mxu0 0.0
        %3351 = vmatpush1.msra.mxu0 0.0
        %3352 = vmatprep.subr.mxu0 0.0
        %3353 = vmatpush1.msra.mxu0 0.0
        %3354 = vmatprep.subr.mxu0 0.0
        %3355 = vmatpush1.msra.mxu0 0.0
        %3356 = vmatprep.subr.mxu0 0.0
        %3357 = vmatpush1.msra.mxu0 0.0
        %3358 = vmatprep.subr.mxu0 0.0
        %3359 = vmatpush1.msra.mxu0 0.0
        %3360 = vmatprep.subr.mxu0 0.0
        %3361 = vmatpush1.msra.mxu0 0.0
        %3362 = vmatprep.subr.mxu0 0.0
        %3363 = vmatpush1.msra.mxu0 %v3209
        %3364 = vmatprep.subr.mxu0 0.0
        %3365 = vmatpush1.msra.mxu0 %v3208
        %3366 = vmatprep.subr.mxu0 0.0
        %3367 = vmatpush1.msra.mxu0 %v3207
        %3368 = vmatprep.subr.mxu0 0.0
        %3369 = vmatpush1.msra.mxu0 %v3206
        %3370 = vmatprep.subr.mxu0 0.0
        %3371 = vmatpush2.msra.mxu0 0.0
        %3372 = vmatprep.subr.mxu0 0.0
        %3373 = vmatpush2.msra.mxu0 0.0
        %3374 = vmatprep.subr.mxu0 0.0
        %3375 = vmatpush2.msra.mxu0 0.0
        %3376 = vmatprep.subr.mxu0 0.0
        %3377 = vmatpush2.msra.mxu0 0.0
        %3378 = vmatprep.subr.mxu0 0.0
        %3379 = vmatpush2.msra.mxu0 0.0
        %3380 = vmatprep.subr.mxu0 0.0
        %3381 = vmatpush2.msra.mxu0 0.0
        %3382 = vmatprep.subr.mxu0 0.0
        %3383 = vmatpush2.msra.mxu0 0.0
        %3384 = vmatprep.subr.mxu0 0.0
        %3385 = vmatpush2.msra.mxu0 0.0
        %3386 = vmatprep.subr.mxu0 0.0
        %3387 = vmatpush2.msra.mxu0 0.0
        %3388 = vmatprep.subr.mxu0 0.0
        %3389 = vmatpush2.msra.mxu0 0.0
        %3390 = vmatprep.subr.mxu0 0.0
        %3391 = vmatpush2.msra.mxu0 0.0
        %3392 = vmatprep.subr.mxu0 0.0
        %3393 = vmatpush2.msra.mxu0 0.0
        %3394 = vmatprep.subr.mxu0 0.0
        %3395 = vmatpush2.msra.mxu0 0.0
        %3396 = vmatprep.subr.mxu0 0.0
        %3397 = vmatpush2.msra.mxu0 0.0
        %3398 = vmatprep.subr.mxu0 0.0
        %3399 = vmatpush2.msra.mxu0 0.0
        %3400 = vmatprep.subr.mxu0 0.0
        %3401 = vmatpush2.msra.mxu0 0.0
        %3402 = vmatprep.mubr.f32.mxu0 0.0
        %3403 = vmatmul.mubr.f32.gmra.mxu0 %v3336
        %v3404 = vpop.f32.mrf.mxu0
        %v3405 = vadd.f32 %v3210, %v3404
        %v3406 = vpop.f32.mrf.mxu0
        %3407 = vdwg.mxu0
        %v3408 = vadd.f32 %v3331, %v3405
        %v3409 = vsub.f32 0.0, %v3408
        %v3410 = vmul.f32 %v3409, 1.442695
        %v3411 = vpow.pop %v3410
        %v3412 = vadd.f32 %v3411, 1.0
        %v3413 = vrcp.pop %v3412
        %3415 = vrot.lane.b32.xlu0 %v3405, 96
        %v3416 = vpop.permute.xlu0 %3415
        %v3418 = vmul.f32 %v3413, %v3416
        %3420 = vrot.lane.b32.xlu0 %v3418, 32
        %v3421 = vpop.permute.xlu0 %3420
        %v3423 = vadd.f32 %v3331, %v3421
        %v3424 = vtanh.pop %v3423
        %v3425 = vsub.f32 1.0, %v3413
        %3427 = vrot.lane.b32.xlu0 %v3424, 112
        %v3428 = vpop.permute.xlu0 %3427
        %v3430 = vmul.f32 %v3425, %v3428
        %v3431 = vmul.f32 %v3413, %v3315
        %v3432 = vadd.f32 %v3430, %v3431
        %3434 = vrot.lane.b32.xlu0 %v3432, 112
        %v3435 = vpop.permute.xlu0 %3434
        %3437 = vst.msk [vmem:[#allocation5 + $0x1] sm:$0x1] %vm3320, %v3435
        %3438 = vst.msk [vmem:[#allocation6 + $0xd] sm:$0x2] %vm3322, %v3435
        %v3439 = vrot.slane %v3198, 2
        %v3441 = vrot.slane %v3203, 4
        %3442 = vrot.lane.b32.xlu0 %v3441, 80
        %v3443 = vpop.permute.xlu0 %3442
        %v3445 = vsel %vm2037, %v3439, %v3443
        %v3446 = vsel %vm3332, %v3435, %v3432
        %v3447 = vmul.f32 %v3446, %v3113
        %v3449 = vsel %vm468, %v3447, 0
        %3451 = vmatprep.subr.mxu0 0.0
        %3452 = vmatpush1.msra.mxu0 0.0
        %3453 = vmatprep.subr.mxu0 0.0
        %3454 = vmatpush1.msra.mxu0 0.0
        %3455 = vmatprep.subr.mxu0 0.0
        %3456 = vmatpush1.msra.mxu0 0.0
        %3457 = vmatprep.subr.mxu0 0.0
        %3458 = vmatpush1.msra.mxu0 0.0
        %3459 = vmatprep.subr.mxu0 0.0
        %3460 = vmatpush1.msra.mxu0 0.0
        %3461 = vmatprep.subr.mxu0 0.0
        %3462 = vmatpush1.msra.mxu0 0.0
        %3463 = vmatprep.subr.mxu0 0.0
        %3464 = vmatpush1.msra.mxu0 0.0
        %3465 = vmatprep.subr.mxu0 0.0
        %3466 = vmatpush1.msra.mxu0 0.0
        %3467 = vmatprep.subr.mxu0 0.0
        %3468 = vmatpush1.msra.mxu0 0.0
        %3469 = vmatprep.subr.mxu0 0.0
        %3470 = vmatpush1.msra.mxu0 0.0
        %3471 = vmatprep.subr.mxu0 0.0
        %3472 = vmatpush1.msra.mxu0 0.0
        %3473 = vmatprep.subr.mxu0 0.0
        %3474 = vmatpush1.msra.mxu0 0.0
        %3475 = vmatprep.subr.mxu0 0.0
        %3476 = vmatpush1.msra.mxu0 %v3209
        %3477 = vmatprep.subr.mxu0 0.0
        %3478 = vmatpush1.msra.mxu0 %v3208
        %3479 = vmatprep.subr.mxu0 0.0
        %3480 = vmatpush1.msra.mxu0 %v3207
        %3481 = vmatprep.subr.mxu0 0.0
        %3482 = vmatpush1.msra.mxu0 %v3206
        %3483 = vmatprep.subr.mxu0 0.0
        %3484 = vmatpush2.msra.mxu0 0.0
        %3485 = vmatprep.subr.mxu0 0.0
        %3486 = vmatpush2.msra.mxu0 0.0
        %3487 = vmatprep.subr.mxu0 0.0
        %3488 = vmatpush2.msra.mxu0 0.0
        %3489 = vmatprep.subr.mxu0 0.0
        %3490 = vmatpush2.msra.mxu0 0.0
        %3491 = vmatprep.subr.mxu0 0.0
        %3492 = vmatpush2.msra.mxu0 0.0
        %3493 = vmatprep.subr.mxu0 0.0
        %3494 = vmatpush2.msra.mxu0 0.0
        %3495 = vmatprep.subr.mxu0 0.0
        %3496 = vmatpush2.msra.mxu0 0.0
        %3497 = vmatprep.subr.mxu0 0.0
        %3498 = vmatpush2.msra.mxu0 0.0
        %3499 = vmatprep.subr.mxu0 0.0
        %3500 = vmatpush2.msra.mxu0 0.0
        %3501 = vmatprep.subr.mxu0 0.0
        %3502 = vmatpush2.msra.mxu0 0.0
        %3503 = vmatprep.subr.mxu0 0.0
        %3504 = vmatpush2.msra.mxu0 0.0
        %3505 = vmatprep.subr.mxu0 0.0
        %3506 = vmatpush2.msra.mxu0 0.0
        %3507 = vmatprep.subr.mxu0 0.0
        %3508 = vmatpush2.msra.mxu0 0.0
        %3509 = vmatprep.subr.mxu0 0.0
        %3510 = vmatpush2.msra.mxu0 0.0
        %3511 = vmatprep.subr.mxu0 0.0
        %3512 = vmatpush2.msra.mxu0 0.0
        %3513 = vmatprep.subr.mxu0 0.0
        %3514 = vmatpush2.msra.mxu0 0.0
        %3515 = vmatprep.mubr.f32.mxu0 0.0
        %3516 = vmatmul.mubr.f32.gmra.mxu0 %v3449
        %v3517 = vpop.f32.mrf.mxu0
        %v3518 = vadd.f32 %v3210, %v3517
        %v3519 = vpop.f32.mrf.mxu0
        %3520 = vdwg.mxu0
        %v3521 = vadd.f32 %v3445, %v3518
        %v3522 = vsub.f32 0.0, %v3521
        %v3523 = vmul.f32 %v3522, 1.442695
        %v3524 = vpow.pop %v3523
        %v3525 = vadd.f32 %v3524, 1.0
        %v3526 = vrcp.pop %v3525
        %3528 = vrot.lane.b32.xlu0 %v3518, 96
        %v3529 = vpop.permute.xlu0 %3528
        %v3531 = vmul.f32 %v3526, %v3529
        %3533 = vrot.lane.b32.xlu0 %v3531, 32
        %v3534 = vpop.permute.xlu0 %3533
        %v3536 = vadd.f32 %v3445, %v3534
        %v3537 = vtanh.pop %v3536
        %v3538 = vsub.f32 1.0, %v3526
        %3540 = vrot.lane.b32.xlu0 %v3537, 112
        %v3541 = vpop.permute.xlu0 %3540
        %v3543 = vmul.f32 %v3538, %v3541
        %v3544 = vmul.f32 %v3526, %v3432
        %v3545 = vadd.f32 %v3543, %v3544
        %3547 = vrot.lane.b32.xlu0 %v3545, 112
        %v3548 = vpop.permute.xlu0 %3547
        %3550 = vst.msk [vmem:[#allocation5 + $0x2] sm:$0x1] %vm3320, %v3548
        %3551 = vst.msk [vmem:[#allocation6 + $0xc] sm:$0x2] %vm3322, %v3548
        %v3552 = vrot.slane %v3198, 3
        %v3554 = vrot.slane %v3203, 3
        %3555 = vrot.lane.b32.xlu0 %v3554, 80
        %v3556 = vpop.permute.xlu0 %3555
        %v3558 = vsel %vm2037, %v3552, %v3556
        %v3559 = vsel %vm3332, %v3548, %v3545
        %v3560 = vmul.f32 %v3559, %v3113
        %v3562 = vsel %vm468, %v3560, 0
        %3564 = vmatprep.subr.mxu0 0.0
        %3565 = vmatpush1.msra.mxu0 0.0
        %3566 = vmatprep.subr.mxu0 0.0
        %3567 = vmatpush1.msra.mxu0 0.0
        %3568 = vmatprep.subr.mxu0 0.0
        %3569 = vmatpush1.msra.mxu0 0.0
        %3570 = vmatprep.subr.mxu0 0.0
        %3571 = vmatpush1.msra.mxu0 0.0
        %3572 = vmatprep.subr.mxu0 0.0
        %3573 = vmatpush1.msra.mxu0 0.0
        %3574 = vmatprep.subr.mxu0 0.0
        %3575 = vmatpush1.msra.mxu0 0.0
        %3576 = vmatprep.subr.mxu0 0.0
        %3577 = vmatpush1.msra.mxu0 0.0
        %3578 = vmatprep.subr.mxu0 0.0
        %3579 = vmatpush1.msra.mxu0 0.0
        %3580 = vmatprep.subr.mxu0 0.0
        %3581 = vmatpush1.msra.mxu0 0.0
        %3582 = vmatprep.subr.mxu0 0.0
        %3583 = vmatpush1.msra.mxu0 0.0
        %3584 = vmatprep.subr.mxu0 0.0
        %3585 = vmatpush1.msra.mxu0 0.0
        %3586 = vmatprep.subr.mxu0 0.0
        %3587 = vmatpush1.msra.mxu0 0.0
        %3588 = vmatprep.subr.mxu0 0.0
        %3589 = vmatpush1.msra.mxu0 %v3209
        %3590 = vmatprep.subr.mxu0 0.0
        %3591 = vmatpush1.msra.mxu0 %v3208
        %3592 = vmatprep.subr.mxu0 0.0
        %3593 = vmatpush1.msra.mxu0 %v3207
        %3594 = vmatprep.subr.mxu0 0.0
        %3595 = vmatpush1.msra.mxu0 %v3206
        %3596 = vmatprep.subr.mxu0 0.0
        %3597 = vmatpush2.msra.mxu0 0.0
        %3598 = vmatprep.subr.mxu0 0.0
        %3599 = vmatpush2.msra.mxu0 0.0
        %3600 = vmatprep.subr.mxu0 0.0
        %3601 = vmatpush2.msra.mxu0 0.0
        %3602 = vmatprep.subr.mxu0 0.0
        %3603 = vmatpush2.msra.mxu0 0.0
        %3604 = vmatprep.subr.mxu0 0.0
        %3605 = vmatpush2.msra.mxu0 0.0
        %3606 = vmatprep.subr.mxu0 0.0
        %3607 = vmatpush2.msra.mxu0 0.0
        %3608 = vmatprep.subr.mxu0 0.0
        %3609 = vmatpush2.msra.mxu0 0.0
        %3610 = vmatprep.subr.mxu0 0.0
        %3611 = vmatpush2.msra.mxu0 0.0
        %3612 = vmatprep.subr.mxu0 0.0
        %3613 = vmatpush2.msra.mxu0 0.0
        %3614 = vmatprep.subr.mxu0 0.0
        %3615 = vmatpush2.msra.mxu0 0.0
        %3616 = vmatprep.subr.mxu0 0.0
        %3617 = vmatpush2.msra.mxu0 0.0
        %3618 = vmatprep.subr.mxu0 0.0
        %3619 = vmatpush2.msra.mxu0 0.0
        %3620 = vmatprep.subr.mxu0 0.0
        %3621 = vmatpush2.msra.mxu0 0.0
        %3622 = vmatprep.subr.mxu0 0.0
        %3623 = vmatpush2.msra.mxu0 0.0
        %3624 = vmatprep.subr.mxu0 0.0
        %3625 = vmatpush2.msra.mxu0 0.0
        %3626 = vmatprep.subr.mxu0 0.0
        %3627 = vmatpush2.msra.mxu0 0.0
        %3628 = vmatprep.mubr.f32.mxu0 0.0
        %3629 = vmatmul.mubr.f32.gmra.mxu0 %v3562
        %v3630 = vpop.f32.mrf.mxu0
        %v3631 = vadd.f32 %v3210, %v3630
        %v3632 = vpop.f32.mrf.mxu0
        %3633 = vdwg.mxu0
        %v3634 = vadd.f32 %v3558, %v3631
        %v3635 = vsub.f32 0.0, %v3634
        %v3636 = vmul.f32 %v3635, 1.442695
        %v3637 = vpow.pop %v3636
        %v3638 = vadd.f32 %v3637, 1.0
        %v3639 = vrcp.pop %v3638
        %3641 = vrot.lane.b32.xlu0 %v3631, 96
        %v3642 = vpop.permute.xlu0 %3641
        %v3644 = vmul.f32 %v3639, %v3642
        %3646 = vrot.lane.b32.xlu0 %v3644, 32
        %v3647 = vpop.permute.xlu0 %3646
        %v3649 = vadd.f32 %v3558, %v3647
        %v3650 = vtanh.pop %v3649
        %v3651 = vsub.f32 1.0, %v3639
        %3653 = vrot.lane.b32.xlu0 %v3650, 112
        %v3654 = vpop.permute.xlu0 %3653
        %v3656 = vmul.f32 %v3651, %v3654
        %v3657 = vmul.f32 %v3639, %v3545
        %v3658 = vadd.f32 %v3656, %v3657
        %3660 = vrot.lane.b32.xlu0 %v3658, 112
        %v3661 = vpop.permute.xlu0 %3660
        %3663 = vst.msk [vmem:[#allocation5 + $0x3] sm:$0x1] %vm3320, %v3661
        %3664 = vst.msk [vmem:[#allocation6 + $0xb] sm:$0x2] %vm3322, %v3661
        %v3665 = vrot.slane %v3198, 4
        %v3667 = vrot.slane %v3203, 2
        %3668 = vrot.lane.b32.xlu0 %v3667, 80
        %v3669 = vpop.permute.xlu0 %3668
        %v3671 = vsel %vm2037, %v3665, %v3669
        %v3672 = vsel %vm3332, %v3661, %v3658
        %v3673 = vmul.f32 %v3672, %v3113
        %v3675 = vsel %vm468, %v3673, 0
        %3677 = vmatprep.subr.mxu0 0.0
        %3678 = vmatpush1.msra.mxu0 0.0
        %3679 = vmatprep.subr.mxu0 0.0
        %3680 = vmatpush1.msra.mxu0 0.0
        %3681 = vmatprep.subr.mxu0 0.0
        %3682 = vmatpush1.msra.mxu0 0.0
        %3683 = vmatprep.subr.mxu0 0.0
        %3684 = vmatpush1.msra.mxu0 0.0
        %3685 = vmatprep.subr.mxu0 0.0
        %3686 = vmatpush1.msra.mxu0 0.0
        %3687 = vmatprep.subr.mxu0 0.0
        %3688 = vmatpush1.msra.mxu0 0.0
        %3689 = vmatprep.subr.mxu0 0.0
        %3690 = vmatpush1.msra.mxu0 0.0
        %3691 = vmatprep.subr.mxu0 0.0
        %3692 = vmatpush1.msra.mxu0 0.0
        %3693 = vmatprep.subr.mxu0 0.0
        %3694 = vmatpush1.msra.mxu0 0.0
        %3695 = vmatprep.subr.mxu0 0.0
        %3696 = vmatpush1.msra.mxu0 0.0
        %3697 = vmatprep.subr.mxu0 0.0
        %3698 = vmatpush1.msra.mxu0 0.0
        %3699 = vmatprep.subr.mxu0 0.0
        %3700 = vmatpush1.msra.mxu0 0.0
        %3701 = vmatprep.subr.mxu0 0.0
        %3702 = vmatpush1.msra.mxu0 %v3209
        %3703 = vmatprep.subr.mxu0 0.0
        %3704 = vmatpush1.msra.mxu0 %v3208
        %3705 = vmatprep.subr.mxu0 0.0
        %3706 = vmatpush1.msra.mxu0 %v3207
        %3707 = vmatprep.subr.mxu0 0.0
        %3708 = vmatpush1.msra.mxu0 %v3206
        %3709 = vmatprep.subr.mxu0 0.0
        %3710 = vmatpush2.msra.mxu0 0.0
        %3711 = vmatprep.subr.mxu0 0.0
        %3712 = vmatpush2.msra.mxu0 0.0
        %3713 = vmatprep.subr.mxu0 0.0
        %3714 = vmatpush2.msra.mxu0 0.0
        %3715 = vmatprep.subr.mxu0 0.0
        %3716 = vmatpush2.msra.mxu0 0.0
        %3717 = vmatprep.subr.mxu0 0.0
        %3718 = vmatpush2.msra.mxu0 0.0
        %3719 = vmatprep.subr.mxu0 0.0
        %3720 = vmatpush2.msra.mxu0 0.0
        %3721 = vmatprep.subr.mxu0 0.0
        %3722 = vmatpush2.msra.mxu0 0.0
        %3723 = vmatprep.subr.mxu0 0.0
        %3724 = vmatpush2.msra.mxu0 0.0
        %3725 = vmatprep.subr.mxu0 0.0
        %3726 = vmatpush2.msra.mxu0 0.0
        %3727 = vmatprep.subr.mxu0 0.0
        %3728 = vmatpush2.msra.mxu0 0.0
        %3729 = vmatprep.subr.mxu0 0.0
        %3730 = vmatpush2.msra.mxu0 0.0
        %3731 = vmatprep.subr.mxu0 0.0
        %3732 = vmatpush2.msra.mxu0 0.0
        %3733 = vmatprep.subr.mxu0 0.0
        %3734 = vmatpush2.msra.mxu0 0.0
        %3735 = vmatprep.subr.mxu0 0.0
        %3736 = vmatpush2.msra.mxu0 0.0
        %3737 = vmatprep.subr.mxu0 0.0
        %3738 = vmatpush2.msra.mxu0 0.0
        %3739 = vmatprep.subr.mxu0 0.0
        %3740 = vmatpush2.msra.mxu0 0.0
        %3741 = vmatprep.mubr.f32.mxu0 0.0
        %3742 = vmatmul.mubr.f32.gmra.mxu0 %v3675
        %v3743 = vpop.f32.mrf.mxu0
        %v3744 = vadd.f32 %v3210, %v3743
        %v3745 = vpop.f32.mrf.mxu0
        %3746 = vdwg.mxu0
        %v3747 = vadd.f32 %v3671, %v3744
        %v3748 = vsub.f32 0.0, %v3747
        %v3749 = vmul.f32 %v3748, 1.442695
        %v3750 = vpow.pop %v3749
        %v3751 = vadd.f32 %v3750, 1.0
        %v3752 = vrcp.pop %v3751
        %3754 = vrot.lane.b32.xlu0 %v3744, 96
        %v3755 = vpop.permute.xlu0 %3754
        %v3757 = vmul.f32 %v3752, %v3755
        %3759 = vrot.lane.b32.xlu0 %v3757, 32
        %v3760 = vpop.permute.xlu0 %3759
        %v3762 = vadd.f32 %v3671, %v3760
        %v3763 = vtanh.pop %v3762
        %v3764 = vsub.f32 1.0, %v3752
        %3766 = vrot.lane.b32.xlu0 %v3763, 112
        %v3767 = vpop.permute.xlu0 %3766
        %v3769 = vmul.f32 %v3764, %v3767
        %v3770 = vmul.f32 %v3752, %v3658
        %v3771 = vadd.f32 %v3769, %v3770
        %3773 = vrot.lane.b32.xlu0 %v3771, 112
        %v3774 = vpop.permute.xlu0 %3773
        %3776 = vst.msk [vmem:[#allocation5 + $0x4] sm:$0x1] %vm3320, %v3774
        %3777 = vst.msk [vmem:[#allocation6 + $0xa] sm:$0x2] %vm3322, %v3774
        %v3778 = vrot.slane %v3198, 5
        %v3780 = vrot.slane %v3203, 1
        %3781 = vrot.lane.b32.xlu0 %v3780, 80
        %v3782 = vpop.permute.xlu0 %3781
        %v3784 = vsel %vm2037, %v3778, %v3782
        %v3785 = vsel %vm3332, %v3774, %v3771
        %v3786 = vmul.f32 %v3785, %v3113
        %v3788 = vsel %vm468, %v3786, 0
        %3790 = vmatprep.subr.mxu0 0.0
        %3791 = vmatpush1.msra.mxu0 0.0
        %3792 = vmatprep.subr.mxu0 0.0
        %3793 = vmatpush1.msra.mxu0 0.0
        %3794 = vmatprep.subr.mxu0 0.0
        %3795 = vmatpush1.msra.mxu0 0.0
        %3796 = vmatprep.subr.mxu0 0.0
        %3797 = vmatpush1.msra.mxu0 0.0
        %3798 = vmatprep.subr.mxu0 0.0
        %3799 = vmatpush1.msra.mxu0 0.0
        %3800 = vmatprep.subr.mxu0 0.0
        %3801 = vmatpush1.msra.mxu0 0.0
        %3802 = vmatprep.subr.mxu0 0.0
        %3803 = vmatpush1.msra.mxu0 0.0
        %3804 = vmatprep.subr.mxu0 0.0
        %3805 = vmatpush1.msra.mxu0 0.0
        %3806 = vmatprep.subr.mxu0 0.0
        %3807 = vmatpush1.msra.mxu0 0.0
        %3808 = vmatprep.subr.mxu0 0.0
        %3809 = vmatpush1.msra.mxu0 0.0
        %3810 = vmatprep.subr.mxu0 0.0
        %3811 = vmatpush1.msra.mxu0 0.0
        %3812 = vmatprep.subr.mxu0 0.0
        %3813 = vmatpush1.msra.mxu0 0.0
        %3814 = vmatprep.subr.mxu0 0.0
        %3815 = vmatpush1.msra.mxu0 %v3209
        %3816 = vmatprep.subr.mxu0 0.0
        %3817 = vmatpush1.msra.mxu0 %v3208
        %3818 = vmatprep.subr.mxu0 0.0
        %3819 = vmatpush1.msra.mxu0 %v3207
        %3820 = vmatprep.subr.mxu0 0.0
        %3821 = vmatpush1.msra.mxu0 %v3206
        %3822 = vmatprep.subr.mxu0 0.0
        %3823 = vmatpush2.msra.mxu0 0.0
        %3824 = vmatprep.subr.mxu0 0.0
        %3825 = vmatpush2.msra.mxu0 0.0
        %3826 = vmatprep.subr.mxu0 0.0
        %3827 = vmatpush2.msra.mxu0 0.0
        %3828 = vmatprep.subr.mxu0 0.0
        %3829 = vmatpush2.msra.mxu0 0.0
        %3830 = vmatprep.subr.mxu0 0.0
        %3831 = vmatpush2.msra.mxu0 0.0
        %3832 = vmatprep.subr.mxu0 0.0
        %3833 = vmatpush2.msra.mxu0 0.0
        %3834 = vmatprep.subr.mxu0 0.0
        %3835 = vmatpush2.msra.mxu0 0.0
        %3836 = vmatprep.subr.mxu0 0.0
        %3837 = vmatpush2.msra.mxu0 0.0
        %3838 = vmatprep.subr.mxu0 0.0
        %3839 = vmatpush2.msra.mxu0 0.0
        %3840 = vmatprep.subr.mxu0 0.0
        %3841 = vmatpush2.msra.mxu0 0.0
        %3842 = vmatprep.subr.mxu0 0.0
        %3843 = vmatpush2.msra.mxu0 0.0
        %3844 = vmatprep.subr.mxu0 0.0
        %3845 = vmatpush2.msra.mxu0 0.0
        %3846 = vmatprep.subr.mxu0 0.0
        %3847 = vmatpush2.msra.mxu0 0.0
        %3848 = vmatprep.subr.mxu0 0.0
        %3849 = vmatpush2.msra.mxu0 0.0
        %3850 = vmatprep.subr.mxu0 0.0
        %3851 = vmatpush2.msra.mxu0 0.0
        %3852 = vmatprep.subr.mxu0 0.0
        %3853 = vmatpush2.msra.mxu0 0.0
        %3854 = vmatprep.mubr.f32.mxu0 0.0
        %3855 = vmatmul.mubr.f32.gmra.mxu0 %v3788
        %v3856 = vpop.f32.mrf.mxu0
        %v3857 = vadd.f32 %v3210, %v3856
        %v3858 = vpop.f32.mrf.mxu0
        %3859 = vdwg.mxu0
        %v3860 = vadd.f32 %v3784, %v3857
        %v3861 = vsub.f32 0.0, %v3860
        %v3862 = vmul.f32 %v3861, 1.442695
        %v3863 = vpow.pop %v3862
        %v3864 = vadd.f32 %v3863, 1.0
        %v3865 = vrcp.pop %v3864
        %3867 = vrot.lane.b32.xlu0 %v3857, 96
        %v3868 = vpop.permute.xlu0 %3867
        %v3870 = vmul.f32 %v3865, %v3868
        %3872 = vrot.lane.b32.xlu0 %v3870, 32
        %v3873 = vpop.permute.xlu0 %3872
        %v3875 = vadd.f32 %v3784, %v3873
        %v3876 = vtanh.pop %v3875
        %v3877 = vsub.f32 1.0, %v3865
        %3879 = vrot.lane.b32.xlu0 %v3876, 112
        %v3880 = vpop.permute.xlu0 %3879
        %v3882 = vmul.f32 %v3877, %v3880
        %v3883 = vmul.f32 %v3865, %v3771
        %v3884 = vadd.f32 %v3882, %v3883
        %3886 = vrot.lane.b32.xlu0 %v3884, 112
        %v3887 = vpop.permute.xlu0 %3886
        %3889 = vst.msk [vmem:[#allocation5 + $0x5] sm:$0x1] %vm3320, %v3887
        %3890 = vst.msk [vmem:[#allocation6 + $0x9] sm:$0x2] %vm3322, %v3887
        %v3891 = vrot.slane %v3198, 6
        %3893 = vrot.lane.b32.xlu0 %v3203, 80
        %v3894 = vpop.permute.xlu0 %3893
        %v3896 = vsel %vm2037, %v3891, %v3894
        %v3897 = vsel %vm3332, %v3887, %v3884
        %v3898 = vmul.f32 %v3897, %v3113
        %v3900 = vsel %vm468, %v3898, 0
        %3902 = vmatprep.subr.mxu0 0.0
        %3903 = vmatpush1.msra.mxu0 0.0
        %3904 = vmatprep.subr.mxu0 0.0
        %3905 = vmatpush1.msra.mxu0 0.0
        %3906 = vmatprep.subr.mxu0 0.0
        %3907 = vmatpush1.msra.mxu0 0.0
        %3908 = vmatprep.subr.mxu0 0.0
        %3909 = vmatpush1.msra.mxu0 0.0
        %3910 = vmatprep.subr.mxu0 0.0
        %3911 = vmatpush1.msra.mxu0 0.0
        %3912 = vmatprep.subr.mxu0 0.0
        %3913 = vmatpush1.msra.mxu0 0.0
        %3914 = vmatprep.subr.mxu0 0.0
        %3915 = vmatpush1.msra.mxu0 0.0
        %3916 = vmatprep.subr.mxu0 0.0
        %3917 = vmatpush1.msra.mxu0 0.0
        %3918 = vmatprep.subr.mxu0 0.0
        %3919 = vmatpush1.msra.mxu0 0.0
        %3920 = vmatprep.subr.mxu0 0.0
        %3921 = vmatpush1.msra.mxu0 0.0
        %3922 = vmatprep.subr.mxu0 0.0
        %3923 = vmatpush1.msra.mxu0 0.0
        %3924 = vmatprep.subr.mxu0 0.0
        %3925 = vmatpush1.msra.mxu0 0.0
        %3926 = vmatprep.subr.mxu0 0.0
        %3927 = vmatpush1.msra.mxu0 %v3209
        %3928 = vmatprep.subr.mxu0 0.0
        %3929 = vmatpush1.msra.mxu0 %v3208
        %3930 = vmatprep.subr.mxu0 0.0
        %3931 = vmatpush1.msra.mxu0 %v3207
        %3932 = vmatprep.subr.mxu0 0.0
        %3933 = vmatpush1.msra.mxu0 %v3206
        %3934 = vmatprep.subr.mxu0 0.0
        %3935 = vmatpush2.msra.mxu0 0.0
        %3936 = vmatprep.subr.mxu0 0.0
        %3937 = vmatpush2.msra.mxu0 0.0
        %3938 = vmatprep.subr.mxu0 0.0
        %3939 = vmatpush2.msra.mxu0 0.0
        %3940 = vmatprep.subr.mxu0 0.0
        %3941 = vmatpush2.msra.mxu0 0.0
        %3942 = vmatprep.subr.mxu0 0.0
        %3943 = vmatpush2.msra.mxu0 0.0
        %3944 = vmatprep.subr.mxu0 0.0
        %3945 = vmatpush2.msra.mxu0 0.0
        %3946 = vmatprep.subr.mxu0 0.0
        %3947 = vmatpush2.msra.mxu0 0.0
        %3948 = vmatprep.subr.mxu0 0.0
        %3949 = vmatpush2.msra.mxu0 0.0
        %3950 = vmatprep.subr.mxu0 0.0
        %3951 = vmatpush2.msra.mxu0 0.0
        %3952 = vmatprep.subr.mxu0 0.0
        %3953 = vmatpush2.msra.mxu0 0.0
        %3954 = vmatprep.subr.mxu0 0.0
        %3955 = vmatpush2.msra.mxu0 0.0
        %3956 = vmatprep.subr.mxu0 0.0
        %3957 = vmatpush2.msra.mxu0 0.0
        %3958 = vmatprep.subr.mxu0 0.0
        %3959 = vmatpush2.msra.mxu0 0.0
        %3960 = vmatprep.subr.mxu0 0.0
        %3961 = vmatpush2.msra.mxu0 0.0
        %3962 = vmatprep.subr.mxu0 0.0
        %3963 = vmatpush2.msra.mxu0 0.0
        %3964 = vmatprep.subr.mxu0 0.0
        %3965 = vmatpush2.msra.mxu0 0.0
        %3966 = vmatprep.mubr.f32.mxu0 0.0
        %3967 = vmatmul.mubr.f32.gmra.mxu0 %v3900
        %v3968 = vpop.f32.mrf.mxu0
        %v3969 = vadd.f32 %v3210, %v3968
        %v3970 = vpop.f32.mrf.mxu0
        %3971 = vdwg.mxu0
        %v3972 = vadd.f32 %v3896, %v3969
        %v3973 = vsub.f32 0.0, %v3972
        %v3974 = vmul.f32 %v3973, 1.442695
        %v3975 = vpow.pop %v3974
        %v3976 = vadd.f32 %v3975, 1.0
        %v3977 = vrcp.pop %v3976
        %3979 = vrot.lane.b32.xlu0 %v3969, 96
        %v3980 = vpop.permute.xlu0 %3979
        %v3982 = vmul.f32 %v3977, %v3980
        %3984 = vrot.lane.b32.xlu0 %v3982, 32
        %v3985 = vpop.permute.xlu0 %3984
        %v3987 = vadd.f32 %v3896, %v3985
        %v3988 = vtanh.pop %v3987
        %v3989 = vsub.f32 1.0, %v3977
        %3991 = vrot.lane.b32.xlu0 %v3988, 112
        %v3992 = vpop.permute.xlu0 %3991
        %v3994 = vmul.f32 %v3989, %v3992
        %v3995 = vmul.f32 %v3977, %v3884
        %v3996 = vadd.f32 %v3994, %v3995
        %3998 = vrot.lane.b32.xlu0 %v3996, 112
        %v3999 = vpop.permute.xlu0 %3998
        %4001 = vst.msk [vmem:[#allocation5 + $0x6] sm:$0x1] %vm3320, %v3999
        %4002 = vst.msk [vmem:[#allocation6 + $0x8] sm:$0x2] %vm3322, %v3999
        %v4003 = vrot.slane %v3198, 7
        %v4005 = vrot.slane %v3203, 7
        %4006 = vrot.lane.b32.xlu0 %v4005, 80
        %v4007 = vpop.permute.xlu0 %4006
        %v4009 = vsel %vm2037, %v4003, %v4007
        %v4010 = vsel %vm3332, %v3999, %v3996
        %v4011 = vmul.f32 %v4010, %v3113
        %v4013 = vsel %vm468, %v4011, 0
        %4015 = vmatprep.subr.mxu0 0.0
        %4016 = vmatpush1.msra.mxu0 0.0
        %4017 = vmatprep.subr.mxu0 0.0
        %4018 = vmatpush1.msra.mxu0 0.0
        %4019 = vmatprep.subr.mxu0 0.0
        %4020 = vmatpush1.msra.mxu0 0.0
        %4021 = vmatprep.subr.mxu0 0.0
        %4022 = vmatpush1.msra.mxu0 0.0
        %4023 = vmatprep.subr.mxu0 0.0
        %4024 = vmatpush1.msra.mxu0 0.0
        %4025 = vmatprep.subr.mxu0 0.0
        %4026 = vmatpush1.msra.mxu0 0.0
        %4027 = vmatprep.subr.mxu0 0.0
        %4028 = vmatpush1.msra.mxu0 0.0
        %4029 = vmatprep.subr.mxu0 0.0
        %4030 = vmatpush1.msra.mxu0 0.0
        %4031 = vmatprep.subr.mxu0 0.0
        %4032 = vmatpush1.msra.mxu0 0.0
        %4033 = vmatprep.subr.mxu0 0.0
        %4034 = vmatpush1.msra.mxu0 0.0
        %4035 = vmatprep.subr.mxu0 0.0
        %4036 = vmatpush1.msra.mxu0 0.0
        %4037 = vmatprep.subr.mxu0 0.0
        %4038 = vmatpush1.msra.mxu0 0.0
        %4039 = vmatprep.subr.mxu0 0.0
        %4040 = vmatpush1.msra.mxu0 %v3209
        %4041 = vmatprep.subr.mxu0 0.0
        %4042 = vmatpush1.msra.mxu0 %v3208
        %4043 = vmatprep.subr.mxu0 0.0
        %4044 = vmatpush1.msra.mxu0 %v3207
        %4045 = vmatprep.subr.mxu0 0.0
        %4046 = vmatpush1.msra.mxu0 %v3206
        %4047 = vmatprep.subr.mxu0 0.0
        %4048 = vmatpush2.msra.mxu0 0.0
        %4049 = vmatprep.subr.mxu0 0.0
        %4050 = vmatpush2.msra.mxu0 0.0
        %4051 = vmatprep.subr.mxu0 0.0
        %4052 = vmatpush2.msra.mxu0 0.0
        %4053 = vmatprep.subr.mxu0 0.0
        %4054 = vmatpush2.msra.mxu0 0.0
        %4055 = vmatprep.subr.mxu0 0.0
        %4056 = vmatpush2.msra.mxu0 0.0
        %4057 = vmatprep.subr.mxu0 0.0
        %4058 = vmatpush2.msra.mxu0 0.0
        %4059 = vmatprep.subr.mxu0 0.0
        %4060 = vmatpush2.msra.mxu0 0.0
        %4061 = vmatprep.subr.mxu0 0.0
        %4062 = vmatpush2.msra.mxu0 0.0
        %4063 = vmatprep.subr.mxu0 0.0
        %4064 = vmatpush2.msra.mxu0 0.0
        %4065 = vmatprep.subr.mxu0 0.0
        %4066 = vmatpush2.msra.mxu0 0.0
        %4067 = vmatprep.subr.mxu0 0.0
        %4068 = vmatpush2.msra.mxu0 0.0
        %4069 = vmatprep.subr.mxu0 0.0
        %4070 = vmatpush2.msra.mxu0 0.0
        %4071 = vmatprep.subr.mxu0 0.0
        %4072 = vmatpush2.msra.mxu0 0.0
        %4073 = vmatprep.subr.mxu0 0.0
        %4074 = vmatpush2.msra.mxu0 0.0
        %4075 = vmatprep.subr.mxu0 0.0
        %4076 = vmatpush2.msra.mxu0 0.0
        %4077 = vmatprep.subr.mxu0 0.0
        %4078 = vmatpush2.msra.mxu0 0.0
        %4079 = vmatprep.mubr.f32.mxu0 0.0
        %4080 = vmatmul.mubr.f32.gmra.mxu0 %v4013
        %v4081 = vpop.f32.mrf.mxu0
        %v4082 = vadd.f32 %v3210, %v4081
        %v4083 = vpop.f32.mrf.mxu0
        %4084 = vdwg.mxu0
        %v4085 = vadd.f32 %v4009, %v4082
        %v4086 = vsub.f32 0.0, %v4085
        %v4087 = vmul.f32 %v4086, 1.442695
        %v4088 = vpow.pop %v4087
        %v4089 = vadd.f32 %v4088, 1.0
        %v4090 = vrcp.pop %v4089
        %4092 = vrot.lane.b32.xlu0 %v4082, 96
        %v4093 = vpop.permute.xlu0 %4092
        %v4095 = vmul.f32 %v4090, %v4093
        %4097 = vrot.lane.b32.xlu0 %v4095, 32
        %v4098 = vpop.permute.xlu0 %4097
        %v4100 = vadd.f32 %v4009, %v4098
        %v4101 = vtanh.pop %v4100
        %v4102 = vsub.f32 1.0, %v4090
        %4104 = vrot.lane.b32.xlu0 %v4101, 112
        %v4105 = vpop.permute.xlu0 %4104
        %v4107 = vmul.f32 %v4102, %v4105
        %v4108 = vmul.f32 %v4090, %v3996
        %v4109 = vadd.f32 %v4107, %v4108
        %4111 = vrot.lane.b32.xlu0 %v4109, 112
        %v4112 = vpop.permute.xlu0 %4111
        %4114 = vst.msk [vmem:[#allocation5 + $0x7] sm:$0x1] %vm3320, %v4112
        %4115 = vst.msk [vmem:[#allocation6 + $0x7] sm:$0x2] %vm3322, %v4112
        %4116 = vrot.lane.b32.xlu0 %v3891, 80
        %v4117 = vpop.permute.xlu0 %4116
        %v4119 = vsel %vm2037, %v3203, %v4117
        %v4120 = vsel %vm3332, %v4112, %v4109
        %v4121 = vmul.f32 %v4120, %v3113
        %v4123 = vsel %vm468, %v4121, 0
        %4125 = vmatprep.subr.mxu0 0.0
        %4126 = vmatpush1.msra.mxu0 0.0
        %4127 = vmatprep.subr.mxu0 0.0
        %4128 = vmatpush1.msra.mxu0 0.0
        %4129 = vmatprep.subr.mxu0 0.0
        %4130 = vmatpush1.msra.mxu0 0.0
        %4131 = vmatprep.subr.mxu0 0.0
        %4132 = vmatpush1.msra.mxu0 0.0
        %4133 = vmatprep.subr.mxu0 0.0
        %4134 = vmatpush1.msra.mxu0 0.0
        %4135 = vmatprep.subr.mxu0 0.0
        %4136 = vmatpush1.msra.mxu0 0.0
        %4137 = vmatprep.subr.mxu0 0.0
        %4138 = vmatpush1.msra.mxu0 0.0
        %4139 = vmatprep.subr.mxu0 0.0
        %4140 = vmatpush1.msra.mxu0 0.0
        %4141 = vmatprep.subr.mxu0 0.0
        %4142 = vmatpush1.msra.mxu0 0.0
        %4143 = vmatprep.subr.mxu0 0.0
        %4144 = vmatpush1.msra.mxu0 0.0
        %4145 = vmatprep.subr.mxu0 0.0
        %4146 = vmatpush1.msra.mxu0 0.0
        %4147 = vmatprep.subr.mxu0 0.0
        %4148 = vmatpush1.msra.mxu0 0.0
        %4149 = vmatprep.subr.mxu0 0.0
        %4150 = vmatpush1.msra.mxu0 %v3209
        %4151 = vmatprep.subr.mxu0 0.0
        %4152 = vmatpush1.msra.mxu0 %v3208
        %4153 = vmatprep.subr.mxu0 0.0
        %4154 = vmatpush1.msra.mxu0 %v3207
        %4155 = vmatprep.subr.mxu0 0.0
        %4156 = vmatpush1.msra.mxu0 %v3206
        %4157 = vmatprep.subr.mxu0 0.0
        %4158 = vmatpush2.msra.mxu0 0.0
        %4159 = vmatprep.subr.mxu0 0.0
        %4160 = vmatpush2.msra.mxu0 0.0
        %4161 = vmatprep.subr.mxu0 0.0
        %4162 = vmatpush2.msra.mxu0 0.0
        %4163 = vmatprep.subr.mxu0 0.0
        %4164 = vmatpush2.msra.mxu0 0.0
        %4165 = vmatprep.subr.mxu0 0.0
        %4166 = vmatpush2.msra.mxu0 0.0
        %4167 = vmatprep.subr.mxu0 0.0
        %4168 = vmatpush2.msra.mxu0 0.0
        %4169 = vmatprep.subr.mxu0 0.0
        %4170 = vmatpush2.msra.mxu0 0.0
        %4171 = vmatprep.subr.mxu0 0.0
        %4172 = vmatpush2.msra.mxu0 0.0
        %4173 = vmatprep.subr.mxu0 0.0
        %4174 = vmatpush2.msra.mxu0 0.0
        %4175 = vmatprep.subr.mxu0 0.0
        %4176 = vmatpush2.msra.mxu0 0.0
        %4177 = vmatprep.subr.mxu0 0.0
        %4178 = vmatpush2.msra.mxu0 0.0
        %4179 = vmatprep.subr.mxu0 0.0
        %4180 = vmatpush2.msra.mxu0 0.0
        %4181 = vmatprep.subr.mxu0 0.0
        %4182 = vmatpush2.msra.mxu0 0.0
        %4183 = vmatprep.subr.mxu0 0.0
        %4184 = vmatpush2.msra.mxu0 0.0
        %4185 = vmatprep.subr.mxu0 0.0
        %4186 = vmatpush2.msra.mxu0 0.0
        %4187 = vmatprep.subr.mxu0 0.0
        %4188 = vmatpush2.msra.mxu0 0.0
        %4189 = vmatprep.mubr.f32.mxu0 0.0
        %4190 = vmatmul.mubr.f32.gmra.mxu0 %v4123
        %v4191 = vpop.f32.mrf.mxu0
        %v4192 = vadd.f32 %v3210, %v4191
        %v4193 = vpop.f32.mrf.mxu0
        %4194 = vdwg.mxu0
        %v4195 = vadd.f32 %v4119, %v4192
        %v4196 = vsub.f32 0.0, %v4195
        %v4197 = vmul.f32 %v4196, 1.442695
        %v4198 = vpow.pop %v4197
        %v4199 = vadd.f32 %v4198, 1.0
        %v4200 = vrcp.pop %v4199
        %4202 = vrot.lane.b32.xlu0 %v4192, 96
        %v4203 = vpop.permute.xlu0 %4202
        %v4205 = vmul.f32 %v4200, %v4203
        %4207 = vrot.lane.b32.xlu0 %v4205, 32
        %v4208 = vpop.permute.xlu0 %4207
        %v4210 = vadd.f32 %v4119, %v4208
        %v4211 = vtanh.pop %v4210
        %v4212 = vsub.f32 1.0, %v4200
        %4214 = vrot.lane.b32.xlu0 %v4211, 112
        %v4215 = vpop.permute.xlu0 %4214
        %v4217 = vmul.f32 %v4212, %v4215
        %v4218 = vmul.f32 %v4200, %v4109
        %v4219 = vadd.f32 %v4217, %v4218
        %4221 = vrot.lane.b32.xlu0 %v4219, 112
        %v4222 = vpop.permute.xlu0 %4221
        %4224 = vst.msk [vmem:[#allocation5 + $0x8] sm:$0x1] %vm3320, %v4222
        %4225 = vst.msk [vmem:[#allocation6 + $0x6] sm:$0x2] %vm3322, %v4222
        %4227 = vrot.lane.b32.xlu0 %v3778, 80
        %v4228 = vpop.permute.xlu0 %4227
        %v4230 = vsel %vm2037, %v3780, %v4228
        %v4231 = vsel %vm3332, %v4222, %v4219
        %v4232 = vmul.f32 %v4231, %v3113
        %v4234 = vsel %vm468, %v4232, 0
        %4236 = vmatprep.subr.mxu0 0.0
        %4237 = vmatpush1.msra.mxu0 0.0
        %4238 = vmatprep.subr.mxu0 0.0
        %4239 = vmatpush1.msra.mxu0 0.0
        %4240 = vmatprep.subr.mxu0 0.0
        %4241 = vmatpush1.msra.mxu0 0.0
        %4242 = vmatprep.subr.mxu0 0.0
        %4243 = vmatpush1.msra.mxu0 0.0
        %4244 = vmatprep.subr.mxu0 0.0
        %4245 = vmatpush1.msra.mxu0 0.0
        %4246 = vmatprep.subr.mxu0 0.0
        %4247 = vmatpush1.msra.mxu0 0.0
        %4248 = vmatprep.subr.mxu0 0.0
        %4249 = vmatpush1.msra.mxu0 0.0
        %4250 = vmatprep.subr.mxu0 0.0
        %4251 = vmatpush1.msra.mxu0 0.0
        %4252 = vmatprep.subr.mxu0 0.0
        %4253 = vmatpush1.msra.mxu0 0.0
        %4254 = vmatprep.subr.mxu0 0.0
        %4255 = vmatpush1.msra.mxu0 0.0
        %4256 = vmatprep.subr.mxu0 0.0
        %4257 = vmatpush1.msra.mxu0 0.0
        %4258 = vmatprep.subr.mxu0 0.0
        %4259 = vmatpush1.msra.mxu0 0.0
        %4260 = vmatprep.subr.mxu0 0.0
        %4261 = vmatpush1.msra.mxu0 %v3209
        %4262 = vmatprep.subr.mxu0 0.0
        %4263 = vmatpush1.msra.mxu0 %v3208
        %4264 = vmatprep.subr.mxu0 0.0
        %4265 = vmatpush1.msra.mxu0 %v3207
        %4266 = vmatprep.subr.mxu0 0.0
        %4267 = vmatpush1.msra.mxu0 %v3206
        %4268 = vmatprep.subr.mxu0 0.0
        %4269 = vmatpush2.msra.mxu0 0.0
        %4270 = vmatprep.subr.mxu0 0.0
        %4271 = vmatpush2.msra.mxu0 0.0
        %4272 = vmatprep.subr.mxu0 0.0
        %4273 = vmatpush2.msra.mxu0 0.0
        %4274 = vmatprep.subr.mxu0 0.0
        %4275 = vmatpush2.msra.mxu0 0.0
        %4276 = vmatprep.subr.mxu0 0.0
        %4277 = vmatpush2.msra.mxu0 0.0
        %4278 = vmatprep.subr.mxu0 0.0
        %4279 = vmatpush2.msra.mxu0 0.0
        %4280 = vmatprep.subr.mxu0 0.0
        %4281 = vmatpush2.msra.mxu0 0.0
        %4282 = vmatprep.subr.mxu0 0.0
        %4283 = vmatpush2.msra.mxu0 0.0
        %4284 = vmatprep.subr.mxu0 0.0
        %4285 = vmatpush2.msra.mxu0 0.0
        %4286 = vmatprep.subr.mxu0 0.0
        %4287 = vmatpush2.msra.mxu0 0.0
        %4288 = vmatprep.subr.mxu0 0.0
        %4289 = vmatpush2.msra.mxu0 0.0
        %4290 = vmatprep.subr.mxu0 0.0
        %4291 = vmatpush2.msra.mxu0 0.0
        %4292 = vmatprep.subr.mxu0 0.0
        %4293 = vmatpush2.msra.mxu0 0.0
        %4294 = vmatprep.subr.mxu0 0.0
        %4295 = vmatpush2.msra.mxu0 0.0
        %4296 = vmatprep.subr.mxu0 0.0
        %4297 = vmatpush2.msra.mxu0 0.0
        %4298 = vmatprep.subr.mxu0 0.0
        %4299 = vmatpush2.msra.mxu0 0.0
        %4300 = vmatprep.mubr.f32.mxu0 0.0
        %4301 = vmatmul.mubr.f32.gmra.mxu0 %v4234
        %v4302 = vpop.f32.mrf.mxu0
        %v4303 = vadd.f32 %v3210, %v4302
        %v4304 = vpop.f32.mrf.mxu0
        %4305 = vdwg.mxu0
        %v4306 = vadd.f32 %v4230, %v4303
        %v4307 = vsub.f32 0.0, %v4306
        %v4308 = vmul.f32 %v4307, 1.442695
        %v4309 = vpow.pop %v4308
        %v4310 = vadd.f32 %v4309, 1.0
        %v4311 = vrcp.pop %v4310
        %4313 = vrot.lane.b32.xlu0 %v4303, 96
        %v4314 = vpop.permute.xlu0 %4313
        %v4316 = vmul.f32 %v4311, %v4314
        %4318 = vrot.lane.b32.xlu0 %v4316, 32
        %v4319 = vpop.permute.xlu0 %4318
        %v4321 = vadd.f32 %v4230, %v4319
        %v4322 = vtanh.pop %v4321
        %v4323 = vsub.f32 1.0, %v4311
        %4325 = vrot.lane.b32.xlu0 %v4322, 112
        %v4326 = vpop.permute.xlu0 %4325
        %v4328 = vmul.f32 %v4323, %v4326
        %v4329 = vmul.f32 %v4311, %v4219
        %v4330 = vadd.f32 %v4328, %v4329
        %4332 = vrot.lane.b32.xlu0 %v4330, 112
        %v4333 = vpop.permute.xlu0 %4332
        %4335 = vst.msk [vmem:[#allocation5 + $0x9] sm:$0x1] %vm3320, %v4333
        %4336 = vst.msk [vmem:[#allocation6 + $0x5] sm:$0x2] %vm3322, %v4333
        %4338 = vrot.lane.b32.xlu0 %v3665, 80
        %v4339 = vpop.permute.xlu0 %4338
        %v4341 = vsel %vm2037, %v3667, %v4339
        %v4342 = vsel %vm3332, %v4333, %v4330
        %v4343 = vmul.f32 %v4342, %v3113
        %v4345 = vsel %vm468, %v4343, 0
        %4347 = vmatprep.subr.mxu0 0.0
        %4348 = vmatpush1.msra.mxu0 0.0
        %4349 = vmatprep.subr.mxu0 0.0
        %4350 = vmatpush1.msra.mxu0 0.0
        %4351 = vmatprep.subr.mxu0 0.0
        %4352 = vmatpush1.msra.mxu0 0.0
        %4353 = vmatprep.subr.mxu0 0.0
        %4354 = vmatpush1.msra.mxu0 0.0
        %4355 = vmatprep.subr.mxu0 0.0
        %4356 = vmatpush1.msra.mxu0 0.0
        %4357 = vmatprep.subr.mxu0 0.0
        %4358 = vmatpush1.msra.mxu0 0.0
        %4359 = vmatprep.subr.mxu0 0.0
        %4360 = vmatpush1.msra.mxu0 0.0
        %4361 = vmatprep.subr.mxu0 0.0
        %4362 = vmatpush1.msra.mxu0 0.0
        %4363 = vmatprep.subr.mxu0 0.0
        %4364 = vmatpush1.msra.mxu0 0.0
        %4365 = vmatprep.subr.mxu0 0.0
        %4366 = vmatpush1.msra.mxu0 0.0
        %4367 = vmatprep.subr.mxu0 0.0
        %4368 = vmatpush1.msra.mxu0 0.0
        %4369 = vmatprep.subr.mxu0 0.0
        %4370 = vmatpush1.msra.mxu0 0.0
        %4371 = vmatprep.subr.mxu0 0.0
        %4372 = vmatpush1.msra.mxu0 %v3209
        %4373 = vmatprep.subr.mxu0 0.0
        %4374 = vmatpush1.msra.mxu0 %v3208
        %4375 = vmatprep.subr.mxu0 0.0
        %4376 = vmatpush1.msra.mxu0 %v3207
        %4377 = vmatprep.subr.mxu0 0.0
        %4378 = vmatpush1.msra.mxu0 %v3206
        %4379 = vmatprep.subr.mxu0 0.0
        %4380 = vmatpush2.msra.mxu0 0.0
        %4381 = vmatprep.subr.mxu0 0.0
        %4382 = vmatpush2.msra.mxu0 0.0
        %4383 = vmatprep.subr.mxu0 0.0
        %4384 = vmatpush2.msra.mxu0 0.0
        %4385 = vmatprep.subr.mxu0 0.0
        %4386 = vmatpush2.msra.mxu0 0.0
        %4387 = vmatprep.subr.mxu0 0.0
        %4388 = vmatpush2.msra.mxu0 0.0
        %4389 = vmatprep.subr.mxu0 0.0
        %4390 = vmatpush2.msra.mxu0 0.0
        %4391 = vmatprep.subr.mxu0 0.0
        %4392 = vmatpush2.msra.mxu0 0.0
        %4393 = vmatprep.subr.mxu0 0.0
        %4394 = vmatpush2.msra.mxu0 0.0
        %4395 = vmatprep.subr.mxu0 0.0
        %4396 = vmatpush2.msra.mxu0 0.0
        %4397 = vmatprep.subr.mxu0 0.0
        %4398 = vmatpush2.msra.mxu0 0.0
        %4399 = vmatprep.subr.mxu0 0.0
        %4400 = vmatpush2.msra.mxu0 0.0
        %4401 = vmatprep.subr.mxu0 0.0
        %4402 = vmatpush2.msra.mxu0 0.0
        %4403 = vmatprep.subr.mxu0 0.0
        %4404 = vmatpush2.msra.mxu0 0.0
        %4405 = vmatprep.subr.mxu0 0.0
        %4406 = vmatpush2.msra.mxu0 0.0
        %4407 = vmatprep.subr.mxu0 0.0
        %4408 = vmatpush2.msra.mxu0 0.0
        %4409 = vmatprep.subr.mxu0 0.0
        %4410 = vmatpush2.msra.mxu0 0.0
        %4411 = vmatprep.mubr.f32.mxu0 0.0
        %4412 = vmatmul.mubr.f32.gmra.mxu0 %v4345
        %v4413 = vpop.f32.mrf.mxu0
        %v4414 = vadd.f32 %v3210, %v4413
        %v4415 = vpop.f32.mrf.mxu0
        %4416 = vdwg.mxu0
        %v4417 = vadd.f32 %v4341, %v4414
        %v4418 = vsub.f32 0.0, %v4417
        %v4419 = vmul.f32 %v4418, 1.442695
        %v4420 = vpow.pop %v4419
        %v4421 = vadd.f32 %v4420, 1.0
        %v4422 = vrcp.pop %v4421
        %4424 = vrot.lane.b32.xlu0 %v4414, 96
        %v4425 = vpop.permute.xlu0 %4424
        %v4427 = vmul.f32 %v4422, %v4425
        %4429 = vrot.lane.b32.xlu0 %v4427, 32
        %v4430 = vpop.permute.xlu0 %4429
        %v4432 = vadd.f32 %v4341, %v4430
        %v4433 = vtanh.pop %v4432
        %v4434 = vsub.f32 1.0, %v4422
        %4436 = vrot.lane.b32.xlu0 %v4433, 112
        %v4437 = vpop.permute.xlu0 %4436
        %v4439 = vmul.f32 %v4434, %v4437
        %v4440 = vmul.f32 %v4422, %v4330
        %v4441 = vadd.f32 %v4439, %v4440
        %4443 = vrot.lane.b32.xlu0 %v4441, 112
        %v4444 = vpop.permute.xlu0 %4443
        %4446 = vst.msk [vmem:[#allocation5 + $0xa] sm:$0x1] %vm3320, %v4444
        %4447 = vst.msk [vmem:[#allocation6 + $0x4] sm:$0x2] %vm3322, %v4444
        %4449 = vrot.lane.b32.xlu0 %v3552, 80
        %v4450 = vpop.permute.xlu0 %4449
        %v4452 = vsel %vm2037, %v3554, %v4450
        %v4453 = vsel %vm3332, %v4444, %v4441
        %v4454 = vmul.f32 %v4453, %v3113
        %v4456 = vsel %vm468, %v4454, 0
        %4458 = vmatprep.subr.mxu0 0.0
        %4459 = vmatpush1.msra.mxu0 0.0
        %4460 = vmatprep.subr.mxu0 0.0
        %4461 = vmatpush1.msra.mxu0 0.0
        %4462 = vmatprep.subr.mxu0 0.0
        %4463 = vmatpush1.msra.mxu0 0.0
        %4464 = vmatprep.subr.mxu0 0.0
        %4465 = vmatpush1.msra.mxu0 0.0
        %4466 = vmatprep.subr.mxu0 0.0
        %4467 = vmatpush1.msra.mxu0 0.0
        %4468 = vmatprep.subr.mxu0 0.0
        %4469 = vmatpush1.msra.mxu0 0.0
        %4470 = vmatprep.subr.mxu0 0.0
        %4471 = vmatpush1.msra.mxu0 0.0
        %4472 = vmatprep.subr.mxu0 0.0
        %4473 = vmatpush1.msra.mxu0 0.0
        %4474 = vmatprep.subr.mxu0 0.0
        %4475 = vmatpush1.msra.mxu0 0.0
        %4476 = vmatprep.subr.mxu0 0.0
        %4477 = vmatpush1.msra.mxu0 0.0
        %4478 = vmatprep.subr.mxu0 0.0
        %4479 = vmatpush1.msra.mxu0 0.0
        %4480 = vmatprep.subr.mxu0 0.0
        %4481 = vmatpush1.msra.mxu0 0.0
        %4482 = vmatprep.subr.mxu0 0.0
        %4483 = vmatpush1.msra.mxu0 %v3209
        %4484 = vmatprep.subr.mxu0 0.0
        %4485 = vmatpush1.msra.mxu0 %v3208
        %4486 = vmatprep.subr.mxu0 0.0
        %4487 = vmatpush1.msra.mxu0 %v3207
        %4488 = vmatprep.subr.mxu0 0.0
        %4489 = vmatpush1.msra.mxu0 %v3206
        %4490 = vmatprep.subr.mxu0 0.0
        %4491 = vmatpush2.msra.mxu0 0.0
        %4492 = vmatprep.subr.mxu0 0.0
        %4493 = vmatpush2.msra.mxu0 0.0
        %4494 = vmatprep.subr.mxu0 0.0
        %4495 = vmatpush2.msra.mxu0 0.0
        %4496 = vmatprep.subr.mxu0 0.0
        %4497 = vmatpush2.msra.mxu0 0.0
        %4498 = vmatprep.subr.mxu0 0.0
        %4499 = vmatpush2.msra.mxu0 0.0
        %4500 = vmatprep.subr.mxu0 0.0
        %4501 = vmatpush2.msra.mxu0 0.0
        %4502 = vmatprep.subr.mxu0 0.0
        %4503 = vmatpush2.msra.mxu0 0.0
        %4504 = vmatprep.subr.mxu0 0.0
        %4505 = vmatpush2.msra.mxu0 0.0
        %4506 = vmatprep.subr.mxu0 0.0
        %4507 = vmatpush2.msra.mxu0 0.0
        %4508 = vmatprep.subr.mxu0 0.0
        %4509 = vmatpush2.msra.mxu0 0.0
        %4510 = vmatprep.subr.mxu0 0.0
        %4511 = vmatpush2.msra.mxu0 0.0
        %4512 = vmatprep.subr.mxu0 0.0
        %4513 = vmatpush2.msra.mxu0 0.0
        %4514 = vmatprep.subr.mxu0 0.0
        %4515 = vmatpush2.msra.mxu0 0.0
        %4516 = vmatprep.subr.mxu0 0.0
        %4517 = vmatpush2.msra.mxu0 0.0
        %4518 = vmatprep.subr.mxu0 0.0
        %4519 = vmatpush2.msra.mxu0 0.0
        %4520 = vmatprep.subr.mxu0 0.0
        %4521 = vmatpush2.msra.mxu0 0.0
        %4522 = vmatprep.mubr.f32.mxu0 0.0
        %4523 = vmatmul.mubr.f32.gmra.mxu0 %v4456
        %v4524 = vpop.f32.mrf.mxu0
        %v4525 = vadd.f32 %v3210, %v4524
        %v4526 = vpop.f32.mrf.mxu0
        %4527 = vdwg.mxu0
        %v4528 = vadd.f32 %v4452, %v4525
        %v4529 = vsub.f32 0.0, %v4528
        %v4530 = vmul.f32 %v4529, 1.442695
        %v4531 = vpow.pop %v4530
        %v4532 = vadd.f32 %v4531, 1.0
        %v4533 = vrcp.pop %v4532
        %4535 = vrot.lane.b32.xlu0 %v4525, 96
        %v4536 = vpop.permute.xlu0 %4535
        %v4538 = vmul.f32 %v4533, %v4536
        %4540 = vrot.lane.b32.xlu0 %v4538, 32
        %v4541 = vpop.permute.xlu0 %4540
        %v4543 = vadd.f32 %v4452, %v4541
        %v4544 = vtanh.pop %v4543
        %v4545 = vsub.f32 1.0, %v4533
        %4547 = vrot.lane.b32.xlu0 %v4544, 112
        %v4548 = vpop.permute.xlu0 %4547
        %v4550 = vmul.f32 %v4545, %v4548
        %v4551 = vmul.f32 %v4533, %v4441
        %v4552 = vadd.f32 %v4550, %v4551
        %4554 = vrot.lane.b32.xlu0 %v4552, 112
        %v4555 = vpop.permute.xlu0 %4554
        %4557 = vst.msk [vmem:[#allocation5 + $0xb] sm:$0x1] %vm3320, %v4555
        %4558 = vst.msk [vmem:[#allocation6 + $0x3] sm:$0x2] %vm3322, %v4555
        %4560 = vrot.lane.b32.xlu0 %v3439, 80
        %v4561 = vpop.permute.xlu0 %4560
        %v4563 = vsel %vm2037, %v3441, %v4561
        %v4564 = vsel %vm3332, %v4555, %v4552
        %v4565 = vmul.f32 %v4564, %v3113
        %v4567 = vsel %vm468, %v4565, 0
        %4569 = vmatprep.subr.mxu0 0.0
        %4570 = vmatpush1.msra.mxu0 0.0
        %4571 = vmatprep.subr.mxu0 0.0
        %4572 = vmatpush1.msra.mxu0 0.0
        %4573 = vmatprep.subr.mxu0 0.0
        %4574 = vmatpush1.msra.mxu0 0.0
        %4575 = vmatprep.subr.mxu0 0.0
        %4576 = vmatpush1.msra.mxu0 0.0
        %4577 = vmatprep.subr.mxu0 0.0
        %4578 = vmatpush1.msra.mxu0 0.0
        %4579 = vmatprep.subr.mxu0 0.0
        %4580 = vmatpush1.msra.mxu0 0.0
        %4581 = vmatprep.subr.mxu0 0.0
        %4582 = vmatpush1.msra.mxu0 0.0
        %4583 = vmatprep.subr.mxu0 0.0
        %4584 = vmatpush1.msra.mxu0 0.0
        %4585 = vmatprep.subr.mxu0 0.0
        %4586 = vmatpush1.msra.mxu0 0.0
        %4587 = vmatprep.subr.mxu0 0.0
        %4588 = vmatpush1.msra.mxu0 0.0
        %4589 = vmatprep.subr.mxu0 0.0
        %4590 = vmatpush1.msra.mxu0 0.0
        %4591 = vmatprep.subr.mxu0 0.0
        %4592 = vmatpush1.msra.mxu0 0.0
        %4593 = vmatprep.subr.mxu0 0.0
        %4594 = vmatpush1.msra.mxu0 %v3209
        %4595 = vmatprep.subr.mxu0 0.0
        %4596 = vmatpush1.msra.mxu0 %v3208
        %4597 = vmatprep.subr.mxu0 0.0
        %4598 = vmatpush1.msra.mxu0 %v3207
        %4599 = vmatprep.subr.mxu0 0.0
        %4600 = vmatpush1.msra.mxu0 %v3206
        %4601 = vmatprep.subr.mxu0 0.0
        %4602 = vmatpush2.msra.mxu0 0.0
        %4603 = vmatprep.subr.mxu0 0.0
        %4604 = vmatpush2.msra.mxu0 0.0
        %4605 = vmatprep.subr.mxu0 0.0
        %4606 = vmatpush2.msra.mxu0 0.0
        %4607 = vmatprep.subr.mxu0 0.0
        %4608 = vmatpush2.msra.mxu0 0.0
        %4609 = vmatprep.subr.mxu0 0.0
        %4610 = vmatpush2.msra.mxu0 0.0
        %4611 = vmatprep.subr.mxu0 0.0
        %4612 = vmatpush2.msra.mxu0 0.0
        %4613 = vmatprep.subr.mxu0 0.0
        %4614 = vmatpush2.msra.mxu0 0.0
        %4615 = vmatprep.subr.mxu0 0.0
        %4616 = vmatpush2.msra.mxu0 0.0
        %4617 = vmatprep.subr.mxu0 0.0
        %4618 = vmatpush2.msra.mxu0 0.0
        %4619 = vmatprep.subr.mxu0 0.0
        %4620 = vmatpush2.msra.mxu0 0.0
        %4621 = vmatprep.subr.mxu0 0.0
        %4622 = vmatpush2.msra.mxu0 0.0
        %4623 = vmatprep.subr.mxu0 0.0
        %4624 = vmatpush2.msra.mxu0 0.0
        %4625 = vmatprep.subr.mxu0 0.0
        %4626 = vmatpush2.msra.mxu0 0.0
        %4627 = vmatprep.subr.mxu0 0.0
        %4628 = vmatpush2.msra.mxu0 0.0
        %4629 = vmatprep.subr.mxu0 0.0
        %4630 = vmatpush2.msra.mxu0 0.0
        %4631 = vmatprep.subr.mxu0 0.0
        %4632 = vmatpush2.msra.mxu0 0.0
        %4633 = vmatprep.mubr.f32.mxu0 0.0
        %4634 = vmatmul.mubr.f32.gmra.mxu0 %v4567
        %v4635 = vpop.f32.mrf.mxu0
        %v4636 = vadd.f32 %v3210, %v4635
        %v4637 = vpop.f32.mrf.mxu0
        %4638 = vdwg.mxu0
        %v4639 = vadd.f32 %v4563, %v4636
        %v4640 = vsub.f32 0.0, %v4639
        %v4641 = vmul.f32 %v4640, 1.442695
        %v4642 = vpow.pop %v4641
        %v4643 = vadd.f32 %v4642, 1.0
        %v4644 = vrcp.pop %v4643
        %4646 = vrot.lane.b32.xlu0 %v4636, 96
        %v4647 = vpop.permute.xlu0 %4646
        %v4649 = vmul.f32 %v4644, %v4647
        %4651 = vrot.lane.b32.xlu0 %v4649, 32
        %v4652 = vpop.permute.xlu0 %4651
        %v4654 = vadd.f32 %v4563, %v4652
        %v4655 = vtanh.pop %v4654
        %v4656 = vsub.f32 1.0, %v4644
        %4658 = vrot.lane.b32.xlu0 %v4655, 112
        %v4659 = vpop.permute.xlu0 %4658
        %v4661 = vmul.f32 %v4656, %v4659
        %v4662 = vmul.f32 %v4644, %v4552
        %v4663 = vadd.f32 %v4661, %v4662
        %4665 = vrot.lane.b32.xlu0 %v4663, 112
        %v4666 = vpop.permute.xlu0 %4665
        %4668 = vst.msk [vmem:[#allocation5 + $0xc] sm:$0x1] %vm3320, %v4666
        %4669 = vst.msk [vmem:[#allocation6 + $0x2] sm:$0x2] %vm3322, %v4666
        %4671 = vrot.lane.b32.xlu0 %v3325, 80
        %v4672 = vpop.permute.xlu0 %4671
        %v4674 = vsel %vm2037, %v3327, %v4672
        %v4675 = vsel %vm3332, %v4666, %v4663
        %v4676 = vmul.f32 %v4675, %v3113
        %v4678 = vsel %vm468, %v4676, 0
        %4680 = vmatprep.subr.mxu0 0.0
        %4681 = vmatpush1.msra.mxu0 0.0
        %4682 = vmatprep.subr.mxu0 0.0
        %4683 = vmatpush1.msra.mxu0 0.0
        %4684 = vmatprep.subr.mxu0 0.0
        %4685 = vmatpush1.msra.mxu0 0.0
        %4686 = vmatprep.subr.mxu0 0.0
        %4687 = vmatpush1.msra.mxu0 0.0
        %4688 = vmatprep.subr.mxu0 0.0
        %4689 = vmatpush1.msra.mxu0 0.0
        %4690 = vmatprep.subr.mxu0 0.0
        %4691 = vmatpush1.msra.mxu0 0.0
        %4692 = vmatprep.subr.mxu0 0.0
        %4693 = vmatpush1.msra.mxu0 0.0
        %4694 = vmatprep.subr.mxu0 0.0
        %4695 = vmatpush1.msra.mxu0 0.0
        %4696 = vmatprep.subr.mxu0 0.0
        %4697 = vmatpush1.msra.mxu0 0.0
        %4698 = vmatprep.subr.mxu0 0.0
        %4699 = vmatpush1.msra.mxu0 0.0
        %4700 = vmatprep.subr.mxu0 0.0
        %4701 = vmatpush1.msra.mxu0 0.0
        %4702 = vmatprep.subr.mxu0 0.0
        %4703 = vmatpush1.msra.mxu0 0.0
        %4704 = vmatprep.subr.mxu0 0.0
        %4705 = vmatpush1.msra.mxu0 %v3209
        %4706 = vmatprep.subr.mxu0 0.0
        %4707 = vmatpush1.msra.mxu0 %v3208
        %4708 = vmatprep.subr.mxu0 0.0
        %4709 = vmatpush1.msra.mxu0 %v3207
        %4710 = vmatprep.subr.mxu0 0.0
        %4711 = vmatpush1.msra.mxu0 %v3206
        %4712 = vmatprep.subr.mxu0 0.0
        %4713 = vmatpush2.msra.mxu0 0.0
        %4714 = vmatprep.subr.mxu0 0.0
        %4715 = vmatpush2.msra.mxu0 0.0
        %4716 = vmatprep.subr.mxu0 0.0
        %4717 = vmatpush2.msra.mxu0 0.0
        %4718 = vmatprep.subr.mxu0 0.0
        %4719 = vmatpush2.msra.mxu0 0.0
        %4720 = vmatprep.subr.mxu0 0.0
        %4721 = vmatpush2.msra.mxu0 0.0
        %4722 = vmatprep.subr.mxu0 0.0
        %4723 = vmatpush2.msra.mxu0 0.0
        %4724 = vmatprep.subr.mxu0 0.0
        %4725 = vmatpush2.msra.mxu0 0.0
        %4726 = vmatprep.subr.mxu0 0.0
        %4727 = vmatpush2.msra.mxu0 0.0
        %4728 = vmatprep.subr.mxu0 0.0
        %4729 = vmatpush2.msra.mxu0 0.0
        %4730 = vmatprep.subr.mxu0 0.0
        %4731 = vmatpush2.msra.mxu0 0.0
        %4732 = vmatprep.subr.mxu0 0.0
        %4733 = vmatpush2.msra.mxu0 0.0
        %4734 = vmatprep.subr.mxu0 0.0
        %4735 = vmatpush2.msra.mxu0 0.0
        %4736 = vmatprep.subr.mxu0 0.0
        %4737 = vmatpush2.msra.mxu0 0.0
        %4738 = vmatprep.subr.mxu0 0.0
        %4739 = vmatpush2.msra.mxu0 0.0
        %4740 = vmatprep.subr.mxu0 0.0
        %4741 = vmatpush2.msra.mxu0 0.0
        %4742 = vmatprep.subr.mxu0 0.0
        %4743 = vmatpush2.msra.mxu0 0.0
        %4744 = vmatprep.mubr.f32.mxu0 0.0
        %4745 = vmatmul.mubr.f32.gmra.mxu0 %v4678
        %v4746 = vpop.f32.mrf.mxu0
        %v4747 = vadd.f32 %v3210, %v4746
        %v4748 = vpop.f32.mrf.mxu0
        %4749 = vdwg.mxu0
        %v4750 = vadd.f32 %v4674, %v4747
        %v4751 = vsub.f32 0.0, %v4750
        %v4752 = vmul.f32 %v4751, 1.442695
        %v4753 = vpow.pop %v4752
        %v4754 = vadd.f32 %v4753, 1.0
        %v4755 = vrcp.pop %v4754
        %4757 = vrot.lane.b32.xlu0 %v4747, 96
        %v4758 = vpop.permute.xlu0 %4757
        %v4760 = vmul.f32 %v4755, %v4758
        %4762 = vrot.lane.b32.xlu0 %v4760, 32
        %v4763 = vpop.permute.xlu0 %4762
        %v4765 = vadd.f32 %v4674, %v4763
        %v4766 = vtanh.pop %v4765
        %v4767 = vsub.f32 1.0, %v4755
        %4769 = vrot.lane.b32.xlu0 %v4766, 112
        %v4770 = vpop.permute.xlu0 %4769
        %v4772 = vmul.f32 %v4767, %v4770
        %v4773 = vmul.f32 %v4755, %v4663
        %v4774 = vadd.f32 %v4772, %v4773
        %4776 = vrot.lane.b32.xlu0 %v4774, 112
        %v4777 = vpop.permute.xlu0 %4776
        %4779 = vst.msk [vmem:[#allocation5 + $0xd] sm:$0x1] %vm3320, %v4777
        %4780 = vst.msk [vmem:[#allocation6 + $0x1] sm:$0x2] %vm3322, %v4777
        %4782 = vrot.lane.b32.xlu0 %v3198, 80
        %v4783 = vpop.permute.xlu0 %4782
        %v4785 = vsel %vm2037, %v3212, %v4783
        %v4786 = vsel %vm3332, %v4777, %v4774
        %v4787 = vmul.f32 %v4786, %v3113
        %v4789 = vsel %vm468, %v4787, 0
        %4791 = vmatprep.subr.mxu0 0.0
        %4792 = vmatpush1.msra.mxu0 0.0
        %4793 = vmatprep.subr.mxu0 0.0
        %4794 = vmatpush1.msra.mxu0 0.0
        %4795 = vmatprep.subr.mxu0 0.0
        %4796 = vmatpush1.msra.mxu0 0.0
        %4797 = vmatprep.subr.mxu0 0.0
        %4798 = vmatpush1.msra.mxu0 0.0
        %4799 = vmatprep.subr.mxu0 0.0
        %4800 = vmatpush1.msra.mxu0 0.0
        %4801 = vmatprep.subr.mxu0 0.0
        %4802 = vmatpush1.msra.mxu0 0.0
        %4803 = vmatprep.subr.mxu0 0.0
        %4804 = vmatpush1.msra.mxu0 0.0
        %4805 = vmatprep.subr.mxu0 0.0
        %4806 = vmatpush1.msra.mxu0 0.0
        %4807 = vmatprep.subr.mxu0 0.0
        %4808 = vmatpush1.msra.mxu0 0.0
        %4809 = vmatprep.subr.mxu0 0.0
        %4810 = vmatpush1.msra.mxu0 0.0
        %4811 = vmatprep.subr.mxu0 0.0
        %4812 = vmatpush1.msra.mxu0 0.0
        %4813 = vmatprep.subr.mxu0 0.0
        %4814 = vmatpush1.msra.mxu0 0.0
        %4815 = vmatprep.subr.mxu0 0.0
        %4816 = vmatpush1.msra.mxu0 %v3209
        %4817 = vmatprep.subr.mxu0 0.0
        %4818 = vmatpush1.msra.mxu0 %v3208
        %4819 = vmatprep.subr.mxu0 0.0
        %4820 = vmatpush1.msra.mxu0 %v3207
        %4821 = vmatprep.subr.mxu0 0.0
        %4822 = vmatpush1.msra.mxu0 %v3206
        %4823 = vmatprep.subr.mxu0 0.0
        %4824 = vmatpush2.msra.mxu0 0.0
        %4825 = vmatprep.subr.mxu0 0.0
        %4826 = vmatpush2.msra.mxu0 0.0
        %4827 = vmatprep.subr.mxu0 0.0
        %4828 = vmatpush2.msra.mxu0 0.0
        %4829 = vmatprep.subr.mxu0 0.0
        %4830 = vmatpush2.msra.mxu0 0.0
        %4831 = vmatprep.subr.mxu0 0.0
        %4832 = vmatpush2.msra.mxu0 0.0
        %4833 = vmatprep.subr.mxu0 0.0
        %4834 = vmatpush2.msra.mxu0 0.0
        %4835 = vmatprep.subr.mxu0 0.0
        %4836 = vmatpush2.msra.mxu0 0.0
        %4837 = vmatprep.subr.mxu0 0.0
        %4838 = vmatpush2.msra.mxu0 0.0
        %4839 = vmatprep.subr.mxu0 0.0
        %4840 = vmatpush2.msra.mxu0 0.0
        %4841 = vmatprep.subr.mxu0 0.0
        %4842 = vmatpush2.msra.mxu0 0.0
        %4843 = vmatprep.subr.mxu0 0.0
        %4844 = vmatpush2.msra.mxu0 0.0
        %4845 = vmatprep.subr.mxu0 0.0
        %4846 = vmatpush2.msra.mxu0 0.0
        %4847 = vmatprep.subr.mxu0 0.0
        %4848 = vmatpush2.msra.mxu0 0.0
        %4849 = vmatprep.subr.mxu0 0.0
        %4850 = vmatpush2.msra.mxu0 0.0
        %4851 = vmatprep.subr.mxu0 0.0
        %4852 = vmatpush2.msra.mxu0 0.0
        %4853 = vmatprep.subr.mxu0 0.0
        %4854 = vmatpush2.msra.mxu0 0.0
        %4855 = vmatprep.mubr.f32.mxu0 0.0
        %4856 = vmatmul.mubr.f32.gmra.mxu0 %v4789
        %v4857 = vpop.f32.mrf.mxu0
        %v4858 = vadd.f32 %v3210, %v4857
        %v4859 = vpop.f32.mrf.mxu0
        %4860 = vdwg.mxu0
        %v4861 = vadd.f32 %v4785, %v4858
        %v4862 = vsub.f32 0.0, %v4861
        %v4863 = vmul.f32 %v4862, 1.442695
        %v4864 = vpow.pop %v4863
        %v4865 = vadd.f32 %v4864, 1.0
        %v4866 = vrcp.pop %v4865
        %4868 = vrot.lane.b32.xlu0 %v4858, 96
        %v4869 = vpop.permute.xlu0 %4868
        %v4871 = vmul.f32 %v4866, %v4869
        %4873 = vrot.lane.b32.xlu0 %v4871, 32
        %v4874 = vpop.permute.xlu0 %4873
        %v4876 = vadd.f32 %v4785, %v4874
        %v4877 = vtanh.pop %v4876
        %v4878 = vsub.f32 1.0, %v4866
        %4880 = vrot.lane.b32.xlu0 %v4877, 112
        %v4881 = vpop.permute.xlu0 %4880
        %v4883 = vmul.f32 %v4878, %v4881
        %v4884 = vmul.f32 %v4866, %v4774
        %v4885 = vadd.f32 %v4883, %v4884
        %4887 = vrot.lane.b32.xlu0 %v4885, 112
        %v4888 = vpop.permute.xlu0 %4887
        %4890 = vst.msk [vmem:[#allocation5 + $0xe] sm:$0x1] %vm3320, %v4888
        %4891 = vst.msk [vmem:[#allocation6] sm:$0x2] %vm3322, %v4888
        %4893 = vrot.lane.b32.xlu0 %v4003, 80
        %v4894 = vpop.permute.xlu0 %4893
        %v4896 = vsel %vm2037, %v4005, %v4894
        %v4897 = vsel %vm3332, %v4888, %v4885
        %v4898 = vmul.f32 %v4897, %v3113
        %v4900 = vsel %vm468, %v4898, 0
        %4902 = vmatprep.subr.mxu0 0.0
        %4903 = vmatpush1.msra.mxu0 0.0
        %4904 = vmatprep.subr.mxu0 0.0
        %4905 = vmatpush1.msra.mxu0 0.0
        %4906 = vmatprep.subr.mxu0 0.0
        %4907 = vmatpush1.msra.mxu0 0.0
        %4908 = vmatprep.subr.mxu0 0.0
        %4909 = vmatpush1.msra.mxu0 0.0
        %4910 = vmatprep.subr.mxu0 0.0
        %4911 = vmatpush1.msra.mxu0 0.0
        %4912 = vmatprep.subr.mxu0 0.0
        %4913 = vmatpush1.msra.mxu0 0.0
        %4914 = vmatprep.subr.mxu0 0.0
        %4915 = vmatpush1.msra.mxu0 0.0
        %4916 = vmatprep.subr.mxu0 0.0
        %4917 = vmatpush1.msra.mxu0 0.0
        %4918 = vmatprep.subr.mxu0 0.0
        %4919 = vmatpush1.msra.mxu0 0.0
        %4920 = vmatprep.subr.mxu0 0.0
        %4921 = vmatpush1.msra.mxu0 0.0
        %4922 = vmatprep.subr.mxu0 0.0
        %4923 = vmatpush1.msra.mxu0 0.0
        %4924 = vmatprep.subr.mxu0 0.0
        %4925 = vmatpush1.msra.mxu0 0.0
        %4926 = vmatprep.subr.mxu0 0.0
        %4927 = vmatpush1.msra.mxu0 %v3209
        %4928 = vmatprep.subr.mxu0 0.0
        %4929 = vmatpush1.msra.mxu0 %v3208
        %4930 = vmatprep.subr.mxu0 0.0
        %4931 = vmatpush1.msra.mxu0 %v3207
        %4932 = vmatprep.subr.mxu0 0.0
        %4933 = vmatpush1.msra.mxu0 %v3206
        %4934 = vmatprep.subr.mxu0 0.0
        %4935 = vmatpush2.msra.mxu0 0.0
        %4936 = vmatprep.subr.mxu0 0.0
        %4937 = vmatpush2.msra.mxu0 0.0
        %4938 = vmatprep.subr.mxu0 0.0
        %4939 = vmatpush2.msra.mxu0 0.0
        %4940 = vmatprep.subr.mxu0 0.0
        %4941 = vmatpush2.msra.mxu0 0.0
        %4942 = vmatprep.subr.mxu0 0.0
        %4943 = vmatpush2.msra.mxu0 0.0
        %4944 = vmatprep.subr.mxu0 0.0
        %4945 = vmatpush2.msra.mxu0 0.0
        %4946 = vmatprep.subr.mxu0 0.0
        %4947 = vmatpush2.msra.mxu0 0.0
        %4948 = vmatprep.subr.mxu0 0.0
        %4949 = vmatpush2.msra.mxu0 0.0
        %4950 = vmatprep.subr.mxu0 0.0
        %4951 = vmatpush2.msra.mxu0 0.0
        %4952 = vmatprep.subr.mxu0 0.0
        %4953 = vmatpush2.msra.mxu0 0.0
        %4954 = vmatprep.subr.mxu0 0.0
        %4955 = vmatpush2.msra.mxu0 0.0
        %4956 = vmatprep.subr.mxu0 0.0
        %4957 = vmatpush2.msra.mxu0 0.0
        %4958 = vmatprep.subr.mxu0 0.0
        %4959 = vmatpush2.msra.mxu0 0.0
        %4960 = vmatprep.subr.mxu0 0.0
        %4961 = vmatpush2.msra.mxu0 0.0
        %4962 = vmatprep.subr.mxu0 0.0
        %4963 = vmatpush2.msra.mxu0 0.0
        %4964 = vmatprep.subr.mxu0 0.0
        %4965 = vmatpush2.msra.mxu0 0.0
        %4966 = vmatprep.mubr.f32.mxu0 0.0
        %4967 = vmatmul.mubr.f32.gmra.mxu0 %v4900
        %v4968 = vpop.f32.mrf.mxu0
        %v4969 = vadd.f32 %v3210, %v4968
        %v4970 = vpop.f32.mrf.mxu0
        %4971 = vdwg.mxu0
        %v4972 = vadd.f32 %v4896, %v4969
        %v4973 = vsub.f32 0.0, %v4972
        %v4974 = vmul.f32 %v4973, 1.442695
        %v4975 = vpow.pop %v4974
        %v4976 = vadd.f32 %v4975, 1.0
        %v4977 = vrcp.pop %v4976
        %4979 = vrot.lane.b32.xlu0 %v4969, 96
        %v4980 = vpop.permute.xlu0 %4979
        %v4982 = vmul.f32 %v4977, %v4980
        %4984 = vrot.lane.b32.xlu0 %v4982, 32
        %v4985 = vpop.permute.xlu0 %4984
        %v4987 = vadd.f32 %v4896, %v4985
        %v4988 = vtanh.pop %v4987
        %v4989 = vsub.f32 1.0, %v4977
        %4991 = vrot.lane.b32.xlu0 %v4988, 112
        %v4992 = vpop.permute.xlu0 %4991
        %v4994 = vmul.f32 %v4989, %v4992
        %v4995 = vmul.f32 %v4977, %v4885
        %v4996 = vadd.f32 %v4994, %v4995
        %4998 = vrot.lane.b32.xlu0 %v4996, 112
        %v4999 = vpop.permute.xlu0 %4998
        %5001 = vst.msk [vmem:[#allocation5 + $0xf] sm:$0x1] %vm3320, %v4999
        %5002 = vst.msk [vmem:[#allocation6 - $0x1] sm:$0x2] %vm3322, %v4999
        %v5003 = vld [vmem:[#allocation5] sm:$0xff]
        %v5004 = vld [vmem:[#allocation5 + $0x8] sm:$0xff]
        %v5005 = vld [vmem:[#allocation6] sm:$0xff]
        %v5006 = vld [vmem:[#allocation6 + $0x8] sm:$0xff]
        %5009 = vrot.lane.b32.xlu0 %v5005, 16
        %v5010 = vpop.permute.xlu0 %5009
        %5011 = vrot.lane.b32.xlu0 %v5006, 16
        %v5012 = vpop.permute.xlu0 %5011
        %v5015 = vsel %vm3332, %v5003, %v5010
        %v5016 = vsel %vm3332, %v5004, %v5012
        %s5017 = scalar_lea.vmem %s10, 32
        %v5018 = vld [vmem:[%s5017] sm:$0xff]
        %v5019 = vld [vmem:[%s5017 + $0x8] sm:$0xff]
        %v5020 = vld [vmem:[%s5017 + $0x10] sm:$0xff]
        %v5021 = vld [vmem:[%s5017 + $0x18] sm:$0xff]
        %s5022 = scalar_lea.vmem %s11, 1
        %v5023 = vld [vmem:[%s5022] sm:$0x1]
        %v5025 = vlaneseq
        %v5026 = vshrl.u32 %v5025, 7
        %v5027 = vsub.s32 0, %v5026
        %v5028 = vrot.slane %v5023, %v5027
        %v5031 = vsel %vm468, %v5015, 0
        %v5034 = vsel %vm468, %v5016, 0
        %5036 = vmatprep.subr.mxu0 0.0
        %5037 = vmatpush1.msra.mxu0 0.0
        %5038 = vmatprep.subr.mxu0 0.0
        %5039 = vmatpush1.msra.mxu0 0.0
        %5040 = vmatprep.subr.mxu0 0.0
        %5041 = vmatpush1.msra.mxu0 0.0
        %5042 = vmatprep.subr.mxu0 0.0
        %5043 = vmatpush1.msra.mxu0 0.0
        %5044 = vmatprep.subr.mxu0 0.0
        %5045 = vmatpush1.msra.mxu0 0.0
        %5046 = vmatprep.subr.mxu0 0.0
        %5047 = vmatpush1.msra.mxu0 0.0
        %5048 = vmatprep.subr.mxu0 0.0
        %5049 = vmatpush1.msra.mxu0 0.0
        %5050 = vmatprep.subr.mxu0 0.0
        %5051 = vmatpush1.msra.mxu0 0.0
        %5052 = vmatprep.subr.mxu0 0.0
        %5053 = vmatpush1.msra.mxu0 0.0
        %5054 = vmatprep.subr.mxu0 0.0
        %5055 = vmatpush1.msra.mxu0 0.0
        %5056 = vmatprep.subr.mxu0 0.0
        %5057 = vmatpush1.msra.mxu0 0.0
        %5058 = vmatprep.subr.mxu0 0.0
        %5059 = vmatpush1.msra.mxu0 0.0
        %5060 = vmatprep.subr.mxu0 0.0
        %5061 = vmatpush1.msra.mxu0 %v5021
        %5062 = vmatprep.subr.mxu0 0.0
        %5063 = vmatpush1.msra.mxu0 %v5020
        %5064 = vmatprep.subr.mxu0 0.0
        %5065 = vmatpush1.msra.mxu0 %v5019
        %5066 = vmatprep.subr.mxu0 0.0
        %5067 = vmatpush1.msra.mxu0 %v5018
        %5068 = vmatprep.subr.mxu0 0.0
        %5069 = vmatpush2.msra.mxu0 0.0
        %5070 = vmatprep.subr.mxu0 0.0
        %5071 = vmatpush2.msra.mxu0 0.0
        %5072 = vmatprep.subr.mxu0 0.0
        %5073 = vmatpush2.msra.mxu0 0.0
        %5074 = vmatprep.subr.mxu0 0.0
        %5075 = vmatpush2.msra.mxu0 0.0
        %5076 = vmatprep.subr.mxu0 0.0
        %5077 = vmatpush2.msra.mxu0 0.0
        %5078 = vmatprep.subr.mxu0 0.0
        %5079 = vmatpush2.msra.mxu0 0.0
        %5080 = vmatprep.subr.mxu0 0.0
        %5081 = vmatpush2.msra.mxu0 0.0
        %5082 = vmatprep.subr.mxu0 0.0
        %5083 = vmatpush2.msra.mxu0 0.0
        %5084 = vmatprep.subr.mxu0 0.0
        %5085 = vmatpush2.msra.mxu0 0.0
        %5086 = vmatprep.subr.mxu0 0.0
        %5087 = vmatpush2.msra.mxu0 0.0
        %5088 = vmatprep.subr.mxu0 0.0
        %5089 = vmatpush2.msra.mxu0 0.0
        %5090 = vmatprep.subr.mxu0 0.0
        %5091 = vmatpush2.msra.mxu0 0.0
        %5092 = vmatprep.subr.mxu0 0.0
        %5093 = vmatpush2.msra.mxu0 0.0
        %5094 = vmatprep.subr.mxu0 0.0
        %5095 = vmatpush2.msra.mxu0 0.0
        %5096 = vmatprep.subr.mxu0 0.0
        %5097 = vmatpush2.msra.mxu0 0.0
        %5098 = vmatprep.subr.mxu0 0.0
        %5099 = vmatpush2.msra.mxu0 0.0
        %5100 = vmatprep.mubr.f32.mxu0 0.0
        %5101 = vmatmul.mubr.f32.gmra.mxu0 %v5031
        %v5102 = vpop.f32.mrf.mxu0
        %v5103 = vadd.f32 %v5028, %v5102
        %v5104 = vpop.f32.mrf.mxu0
        %5105 = vmatprep.mubr.f32.mxu0 0.0
        %5106 = vmatmul.mubr.f32.gmra.mxu0 %v5034
        %v5107 = vpop.f32.mrf.mxu0
        %v5108 = vadd.f32 %v5028, %v5107
        %v5109 = vpop.f32.mrf.mxu0
        %5110 = vdwg.mxu0
        %s5111 = scalar_lea.vmem %s12, 32
        %v5112 = vld [vmem:[%s5111] sm:$0xff]
        %v5113 = vld [vmem:[%s5111 + $0x8] sm:$0xff]
        %v5114 = vld [vmem:[%s5111 + $0x10] sm:$0xff]
        %v5115 = vld [vmem:[%s5111 + $0x18] sm:$0xff]
        %s5116 = scalar_lea.vmem %s13, 2
        %v5117 = vld [vmem:[%s5116] sm:$0x3]
        %v5119 = vrot.slane %v5108, 6
        %5120 = vrot.lane.b32.xlu0 %v5119, 80
        %v5121 = vpop.permute.xlu0 %5120
        %v5123 = vsel %vm2037, %v5103, %v5121
        %5124 = vmatprep.subr.mxu0 0.0
        %5125 = vmatpush1.msra.mxu0 0.0
        %5126 = vmatprep.subr.mxu0 0.0
        %5127 = vmatpush1.msra.mxu0 0.0
        %5128 = vmatprep.subr.mxu0 0.0
        %5129 = vmatpush1.msra.mxu0 0.0
        %5130 = vmatprep.subr.mxu0 0.0
        %5131 = vmatpush1.msra.mxu0 0.0
        %5132 = vmatprep.subr.mxu0 0.0
        %5133 = vmatpush1.msra.mxu0 0.0
        %5134 = vmatprep.subr.mxu0 0.0
        %5135 = vmatpush1.msra.mxu0 0.0
        %5136 = vmatprep.subr.mxu0 0.0
        %5137 = vmatpush1.msra.mxu0 0.0
        %5138 = vmatprep.subr.mxu0 0.0
        %5139 = vmatpush1.msra.mxu0 0.0
        %5140 = vmatprep.subr.mxu0 0.0
        %5141 = vmatpush1.msra.mxu0 0.0
        %5142 = vmatprep.subr.mxu0 0.0
        %5143 = vmatpush1.msra.mxu0 0.0
        %5144 = vmatprep.subr.mxu0 0.0
        %5145 = vmatpush1.msra.mxu0 0.0
        %5146 = vmatprep.subr.mxu0 0.0
        %5147 = vmatpush1.msra.mxu0 0.0
        %5148 = vmatprep.subr.mxu0 0.0
        %5149 = vmatpush1.msra.mxu0 %v5115
        %5150 = vmatprep.subr.mxu0 0.0
        %5151 = vmatpush1.msra.mxu0 %v5114
        %5152 = vmatprep.subr.mxu0 0.0
        %5153 = vmatpush1.msra.mxu0 %v5113
        %5154 = vmatprep.subr.mxu0 0.0
        %5155 = vmatpush1.msra.mxu0 %v5112
        %5156 = vmatprep.subr.mxu0 0.0
        %5157 = vmatpush2.msra.mxu0 0.0
        %5158 = vmatprep.subr.mxu0 0.0
        %5159 = vmatpush2.msra.mxu0 0.0
        %5160 = vmatprep.subr.mxu0 0.0
        %5161 = vmatpush2.msra.mxu0 0.0
        %5162 = vmatprep.subr.mxu0 0.0
        %5163 = vmatpush2.msra.mxu0 0.0
        %5164 = vmatprep.subr.mxu0 0.0
        %5165 = vmatpush2.msra.mxu0 0.0
        %5166 = vmatprep.subr.mxu0 0.0
        %5167 = vmatpush2.msra.mxu0 0.0
        %5168 = vmatprep.subr.mxu0 0.0
        %5169 = vmatpush2.msra.mxu0 0.0
        %5170 = vmatprep.subr.mxu0 0.0
        %5171 = vmatpush2.msra.mxu0 0.0
        %5172 = vmatprep.subr.mxu0 0.0
        %5173 = vmatpush2.msra.mxu0 0.0
        %5174 = vmatprep.subr.mxu0 0.0
        %5175 = vmatpush2.msra.mxu0 0.0
        %5176 = vmatprep.subr.mxu0 0.0
        %5177 = vmatpush2.msra.mxu0 0.0
        %5178 = vmatprep.subr.mxu0 0.0
        %5179 = vmatpush2.msra.mxu0 0.0
        %5180 = vmatprep.subr.mxu0 0.0
        %5181 = vmatpush2.msra.mxu0 0.0
        %5182 = vmatprep.subr.mxu0 0.0
        %5183 = vmatpush2.msra.mxu0 0.0
        %5184 = vmatprep.subr.mxu0 0.0
        %5185 = vmatpush2.msra.mxu0 0.0
        %5186 = vmatprep.subr.mxu0 0.0
        %5187 = vmatpush2.msra.mxu0 0.0
        %5188 = vmatprep.mubr.f32.mxu0 0.0
        %5189 = vmatmul.mubr.f32.gmra.mxu0 %v3219
        %v5190 = vpop.f32.mrf.mxu0
        %v5191 = vadd.f32 %v5117, %v5190
        %v5192 = vpop.f32.mrf.mxu0
        %5193 = vdwg.mxu0
        %v5194 = vadd.f32 %v5123, %v5191
        %v5195 = vsub.f32 0.0, %v5194
        %v5196 = vmul.f32 %v5195, 1.442695
        %v5197 = vpow.pop %v5196
        %v5198 = vadd.f32 %v5197, 1.0
        %v5199 = vrcp.pop %v5198
        %5201 = vrot.lane.b32.xlu0 %v5191, 96
        %v5202 = vpop.permute.xlu0 %5201
        %v5204 = vmul.f32 %v5199, %v5202
        %5206 = vrot.lane.b32.xlu0 %v5204, 32
        %v5207 = vpop.permute.xlu0 %5206
        %v5209 = vadd.f32 %v5123, %v5207
        %v5210 = vtanh.pop %v5209
        %v5211 = vsub.f32 1.0, %v5199
        %5213 = vrot.lane.b32.xlu0 %v5210, 112
        %v5214 = vpop.permute.xlu0 %5213
        %v5216 = vmul.f32 %v5211, %v5214
        %v5217 = vmul.f32 %v5199, 0.0
        %v5218 = vadd.f32 %v5216, %v5217
        %5220 = vrot.lane.b32.xlu0 %v5218, 112
        %v5221 = vpop.permute.xlu0 %5220
        %5223 = vst.msk [vmem:[#allocation5] sm:$0x1] %vm3320, %v5221
        %5224 = vst.msk [vmem:[#allocation6 + $0xe] sm:$0x2] %vm3322, %v5221
        %v5226 = vrot.slane %v5103, 1
        %v5228 = vrot.slane %v5108, 5
        %5229 = vrot.lane.b32.xlu0 %v5228, 80
        %v5230 = vpop.permute.xlu0 %5229
        %v5232 = vsel %vm2037, %v5226, %v5230
        %v5233 = vsel %vm3332, %v5221, %v5218
        %v5234 = vmul.f32 %v5233, %v3113
        %v5236 = vsel %vm468, %v5234, 0
        %5238 = vmatprep.subr.mxu0 0.0
        %5239 = vmatpush1.msra.mxu0 0.0
        %5240 = vmatprep.subr.mxu0 0.0
        %5241 = vmatpush1.msra.mxu0 0.0
        %5242 = vmatprep.subr.mxu0 0.0
        %5243 = vmatpush1.msra.mxu0 0.0
        %5244 = vmatprep.subr.mxu0 0.0
        %5245 = vmatpush1.msra.mxu0 0.0
        %5246 = vmatprep.subr.mxu0 0.0
        %5247 = vmatpush1.msra.mxu0 0.0
        %5248 = vmatprep.subr.mxu0 0.0
        %5249 = vmatpush1.msra.mxu0 0.0
        %5250 = vmatprep.subr.mxu0 0.0
        %5251 = vmatpush1.msra.mxu0 0.0
        %5252 = vmatprep.subr.mxu0 0.0
        %5253 = vmatpush1.msra.mxu0 0.0
        %5254 = vmatprep.subr.mxu0 0.0
        %5255 = vmatpush1.msra.mxu0 0.0
        %5256 = vmatprep.subr.mxu0 0.0
        %5257 = vmatpush1.msra.mxu0 0.0
        %5258 = vmatprep.subr.mxu0 0.0
        %5259 = vmatpush1.msra.mxu0 0.0
        %5260 = vmatprep.subr.mxu0 0.0
        %5261 = vmatpush1.msra.mxu0 0.0
        %5262 = vmatprep.subr.mxu0 0.0
        %5263 = vmatpush1.msra.mxu0 %v5115
        %5264 = vmatprep.subr.mxu0 0.0
        %5265 = vmatpush1.msra.mxu0 %v5114
        %5266 = vmatprep.subr.mxu0 0.0
        %5267 = vmatpush1.msra.mxu0 %v5113
        %5268 = vmatprep.subr.mxu0 0.0
        %5269 = vmatpush1.msra.mxu0 %v5112
        %5270 = vmatprep.subr.mxu0 0.0
        %5271 = vmatpush2.msra.mxu0 0.0
        %5272 = vmatprep.subr.mxu0 0.0
        %5273 = vmatpush2.msra.mxu0 0.0
        %5274 = vmatprep.subr.mxu0 0.0
        %5275 = vmatpush2.msra.mxu0 0.0
        %5276 = vmatprep.subr.mxu0 0.0
        %5277 = vmatpush2.msra.mxu0 0.0
        %5278 = vmatprep.subr.mxu0 0.0
        %5279 = vmatpush2.msra.mxu0 0.0
        %5280 = vmatprep.subr.mxu0 0.0
        %5281 = vmatpush2.msra.mxu0 0.0
        %5282 = vmatprep.subr.mxu0 0.0
        %5283 = vmatpush2.msra.mxu0 0.0
        %5284 = vmatprep.subr.mxu0 0.0
        %5285 = vmatpush2.msra.mxu0 0.0
        %5286 = vmatprep.subr.mxu0 0.0
        %5287 = vmatpush2.msra.mxu0 0.0
        %5288 = vmatprep.subr.mxu0 0.0
        %5289 = vmatpush2.msra.mxu0 0.0
        %5290 = vmatprep.subr.mxu0 0.0
        %5291 = vmatpush2.msra.mxu0 0.0
        %5292 = vmatprep.subr.mxu0 0.0
        %5293 = vmatpush2.msra.mxu0 0.0
        %5294 = vmatprep.subr.mxu0 0.0
        %5295 = vmatpush2.msra.mxu0 0.0
        %5296 = vmatprep.subr.mxu0 0.0
        %5297 = vmatpush2.msra.mxu0 0.0
        %5298 = vmatprep.subr.mxu0 0.0
        %5299 = vmatpush2.msra.mxu0 0.0
        %5300 = vmatprep.subr.mxu0 0.0
        %5301 = vmatpush2.msra.mxu0 0.0
        %5302 = vmatprep.mubr.f32.mxu0 0.0
        %5303 = vmatmul.mubr.f32.gmra.mxu0 %v5236
        %v5304 = vpop.f32.mrf.mxu0
        %v5305 = vadd.f32 %v5117, %v5304
        %v5306 = vpop.f32.mrf.mxu0
        %5307 = vdwg.mxu0
        %v5308 = vadd.f32 %v5232, %v5305
        %v5309 = vsub.f32 0.0, %v5308
        %v5310 = vmul.f32 %v5309, 1.442695
        %v5311 = vpow.pop %v5310
        %v5312 = vadd.f32 %v5311, 1.0
        %v5313 = vrcp.pop %v5312
        %5315 = vrot.lane.b32.xlu0 %v5305, 96
        %v5316 = vpop.permute.xlu0 %5315
        %v5318 = vmul.f32 %v5313, %v5316
        %5320 = vrot.lane.b32.xlu0 %v5318, 32
        %v5321 = vpop.permute.xlu0 %5320
        %v5323 = vadd.f32 %v5232, %v5321
        %v5324 = vtanh.pop %v5323
        %v5325 = vsub.f32 1.0, %v5313
        %5327 = vrot.lane.b32.xlu0 %v5324, 112
        %v5328 = vpop.permute.xlu0 %5327
        %v5330 = vmul.f32 %v5325, %v5328
        %v5331 = vmul.f32 %v5313, %v5218
        %v5332 = vadd.f32 %v5330, %v5331
        %5334 = vrot.lane.b32.xlu0 %v5332, 112
        %v5335 = vpop.permute.xlu0 %5334
        %5337 = vst.msk [vmem:[#allocation5 + $0x1] sm:$0x1] %vm3320, %v5335
        %5338 = vst.msk [vmem:[#allocation6 + $0xd] sm:$0x2] %vm3322, %v5335
        %v5339 = vrot.slane %v5103, 2
        %v5341 = vrot.slane %v5108, 4
        %5342 = vrot.lane.b32.xlu0 %v5341, 80
        %v5343 = vpop.permute.xlu0 %5342
        %v5345 = vsel %vm2037, %v5339, %v5343
        %v5346 = vsel %vm3332, %v5335, %v5332
        %v5347 = vmul.f32 %v5346, %v3113
        %v5349 = vsel %vm468, %v5347, 0
        %5351 = vmatprep.subr.mxu0 0.0
        %5352 = vmatpush1.msra.mxu0 0.0
        %5353 = vmatprep.subr.mxu0 0.0
        %5354 = vmatpush1.msra.mxu0 0.0
        %5355 = vmatprep.subr.mxu0 0.0
        %5356 = vmatpush1.msra.mxu0 0.0
        %5357 = vmatprep.subr.mxu0 0.0
        %5358 = vmatpush1.msra.mxu0 0.0
        %5359 = vmatprep.subr.mxu0 0.0
        %5360 = vmatpush1.msra.mxu0 0.0
        %5361 = vmatprep.subr.mxu0 0.0
        %5362 = vmatpush1.msra.mxu0 0.0
        %5363 = vmatprep.subr.mxu0 0.0
        %5364 = vmatpush1.msra.mxu0 0.0
        %5365 = vmatprep.subr.mxu0 0.0
        %5366 = vmatpush1.msra.mxu0 0.0
        %5367 = vmatprep.subr.mxu0 0.0
        %5368 = vmatpush1.msra.mxu0 0.0
        %5369 = vmatprep.subr.mxu0 0.0
        %5370 = vmatpush1.msra.mxu0 0.0
        %5371 = vmatprep.subr.mxu0 0.0
        %5372 = vmatpush1.msra.mxu0 0.0
        %5373 = vmatprep.subr.mxu0 0.0
        %5374 = vmatpush1.msra.mxu0 0.0
        %5375 = vmatprep.subr.mxu0 0.0
        %5376 = vmatpush1.msra.mxu0 %v5115
        %5377 = vmatprep.subr.mxu0 0.0
        %5378 = vmatpush1.msra.mxu0 %v5114
        %5379 = vmatprep.subr.mxu0 0.0
        %5380 = vmatpush1.msra.mxu0 %v5113
        %5381 = vmatprep.subr.mxu0 0.0
        %5382 = vmatpush1.msra.mxu0 %v5112
        %5383 = vmatprep.subr.mxu0 0.0
        %5384 = vmatpush2.msra.mxu0 0.0
        %5385 = vmatprep.subr.mxu0 0.0
        %5386 = vmatpush2.msra.mxu0 0.0
        %5387 = vmatprep.subr.mxu0 0.0
        %5388 = vmatpush2.msra.mxu0 0.0
        %5389 = vmatprep.subr.mxu0 0.0
        %5390 = vmatpush2.msra.mxu0 0.0
        %5391 = vmatprep.subr.mxu0 0.0
        %5392 = vmatpush2.msra.mxu0 0.0
        %5393 = vmatprep.subr.mxu0 0.0
        %5394 = vmatpush2.msra.mxu0 0.0
        %5395 = vmatprep.subr.mxu0 0.0
        %5396 = vmatpush2.msra.mxu0 0.0
        %5397 = vmatprep.subr.mxu0 0.0
        %5398 = vmatpush2.msra.mxu0 0.0
        %5399 = vmatprep.subr.mxu0 0.0
        %5400 = vmatpush2.msra.mxu0 0.0
        %5401 = vmatprep.subr.mxu0 0.0
        %5402 = vmatpush2.msra.mxu0 0.0
        %5403 = vmatprep.subr.mxu0 0.0
        %5404 = vmatpush2.msra.mxu0 0.0
        %5405 = vmatprep.subr.mxu0 0.0
        %5406 = vmatpush2.msra.mxu0 0.0
        %5407 = vmatprep.subr.mxu0 0.0
        %5408 = vmatpush2.msra.mxu0 0.0
        %5409 = vmatprep.subr.mxu0 0.0
        %5410 = vmatpush2.msra.mxu0 0.0
        %5411 = vmatprep.subr.mxu0 0.0
        %5412 = vmatpush2.msra.mxu0 0.0
        %5413 = vmatprep.subr.mxu0 0.0
        %5414 = vmatpush2.msra.mxu0 0.0
        %5415 = vmatprep.mubr.f32.mxu0 0.0
        %5416 = vmatmul.mubr.f32.gmra.mxu0 %v5349
        %v5417 = vpop.f32.mrf.mxu0
        %v5418 = vadd.f32 %v5117, %v5417
        %v5419 = vpop.f32.mrf.mxu0
        %5420 = vdwg.mxu0
        %v5421 = vadd.f32 %v5345, %v5418
        %v5422 = vsub.f32 0.0, %v5421
        %v5423 = vmul.f32 %v5422, 1.442695
        %v5424 = vpow.pop %v5423
        %v5425 = vadd.f32 %v5424, 1.0
        %v5426 = vrcp.pop %v5425
        %5428 = vrot.lane.b32.xlu0 %v5418, 96
        %v5429 = vpop.permute.xlu0 %5428
        %v5431 = vmul.f32 %v5426, %v5429
        %5433 = vrot.lane.b32.xlu0 %v5431, 32
        %v5434 = vpop.permute.xlu0 %5433
        %v5436 = vadd.f32 %v5345, %v5434
        %v5437 = vtanh.pop %v5436
        %v5438 = vsub.f32 1.0, %v5426
        %5440 = vrot.lane.b32.xlu0 %v5437, 112
        %v5441 = vpop.permute.xlu0 %5440
        %v5443 = vmul.f32 %v5438, %v5441
        %v5444 = vmul.f32 %v5426, %v5332
        %v5445 = vadd.f32 %v5443, %v5444
        %5447 = vrot.lane.b32.xlu0 %v5445, 112
        %v5448 = vpop.permute.xlu0 %5447
        %5450 = vst.msk [vmem:[#allocation5 + $0x2] sm:$0x1] %vm3320, %v5448
        %5451 = vst.msk [vmem:[#allocation6 + $0xc] sm:$0x2] %vm3322, %v5448
        %v5452 = vrot.slane %v5103, 3
        %v5454 = vrot.slane %v5108, 3
        %5455 = vrot.lane.b32.xlu0 %v5454, 80
        %v5456 = vpop.permute.xlu0 %5455
        %v5458 = vsel %vm2037, %v5452, %v5456
        %v5459 = vsel %vm3332, %v5448, %v5445
        %v5460 = vmul.f32 %v5459, %v3113
        %v5462 = vsel %vm468, %v5460, 0
        %5464 = vmatprep.subr.mxu0 0.0
        %5465 = vmatpush1.msra.mxu0 0.0
        %5466 = vmatprep.subr.mxu0 0.0
        %5467 = vmatpush1.msra.mxu0 0.0
        %5468 = vmatprep.subr.mxu0 0.0
        %5469 = vmatpush1.msra.mxu0 0.0
        %5470 = vmatprep.subr.mxu0 0.0
        %5471 = vmatpush1.msra.mxu0 0.0
        %5472 = vmatprep.subr.mxu0 0.0
        %5473 = vmatpush1.msra.mxu0 0.0
        %5474 = vmatprep.subr.mxu0 0.0
        %5475 = vmatpush1.msra.mxu0 0.0
        %5476 = vmatprep.subr.mxu0 0.0
        %5477 = vmatpush1.msra.mxu0 0.0
        %5478 = vmatprep.subr.mxu0 0.0
        %5479 = vmatpush1.msra.mxu0 0.0
        %5480 = vmatprep.subr.mxu0 0.0
        %5481 = vmatpush1.msra.mxu0 0.0
        %5482 = vmatprep.subr.mxu0 0.0
        %5483 = vmatpush1.msra.mxu0 0.0
        %5484 = vmatprep.subr.mxu0 0.0
        %5485 = vmatpush1.msra.mxu0 0.0
        %5486 = vmatprep.subr.mxu0 0.0
        %5487 = vmatpush1.msra.mxu0 0.0
        %5488 = vmatprep.subr.mxu0 0.0
        %5489 = vmatpush1.msra.mxu0 %v5115
        %5490 = vmatprep.subr.mxu0 0.0
        %5491 = vmatpush1.msra.mxu0 %v5114
        %5492 = vmatprep.subr.mxu0 0.0
        %5493 = vmatpush1.msra.mxu0 %v5113
        %5494 = vmatprep.subr.mxu0 0.0
        %5495 = vmatpush1.msra.mxu0 %v5112
        %5496 = vmatprep.subr.mxu0 0.0
        %5497 = vmatpush2.msra.mxu0 0.0
        %5498 = vmatprep.subr.mxu0 0.0
        %5499 = vmatpush2.msra.mxu0 0.0
        %5500 = vmatprep.subr.mxu0 0.0
        %5501 = vmatpush2.msra.mxu0 0.0
        %5502 = vmatprep.subr.mxu0 0.0
        %5503 = vmatpush2.msra.mxu0 0.0
        %5504 = vmatprep.subr.mxu0 0.0
        %5505 = vmatpush2.msra.mxu0 0.0
        %5506 = vmatprep.subr.mxu0 0.0
        %5507 = vmatpush2.msra.mxu0 0.0
        %5508 = vmatprep.subr.mxu0 0.0
        %5509 = vmatpush2.msra.mxu0 0.0
        %5510 = vmatprep.subr.mxu0 0.0
        %5511 = vmatpush2.msra.mxu0 0.0
        %5512 = vmatprep.subr.mxu0 0.0
        %5513 = vmatpush2.msra.mxu0 0.0
        %5514 = vmatprep.subr.mxu0 0.0
        %5515 = vmatpush2.msra.mxu0 0.0
        %5516 = vmatprep.subr.mxu0 0.0
        %5517 = vmatpush2.msra.mxu0 0.0
        %5518 = vmatprep.subr.mxu0 0.0
        %5519 = vmatpush2.msra.mxu0 0.0
        %5520 = vmatprep.subr.mxu0 0.0
        %5521 = vmatpush2.msra.mxu0 0.0
        %5522 = vmatprep.subr.mxu0 0.0
        %5523 = vmatpush2.msra.mxu0 0.0
        %5524 = vmatprep.subr.mxu0 0.0
        %5525 = vmatpush2.msra.mxu0 0.0
        %5526 = vmatprep.subr.mxu0 0.0
        %5527 = vmatpush2.msra.mxu0 0.0
        %5528 = vmatprep.mubr.f32.mxu0 0.0
        %5529 = vmatmul.mubr.f32.gmra.mxu0 %v5462
        %v5530 = vpop.f32.mrf.mxu0
        %v5531 = vadd.f32 %v5117, %v5530
        %v5532 = vpop.f32.mrf.mxu0
        %5533 = vdwg.mxu0
        %v5534 = vadd.f32 %v5458, %v5531
        %v5535 = vsub.f32 0.0, %v5534
        %v5536 = vmul.f32 %v5535, 1.442695
        %v5537 = vpow.pop %v5536
        %v5538 = vadd.f32 %v5537, 1.0
        %v5539 = vrcp.pop %v5538
        %5541 = vrot.lane.b32.xlu0 %v5531, 96
        %v5542 = vpop.permute.xlu0 %5541
        %v5544 = vmul.f32 %v5539, %v5542
        %5546 = vrot.lane.b32.xlu0 %v5544, 32
        %v5547 = vpop.permute.xlu0 %5546
        %v5549 = vadd.f32 %v5458, %v5547
        %v5550 = vtanh.pop %v5549
        %v5551 = vsub.f32 1.0, %v5539
        %5553 = vrot.lane.b32.xlu0 %v5550, 112
        %v5554 = vpop.permute.xlu0 %5553
        %v5556 = vmul.f32 %v5551, %v5554
        %v5557 = vmul.f32 %v5539, %v5445
        %v5558 = vadd.f32 %v5556, %v5557
        %5560 = vrot.lane.b32.xlu0 %v5558, 112
        %v5561 = vpop.permute.xlu0 %5560
        %5563 = vst.msk [vmem:[#allocation5 + $0x3] sm:$0x1] %vm3320, %v5561
        %5564 = vst.msk [vmem:[#allocation6 + $0xb] sm:$0x2] %vm3322, %v5561
        %v5565 = vrot.slane %v5103, 4
        %v5567 = vrot.slane %v5108, 2
        %5568 = vrot.lane.b32.xlu0 %v5567, 80
        %v5569 = vpop.permute.xlu0 %5568
        %v5571 = vsel %vm2037, %v5565, %v5569
        %v5572 = vsel %vm3332, %v5561, %v5558
        %v5573 = vmul.f32 %v5572, %v3113
        %v5575 = vsel %vm468, %v5573, 0
        %5577 = vmatprep.subr.mxu0 0.0
        %5578 = vmatpush1.msra.mxu0 0.0
        %5579 = vmatprep.subr.mxu0 0.0
        %5580 = vmatpush1.msra.mxu0 0.0
        %5581 = vmatprep.subr.mxu0 0.0
        %5582 = vmatpush1.msra.mxu0 0.0
        %5583 = vmatprep.subr.mxu0 0.0
        %5584 = vmatpush1.msra.mxu0 0.0
        %5585 = vmatprep.subr.mxu0 0.0
        %5586 = vmatpush1.msra.mxu0 0.0
        %5587 = vmatprep.subr.mxu0 0.0
        %5588 = vmatpush1.msra.mxu0 0.0
        %5589 = vmatprep.subr.mxu0 0.0
        %5590 = vmatpush1.msra.mxu0 0.0
        %5591 = vmatprep.subr.mxu0 0.0
        %5592 = vmatpush1.msra.mxu0 0.0
        %5593 = vmatprep.subr.mxu0 0.0
        %5594 = vmatpush1.msra.mxu0 0.0
        %5595 = vmatprep.subr.mxu0 0.0
        %5596 = vmatpush1.msra.mxu0 0.0
        %5597 = vmatprep.subr.mxu0 0.0
        %5598 = vmatpush1.msra.mxu0 0.0
        %5599 = vmatprep.subr.mxu0 0.0
        %5600 = vmatpush1.msra.mxu0 0.0
        %5601 = vmatprep.subr.mxu0 0.0
        %5602 = vmatpush1.msra.mxu0 %v5115
        %5603 = vmatprep.subr.mxu0 0.0
        %5604 = vmatpush1.msra.mxu0 %v5114
        %5605 = vmatprep.subr.mxu0 0.0
        %5606 = vmatpush1.msra.mxu0 %v5113
        %5607 = vmatprep.subr.mxu0 0.0
        %5608 = vmatpush1.msra.mxu0 %v5112
        %5609 = vmatprep.subr.mxu0 0.0
        %5610 = vmatpush2.msra.mxu0 0.0
        %5611 = vmatprep.subr.mxu0 0.0
        %5612 = vmatpush2.msra.mxu0 0.0
        %5613 = vmatprep.subr.mxu0 0.0
        %5614 = vmatpush2.msra.mxu0 0.0
        %5615 = vmatprep.subr.mxu0 0.0
        %5616 = vmatpush2.msra.mxu0 0.0
        %5617 = vmatprep.subr.mxu0 0.0
        %5618 = vmatpush2.msra.mxu0 0.0
        %5619 = vmatprep.subr.mxu0 0.0
        %5620 = vmatpush2.msra.mxu0 0.0
        %5621 = vmatprep.subr.mxu0 0.0
        %5622 = vmatpush2.msra.mxu0 0.0
        %5623 = vmatprep.subr.mxu0 0.0
        %5624 = vmatpush2.msra.mxu0 0.0
        %5625 = vmatprep.subr.mxu0 0.0
        %5626 = vmatpush2.msra.mxu0 0.0
        %5627 = vmatprep.subr.mxu0 0.0
        %5628 = vmatpush2.msra.mxu0 0.0
        %5629 = vmatprep.subr.mxu0 0.0
        %5630 = vmatpush2.msra.mxu0 0.0
        %5631 = vmatprep.subr.mxu0 0.0
        %5632 = vmatpush2.msra.mxu0 0.0
        %5633 = vmatprep.subr.mxu0 0.0
        %5634 = vmatpush2.msra.mxu0 0.0
        %5635 = vmatprep.subr.mxu0 0.0
        %5636 = vmatpush2.msra.mxu0 0.0
        %5637 = vmatprep.subr.mxu0 0.0
        %5638 = vmatpush2.msra.mxu0 0.0
        %5639 = vmatprep.subr.mxu0 0.0
        %5640 = vmatpush2.msra.mxu0 0.0
        %5641 = vmatprep.mubr.f32.mxu0 0.0
        %5642 = vmatmul.mubr.f32.gmra.mxu0 %v5575
        %v5643 = vpop.f32.mrf.mxu0
        %v5644 = vadd.f32 %v5117, %v5643
        %v5645 = vpop.f32.mrf.mxu0
        %5646 = vdwg.mxu0
        %v5647 = vadd.f32 %v5571, %v5644
        %v5648 = vsub.f32 0.0, %v5647
        %v5649 = vmul.f32 %v5648, 1.442695
        %v5650 = vpow.pop %v5649
        %v5651 = vadd.f32 %v5650, 1.0
        %v5652 = vrcp.pop %v5651
        %5654 = vrot.lane.b32.xlu0 %v5644, 96
        %v5655 = vpop.permute.xlu0 %5654
        %v5657 = vmul.f32 %v5652, %v5655
        %5659 = vrot.lane.b32.xlu0 %v5657, 32
        %v5660 = vpop.permute.xlu0 %5659
        %v5662 = vadd.f32 %v5571, %v5660
        %v5663 = vtanh.pop %v5662
        %v5664 = vsub.f32 1.0, %v5652
        %5666 = vrot.lane.b32.xlu0 %v5663, 112
        %v5667 = vpop.permute.xlu0 %5666
        %v5669 = vmul.f32 %v5664, %v5667
        %v5670 = vmul.f32 %v5652, %v5558
        %v5671 = vadd.f32 %v5669, %v5670
        %5673 = vrot.lane.b32.xlu0 %v5671, 112
        %v5674 = vpop.permute.xlu0 %5673
        %5676 = vst.msk [vmem:[#allocation5 + $0x4] sm:$0x1] %vm3320, %v5674
        %5677 = vst.msk [vmem:[#allocation6 + $0xa] sm:$0x2] %vm3322, %v5674
        %v5678 = vrot.slane %v5103, 5
        %v5680 = vrot.slane %v5108, 1
        %5681 = vrot.lane.b32.xlu0 %v5680, 80
        %v5682 = vpop.permute.xlu0 %5681
        %v5684 = vsel %vm2037, %v5678, %v5682
        %v5685 = vsel %vm3332, %v5674, %v5671
        %v5686 = vmul.f32 %v5685, %v3113
        %v5688 = vsel %vm468, %v5686, 0
        %5690 = vmatprep.subr.mxu0 0.0
        %5691 = vmatpush1.msra.mxu0 0.0
        %5692 = vmatprep.subr.mxu0 0.0
        %5693 = vmatpush1.msra.mxu0 0.0
        %5694 = vmatprep.subr.mxu0 0.0
        %5695 = vmatpush1.msra.mxu0 0.0
        %5696 = vmatprep.subr.mxu0 0.0
        %5697 = vmatpush1.msra.mxu0 0.0
        %5698 = vmatprep.subr.mxu0 0.0
        %5699 = vmatpush1.msra.mxu0 0.0
        %5700 = vmatprep.subr.mxu0 0.0
        %5701 = vmatpush1.msra.mxu0 0.0
        %5702 = vmatprep.subr.mxu0 0.0
        %5703 = vmatpush1.msra.mxu0 0.0
        %5704 = vmatprep.subr.mxu0 0.0
        %5705 = vmatpush1.msra.mxu0 0.0
        %5706 = vmatprep.subr.mxu0 0.0
        %5707 = vmatpush1.msra.mxu0 0.0
        %5708 = vmatprep.subr.mxu0 0.0
        %5709 = vmatpush1.msra.mxu0 0.0
        %5710 = vmatprep.subr.mxu0 0.0
        %5711 = vmatpush1.msra.mxu0 0.0
        %5712 = vmatprep.subr.mxu0 0.0
        %5713 = vmatpush1.msra.mxu0 0.0
        %5714 = vmatprep.subr.mxu0 0.0
        %5715 = vmatpush1.msra.mxu0 %v5115
        %5716 = vmatprep.subr.mxu0 0.0
        %5717 = vmatpush1.msra.mxu0 %v5114
        %5718 = vmatprep.subr.mxu0 0.0
        %5719 = vmatpush1.msra.mxu0 %v5113
        %5720 = vmatprep.subr.mxu0 0.0
        %5721 = vmatpush1.msra.mxu0 %v5112
        %5722 = vmatprep.subr.mxu0 0.0
        %5723 = vmatpush2.msra.mxu0 0.0
        %5724 = vmatprep.subr.mxu0 0.0
        %5725 = vmatpush2.msra.mxu0 0.0
        %5726 = vmatprep.subr.mxu0 0.0
        %5727 = vmatpush2.msra.mxu0 0.0
        %5728 = vmatprep.subr.mxu0 0.0
        %5729 = vmatpush2.msra.mxu0 0.0
        %5730 = vmatprep.subr.mxu0 0.0
        %5731 = vmatpush2.msra.mxu0 0.0
        %5732 = vmatprep.subr.mxu0 0.0
        %5733 = vmatpush2.msra.mxu0 0.0
        %5734 = vmatprep.subr.mxu0 0.0
        %5735 = vmatpush2.msra.mxu0 0.0
        %5736 = vmatprep.subr.mxu0 0.0
        %5737 = vmatpush2.msra.mxu0 0.0
        %5738 = vmatprep.subr.mxu0 0.0
        %5739 = vmatpush2.msra.mxu0 0.0
        %5740 = vmatprep.subr.mxu0 0.0
        %5741 = vmatpush2.msra.mxu0 0.0
        %5742 = vmatprep.subr.mxu0 0.0
        %5743 = vmatpush2.msra.mxu0 0.0
        %5744 = vmatprep.subr.mxu0 0.0
        %5745 = vmatpush2.msra.mxu0 0.0
        %5746 = vmatprep.subr.mxu0 0.0
        %5747 = vmatpush2.msra.mxu0 0.0
        %5748 = vmatprep.subr.mxu0 0.0
        %5749 = vmatpush2.msra.mxu0 0.0
        %5750 = vmatprep.subr.mxu0 0.0
        %5751 = vmatpush2.msra.mxu0 0.0
        %5752 = vmatprep.subr.mxu0 0.0
        %5753 = vmatpush2.msra.mxu0 0.0
        %5754 = vmatprep.mubr.f32.mxu0 0.0
        %5755 = vmatmul.mubr.f32.gmra.mxu0 %v5688
        %v5756 = vpop.f32.mrf.mxu0
        %v5757 = vadd.f32 %v5117, %v5756
        %v5758 = vpop.f32.mrf.mxu0
        %5759 = vdwg.mxu0
        %v5760 = vadd.f32 %v5684, %v5757
        %v5761 = vsub.f32 0.0, %v5760
        %v5762 = vmul.f32 %v5761, 1.442695
        %v5763 = vpow.pop %v5762
        %v5764 = vadd.f32 %v5763, 1.0
        %v5765 = vrcp.pop %v5764
        %5767 = vrot.lane.b32.xlu0 %v5757, 96
        %v5768 = vpop.permute.xlu0 %5767
        %v5770 = vmul.f32 %v5765, %v5768
        %5772 = vrot.lane.b32.xlu0 %v5770, 32
        %v5773 = vpop.permute.xlu0 %5772
        %v5775 = vadd.f32 %v5684, %v5773
        %v5776 = vtanh.pop %v5775
        %v5777 = vsub.f32 1.0, %v5765
        %5779 = vrot.lane.b32.xlu0 %v5776, 112
        %v5780 = vpop.permute.xlu0 %5779
        %v5782 = vmul.f32 %v5777, %v5780
        %v5783 = vmul.f32 %v5765, %v5671
        %v5784 = vadd.f32 %v5782, %v5783
        %5786 = vrot.lane.b32.xlu0 %v5784, 112
        %v5787 = vpop.permute.xlu0 %5786
        %5789 = vst.msk [vmem:[#allocation5 + $0x5] sm:$0x1] %vm3320, %v5787
        %5790 = vst.msk [vmem:[#allocation6 + $0x9] sm:$0x2] %vm3322, %v5787
        %v5791 = vrot.slane %v5103, 6
        %5793 = vrot.lane.b32.xlu0 %v5108, 80
        %v5794 = vpop.permute.xlu0 %5793
        %v5796 = vsel %vm2037, %v5791, %v5794
        %v5797 = vsel %vm3332, %v5787, %v5784
        %v5798 = vmul.f32 %v5797, %v3113
        %v5800 = vsel %vm468, %v5798, 0
        %5802 = vmatprep.subr.mxu0 0.0
        %5803 = vmatpush1.msra.mxu0 0.0
        %5804 = vmatprep.subr.mxu0 0.0
        %5805 = vmatpush1.msra.mxu0 0.0
        %5806 = vmatprep.subr.mxu0 0.0
        %5807 = vmatpush1.msra.mxu0 0.0
        %5808 = vmatprep.subr.mxu0 0.0
        %5809 = vmatpush1.msra.mxu0 0.0
        %5810 = vmatprep.subr.mxu0 0.0
        %5811 = vmatpush1.msra.mxu0 0.0
        %5812 = vmatprep.subr.mxu0 0.0
        %5813 = vmatpush1.msra.mxu0 0.0
        %5814 = vmatprep.subr.mxu0 0.0
        %5815 = vmatpush1.msra.mxu0 0.0
        %5816 = vmatprep.subr.mxu0 0.0
        %5817 = vmatpush1.msra.mxu0 0.0
        %5818 = vmatprep.subr.mxu0 0.0
        %5819 = vmatpush1.msra.mxu0 0.0
        %5820 = vmatprep.subr.mxu0 0.0
        %5821 = vmatpush1.msra.mxu0 0.0
        %5822 = vmatprep.subr.mxu0 0.0
        %5823 = vmatpush1.msra.mxu0 0.0
        %5824 = vmatprep.subr.mxu0 0.0
        %5825 = vmatpush1.msra.mxu0 0.0
        %5826 = vmatprep.subr.mxu0 0.0
        %5827 = vmatpush1.msra.mxu0 %v5115
        %5828 = vmatprep.subr.mxu0 0.0
        %5829 = vmatpush1.msra.mxu0 %v5114
        %5830 = vmatprep.subr.mxu0 0.0
        %5831 = vmatpush1.msra.mxu0 %v5113
        %5832 = vmatprep.subr.mxu0 0.0
        %5833 = vmatpush1.msra.mxu0 %v5112
        %5834 = vmatprep.subr.mxu0 0.0
        %5835 = vmatpush2.msra.mxu0 0.0
        %5836 = vmatprep.subr.mxu0 0.0
        %5837 = vmatpush2.msra.mxu0 0.0
        %5838 = vmatprep.subr.mxu0 0.0
        %5839 = vmatpush2.msra.mxu0 0.0
        %5840 = vmatprep.subr.mxu0 0.0
        %5841 = vmatpush2.msra.mxu0 0.0
        %5842 = vmatprep.subr.mxu0 0.0
        %5843 = vmatpush2.msra.mxu0 0.0
        %5844 = vmatprep.subr.mxu0 0.0
        %5845 = vmatpush2.msra.mxu0 0.0
        %5846 = vmatprep.subr.mxu0 0.0
        %5847 = vmatpush2.msra.mxu0 0.0
        %5848 = vmatprep.subr.mxu0 0.0
        %5849 = vmatpush2.msra.mxu0 0.0
        %5850 = vmatprep.subr.mxu0 0.0
        %5851 = vmatpush2.msra.mxu0 0.0
        %5852 = vmatprep.subr.mxu0 0.0
        %5853 = vmatpush2.msra.mxu0 0.0
        %5854 = vmatprep.subr.mxu0 0.0
        %5855 = vmatpush2.msra.mxu0 0.0
        %5856 = vmatprep.subr.mxu0 0.0
        %5857 = vmatpush2.msra.mxu0 0.0
        %5858 = vmatprep.subr.mxu0 0.0
        %5859 = vmatpush2.msra.mxu0 0.0
        %5860 = vmatprep.subr.mxu0 0.0
        %5861 = vmatpush2.msra.mxu0 0.0
        %5862 = vmatprep.subr.mxu0 0.0
        %5863 = vmatpush2.msra.mxu0 0.0
        %5864 = vmatprep.subr.mxu0 0.0
        %5865 = vmatpush2.msra.mxu0 0.0
        %5866 = vmatprep.mubr.f32.mxu0 0.0
        %5867 = vmatmul.mubr.f32.gmra.mxu0 %v5800
        %v5868 = vpop.f32.mrf.mxu0
        %v5869 = vadd.f32 %v5117, %v5868
        %v5870 = vpop.f32.mrf.mxu0
        %5871 = vdwg.mxu0
        %v5872 = vadd.f32 %v5796, %v5869
        %v5873 = vsub.f32 0.0, %v5872
        %v5874 = vmul.f32 %v5873, 1.442695
        %v5875 = vpow.pop %v5874
        %v5876 = vadd.f32 %v5875, 1.0
        %v5877 = vrcp.pop %v5876
        %5879 = vrot.lane.b32.xlu0 %v5869, 96
        %v5880 = vpop.permute.xlu0 %5879
        %v5882 = vmul.f32 %v5877, %v5880
        %5884 = vrot.lane.b32.xlu0 %v5882, 32
        %v5885 = vpop.permute.xlu0 %5884
        %v5887 = vadd.f32 %v5796, %v5885
        %v5888 = vtanh.pop %v5887
        %v5889 = vsub.f32 1.0, %v5877
        %5891 = vrot.lane.b32.xlu0 %v5888, 112
        %v5892 = vpop.permute.xlu0 %5891
        %v5894 = vmul.f32 %v5889, %v5892
        %v5895 = vmul.f32 %v5877, %v5784
        %v5896 = vadd.f32 %v5894, %v5895
        %5898 = vrot.lane.b32.xlu0 %v5896, 112
        %v5899 = vpop.permute.xlu0 %5898
        %5901 = vst.msk [vmem:[#allocation5 + $0x6] sm:$0x1] %vm3320, %v5899
        %5902 = vst.msk [vmem:[#allocation6 + $0x8] sm:$0x2] %vm3322, %v5899
        %v5903 = vrot.slane %v5103, 7
        %v5905 = vrot.slane %v5108, 7
        %5906 = vrot.lane.b32.xlu0 %v5905, 80
        %v5907 = vpop.permute.xlu0 %5906
        %v5909 = vsel %vm2037, %v5903, %v5907
        %v5910 = vsel %vm3332, %v5899, %v5896
        %v5911 = vmul.f32 %v5910, %v3113
        %v5913 = vsel %vm468, %v5911, 0
        %5915 = vmatprep.subr.mxu0 0.0
        %5916 = vmatpush1.msra.mxu0 0.0
        %5917 = vmatprep.subr.mxu0 0.0
        %5918 = vmatpush1.msra.mxu0 0.0
        %5919 = vmatprep.subr.mxu0 0.0
        %5920 = vmatpush1.msra.mxu0 0.0
        %5921 = vmatprep.subr.mxu0 0.0
        %5922 = vmatpush1.msra.mxu0 0.0
        %5923 = vmatprep.subr.mxu0 0.0
        %5924 = vmatpush1.msra.mxu0 0.0
        %5925 = vmatprep.subr.mxu0 0.0
        %5926 = vmatpush1.msra.mxu0 0.0
        %5927 = vmatprep.subr.mxu0 0.0
        %5928 = vmatpush1.msra.mxu0 0.0
        %5929 = vmatprep.subr.mxu0 0.0
        %5930 = vmatpush1.msra.mxu0 0.0
        %5931 = vmatprep.subr.mxu0 0.0
        %5932 = vmatpush1.msra.mxu0 0.0
        %5933 = vmatprep.subr.mxu0 0.0
        %5934 = vmatpush1.msra.mxu0 0.0
        %5935 = vmatprep.subr.mxu0 0.0
        %5936 = vmatpush1.msra.mxu0 0.0
        %5937 = vmatprep.subr.mxu0 0.0
        %5938 = vmatpush1.msra.mxu0 0.0
        %5939 = vmatprep.subr.mxu0 0.0
        %5940 = vmatpush1.msra.mxu0 %v5115
        %5941 = vmatprep.subr.mxu0 0.0
        %5942 = vmatpush1.msra.mxu0 %v5114
        %5943 = vmatprep.subr.mxu0 0.0
        %5944 = vmatpush1.msra.mxu0 %v5113
        %5945 = vmatprep.subr.mxu0 0.0
        %5946 = vmatpush1.msra.mxu0 %v5112
        %5947 = vmatprep.subr.mxu0 0.0
        %5948 = vmatpush2.msra.mxu0 0.0
        %5949 = vmatprep.subr.mxu0 0.0
        %5950 = vmatpush2.msra.mxu0 0.0
        %5951 = vmatprep.subr.mxu0 0.0
        %5952 = vmatpush2.msra.mxu0 0.0
        %5953 = vmatprep.subr.mxu0 0.0
        %5954 = vmatpush2.msra.mxu0 0.0
        %5955 = vmatprep.subr.mxu0 0.0
        %5956 = vmatpush2.msra.mxu0 0.0
        %5957 = vmatprep.subr.mxu0 0.0
        %5958 = vmatpush2.msra.mxu0 0.0
        %5959 = vmatprep.subr.mxu0 0.0
        %5960 = vmatpush2.msra.mxu0 0.0
        %5961 = vmatprep.subr.mxu0 0.0
        %5962 = vmatpush2.msra.mxu0 0.0
        %5963 = vmatprep.subr.mxu0 0.0
        %5964 = vmatpush2.msra.mxu0 0.0
        %5965 = vmatprep.subr.mxu0 0.0
        %5966 = vmatpush2.msra.mxu0 0.0
        %5967 = vmatprep.subr.mxu0 0.0
        %5968 = vmatpush2.msra.mxu0 0.0
        %5969 = vmatprep.subr.mxu0 0.0
        %5970 = vmatpush2.msra.mxu0 0.0
        %5971 = vmatprep.subr.mxu0 0.0
        %5972 = vmatpush2.msra.mxu0 0.0
        %5973 = vmatprep.subr.mxu0 0.0
        %5974 = vmatpush2.msra.mxu0 0.0
        %5975 = vmatprep.subr.mxu0 0.0
        %5976 = vmatpush2.msra.mxu0 0.0
        %5977 = vmatprep.subr.mxu0 0.0
        %5978 = vmatpush2.msra.mxu0 0.0
        %5979 = vmatprep.mubr.f32.mxu0 0.0
        %5980 = vmatmul.mubr.f32.gmra.mxu0 %v5913
        %v5981 = vpop.f32.mrf.mxu0
        %v5982 = vadd.f32 %v5117, %v5981
        %v5983 = vpop.f32.mrf.mxu0
        %5984 = vdwg.mxu0
        %v5985 = vadd.f32 %v5909, %v5982
        %v5986 = vsub.f32 0.0, %v5985
        %v5987 = vmul.f32 %v5986, 1.442695
        %v5988 = vpow.pop %v5987
        %v5989 = vadd.f32 %v5988, 1.0
        %v5990 = vrcp.pop %v5989
        %5992 = vrot.lane.b32.xlu0 %v5982, 96
        %v5993 = vpop.permute.xlu0 %5992
        %v5995 = vmul.f32 %v5990, %v5993
        %5997 = vrot.lane.b32.xlu0 %v5995, 32
        %v5998 = vpop.permute.xlu0 %5997
        %v6000 = vadd.f32 %v5909, %v5998
        %v6001 = vtanh.pop %v6000
        %v6002 = vsub.f32 1.0, %v5990
        %6004 = vrot.lane.b32.xlu0 %v6001, 112
        %v6005 = vpop.permute.xlu0 %6004
        %v6007 = vmul.f32 %v6002, %v6005
        %v6008 = vmul.f32 %v5990, %v5896
        %v6009 = vadd.f32 %v6007, %v6008
        %6011 = vrot.lane.b32.xlu0 %v6009, 112
        %v6012 = vpop.permute.xlu0 %6011
        %6014 = vst.msk [vmem:[#allocation5 + $0x7] sm:$0x1] %vm3320, %v6012
        %6015 = vst.msk [vmem:[#allocation6 + $0x7] sm:$0x2] %vm3322, %v6012
        %6016 = vrot.lane.b32.xlu0 %v5791, 80
        %v6017 = vpop.permute.xlu0 %6016
        %v6019 = vsel %vm2037, %v5108, %v6017
        %v6020 = vsel %vm3332, %v6012, %v6009
        %v6021 = vmul.f32 %v6020, %v3113
        %v6023 = vsel %vm468, %v6021, 0
        %6025 = vmatprep.subr.mxu0 0.0
        %6026 = vmatpush1.msra.mxu0 0.0
        %6027 = vmatprep.subr.mxu0 0.0
        %6028 = vmatpush1.msra.mxu0 0.0
        %6029 = vmatprep.subr.mxu0 0.0
        %6030 = vmatpush1.msra.mxu0 0.0
        %6031 = vmatprep.subr.mxu0 0.0
        %6032 = vmatpush1.msra.mxu0 0.0
        %6033 = vmatprep.subr.mxu0 0.0
        %6034 = vmatpush1.msra.mxu0 0.0
        %6035 = vmatprep.subr.mxu0 0.0
        %6036 = vmatpush1.msra.mxu0 0.0
        %6037 = vmatprep.subr.mxu0 0.0
        %6038 = vmatpush1.msra.mxu0 0.0
        %6039 = vmatprep.subr.mxu0 0.0
        %6040 = vmatpush1.msra.mxu0 0.0
        %6041 = vmatprep.subr.mxu0 0.0
        %6042 = vmatpush1.msra.mxu0 0.0
        %6043 = vmatprep.subr.mxu0 0.0
        %6044 = vmatpush1.msra.mxu0 0.0
        %6045 = vmatprep.subr.mxu0 0.0
        %6046 = vmatpush1.msra.mxu0 0.0
        %6047 = vmatprep.subr.mxu0 0.0
        %6048 = vmatpush1.msra.mxu0 0.0
        %6049 = vmatprep.subr.mxu0 0.0
        %6050 = vmatpush1.msra.mxu0 %v5115
        %6051 = vmatprep.subr.mxu0 0.0
        %6052 = vmatpush1.msra.mxu0 %v5114
        %6053 = vmatprep.subr.mxu0 0.0
        %6054 = vmatpush1.msra.mxu0 %v5113
        %6055 = vmatprep.subr.mxu0 0.0
        %6056 = vmatpush1.msra.mxu0 %v5112
        %6057 = vmatprep.subr.mxu0 0.0
        %6058 = vmatpush2.msra.mxu0 0.0
        %6059 = vmatprep.subr.mxu0 0.0
        %6060 = vmatpush2.msra.mxu0 0.0
        %6061 = vmatprep.subr.mxu0 0.0
        %6062 = vmatpush2.msra.mxu0 0.0
        %6063 = vmatprep.subr.mxu0 0.0
        %6064 = vmatpush2.msra.mxu0 0.0
        %6065 = vmatprep.subr.mxu0 0.0
        %6066 = vmatpush2.msra.mxu0 0.0
        %6067 = vmatprep.subr.mxu0 0.0
        %6068 = vmatpush2.msra.mxu0 0.0
        %6069 = vmatprep.subr.mxu0 0.0
        %6070 = vmatpush2.msra.mxu0 0.0
        %6071 = vmatprep.subr.mxu0 0.0
        %6072 = vmatpush2.msra.mxu0 0.0
        %6073 = vmatprep.subr.mxu0 0.0
        %6074 = vmatpush2.msra.mxu0 0.0
        %6075 = vmatprep.subr.mxu0 0.0
        %6076 = vmatpush2.msra.mxu0 0.0
        %6077 = vmatprep.subr.mxu0 0.0
        %6078 = vmatpush2.msra.mxu0 0.0
        %6079 = vmatprep.subr.mxu0 0.0
        %6080 = vmatpush2.msra.mxu0 0.0
        %6081 = vmatprep.subr.mxu0 0.0
        %6082 = vmatpush2.msra.mxu0 0.0
        %6083 = vmatprep.subr.mxu0 0.0
        %6084 = vmatpush2.msra.mxu0 0.0
        %6085 = vmatprep.subr.mxu0 0.0
        %6086 = vmatpush2.msra.mxu0 0.0
        %6087 = vmatprep.subr.mxu0 0.0
        %6088 = vmatpush2.msra.mxu0 0.0
        %6089 = vmatprep.mubr.f32.mxu0 0.0
        %6090 = vmatmul.mubr.f32.gmra.mxu0 %v6023
        %v6091 = vpop.f32.mrf.mxu0
        %v6092 = vadd.f32 %v5117, %v6091
        %v6093 = vpop.f32.mrf.mxu0
        %6094 = vdwg.mxu0
        %v6095 = vadd.f32 %v6019, %v6092
        %v6096 = vsub.f32 0.0, %v6095
        %v6097 = vmul.f32 %v6096, 1.442695
        %v6098 = vpow.pop %v6097
        %v6099 = vadd.f32 %v6098, 1.0
        %v6100 = vrcp.pop %v6099
        %6102 = vrot.lane.b32.xlu0 %v6092, 96
        %v6103 = vpop.permute.xlu0 %6102
        %v6105 = vmul.f32 %v6100, %v6103
        %6107 = vrot.lane.b32.xlu0 %v6105, 32
        %v6108 = vpop.permute.xlu0 %6107
        %v6110 = vadd.f32 %v6019, %v6108
        %v6111 = vtanh.pop %v6110
        %v6112 = vsub.f32 1.0, %v6100
        %6114 = vrot.lane.b32.xlu0 %v6111, 112
        %v6115 = vpop.permute.xlu0 %6114
        %v6117 = vmul.f32 %v6112, %v6115
        %v6118 = vmul.f32 %v6100, %v6009
        %v6119 = vadd.f32 %v6117, %v6118
        %6121 = vrot.lane.b32.xlu0 %v6119, 112
        %v6122 = vpop.permute.xlu0 %6121
        %6124 = vst.msk [vmem:[#allocation5 + $0x8] sm:$0x1] %vm3320, %v6122
        %6125 = vst.msk [vmem:[#allocation6 + $0x6] sm:$0x2] %vm3322, %v6122
        %6127 = vrot.lane.b32.xlu0 %v5678, 80
        %v6128 = vpop.permute.xlu0 %6127
        %v6130 = vsel %vm2037, %v5680, %v6128
        %v6131 = vsel %vm3332, %v6122, %v6119
        %v6132 = vmul.f32 %v6131, %v3113
        %v6134 = vsel %vm468, %v6132, 0
        %6136 = vmatprep.subr.mxu0 0.0
        %6137 = vmatpush1.msra.mxu0 0.0
        %6138 = vmatprep.subr.mxu0 0.0
        %6139 = vmatpush1.msra.mxu0 0.0
        %6140 = vmatprep.subr.mxu0 0.0
        %6141 = vmatpush1.msra.mxu0 0.0
        %6142 = vmatprep.subr.mxu0 0.0
        %6143 = vmatpush1.msra.mxu0 0.0
        %6144 = vmatprep.subr.mxu0 0.0
        %6145 = vmatpush1.msra.mxu0 0.0
        %6146 = vmatprep.subr.mxu0 0.0
        %6147 = vmatpush1.msra.mxu0 0.0
        %6148 = vmatprep.subr.mxu0 0.0
        %6149 = vmatpush1.msra.mxu0 0.0
        %6150 = vmatprep.subr.mxu0 0.0
        %6151 = vmatpush1.msra.mxu0 0.0
        %6152 = vmatprep.subr.mxu0 0.0
        %6153 = vmatpush1.msra.mxu0 0.0
        %6154 = vmatprep.subr.mxu0 0.0
        %6155 = vmatpush1.msra.mxu0 0.0
        %6156 = vmatprep.subr.mxu0 0.0
        %6157 = vmatpush1.msra.mxu0 0.0
        %6158 = vmatprep.subr.mxu0 0.0
        %6159 = vmatpush1.msra.mxu0 0.0
        %6160 = vmatprep.subr.mxu0 0.0
        %6161 = vmatpush1.msra.mxu0 %v5115
        %6162 = vmatprep.subr.mxu0 0.0
        %6163 = vmatpush1.msra.mxu0 %v5114
        %6164 = vmatprep.subr.mxu0 0.0
        %6165 = vmatpush1.msra.mxu0 %v5113
        %6166 = vmatprep.subr.mxu0 0.0
        %6167 = vmatpush1.msra.mxu0 %v5112
        %6168 = vmatprep.subr.mxu0 0.0
        %6169 = vmatpush2.msra.mxu0 0.0
        %6170 = vmatprep.subr.mxu0 0.0
        %6171 = vmatpush2.msra.mxu0 0.0
        %6172 = vmatprep.subr.mxu0 0.0
        %6173 = vmatpush2.msra.mxu0 0.0
        %6174 = vmatprep.subr.mxu0 0.0
        %6175 = vmatpush2.msra.mxu0 0.0
        %6176 = vmatprep.subr.mxu0 0.0
        %6177 = vmatpush2.msra.mxu0 0.0
        %6178 = vmatprep.subr.mxu0 0.0
        %6179 = vmatpush2.msra.mxu0 0.0
        %6180 = vmatprep.subr.mxu0 0.0
        %6181 = vmatpush2.msra.mxu0 0.0
        %6182 = vmatprep.subr.mxu0 0.0
        %6183 = vmatpush2.msra.mxu0 0.0
        %6184 = vmatprep.subr.mxu0 0.0
        %6185 = vmatpush2.msra.mxu0 0.0
        %6186 = vmatprep.subr.mxu0 0.0
        %6187 = vmatpush2.msra.mxu0 0.0
        %6188 = vmatprep.subr.mxu0 0.0
        %6189 = vmatpush2.msra.mxu0 0.0
        %6190 = vmatprep.subr.mxu0 0.0
        %6191 = vmatpush2.msra.mxu0 0.0
        %6192 = vmatprep.subr.mxu0 0.0
        %6193 = vmatpush2.msra.mxu0 0.0
        %6194 = vmatprep.subr.mxu0 0.0
        %6195 = vmatpush2.msra.mxu0 0.0
        %6196 = vmatprep.subr.mxu0 0.0
        %6197 = vmatpush2.msra.mxu0 0.0
        %6198 = vmatprep.subr.mxu0 0.0
        %6199 = vmatpush2.msra.mxu0 0.0
        %6200 = vmatprep.mubr.f32.mxu0 0.0
        %6201 = vmatmul.mubr.f32.gmra.mxu0 %v6134
        %v6202 = vpop.f32.mrf.mxu0
        %v6203 = vadd.f32 %v5117, %v6202
        %v6204 = vpop.f32.mrf.mxu0
        %6205 = vdwg.mxu0
        %v6206 = vadd.f32 %v6130, %v6203
        %v6207 = vsub.f32 0.0, %v6206
        %v6208 = vmul.f32 %v6207, 1.442695
        %v6209 = vpow.pop %v6208
        %v6210 = vadd.f32 %v6209, 1.0
        %v6211 = vrcp.pop %v6210
        %6213 = vrot.lane.b32.xlu0 %v6203, 96
        %v6214 = vpop.permute.xlu0 %6213
        %v6216 = vmul.f32 %v6211, %v6214
        %6218 = vrot.lane.b32.xlu0 %v6216, 32
        %v6219 = vpop.permute.xlu0 %6218
        %v6221 = vadd.f32 %v6130, %v6219
        %v6222 = vtanh.pop %v6221
        %v6223 = vsub.f32 1.0, %v6211
        %6225 = vrot.lane.b32.xlu0 %v6222, 112
        %v6226 = vpop.permute.xlu0 %6225
        %v6228 = vmul.f32 %v6223, %v6226
        %v6229 = vmul.f32 %v6211, %v6119
        %v6230 = vadd.f32 %v6228, %v6229
        %6232 = vrot.lane.b32.xlu0 %v6230, 112
        %v6233 = vpop.permute.xlu0 %6232
        %6235 = vst.msk [vmem:[#allocation5 + $0x9] sm:$0x1] %vm3320, %v6233
        %6236 = vst.msk [vmem:[#allocation6 + $0x5] sm:$0x2] %vm3322, %v6233
        %6238 = vrot.lane.b32.xlu0 %v5565, 80
        %v6239 = vpop.permute.xlu0 %6238
        %v6241 = vsel %vm2037, %v5567, %v6239
        %v6242 = vsel %vm3332, %v6233, %v6230
        %v6243 = vmul.f32 %v6242, %v3113
        %v6245 = vsel %vm468, %v6243, 0
        %6247 = vmatprep.subr.mxu0 0.0
        %6248 = vmatpush1.msra.mxu0 0.0
        %6249 = vmatprep.subr.mxu0 0.0
        %6250 = vmatpush1.msra.mxu0 0.0
        %6251 = vmatprep.subr.mxu0 0.0
        %6252 = vmatpush1.msra.mxu0 0.0
        %6253 = vmatprep.subr.mxu0 0.0
        %6254 = vmatpush1.msra.mxu0 0.0
        %6255 = vmatprep.subr.mxu0 0.0
        %6256 = vmatpush1.msra.mxu0 0.0
        %6257 = vmatprep.subr.mxu0 0.0
        %6258 = vmatpush1.msra.mxu0 0.0
        %6259 = vmatprep.subr.mxu0 0.0
        %6260 = vmatpush1.msra.mxu0 0.0
        %6261 = vmatprep.subr.mxu0 0.0
        %6262 = vmatpush1.msra.mxu0 0.0
        %6263 = vmatprep.subr.mxu0 0.0
        %6264 = vmatpush1.msra.mxu0 0.0
        %6265 = vmatprep.subr.mxu0 0.0
        %6266 = vmatpush1.msra.mxu0 0.0
        %6267 = vmatprep.subr.mxu0 0.0
        %6268 = vmatpush1.msra.mxu0 0.0
        %6269 = vmatprep.subr.mxu0 0.0
        %6270 = vmatpush1.msra.mxu0 0.0
        %6271 = vmatprep.subr.mxu0 0.0
        %6272 = vmatpush1.msra.mxu0 %v5115
        %6273 = vmatprep.subr.mxu0 0.0
        %6274 = vmatpush1.msra.mxu0 %v5114
        %6275 = vmatprep.subr.mxu0 0.0
        %6276 = vmatpush1.msra.mxu0 %v5113
        %6277 = vmatprep.subr.mxu0 0.0
        %6278 = vmatpush1.msra.mxu0 %v5112
        %6279 = vmatprep.subr.mxu0 0.0
        %6280 = vmatpush2.msra.mxu0 0.0
        %6281 = vmatprep.subr.mxu0 0.0
        %6282 = vmatpush2.msra.mxu0 0.0
        %6283 = vmatprep.subr.mxu0 0.0
        %6284 = vmatpush2.msra.mxu0 0.0
        %6285 = vmatprep.subr.mxu0 0.0
        %6286 = vmatpush2.msra.mxu0 0.0
        %6287 = vmatprep.subr.mxu0 0.0
        %6288 = vmatpush2.msra.mxu0 0.0
        %6289 = vmatprep.subr.mxu0 0.0
        %6290 = vmatpush2.msra.mxu0 0.0
        %6291 = vmatprep.subr.mxu0 0.0
        %6292 = vmatpush2.msra.mxu0 0.0
        %6293 = vmatprep.subr.mxu0 0.0
        %6294 = vmatpush2.msra.mxu0 0.0
        %6295 = vmatprep.subr.mxu0 0.0
        %6296 = vmatpush2.msra.mxu0 0.0
        %6297 = vmatprep.subr.mxu0 0.0
        %6298 = vmatpush2.msra.mxu0 0.0
        %6299 = vmatprep.subr.mxu0 0.0
        %6300 = vmatpush2.msra.mxu0 0.0
        %6301 = vmatprep.subr.mxu0 0.0
        %6302 = vmatpush2.msra.mxu0 0.0
        %6303 = vmatprep.subr.mxu0 0.0
        %6304 = vmatpush2.msra.mxu0 0.0
        %6305 = vmatprep.subr.mxu0 0.0
        %6306 = vmatpush2.msra.mxu0 0.0
        %6307 = vmatprep.subr.mxu0 0.0
        %6308 = vmatpush2.msra.mxu0 0.0
        %6309 = vmatprep.subr.mxu0 0.0
        %6310 = vmatpush2.msra.mxu0 0.0
        %6311 = vmatprep.mubr.f32.mxu0 0.0
        %6312 = vmatmul.mubr.f32.gmra.mxu0 %v6245
        %v6313 = vpop.f32.mrf.mxu0
        %v6314 = vadd.f32 %v5117, %v6313
        %v6315 = vpop.f32.mrf.mxu0
        %6316 = vdwg.mxu0
        %v6317 = vadd.f32 %v6241, %v6314
        %v6318 = vsub.f32 0.0, %v6317
        %v6319 = vmul.f32 %v6318, 1.442695
        %v6320 = vpow.pop %v6319
        %v6321 = vadd.f32 %v6320, 1.0
        %v6322 = vrcp.pop %v6321
        %6324 = vrot.lane.b32.xlu0 %v6314, 96
        %v6325 = vpop.permute.xlu0 %6324
        %v6327 = vmul.f32 %v6322, %v6325
        %6329 = vrot.lane.b32.xlu0 %v6327, 32
        %v6330 = vpop.permute.xlu0 %6329
        %v6332 = vadd.f32 %v6241, %v6330
        %v6333 = vtanh.pop %v6332
        %v6334 = vsub.f32 1.0, %v6322
        %6336 = vrot.lane.b32.xlu0 %v6333, 112
        %v6337 = vpop.permute.xlu0 %6336
        %v6339 = vmul.f32 %v6334, %v6337
        %v6340 = vmul.f32 %v6322, %v6230
        %v6341 = vadd.f32 %v6339, %v6340
        %6343 = vrot.lane.b32.xlu0 %v6341, 112
        %v6344 = vpop.permute.xlu0 %6343
        %6346 = vst.msk [vmem:[#allocation5 + $0xa] sm:$0x1] %vm3320, %v6344
        %6347 = vst.msk [vmem:[#allocation6 + $0x4] sm:$0x2] %vm3322, %v6344
        %6349 = vrot.lane.b32.xlu0 %v5452, 80
        %v6350 = vpop.permute.xlu0 %6349
        %v6352 = vsel %vm2037, %v5454, %v6350
        %v6353 = vsel %vm3332, %v6344, %v6341
        %v6354 = vmul.f32 %v6353, %v3113
        %v6356 = vsel %vm468, %v6354, 0
        %6358 = vmatprep.subr.mxu0 0.0
        %6359 = vmatpush1.msra.mxu0 0.0
        %6360 = vmatprep.subr.mxu0 0.0
        %6361 = vmatpush1.msra.mxu0 0.0
        %6362 = vmatprep.subr.mxu0 0.0
        %6363 = vmatpush1.msra.mxu0 0.0
        %6364 = vmatprep.subr.mxu0 0.0
        %6365 = vmatpush1.msra.mxu0 0.0
        %6366 = vmatprep.subr.mxu0 0.0
        %6367 = vmatpush1.msra.mxu0 0.0
        %6368 = vmatprep.subr.mxu0 0.0
        %6369 = vmatpush1.msra.mxu0 0.0
        %6370 = vmatprep.subr.mxu0 0.0
        %6371 = vmatpush1.msra.mxu0 0.0
        %6372 = vmatprep.subr.mxu0 0.0
        %6373 = vmatpush1.msra.mxu0 0.0
        %6374 = vmatprep.subr.mxu0 0.0
        %6375 = vmatpush1.msra.mxu0 0.0
        %6376 = vmatprep.subr.mxu0 0.0
        %6377 = vmatpush1.msra.mxu0 0.0
        %6378 = vmatprep.subr.mxu0 0.0
        %6379 = vmatpush1.msra.mxu0 0.0
        %6380 = vmatprep.subr.mxu0 0.0
        %6381 = vmatpush1.msra.mxu0 0.0
        %6382 = vmatprep.subr.mxu0 0.0
        %6383 = vmatpush1.msra.mxu0 %v5115
        %6384 = vmatprep.subr.mxu0 0.0
        %6385 = vmatpush1.msra.mxu0 %v5114
        %6386 = vmatprep.subr.mxu0 0.0
        %6387 = vmatpush1.msra.mxu0 %v5113
        %6388 = vmatprep.subr.mxu0 0.0
        %6389 = vmatpush1.msra.mxu0 %v5112
        %6390 = vmatprep.subr.mxu0 0.0
        %6391 = vmatpush2.msra.mxu0 0.0
        %6392 = vmatprep.subr.mxu0 0.0
        %6393 = vmatpush2.msra.mxu0 0.0
        %6394 = vmatprep.subr.mxu0 0.0
        %6395 = vmatpush2.msra.mxu0 0.0
        %6396 = vmatprep.subr.mxu0 0.0
        %6397 = vmatpush2.msra.mxu0 0.0
        %6398 = vmatprep.subr.mxu0 0.0
        %6399 = vmatpush2.msra.mxu0 0.0
        %6400 = vmatprep.subr.mxu0 0.0
        %6401 = vmatpush2.msra.mxu0 0.0
        %6402 = vmatprep.subr.mxu0 0.0
        %6403 = vmatpush2.msra.mxu0 0.0
        %6404 = vmatprep.subr.mxu0 0.0
        %6405 = vmatpush2.msra.mxu0 0.0
        %6406 = vmatprep.subr.mxu0 0.0
        %6407 = vmatpush2.msra.mxu0 0.0
        %6408 = vmatprep.subr.mxu0 0.0
        %6409 = vmatpush2.msra.mxu0 0.0
        %6410 = vmatprep.subr.mxu0 0.0
        %6411 = vmatpush2.msra.mxu0 0.0
        %6412 = vmatprep.subr.mxu0 0.0
        %6413 = vmatpush2.msra.mxu0 0.0
        %6414 = vmatprep.subr.mxu0 0.0
        %6415 = vmatpush2.msra.mxu0 0.0
        %6416 = vmatprep.subr.mxu0 0.0
        %6417 = vmatpush2.msra.mxu0 0.0
        %6418 = vmatprep.subr.mxu0 0.0
        %6419 = vmatpush2.msra.mxu0 0.0
        %6420 = vmatprep.subr.mxu0 0.0
        %6421 = vmatpush2.msra.mxu0 0.0
        %6422 = vmatprep.mubr.f32.mxu0 0.0
        %6423 = vmatmul.mubr.f32.gmra.mxu0 %v6356
        %v6424 = vpop.f32.mrf.mxu0
        %v6425 = vadd.f32 %v5117, %v6424
        %v6426 = vpop.f32.mrf.mxu0
        %6427 = vdwg.mxu0
        %v6428 = vadd.f32 %v6352, %v6425
        %v6429 = vsub.f32 0.0, %v6428
        %v6430 = vmul.f32 %v6429, 1.442695
        %v6431 = vpow.pop %v6430
        %v6432 = vadd.f32 %v6431, 1.0
        %v6433 = vrcp.pop %v6432
        %6435 = vrot.lane.b32.xlu0 %v6425, 96
        %v6436 = vpop.permute.xlu0 %6435
        %v6438 = vmul.f32 %v6433, %v6436
        %6440 = vrot.lane.b32.xlu0 %v6438, 32
        %v6441 = vpop.permute.xlu0 %6440
        %v6443 = vadd.f32 %v6352, %v6441
        %v6444 = vtanh.pop %v6443
        %v6445 = vsub.f32 1.0, %v6433
        %6447 = vrot.lane.b32.xlu0 %v6444, 112
        %v6448 = vpop.permute.xlu0 %6447
        %v6450 = vmul.f32 %v6445, %v6448
        %v6451 = vmul.f32 %v6433, %v6341
        %v6452 = vadd.f32 %v6450, %v6451
        %6454 = vrot.lane.b32.xlu0 %v6452, 112
        %v6455 = vpop.permute.xlu0 %6454
        %6457 = vst.msk [vmem:[#allocation5 + $0xb] sm:$0x1] %vm3320, %v6455
        %6458 = vst.msk [vmem:[#allocation6 + $0x3] sm:$0x2] %vm3322, %v6455
        %6460 = vrot.lane.b32.xlu0 %v5339, 80
        %v6461 = vpop.permute.xlu0 %6460
        %v6463 = vsel %vm2037, %v5341, %v6461
        %v6464 = vsel %vm3332, %v6455, %v6452
        %v6465 = vmul.f32 %v6464, %v3113
        %v6467 = vsel %vm468, %v6465, 0
        %6469 = vmatprep.subr.mxu0 0.0
        %6470 = vmatpush1.msra.mxu0 0.0
        %6471 = vmatprep.subr.mxu0 0.0
        %6472 = vmatpush1.msra.mxu0 0.0
        %6473 = vmatprep.subr.mxu0 0.0
        %6474 = vmatpush1.msra.mxu0 0.0
        %6475 = vmatprep.subr.mxu0 0.0
        %6476 = vmatpush1.msra.mxu0 0.0
        %6477 = vmatprep.subr.mxu0 0.0
        %6478 = vmatpush1.msra.mxu0 0.0
        %6479 = vmatprep.subr.mxu0 0.0
        %6480 = vmatpush1.msra.mxu0 0.0
        %6481 = vmatprep.subr.mxu0 0.0
        %6482 = vmatpush1.msra.mxu0 0.0
        %6483 = vmatprep.subr.mxu0 0.0
        %6484 = vmatpush1.msra.mxu0 0.0
        %6485 = vmatprep.subr.mxu0 0.0
        %6486 = vmatpush1.msra.mxu0 0.0
        %6487 = vmatprep.subr.mxu0 0.0
        %6488 = vmatpush1.msra.mxu0 0.0
        %6489 = vmatprep.subr.mxu0 0.0
        %6490 = vmatpush1.msra.mxu0 0.0
        %6491 = vmatprep.subr.mxu0 0.0
        %6492 = vmatpush1.msra.mxu0 0.0
        %6493 = vmatprep.subr.mxu0 0.0
        %6494 = vmatpush1.msra.mxu0 %v5115
        %6495 = vmatprep.subr.mxu0 0.0
        %6496 = vmatpush1.msra.mxu0 %v5114
        %6497 = vmatprep.subr.mxu0 0.0
        %6498 = vmatpush1.msra.mxu0 %v5113
        %6499 = vmatprep.subr.mxu0 0.0
        %6500 = vmatpush1.msra.mxu0 %v5112
        %6501 = vmatprep.subr.mxu0 0.0
        %6502 = vmatpush2.msra.mxu0 0.0
        %6503 = vmatprep.subr.mxu0 0.0
        %6504 = vmatpush2.msra.mxu0 0.0
        %6505 = vmatprep.subr.mxu0 0.0
        %6506 = vmatpush2.msra.mxu0 0.0
        %6507 = vmatprep.subr.mxu0 0.0
        %6508 = vmatpush2.msra.mxu0 0.0
        %6509 = vmatprep.subr.mxu0 0.0
        %6510 = vmatpush2.msra.mxu0 0.0
        %6511 = vmatprep.subr.mxu0 0.0
        %6512 = vmatpush2.msra.mxu0 0.0
        %6513 = vmatprep.subr.mxu0 0.0
        %6514 = vmatpush2.msra.mxu0 0.0
        %6515 = vmatprep.subr.mxu0 0.0
        %6516 = vmatpush2.msra.mxu0 0.0
        %6517 = vmatprep.subr.mxu0 0.0
        %6518 = vmatpush2.msra.mxu0 0.0
        %6519 = vmatprep.subr.mxu0 0.0
        %6520 = vmatpush2.msra.mxu0 0.0
        %6521 = vmatprep.subr.mxu0 0.0
        %6522 = vmatpush2.msra.mxu0 0.0
        %6523 = vmatprep.subr.mxu0 0.0
        %6524 = vmatpush2.msra.mxu0 0.0
        %6525 = vmatprep.subr.mxu0 0.0
        %6526 = vmatpush2.msra.mxu0 0.0
        %6527 = vmatprep.subr.mxu0 0.0
        %6528 = vmatpush2.msra.mxu0 0.0
        %6529 = vmatprep.subr.mxu0 0.0
        %6530 = vmatpush2.msra.mxu0 0.0
        %6531 = vmatprep.subr.mxu0 0.0
        %6532 = vmatpush2.msra.mxu0 0.0
        %6533 = vmatprep.mubr.f32.mxu0 0.0
        %6534 = vmatmul.mubr.f32.gmra.mxu0 %v6467
        %v6535 = vpop.f32.mrf.mxu0
        %v6536 = vadd.f32 %v5117, %v6535
        %v6537 = vpop.f32.mrf.mxu0
        %6538 = vdwg.mxu0
        %v6539 = vadd.f32 %v6463, %v6536
        %v6540 = vsub.f32 0.0, %v6539
        %v6541 = vmul.f32 %v6540, 1.442695
        %v6542 = vpow.pop %v6541
        %v6543 = vadd.f32 %v6542, 1.0
        %v6544 = vrcp.pop %v6543
        %6546 = vrot.lane.b32.xlu0 %v6536, 96
        %v6547 = vpop.permute.xlu0 %6546
        %v6549 = vmul.f32 %v6544, %v6547
        %6551 = vrot.lane.b32.xlu0 %v6549, 32
        %v6552 = vpop.permute.xlu0 %6551
        %v6554 = vadd.f32 %v6463, %v6552
        %v6555 = vtanh.pop %v6554
        %v6556 = vsub.f32 1.0, %v6544
        %6558 = vrot.lane.b32.xlu0 %v6555, 112
        %v6559 = vpop.permute.xlu0 %6558
        %v6561 = vmul.f32 %v6556, %v6559
        %v6562 = vmul.f32 %v6544, %v6452
        %v6563 = vadd.f32 %v6561, %v6562
        %6565 = vrot.lane.b32.xlu0 %v6563, 112
        %v6566 = vpop.permute.xlu0 %6565
        %6568 = vst.msk [vmem:[#allocation5 + $0xc] sm:$0x1] %vm3320, %v6566
        %6569 = vst.msk [vmem:[#allocation6 + $0x2] sm:$0x2] %vm3322, %v6566
        %6571 = vrot.lane.b32.xlu0 %v5226, 80
        %v6572 = vpop.permute.xlu0 %6571
        %v6574 = vsel %vm2037, %v5228, %v6572
        %v6575 = vsel %vm3332, %v6566, %v6563
        %v6576 = vmul.f32 %v6575, %v3113
        %v6578 = vsel %vm468, %v6576, 0
        %6580 = vmatprep.subr.mxu0 0.0
        %6581 = vmatpush1.msra.mxu0 0.0
        %6582 = vmatprep.subr.mxu0 0.0
        %6583 = vmatpush1.msra.mxu0 0.0
        %6584 = vmatprep.subr.mxu0 0.0
        %6585 = vmatpush1.msra.mxu0 0.0
        %6586 = vmatprep.subr.mxu0 0.0
        %6587 = vmatpush1.msra.mxu0 0.0
        %6588 = vmatprep.subr.mxu0 0.0
        %6589 = vmatpush1.msra.mxu0 0.0
        %6590 = vmatprep.subr.mxu0 0.0
        %6591 = vmatpush1.msra.mxu0 0.0
        %6592 = vmatprep.subr.mxu0 0.0
        %6593 = vmatpush1.msra.mxu0 0.0
        %6594 = vmatprep.subr.mxu0 0.0
        %6595 = vmatpush1.msra.mxu0 0.0
        %6596 = vmatprep.subr.mxu0 0.0
        %6597 = vmatpush1.msra.mxu0 0.0
        %6598 = vmatprep.subr.mxu0 0.0
        %6599 = vmatpush1.msra.mxu0 0.0
        %6600 = vmatprep.subr.mxu0 0.0
        %6601 = vmatpush1.msra.mxu0 0.0
        %6602 = vmatprep.subr.mxu0 0.0
        %6603 = vmatpush1.msra.mxu0 0.0
        %6604 = vmatprep.subr.mxu0 0.0
        %6605 = vmatpush1.msra.mxu0 %v5115
        %6606 = vmatprep.subr.mxu0 0.0
        %6607 = vmatpush1.msra.mxu0 %v5114
        %6608 = vmatprep.subr.mxu0 0.0
        %6609 = vmatpush1.msra.mxu0 %v5113
        %6610 = vmatprep.subr.mxu0 0.0
        %6611 = vmatpush1.msra.mxu0 %v5112
        %6612 = vmatprep.subr.mxu0 0.0
        %6613 = vmatpush2.msra.mxu0 0.0
        %6614 = vmatprep.subr.mxu0 0.0
        %6615 = vmatpush2.msra.mxu0 0.0
        %6616 = vmatprep.subr.mxu0 0.0
        %6617 = vmatpush2.msra.mxu0 0.0
        %6618 = vmatprep.subr.mxu0 0.0
        %6619 = vmatpush2.msra.mxu0 0.0
        %6620 = vmatprep.subr.mxu0 0.0
        %6621 = vmatpush2.msra.mxu0 0.0
        %6622 = vmatprep.subr.mxu0 0.0
        %6623 = vmatpush2.msra.mxu0 0.0
        %6624 = vmatprep.subr.mxu0 0.0
        %6625 = vmatpush2.msra.mxu0 0.0
        %6626 = vmatprep.subr.mxu0 0.0
        %6627 = vmatpush2.msra.mxu0 0.0
        %6628 = vmatprep.subr.mxu0 0.0
        %6629 = vmatpush2.msra.mxu0 0.0
        %6630 = vmatprep.subr.mxu0 0.0
        %6631 = vmatpush2.msra.mxu0 0.0
        %6632 = vmatprep.subr.mxu0 0.0
        %6633 = vmatpush2.msra.mxu0 0.0
        %6634 = vmatprep.subr.mxu0 0.0
        %6635 = vmatpush2.msra.mxu0 0.0
        %6636 = vmatprep.subr.mxu0 0.0
        %6637 = vmatpush2.msra.mxu0 0.0
        %6638 = vmatprep.subr.mxu0 0.0
        %6639 = vmatpush2.msra.mxu0 0.0
        %6640 = vmatprep.subr.mxu0 0.0
        %6641 = vmatpush2.msra.mxu0 0.0
        %6642 = vmatprep.subr.mxu0 0.0
        %6643 = vmatpush2.msra.mxu0 0.0
        %6644 = vmatprep.mubr.f32.mxu0 0.0
        %6645 = vmatmul.mubr.f32.gmra.mxu0 %v6578
        %v6646 = vpop.f32.mrf.mxu0
        %v6647 = vadd.f32 %v5117, %v6646
        %v6648 = vpop.f32.mrf.mxu0
        %6649 = vdwg.mxu0
        %v6650 = vadd.f32 %v6574, %v6647
        %v6651 = vsub.f32 0.0, %v6650
        %v6652 = vmul.f32 %v6651, 1.442695
        %v6653 = vpow.pop %v6652
        %v6654 = vadd.f32 %v6653, 1.0
        %v6655 = vrcp.pop %v6654
        %6657 = vrot.lane.b32.xlu0 %v6647, 96
        %v6658 = vpop.permute.xlu0 %6657
        %v6660 = vmul.f32 %v6655, %v6658
        %6662 = vrot.lane.b32.xlu0 %v6660, 32
        %v6663 = vpop.permute.xlu0 %6662
        %v6665 = vadd.f32 %v6574, %v6663
        %v6666 = vtanh.pop %v6665
        %v6667 = vsub.f32 1.0, %v6655
        %6669 = vrot.lane.b32.xlu0 %v6666, 112
        %v6670 = vpop.permute.xlu0 %6669
        %v6672 = vmul.f32 %v6667, %v6670
        %v6673 = vmul.f32 %v6655, %v6563
        %v6674 = vadd.f32 %v6672, %v6673
        %6676 = vrot.lane.b32.xlu0 %v6674, 112
        %v6677 = vpop.permute.xlu0 %6676
        %6679 = vst.msk [vmem:[#allocation5 + $0xd] sm:$0x1] %vm3320, %v6677
        %6680 = vst.msk [vmem:[#allocation6 + $0x1] sm:$0x2] %vm3322, %v6677
        %6682 = vrot.lane.b32.xlu0 %v5103, 80
        %v6683 = vpop.permute.xlu0 %6682
        %v6685 = vsel %vm2037, %v5119, %v6683
        %v6686 = vsel %vm3332, %v6677, %v6674
        %v6687 = vmul.f32 %v6686, %v3113
        %v6689 = vsel %vm468, %v6687, 0
        %6691 = vmatprep.subr.mxu0 0.0
        %6692 = vmatpush1.msra.mxu0 0.0
        %6693 = vmatprep.subr.mxu0 0.0
        %6694 = vmatpush1.msra.mxu0 0.0
        %6695 = vmatprep.subr.mxu0 0.0
        %6696 = vmatpush1.msra.mxu0 0.0
        %6697 = vmatprep.subr.mxu0 0.0
        %6698 = vmatpush1.msra.mxu0 0.0
        %6699 = vmatprep.subr.mxu0 0.0
        %6700 = vmatpush1.msra.mxu0 0.0
        %6701 = vmatprep.subr.mxu0 0.0
        %6702 = vmatpush1.msra.mxu0 0.0
        %6703 = vmatprep.subr.mxu0 0.0
        %6704 = vmatpush1.msra.mxu0 0.0
        %6705 = vmatprep.subr.mxu0 0.0
        %6706 = vmatpush1.msra.mxu0 0.0
        %6707 = vmatprep.subr.mxu0 0.0
        %6708 = vmatpush1.msra.mxu0 0.0
        %6709 = vmatprep.subr.mxu0 0.0
        %6710 = vmatpush1.msra.mxu0 0.0
        %6711 = vmatprep.subr.mxu0 0.0
        %6712 = vmatpush1.msra.mxu0 0.0
        %6713 = vmatprep.subr.mxu0 0.0
        %6714 = vmatpush1.msra.mxu0 0.0
        %6715 = vmatprep.subr.mxu0 0.0
        %6716 = vmatpush1.msra.mxu0 %v5115
        %6717 = vmatprep.subr.mxu0 0.0
        %6718 = vmatpush1.msra.mxu0 %v5114
        %6719 = vmatprep.subr.mxu0 0.0
        %6720 = vmatpush1.msra.mxu0 %v5113
        %6721 = vmatprep.subr.mxu0 0.0
        %6722 = vmatpush1.msra.mxu0 %v5112
        %6723 = vmatprep.subr.mxu0 0.0
        %6724 = vmatpush2.msra.mxu0 0.0
        %6725 = vmatprep.subr.mxu0 0.0
        %6726 = vmatpush2.msra.mxu0 0.0
        %6727 = vmatprep.subr.mxu0 0.0
        %6728 = vmatpush2.msra.mxu0 0.0
        %6729 = vmatprep.subr.mxu0 0.0
        %6730 = vmatpush2.msra.mxu0 0.0
        %6731 = vmatprep.subr.mxu0 0.0
        %6732 = vmatpush2.msra.mxu0 0.0
        %6733 = vmatprep.subr.mxu0 0.0
        %6734 = vmatpush2.msra.mxu0 0.0
        %6735 = vmatprep.subr.mxu0 0.0
        %6736 = vmatpush2.msra.mxu0 0.0
        %6737 = vmatprep.subr.mxu0 0.0
        %6738 = vmatpush2.msra.mxu0 0.0
        %6739 = vmatprep.subr.mxu0 0.0
        %6740 = vmatpush2.msra.mxu0 0.0
        %6741 = vmatprep.subr.mxu0 0.0
        %6742 = vmatpush2.msra.mxu0 0.0
        %6743 = vmatprep.subr.mxu0 0.0
        %6744 = vmatpush2.msra.mxu0 0.0
        %6745 = vmatprep.subr.mxu0 0.0
        %6746 = vmatpush2.msra.mxu0 0.0
        %6747 = vmatprep.subr.mxu0 0.0
        %6748 = vmatpush2.msra.mxu0 0.0
        %6749 = vmatprep.subr.mxu0 0.0
        %6750 = vmatpush2.msra.mxu0 0.0
        %6751 = vmatprep.subr.mxu0 0.0
        %6752 = vmatpush2.msra.mxu0 0.0
        %6753 = vmatprep.subr.mxu0 0.0
        %6754 = vmatpush2.msra.mxu0 0.0
        %6755 = vmatprep.mubr.f32.mxu0 0.0
        %6756 = vmatmul.mubr.f32.gmra.mxu0 %v6689
        %v6757 = vpop.f32.mrf.mxu0
        %v6758 = vadd.f32 %v5117, %v6757
        %v6759 = vpop.f32.mrf.mxu0
        %6760 = vdwg.mxu0
        %v6761 = vadd.f32 %v6685, %v6758
        %v6762 = vsub.f32 0.0, %v6761
        %v6763 = vmul.f32 %v6762, 1.442695
        %v6764 = vpow.pop %v6763
        %v6765 = vadd.f32 %v6764, 1.0
        %v6766 = vrcp.pop %v6765
        %6768 = vrot.lane.b32.xlu0 %v6758, 96
        %v6769 = vpop.permute.xlu0 %6768
        %v6771 = vmul.f32 %v6766, %v6769
        %6773 = vrot.lane.b32.xlu0 %v6771, 32
        %v6774 = vpop.permute.xlu0 %6773
        %v6776 = vadd.f32 %v6685, %v6774
        %v6777 = vtanh.pop %v6776
        %v6778 = vsub.f32 1.0, %v6766
        %6780 = vrot.lane.b32.xlu0 %v6777, 112
        %v6781 = vpop.permute.xlu0 %6780
        %v6783 = vmul.f32 %v6778, %v6781
        %v6784 = vmul.f32 %v6766, %v6674
        %v6785 = vadd.f32 %v6783, %v6784
        %6787 = vrot.lane.b32.xlu0 %v6785, 112
        %v6788 = vpop.permute.xlu0 %6787
        %6790 = vst.msk [vmem:[#allocation5 + $0xe] sm:$0x1] %vm3320, %v6788
        %6791 = vst.msk [vmem:[#allocation6] sm:$0x2] %vm3322, %v6788
        %6793 = vrot.lane.b32.xlu0 %v5903, 80
        %v6794 = vpop.permute.xlu0 %6793
        %v6796 = vsel %vm2037, %v5905, %v6794
        %v6797 = vsel %vm3332, %v6788, %v6785
        %v6798 = vmul.f32 %v6797, %v3113
        %v6800 = vsel %vm468, %v6798, 0
        %6802 = vmatprep.subr.mxu0 0.0
        %6803 = vmatpush1.msra.mxu0 0.0
        %6804 = vmatprep.subr.mxu0 0.0
        %6805 = vmatpush1.msra.mxu0 0.0
        %6806 = vmatprep.subr.mxu0 0.0
        %6807 = vmatpush1.msra.mxu0 0.0
        %6808 = vmatprep.subr.mxu0 0.0
        %6809 = vmatpush1.msra.mxu0 0.0
        %6810 = vmatprep.subr.mxu0 0.0
        %6811 = vmatpush1.msra.mxu0 0.0
        %6812 = vmatprep.subr.mxu0 0.0
        %6813 = vmatpush1.msra.mxu0 0.0
        %6814 = vmatprep.subr.mxu0 0.0
        %6815 = vmatpush1.msra.mxu0 0.0
        %6816 = vmatprep.subr.mxu0 0.0
        %6817 = vmatpush1.msra.mxu0 0.0
        %6818 = vmatprep.subr.mxu0 0.0
        %6819 = vmatpush1.msra.mxu0 0.0
        %6820 = vmatprep.subr.mxu0 0.0
        %6821 = vmatpush1.msra.mxu0 0.0
        %6822 = vmatprep.subr.mxu0 0.0
        %6823 = vmatpush1.msra.mxu0 0.0
        %6824 = vmatprep.subr.mxu0 0.0
        %6825 = vmatpush1.msra.mxu0 0.0
        %6826 = vmatprep.subr.mxu0 0.0
        %6827 = vmatpush1.msra.mxu0 %v5115
        %6828 = vmatprep.subr.mxu0 0.0
        %6829 = vmatpush1.msra.mxu0 %v5114
        %6830 = vmatprep.subr.mxu0 0.0
        %6831 = vmatpush1.msra.mxu0 %v5113
        %6832 = vmatprep.subr.mxu0 0.0
        %6833 = vmatpush1.msra.mxu0 %v5112
        %6834 = vmatprep.subr.mxu0 0.0
        %6835 = vmatpush2.msra.mxu0 0.0
        %6836 = vmatprep.subr.mxu0 0.0
        %6837 = vmatpush2.msra.mxu0 0.0
        %6838 = vmatprep.subr.mxu0 0.0
        %6839 = vmatpush2.msra.mxu0 0.0
        %6840 = vmatprep.subr.mxu0 0.0
        %6841 = vmatpush2.msra.mxu0 0.0
        %6842 = vmatprep.subr.mxu0 0.0
        %6843 = vmatpush2.msra.mxu0 0.0
        %6844 = vmatprep.subr.mxu0 0.0
        %6845 = vmatpush2.msra.mxu0 0.0
        %6846 = vmatprep.subr.mxu0 0.0
        %6847 = vmatpush2.msra.mxu0 0.0
        %6848 = vmatprep.subr.mxu0 0.0
        %6849 = vmatpush2.msra.mxu0 0.0
        %6850 = vmatprep.subr.mxu0 0.0
        %6851 = vmatpush2.msra.mxu0 0.0
        %6852 = vmatprep.subr.mxu0 0.0
        %6853 = vmatpush2.msra.mxu0 0.0
        %6854 = vmatprep.subr.mxu0 0.0
        %6855 = vmatpush2.msra.mxu0 0.0
        %6856 = vmatprep.subr.mxu0 0.0
        %6857 = vmatpush2.msra.mxu0 0.0
        %6858 = vmatprep.subr.mxu0 0.0
        %6859 = vmatpush2.msra.mxu0 0.0
        %6860 = vmatprep.subr.mxu0 0.0
        %6861 = vmatpush2.msra.mxu0 0.0
        %6862 = vmatprep.subr.mxu0 0.0
        %6863 = vmatpush2.msra.mxu0 0.0
        %6864 = vmatprep.subr.mxu0 0.0
        %6865 = vmatpush2.msra.mxu0 0.0
        %6866 = vmatprep.mubr.f32.mxu0 0.0
        %6867 = vmatmul.mubr.f32.gmra.mxu0 %v6800
        %v6868 = vpop.f32.mrf.mxu0
        %v6869 = vadd.f32 %v5117, %v6868
        %v6870 = vpop.f32.mrf.mxu0
        %6871 = vdwg.mxu0
        %v6872 = vadd.f32 %v6796, %v6869
        %v6873 = vsub.f32 0.0, %v6872
        %v6874 = vmul.f32 %v6873, 1.442695
        %v6875 = vpow.pop %v6874
        %v6876 = vadd.f32 %v6875, 1.0
        %v6877 = vrcp.pop %v6876
        %6879 = vrot.lane.b32.xlu0 %v6869, 96
        %v6880 = vpop.permute.xlu0 %6879
        %v6882 = vmul.f32 %v6877, %v6880
        %6884 = vrot.lane.b32.xlu0 %v6882, 32
        %v6885 = vpop.permute.xlu0 %6884
        %v6887 = vadd.f32 %v6796, %v6885
        %v6888 = vtanh.pop %v6887
        %v6889 = vsub.f32 1.0, %v6877
        %6891 = vrot.lane.b32.xlu0 %v6888, 112
        %v6892 = vpop.permute.xlu0 %6891
        %v6894 = vmul.f32 %v6889, %v6892
        %v6895 = vmul.f32 %v6877, %v6785
        %v6896 = vadd.f32 %v6894, %v6895
        %6898 = vrot.lane.b32.xlu0 %v6896, 112
        %v6899 = vpop.permute.xlu0 %6898
        %6901 = vst.msk [vmem:[#allocation5 + $0xf] sm:$0x1] %vm3320, %v6899
        %6902 = vst.msk [vmem:[#allocation6 - $0x1] sm:$0x2] %vm3322, %v6899
        %v6903 = vld [vmem:[#allocation5] sm:$0xff]
        %v6904 = vld [vmem:[#allocation5 + $0x8] sm:$0xff]
        %v6905 = vld [vmem:[#allocation6] sm:$0xff]
        %v6906 = vld [vmem:[#allocation6 + $0x8] sm:$0xff]
        %6909 = vrot.lane.b32.xlu0 %v6905, 16
        %v6910 = vpop.permute.xlu0 %6909
        %6911 = vrot.lane.b32.xlu0 %v6906, 16
        %v6912 = vpop.permute.xlu0 %6911
        %v6915 = vsel %vm3332, %v6903, %v6910
        %v6916 = vsel %vm3332, %v6904, %v6912
        %6917 = vst.msk [vmem:[%s460] sm:$0xff] %vm468, %v6915
        %6918 = vst.msk [vmem:[%s460 + $0x8] sm:$0xff] %vm468, %v6916
        %s6919 = sand.u32 %s335, 1
        %s6920 = scalar_lea.sflag [#allocation8], %s6919
        %s6921 = sand.u32 %s335, 1
        %s6922 = smul.addr %s6921, 16
        %s6923 = scalar_lea.vmem [#allocation7], %s6922
        // Predicated region
        $region77: #{tpu_custom_call.1} parent=75 // pred_check
          %p6924 = pneg %p345
        $region78: #{tpu_custom_call.1} parent=75 // pred_check_branch
          %6926 = sbr.rel (%p6924) target = $region80
        $region79: #{tpu_custom_call.1} parent=75 // pred_region
          %s6928 = ssub.s32 256, 256
          %6929 = vsyncadd %s6920, %s6928
          %s6930 = smul.addr %s28, 2
          %s6931 = smul.addr %s6930, 128
          %s6932 = scalar_lea.hbm %s14, %s6931
          %s6933 = sshll.u32 %s6923, 4
          %s6934 = int_to_ptr.vmem [resolvable:$true] %s6933
          %6939 = dma.vmem_to_hbm [thread:$0]  %s6934, 256, %s6932, %s6920, 128, 128, 8
        $region80: #{tpu_custom_call.1} parent=75 // pred_fallthru
          _
      $region76: #{tpu_custom_call.1} parent=5 // pred_fallthru
        _
      %p6940 = scmp.le.s32.totalorder 2, %s23
      // Predicated region
      $region81: #{tpu_custom_call.1} parent=5 // pred_check
        %p6941 = pneg %p6940
      $region82: #{tpu_custom_call.1} parent=5 // pred_check_branch
        %6943 = sbr.rel (%p6941) target = $region84
      $region83: #{tpu_custom_call.1} parent=5 // pred_region
        %s6944 = ssub.s32 %s23, 2
        // Predicated region
        $region85: #{tpu_custom_call.1} parent=83 // pred_check
          %p6945 = pneg %p351
        $region86: #{tpu_custom_call.1} parent=83 // pred_check_branch
          %6947 = sbr.rel (%p6945) target = $region88
        $region87: #{tpu_custom_call.1} parent=83 // pred_region
          %s6948 = sand.u32 %s336, 1
          %s6949 = scalar_lea.sflag [#allocation8], %s6948
          %s6950 = sand.u32 %s336, 1
          %s6951 = smul.addr %s6950, 16
          %s6952 = scalar_lea.vmem [#allocation7], %s6951
          %6953 = dma.done %s6949, 256
        $region88: #{tpu_custom_call.1} parent=83 // pred_fallthru
          _
      $region84: #{tpu_custom_call.1} parent=5 // pred_fallthru
        _
    $region6: #{tpu_custom_call.1} parent=1 // loop_footer
      %s27 = sadd.s32 1, %s23
    $region7: #{tpu_custom_call.1} parent=1 // loop_footer_branch
      %22 = sbr.rel target = $region3
    $region8: #{tpu_custom_call.1} parent=1 // loop_exit
      _
    %6954 = vsyncpa [#allocation8], 1
    %s6955 = scalar_lea.sflag [#allocation8], 1
    %6956 = vsyncpa %s6955, 1

</llo_original>
